<compile_context>
chip_gen: v6e
topology: v6e:2x2x1
jax: 0.10.0
libtpu: 0.0.40
codegen_flags: <defaults>
</compile_context>

<pallas_src>
import functools

import jax
import jax.numpy as jnp
from jax.experimental import pallas as pl
from jax.experimental.pallas import tpu as pltpu


def _reward_kernel(xs_ref, xa_ref, w1s_ref, w1a_ref, b1_ref, gamma_ref,
                   beta_ref, w2_ref, out_ref, *, fast):
    # ---- Layer 1: Linear(L+A -> L, bias=True).  The torch concat is folded
    #      into two MXU matmuls against the split weight (f32 accumulate).
    w_dtype = w1s_ref.dtype
    xs = xs_ref[...].astype(w_dtype)
    xa = xa_ref[...].astype(w_dtype)
    h = jnp.dot(xs, w1s_ref[...], preferred_element_type=jnp.float32)
    h = h + jnp.dot(xa, w1a_ref[...], preferred_element_type=jnp.float32)
    h = h + b1_ref[...]                                     # (TB, L) + (1, L)

    # ---- LayerNorm over features (eps = 1e-5, elementwise affine), f32.
    mean = jnp.mean(h, axis=-1, keepdims=True)
    centered = h - mean
    var = jnp.mean(centered * centered, axis=-1, keepdims=True)
    h = centered * jax.lax.rsqrt(var + 1e-5) * gamma_ref[...] + beta_ref[...]

    # ---- Mish(h) = h * tanh(softplus(h)) with a single exp:
    #        tanh(log1p(e)) = e*(e+2) / (e*(e+2) + 2),   e = exp(h)
    #      plus a passthrough for large h (tanh(softplus(h)) -> 1).
    e = jnp.exp(jnp.minimum(h, 20.0))
    num = e * (e + 2.0)
    if fast:
        t = num * pl.reciprocal(num + 2.0, approx=True)     # EUP, off the VALU
    else:
        t = num / (num + 2.0)                               # strict f32 path
    h = jnp.where(h > 20.0, h, h * t)

    # ---- Layer 2: Linear(L -> 1, bias=False), lane-dense result.
    #      w2 is pre-replicated to (8, L); contracting both operands on the
    #      feature axis (A @ B^T form) keeps the batch on the lane axis, so the
    #      store is one dense (8, TB) block instead of TB masked (row,1) stores.
    out_ref[...] = jax.lax.dot_general(
        w2_ref[...], h, (((1,), (1,)), ((), ())),
        preferred_element_type=jnp.float32)


def _round_up(v, m):
    return (v + m - 1) // m * m


def reward_net_forward(latent_state, latent_action, params, *,
                       block_b=2048, use_bf16=False):
    """latent_state: (B, L) f32, latent_action: (B, A) f32 -> (B, 1) f32."""
    w1, b1, gamma, beta, w2 = params
    B, L = latent_state.shape
    A = latent_action.shape[-1]

    # Split / replicate the (tiny) parameters once; no activation-sized wrapper op.
    w1s, w1a = w1[:L], w1[L:]
    if use_bf16:
        w1s = w1s.astype(jnp.bfloat16)
        w1a = w1a.astype(jnp.bfloat16)
    w2_rep = jnp.broadcast_to(w2.reshape(1, L), (8, L))

    # Batch tile: big enough to amortize the ~0.35us/step overhead, 128-aligned
    # whenever there is more than one tile (unmasked lane-dense output stores),
    # and split in two for large single-tile batches so both v7x TCs get work.
    tb = min(block_b, _round_up(B, 8))
    if B > tb:
        tb = _round_up(tb, 128)
    elif B >= 1024:
        tb = _round_up(pl.cdiv(B, 2), 128)
    grid_b = pl.cdiv(B, tb)

    resident = lambda shape: pl.BlockSpec(shape, lambda i: (0, 0))

    out = pl.pallas_call(
        functools.partial(_reward_kernel, fast=use_bf16),
        out_shape=jax.ShapeDtypeStruct((8, grid_b * tb), jnp.float32),
        grid=(grid_b,),
        in_specs=[
            pl.BlockSpec((tb, L), lambda i: (i, 0)),   # latent_state tiles
            pl.BlockSpec((tb, A), lambda i: (i, 0)),   # latent_action tiles
            resident((L, L)),                          # W1[:L]  [in, out]
            resident((A, L)),                          # W1[L:]  [in, out]
            resident((1, L)),                          # b1
            resident((1, L)),                          # layernorm gamma
            resident((1, L)),                          # layernorm beta
            resident((8, L)),                          # W2 replicated on sublanes
        ],
        out_specs=pl.BlockSpec((8, tb), lambda i: (0, i)),
        compiler_params=pltpu.CompilerParams(
            dimension_semantics=("parallel",),
            vmem_limit_bytes=32 * 1024 * 1024,
        ),
    )(latent_state, latent_action, w1s, w1a, b1, gamma, beta, w2_rep)

    # TODO(synk): consumers that can take a lane-dense (B,) reward should use
    # out[0, :B] directly; reshaping to (B, 1) only to match the nn.Module
    # output re-materializes a lane-padded array outside the kernel.
    return out[0, :B].reshape(B, 1)


def init_params(key, latent_size, action_size):
    """Deterministic synthetic parameters (shapes match the nn.Module)."""
    k1, k2, k3 = jax.random.split(key, 3)
    d_in = latent_size + action_size
    scale1 = 1.0 / jnp.sqrt(jnp.float32(d_in))
    w1 = jax.random.uniform(k1, (d_in, latent_size), jnp.float32, -scale1, scale1)
    b1 = jax.random.uniform(k2, (1, latent_size), jnp.float32, -scale1, scale1)
    gamma = jnp.ones((1, latent_size), jnp.float32)
    beta = jnp.zeros((1, latent_size), jnp.float32)
    scale2 = 1.0 / jnp.sqrt(jnp.float32(latent_size))
    w2 = jax.random.uniform(k3, (1, latent_size), jnp.float32, -scale2, scale2)
    return (w1, b1, gamma, beta, w2)


def _reference_forward(latent_state, latent_action, params):
    """Pure-JAX reference mirroring the PyTorch forward."""
    w1, b1, gamma, beta, w2 = params
    x = jnp.concatenate([latent_state, latent_action], axis=-1)
    h = x @ w1 + b1
    mean = jnp.mean(h, axis=-1, keepdims=True)
    var = jnp.mean((h - mean) ** 2, axis=-1, keepdims=True)
    h = (h - mean) / jnp.sqrt(var + 1e-5) * gamma + beta
    h = h * jnp.tanh(jax.nn.softplus(h))                   # Mish
    return h @ w2.T                                        # (B, 1)


if __name__ == "__main__":
    # Make the XLA reference matmuls full-f32 so the comparison is meaningful.
    jax.config.update("jax_default_matmul_precision", "highest")

    latent_size = 32
    action_size = 8
    batch = 300          # deliberately NOT a multiple of 8 or of any batch tile

    key = jax.random.PRNGKey(0)
    k_state, k_action, k_params = jax.random.split(key, 3)
    latent_state = jax.random.normal(k_state, (batch, latent_size), jnp.float32)
    latent_action = jax.random.normal(k_action, (batch, action_size), jnp.float32)
    params = init_params(k_params, latent_size, action_size)

    ref = _reference_forward(latent_state, latent_action, params)

    # 1) Strict f32 path, single tile (default block_b).
    out = jax.block_until_ready(
        reward_net_forward(latent_state, latent_action, params))
    assert out.shape == (batch, 1)
    assert bool(jnp.all(jnp.isfinite(out)))
    assert jnp.allclose(out, ref, atol=1e-4, rtol=1e-4)

    # 2) Strict f32 path, multi-tile grid (exercises partial tail blocks and the
    #    lane-dense multi-block output).
    out_mt = jax.block_until_ready(
        reward_net_forward(latent_state, latent_action, params, block_b=128))
    assert jnp.allclose(out_mt, ref, atol=1e-4, rtol=1e-4)

    # 3) Fast path: bf16 MXU operands + approx reciprocal in the Mish.
    out_fast = jax.block_until_ready(
        reward_net_forward(latent_state, latent_action, params, use_bf16=True))
    assert jnp.allclose(out_fast, ref, atol=5e-2, rtol=5e-2)

    print("KERNEL_OK")
</pallas_src>

<mosaic_0001>
module attributes {stable_mosaic.version = 11 : i64} {
  func.func @_reward_kernel(%arg0: i32, %arg1: memref<304x32xf32, #tpu.memory_space<vmem>>, %arg2: memref<304x8xf32, #tpu.memory_space<vmem>>, %arg3: memref<32x32xf32, #tpu.memory_space<vmem>>, %arg4: memref<8x32xf32, #tpu.memory_space<vmem>>, %arg5: memref<1x32xf32, #tpu.memory_space<vmem>>, %arg6: memref<1x32xf32, #tpu.memory_space<vmem>>, %arg7: memref<1x32xf32, #tpu.memory_space<vmem>>, %arg8: memref<8x32xf32, #tpu.memory_space<vmem>>, %arg9: memref<8x304xf32, #tpu.memory_space<vmem>>) attributes {dimension_semantics = [#tpu.dimension_semantics<parallel>], iteration_bounds = array<i64: 1>, scalar_prefetch = 0 : i64, scratch_operands = 0 : i64, tpu.core_type = #tpu.core_type<tc>, window_params = [{transform_indices = @transform_0, window_bounds = array<i64: 304, 32>}, {transform_indices = @transform_1, window_bounds = array<i64: 304, 8>}, {pipeline_mode = #tpu.pipeline_mode<synchronous>, transform_indices = @transform_2, window_bounds = array<i64: 32, 32>}, {pipeline_mode = #tpu.pipeline_mode<synchronous>, transform_indices = @transform_3, window_bounds = array<i64: 8, 32>}, {pipeline_mode = #tpu.pipeline_mode<synchronous>, transform_indices = @transform_4, window_bounds = array<i64: 1, 32>}, {pipeline_mode = #tpu.pipeline_mode<synchronous>, transform_indices = @transform_5, window_bounds = array<i64: 1, 32>}, {pipeline_mode = #tpu.pipeline_mode<synchronous>, transform_indices = @transform_6, window_bounds = array<i64: 1, 32>}, {pipeline_mode = #tpu.pipeline_mode<synchronous>, transform_indices = @transform_7, window_bounds = array<i64: 8, 32>}, {transform_indices = @transform_8, window_bounds = array<i64: 8, 304>}]} {
    %c0 = arith.constant 0 : index
    %c0_0 = arith.constant 0 : index
    %0 = vector.load %arg1[%c0, %c0_0] : memref<304x32xf32, #tpu.memory_space<vmem>>, vector<304x32xf32>
    %c0_1 = arith.constant 0 : index
    %c0_2 = arith.constant 0 : index
    %1 = vector.load %arg2[%c0_1, %c0_2] : memref<304x8xf32, #tpu.memory_space<vmem>>, vector<304x8xf32>
    %c0_3 = arith.constant 0 : index
    %c0_4 = arith.constant 0 : index
    %2 = vector.load %arg3[%c0_3, %c0_4] : memref<32x32xf32, #tpu.memory_space<vmem>>, vector<32x32xf32>
    %cst = arith.constant dense<0.000000e+00> : vector<304x32xf32>
    %3 = tpu.matmul %0, %2, %cst {dimension_numbers = #tpu.dot_dimension_numbers<[1], [0], [0], [1], [0, 0, 1, 1], [], []>, precision = #tpu.contract_precision<fp32>} : vector<304x32xf32>, vector<32x32xf32>, vector<304x32xf32> -> vector<304x32xf32>
    %c0_5 = arith.constant 0 : index
    %c0_6 = arith.constant 0 : index
    %4 = vector.load %arg4[%c0_5, %c0_6] : memref<8x32xf32, #tpu.memory_space<vmem>>, vector<8x32xf32>
    %cst_7 = arith.constant dense<0.000000e+00> : vector<304x32xf32>
    %5 = tpu.matmul %1, %4, %cst_7 {dimension_numbers = #tpu.dot_dimension_numbers<[1], [0], [0], [1], [0, 0, 1, 1], [], []>, precision = #tpu.contract_precision<fp32>} : vector<304x8xf32>, vector<8x32xf32>, vector<304x32xf32> -> vector<304x32xf32>
    %6 = arith.addf %3, %5 : vector<304x32xf32>
    %c0_8 = arith.constant 0 : index
    %c0_9 = arith.constant 0 : index
    %7 = vector.load %arg5[%c0_8, %c0_9] : memref<1x32xf32, #tpu.memory_space<vmem>>, vector<1x32xf32>
    %8 = vector.broadcast %7 : vector<1x32xf32> to vector<304x32xf32>
    %9 = arith.addf %6, %8 : vector<304x32xf32>
    %cst_10 = arith.constant dense<0.000000e+00> : vector<304xf32>
    %10 = vector.multi_reduction <add>, %9, %cst_10 [1] : vector<304x32xf32> to vector<304xf32>
    %11 = vector.shape_cast %10 : vector<304xf32> to vector<304x1xf32>
    %cst_11 = arith.constant 3.200000e+01 : f32
    %12 = vector.broadcast %cst_11 : f32 to vector<304x1xf32>
    %13 = arith.divf %11, %12 : vector<304x1xf32>
    %14 = vector.broadcast %13 : vector<304x1xf32> to vector<304x32xf32>
    %15 = arith.subf %9, %14 : vector<304x32xf32>
    %16 = arith.mulf %15, %15 : vector<304x32xf32>
    %cst_12 = arith.constant dense<0.000000e+00> : vector<304xf32>
    %17 = vector.multi_reduction <add>, %16, %cst_12 [1] : vector<304x32xf32> to vector<304xf32>
    %18 = vector.shape_cast %17 : vector<304xf32> to vector<304x1xf32>
    %cst_13 = arith.constant 3.200000e+01 : f32
    %19 = vector.broadcast %cst_13 : f32 to vector<304x1xf32>
    %20 = arith.divf %18, %19 : vector<304x1xf32>
    %cst_14 = arith.constant 9.99999974E-6 : f32
    %21 = vector.broadcast %cst_14 : f32 to vector<304x1xf32>
    %22 = arith.addf %20, %21 : vector<304x1xf32>
    %23 = math.rsqrt %22 : vector<304x1xf32>
    %24 = vector.broadcast %23 : vector<304x1xf32> to vector<304x32xf32>
    %25 = arith.mulf %15, %24 : vector<304x32xf32>
    %c0_15 = arith.constant 0 : index
    %c0_16 = arith.constant 0 : index
    %26 = vector.load %arg6[%c0_15, %c0_16] : memref<1x32xf32, #tpu.memory_space<vmem>>, vector<1x32xf32>
    %27 = vector.broadcast %26 : vector<1x32xf32> to vector<304x32xf32>
    %28 = arith.mulf %25, %27 : vector<304x32xf32>
    %c0_17 = arith.constant 0 : index
    %c0_18 = arith.constant 0 : index
    %29 = vector.load %arg7[%c0_17, %c0_18] : memref<1x32xf32, #tpu.memory_space<vmem>>, vector<1x32xf32>
    %30 = vector.broadcast %29 : vector<1x32xf32> to vector<304x32xf32>
    %31 = arith.addf %28, %30 : vector<304x32xf32>
    %cst_19 = arith.constant 2.000000e+01 : f32
    %32 = vector.broadcast %cst_19 : f32 to vector<304x32xf32>
    %33 = arith.minimumf %31, %32 : vector<304x32xf32>
    %34 = math.exp %33 : vector<304x32xf32>
    %cst_20 = arith.constant 2.000000e+00 : f32
    %35 = vector.broadcast %cst_20 : f32 to vector<304x32xf32>
    %36 = arith.addf %34, %35 : vector<304x32xf32>
    %37 = arith.mulf %34, %36 : vector<304x32xf32>
    %cst_21 = arith.constant 2.000000e+00 : f32
    %38 = vector.broadcast %cst_21 : f32 to vector<304x32xf32>
    %39 = arith.addf %37, %38 : vector<304x32xf32>
    %40 = arith.divf %37, %39 : vector<304x32xf32>
    %cst_22 = arith.constant 2.000000e+01 : f32
    %41 = vector.broadcast %cst_22 : f32 to vector<304x32xf32>
    %42 = arith.cmpf ogt, %31, %41 : vector<304x32xf32>
    %43 = arith.mulf %31, %40 : vector<304x32xf32>
    %44 = arith.select %42, %31, %43 : vector<304x32xi1>, vector<304x32xf32>
    %c0_23 = arith.constant 0 : index
    %c0_24 = arith.constant 0 : index
    %45 = vector.load %arg8[%c0_23, %c0_24] : memref<8x32xf32, #tpu.memory_space<vmem>>, vector<8x32xf32>
    %cst_25 = arith.constant dense<0.000000e+00> : vector<8x304xf32>
    %46 = tpu.matmul %45, %44, %cst_25 {dimension_numbers = #tpu.dot_dimension_numbers<[1], [1], [0], [0], [0, 0, 1, 0], [], []>, precision = #tpu.contract_precision<fp32>} : vector<8x32xf32>, vector<304x32xf32>, vector<8x304xf32> -> vector<8x304xf32>
    %c0_26 = arith.constant 0 : index
    %c0_27 = arith.constant 0 : index
    %47 = vector.load %arg9[%c0_26, %c0_27] : memref<8x304xf32, #tpu.memory_space<vmem>>, vector<8x304xf32>
    tpu.vector_store %arg9[%c0_26, %c0_27], %46 {strides = array<i32>} : memref<8x304xf32, #tpu.memory_space<vmem>>, vector<8x304xf32>,
    return
  }
  func.func @transform_0(%arg0: i32) -> (i32, i32) {
    %c0_i32 = arith.constant 0 : i32
    %c0_i32_0 = arith.constant 0 : i32
    return %arg0, %c0_i32 : i32, i32
  }
  func.func @transform_1(%arg0: i32) -> (i32, i32) {
    %c0_i32 = arith.constant 0 : i32
    %c0_i32_0 = arith.constant 0 : i32
    return %arg0, %c0_i32 : i32, i32
  }
  func.func @transform_2(%arg0: i32) -> (i32, i32) {
    %c0_i32 = arith.constant 0 : i32
    %c0_i32_0 = arith.constant 0 : i32
    %c0_i32_1 = arith.constant 0 : i32
    return %c0_i32, %c0_i32_0 : i32, i32
  }
  func.func @transform_3(%arg0: i32) -> (i32, i32) {
    %c0_i32 = arith.constant 0 : i32
    %c0_i32_0 = arith.constant 0 : i32
    %c0_i32_1 = arith.constant 0 : i32
    return %c0_i32, %c0_i32_0 : i32, i32
  }
  func.func @transform_4(%arg0: i32) -> (i32, i32) {
    %c0_i32 = arith.constant 0 : i32
    %c0_i32_0 = arith.constant 0 : i32
    %c0_i32_1 = arith.constant 0 : i32
    return %c0_i32, %c0_i32_0 : i32, i32
  }
  func.func @transform_5(%arg0: i32) -> (i32, i32) {
    %c0_i32 = arith.constant 0 : i32
    %c0_i32_0 = arith.constant 0 : i32
    %c0_i32_1 = arith.constant 0 : i32
    return %c0_i32, %c0_i32_0 : i32, i32
  }
  func.func @transform_6(%arg0: i32) -> (i32, i32) {
    %c0_i32 = arith.constant 0 : i32
    %c0_i32_0 = arith.constant 0 : i32
    %c0_i32_1 = arith.constant 0 : i32
    return %c0_i32, %c0_i32_0 : i32, i32
  }
  func.func @transform_7(%arg0: i32) -> (i32, i32) {
    %c0_i32 = arith.constant 0 : i32
    %c0_i32_0 = arith.constant 0 : i32
    %c0_i32_1 = arith.constant 0 : i32
    return %c0_i32, %c0_i32_0 : i32, i32
  }
  func.func @transform_8(%arg0: i32) -> (i32, i32) {
    %c0_i32 = arith.constant 0 : i32
    %c0_i32_0 = arith.constant 0 : i32
    return %c0_i32, %arg0 : i32, i32
  }
}

</mosaic_0001>

<llo_original>
// kernel: tpu_custom_call.1
$region0: #{tpu_custom_call.1}
  #allocation0 [shape = 'u32[]', space=smem, size = 0x4, offset = 0x4, fixed_abs, tag = 'smem constant byte address 0x4 - core index']
  #allocation1 [shape = 'u32[144,128]{1,0:T(1,128)}', space=vmem, size = 0x12000, scoped, tag = 'internal scratch']
  %s0 = inlined_call_operand.vmem [shape: f32[300,32], index: 0, kind: input, shape index: {}]
  %s1 = inlined_call_operand.vmem [shape: f32[300,8], index: 1, kind: input, shape index: {}]
  %s2 = inlined_call_operand.vmem [shape: f32[32,32], index: 2, kind: input, shape index: {}]
  %s3 = inlined_call_operand.vmem [shape: f32[8,32], index: 3, kind: input, shape index: {}]
  %s4 = inlined_call_operand.vmem [shape: f32[1,32], index: 4, kind: input, shape index: {}]
  %s5 = inlined_call_operand.vmem [shape: f32[1,32], index: 5, kind: input, shape index: {}]
  %s6 = inlined_call_operand.vmem [shape: f32[1,32], index: 6, kind: input, shape index: {}]
  %s7 = inlined_call_operand.vmem [shape: f32[8,32], index: 7, kind: input, shape index: {}]
  %s8 = inlined_call_operand.hbm [shape: f32[8,304], index: 8, kind: output, shape index: {}]
  %s9 = sld [smem:[#allocation0]]
  $region42: #{tpu_custom_call.1} parent=0
    _
  %s11 = ssub.s32 1, %s9
  %s12 = scalar_select 0, %s11, %s9
  $region1: #{tpu_custom_call.1} parent=0
    #allocation2 [shape = 'u8[12288]{0}', space=vmem, size = 0x3000, scoped, tag = 'output window, operand 0, single buffered']
    #allocation3 [shape = 's32[1]{0}', space=sflag, size = 0x4, scoped, tag = 'scoped memory for tpu_custom_call.1']
    %13 = vsyncpa [#allocation3], 0
    // Predicated region
    $region2: #{tpu_custom_call.1} parent=1 // pred_check
      _
    $region3: #{tpu_custom_call.1} parent=1 // pred_check_branch
      %15 = sbr.rel (0) target = $region5
    $region4: #{tpu_custom_call.1} parent=1 // pred_region
      _
    $region5: #{tpu_custom_call.1} parent=1 // pred_fallthru
      _
    // Predicated region
    $region6: #{tpu_custom_call.1} parent=1 // pred_check
      _
    $region7: #{tpu_custom_call.1} parent=1 // pred_check_branch
      %17 = sbr.rel (0) target = $region9
    $region8: #{tpu_custom_call.1} parent=1 // pred_region
      _
    $region9: #{tpu_custom_call.1} parent=1 // pred_fallthru
      _
    // Predicated region
    $region10: #{tpu_custom_call.1} parent=1 // pred_check
      _
    $region11: #{tpu_custom_call.1} parent=1 // pred_check_branch
      %19 = sbr.rel (0) target = $region13
    $region12: #{tpu_custom_call.1} parent=1 // pred_region
      _
    $region13: #{tpu_custom_call.1} parent=1 // pred_fallthru
      _
    // Predicated region
    $region14: #{tpu_custom_call.1} parent=1 // pred_check
      _
    $region15: #{tpu_custom_call.1} parent=1 // pred_check_branch
      %21 = sbr.rel (0) target = $region17
    $region16: #{tpu_custom_call.1} parent=1 // pred_region
      _
    $region17: #{tpu_custom_call.1} parent=1 // pred_fallthru
      _
    // Predicated region
    $region18: #{tpu_custom_call.1} parent=1 // pred_check
      _
    $region19: #{tpu_custom_call.1} parent=1 // pred_check_branch
      %23 = sbr.rel (0) target = $region21
    $region20: #{tpu_custom_call.1} parent=1 // pred_region
      _
    $region21: #{tpu_custom_call.1} parent=1 // pred_fallthru
      _
    // Predicated region
    $region22: #{tpu_custom_call.1} parent=1 // pred_check
      _
    $region23: #{tpu_custom_call.1} parent=1 // pred_check_branch
      %25 = sbr.rel (0) target = $region25
    $region24: #{tpu_custom_call.1} parent=1 // pred_region
      _
    $region25: #{tpu_custom_call.1} parent=1 // pred_fallthru
      _
    // Predicated region
    $region26: #{tpu_custom_call.1} parent=1 // pred_check
      _
    $region27: #{tpu_custom_call.1} parent=1 // pred_check_branch
      %27 = sbr.rel (0) target = $region29
    $region28: #{tpu_custom_call.1} parent=1 // pred_region
      _
    $region29: #{tpu_custom_call.1} parent=1 // pred_fallthru
      _
    // Predicated region
    $region30: #{tpu_custom_call.1} parent=1 // pred_check
      _
    $region31: #{tpu_custom_call.1} parent=1 // pred_check_branch
      %29 = sbr.rel (0) target = $region33
    $region32: #{tpu_custom_call.1} parent=1 // pred_region
      _
    $region33: #{tpu_custom_call.1} parent=1 // pred_fallthru
      _
    %v30 = vld [vmem:[%s0] sm:$0xff]
    %v31 = vld [vmem:[%s0 + $0x8] sm:$0xff]
    %v32 = vld [vmem:[%s0 + $0x10] sm:$0xff]
    %v33 = vld [vmem:[%s0 + $0x18] sm:$0xff]
    %v34 = vld [vmem:[%s0 + $0x20] sm:$0xff]
    %v35 = vld [vmem:[%s0 + $0x28] sm:$0xff]
    %v36 = vld [vmem:[%s0 + $0x30] sm:$0xff]
    %v37 = vld [vmem:[%s0 + $0x38] sm:$0xff]
    %v38 = vld [vmem:[%s0 + $0x40] sm:$0xff]
    %v39 = vld [vmem:[%s0 + $0x48] sm:$0xff]
    %v40 = vld [vmem:[%s0 + $0x50] sm:$0xff]
    %v41 = vld [vmem:[%s0 + $0x58] sm:$0xff]
    %v42 = vld [vmem:[%s0 + $0x60] sm:$0xff]
    %v43 = vld [vmem:[%s0 + $0x68] sm:$0xff]
    %v44 = vld [vmem:[%s0 + $0x70] sm:$0xff]
    %v45 = vld [vmem:[%s0 + $0x78] sm:$0xff]
    %v46 = vld [vmem:[%s0 + $0x80] sm:$0xff]
    %v47 = vld [vmem:[%s0 + $0x88] sm:$0xff]
    %v48 = vld [vmem:[%s0 + $0x90] sm:$0xff]
    %v49 = vld [vmem:[%s0 + $0x98] sm:$0xff]
    %v50 = vld [vmem:[%s0 + $0xa0] sm:$0xff]
    %v51 = vld [vmem:[%s0 + $0xa8] sm:$0xff]
    %v52 = vld [vmem:[%s0 + $0xb0] sm:$0xff]
    %v53 = vld [vmem:[%s0 + $0xb8] sm:$0xff]
    %v54 = vld [vmem:[%s0 + $0xc0] sm:$0xff]
    %v55 = vld [vmem:[%s0 + $0xc8] sm:$0xff]
    %v56 = vld [vmem:[%s0 + $0xd0] sm:$0xff]
    %v57 = vld [vmem:[%s0 + $0xd8] sm:$0xff]
    %v58 = vld [vmem:[%s0 + $0xe0] sm:$0xff]
    %v59 = vld [vmem:[%s0 + $0xe8] sm:$0xff]
    %v60 = vld [vmem:[%s0 + $0xf0] sm:$0xff]
    %v61 = vld [vmem:[%s0 + $0xf8] sm:$0xff]
    %v62 = vld [vmem:[%s0 + $0x100] sm:$0xff]
    %v63 = vld [vmem:[%s0 + $0x108] sm:$0xff]
    %v64 = vld [vmem:[%s0 + $0x110] sm:$0xff]
    %v65 = vld [vmem:[%s0 + $0x118] sm:$0xff]
    %v66 = vld [vmem:[%s0 + $0x120] sm:$0xff]
    %v67 = vld [vmem:[%s0 + $0x128] sm:$0xff]
    %v68 = vld [vmem:[%s1] sm:$0xff]
    %v69 = vld [vmem:[%s1 + $0x8] sm:$0xff]
    %v70 = vld [vmem:[%s1 + $0x10] sm:$0xff]
    %v71 = vld [vmem:[%s1 + $0x18] sm:$0xff]
    %v72 = vld [vmem:[%s1 + $0x20] sm:$0xff]
    %v73 = vld [vmem:[%s1 + $0x28] sm:$0xff]
    %v74 = vld [vmem:[%s1 + $0x30] sm:$0xff]
    %v75 = vld [vmem:[%s1 + $0x38] sm:$0xff]
    %v76 = vld [vmem:[%s1 + $0x40] sm:$0xff]
    %v77 = vld [vmem:[%s1 + $0x48] sm:$0xff]
    %v78 = vld [vmem:[%s1 + $0x50] sm:$0xff]
    %v79 = vld [vmem:[%s1 + $0x58] sm:$0xff]
    %v80 = vld [vmem:[%s1 + $0x60] sm:$0xff]
    %v81 = vld [vmem:[%s1 + $0x68] sm:$0xff]
    %v82 = vld [vmem:[%s1 + $0x70] sm:$0xff]
    %v83 = vld [vmem:[%s1 + $0x78] sm:$0xff]
    %v84 = vld [vmem:[%s1 + $0x80] sm:$0xff]
    %v85 = vld [vmem:[%s1 + $0x88] sm:$0xff]
    %v86 = vld [vmem:[%s1 + $0x90] sm:$0xff]
    %v87 = vld [vmem:[%s1 + $0x98] sm:$0xff]
    %v88 = vld [vmem:[%s1 + $0xa0] sm:$0xff]
    %v89 = vld [vmem:[%s1 + $0xa8] sm:$0xff]
    %v90 = vld [vmem:[%s1 + $0xb0] sm:$0xff]
    %v91 = vld [vmem:[%s1 + $0xb8] sm:$0xff]
    %v92 = vld [vmem:[%s1 + $0xc0] sm:$0xff]
    %v93 = vld [vmem:[%s1 + $0xc8] sm:$0xff]
    %v94 = vld [vmem:[%s1 + $0xd0] sm:$0xff]
    %v95 = vld [vmem:[%s1 + $0xd8] sm:$0xff]
    %v96 = vld [vmem:[%s1 + $0xe0] sm:$0xff]
    %v97 = vld [vmem:[%s1 + $0xe8] sm:$0xff]
    %v98 = vld [vmem:[%s1 + $0xf0] sm:$0xff]
    %v99 = vld [vmem:[%s1 + $0xf8] sm:$0xff]
    %v100 = vld [vmem:[%s1 + $0x100] sm:$0xff]
    %v101 = vld [vmem:[%s1 + $0x108] sm:$0xff]
    %v102 = vld [vmem:[%s1 + $0x110] sm:$0xff]
    %v103 = vld [vmem:[%s1 + $0x118] sm:$0xff]
    %v104 = vld [vmem:[%s1 + $0x120] sm:$0xff]
    %v105 = vld [vmem:[%s1 + $0x128] sm:$0xff]
    %v106 = vld [vmem:[%s2] sm:$0xff]
    %v107 = vld [vmem:[%s2 + $0x8] sm:$0xff]
    %v108 = vld [vmem:[%s2 + $0x10] sm:$0xff]
    %v109 = vld [vmem:[%s2 + $0x18] sm:$0xff]
    %v110 = vld [vmem:[%s3] sm:$0xff]
    %vm111 = vcmask 64512
    %v113 = vsel %vm111, %v68, 0
    %v116 = vsel %vm111, %v69, 0
    %v119 = vsel %vm111, %v70, 0
    %v122 = vsel %vm111, %v71, 0
    %v125 = vsel %vm111, %v72, 0
    %v128 = vsel %vm111, %v73, 0
    %v131 = vsel %vm111, %v74, 0
    %v134 = vsel %vm111, %v75, 0
    %v137 = vsel %vm111, %v76, 0
    %v140 = vsel %vm111, %v77, 0
    %v143 = vsel %vm111, %v78, 0
    %v146 = vsel %vm111, %v79, 0
    %v149 = vsel %vm111, %v80, 0
    %v152 = vsel %vm111, %v81, 0
    %v155 = vsel %vm111, %v82, 0
    %v158 = vsel %vm111, %v83, 0
    %v161 = vsel %vm111, %v84, 0
    %v164 = vsel %vm111, %v85, 0
    %v167 = vsel %vm111, %v86, 0
    %v170 = vsel %vm111, %v87, 0
    %v173 = vsel %vm111, %v88, 0
    %v176 = vsel %vm111, %v89, 0
    %v179 = vsel %vm111, %v90, 0
    %v182 = vsel %vm111, %v91, 0
    %v185 = vsel %vm111, %v92, 0
    %v188 = vsel %vm111, %v93, 0
    %v191 = vsel %vm111, %v94, 0
    %v194 = vsel %vm111, %v95, 0
    %v197 = vsel %vm111, %v96, 0
    %v200 = vsel %vm111, %v97, 0
    %v203 = vsel %vm111, %v98, 0
    %v206 = vsel %vm111, %v99, 0
    %v209 = vsel %vm111, %v100, 0
    %v212 = vsel %vm111, %v101, 0
    %v215 = vsel %vm111, %v102, 0
    %v218 = vsel %vm111, %v103, 0
    %v221 = vsel %vm111, %v104, 0
    %v224 = vsel %vm111, %v105, 0
    %226 = vmatprep.subr.mxu0 0.0
    %227 = vmatpush1.msra.mxu0 0.0
    %228 = vmatprep.subr.mxu0 0.0
    %229 = vmatpush1.msra.mxu0 0.0
    %230 = vmatprep.subr.mxu0 0.0
    %231 = vmatpush1.msra.mxu0 0.0
    %232 = vmatprep.subr.mxu0 0.0
    %233 = vmatpush1.msra.mxu0 0.0
    %234 = vmatprep.subr.mxu0 0.0
    %235 = vmatpush1.msra.mxu0 0.0
    %236 = vmatprep.subr.mxu0 0.0
    %237 = vmatpush1.msra.mxu0 0.0
    %238 = vmatprep.subr.mxu0 0.0
    %239 = vmatpush1.msra.mxu0 0.0
    %240 = vmatprep.subr.mxu0 0.0
    %241 = vmatpush1.msra.mxu0 0.0
    %242 = vmatprep.subr.mxu0 0.0
    %243 = vmatpush1.msra.mxu0 0.0
    %244 = vmatprep.subr.mxu0 0.0
    %245 = vmatpush1.msra.mxu0 0.0
    %246 = vmatprep.subr.mxu0 0.0
    %247 = vmatpush1.msra.mxu0 0.0
    %248 = vmatprep.subr.mxu0 0.0
    %249 = vmatpush1.msra.mxu0 0.0
    %250 = vmatprep.subr.mxu0 0.0
    %251 = vmatpush1.msra.mxu0 0.0
    %252 = vmatprep.subr.mxu0 0.0
    %253 = vmatpush1.msra.mxu0 0.0
    %254 = vmatprep.subr.mxu0 0.0
    %255 = vmatpush1.msra.mxu0 0.0
    %256 = vmatprep.subr.mxu0 0.0
    %v257 = vand.u32 %v110, 4294901760
    %258 = vmatpush1.msra.mxu0 %v257
    %259 = vmatprep.subr.mxu0 0.0
    %260 = vmatpush2.msra.mxu0 0.0
    %261 = vmatprep.subr.mxu0 0.0
    %262 = vmatpush2.msra.mxu0 0.0
    %263 = vmatprep.subr.mxu0 0.0
    %264 = vmatpush2.msra.mxu0 0.0
    %265 = vmatprep.subr.mxu0 0.0
    %266 = vmatpush2.msra.mxu0 0.0
    %267 = vmatprep.subr.mxu0 0.0
    %268 = vmatpush2.msra.mxu0 0.0
    %269 = vmatprep.subr.mxu0 0.0
    %270 = vmatpush2.msra.mxu0 0.0
    %271 = vmatprep.subr.mxu0 0.0
    %272 = vmatpush2.msra.mxu0 0.0
    %273 = vmatprep.subr.mxu0 0.0
    %274 = vmatpush2.msra.mxu0 0.0
    %275 = vmatprep.subr.mxu0 0.0
    %276 = vmatpush2.msra.mxu0 0.0
    %277 = vmatprep.subr.mxu0 0.0
    %278 = vmatpush2.msra.mxu0 0.0
    %279 = vmatprep.subr.mxu0 0.0
    %280 = vmatpush2.msra.mxu0 0.0
    %281 = vmatprep.subr.mxu0 0.0
    %282 = vmatpush2.msra.mxu0 0.0
    %283 = vmatprep.subr.mxu0 0.0
    %284 = vmatpush2.msra.mxu0 0.0
    %285 = vmatprep.subr.mxu0 0.0
    %286 = vmatpush2.msra.mxu0 0.0
    %287 = vmatprep.subr.mxu0 0.0
    %288 = vmatpush2.msra.mxu0 0.0
    %289 = vmatprep.subr.mxu0 0.0
    %290 = vmatpush2.msra.mxu0 0.0
    %291 = vmatprep.mubr.f32.mxu0 0.0
    %v292 = vand.u32 %v113, 4294901760
    %v293 = vsub.f32 %v113, %v292
    %v294 = vand.u32 %v293, 4294901760
    %v295 = vsub.f32 %v293, %v294
    %v296 = vand.u32 %v295, 4294901760
    %297 = vmatmul.mubr.f32.gmra.mxu0 %v296
    %v298 = vpop.f32.mrf.mxu0
    %v299 = vadd.f32 0.0, %v298
    %v300 = vpop.f32.mrf.mxu0
    %301 = vmatprep.mubr.f32.mxu0 0.0
    %v302 = vand.u32 %v116, 4294901760
    %v303 = vsub.f32 %v116, %v302
    %v304 = vand.u32 %v303, 4294901760
    %v305 = vsub.f32 %v303, %v304
    %v306 = vand.u32 %v305, 4294901760
    %307 = vmatmul.mubr.f32.gmra.mxu0 %v306
    %v308 = vpop.f32.mrf.mxu0
    %v309 = vadd.f32 0.0, %v308
    %v310 = vpop.f32.mrf.mxu0
    %311 = vmatprep.mubr.f32.mxu0 0.0
    %v312 = vand.u32 %v119, 4294901760
    %v313 = vsub.f32 %v119, %v312
    %v314 = vand.u32 %v313, 4294901760
    %v315 = vsub.f32 %v313, %v314
    %v316 = vand.u32 %v315, 4294901760
    %317 = vmatmul.mubr.f32.gmra.mxu0 %v316
    %v318 = vpop.f32.mrf.mxu0
    %v319 = vadd.f32 0.0, %v318
    %v320 = vpop.f32.mrf.mxu0
    %321 = vmatprep.mubr.f32.mxu0 0.0
    %v322 = vand.u32 %v122, 4294901760
    %v323 = vsub.f32 %v122, %v322
    %v324 = vand.u32 %v323, 4294901760
    %v325 = vsub.f32 %v323, %v324
    %v326 = vand.u32 %v325, 4294901760
    %327 = vmatmul.mubr.f32.gmra.mxu0 %v326
    %v328 = vpop.f32.mrf.mxu0
    %v329 = vadd.f32 0.0, %v328
    %v330 = vpop.f32.mrf.mxu0
    %331 = vmatprep.mubr.f32.mxu0 0.0
    %v332 = vand.u32 %v125, 4294901760
    %v333 = vsub.f32 %v125, %v332
    %v334 = vand.u32 %v333, 4294901760
    %v335 = vsub.f32 %v333, %v334
    %v336 = vand.u32 %v335, 4294901760
    %337 = vmatmul.mubr.f32.gmra.mxu0 %v336
    %v338 = vpop.f32.mrf.mxu0
    %v339 = vadd.f32 0.0, %v338
    %v340 = vpop.f32.mrf.mxu0
    %341 = vmatprep.mubr.f32.mxu0 0.0
    %v342 = vand.u32 %v128, 4294901760
    %v343 = vsub.f32 %v128, %v342
    %v344 = vand.u32 %v343, 4294901760
    %v345 = vsub.f32 %v343, %v344
    %v346 = vand.u32 %v345, 4294901760
    %347 = vmatmul.mubr.f32.gmra.mxu0 %v346
    %v348 = vpop.f32.mrf.mxu0
    %v349 = vadd.f32 0.0, %v348
    %v350 = vpop.f32.mrf.mxu0
    %351 = vmatprep.mubr.f32.mxu0 0.0
    %v352 = vand.u32 %v131, 4294901760
    %v353 = vsub.f32 %v131, %v352
    %v354 = vand.u32 %v353, 4294901760
    %v355 = vsub.f32 %v353, %v354
    %v356 = vand.u32 %v355, 4294901760
    %357 = vmatmul.mubr.f32.gmra.mxu0 %v356
    %v358 = vpop.f32.mrf.mxu0
    %v359 = vadd.f32 0.0, %v358
    %v360 = vpop.f32.mrf.mxu0
    %361 = vmatprep.mubr.f32.mxu0 0.0
    %v362 = vand.u32 %v134, 4294901760
    %v363 = vsub.f32 %v134, %v362
    %v364 = vand.u32 %v363, 4294901760
    %v365 = vsub.f32 %v363, %v364
    %v366 = vand.u32 %v365, 4294901760
    %367 = vmatmul.mubr.f32.gmra.mxu0 %v366
    %v368 = vpop.f32.mrf.mxu0
    %v369 = vadd.f32 0.0, %v368
    %v370 = vpop.f32.mrf.mxu0
    %371 = vmatprep.mubr.f32.mxu0 0.0
    %v372 = vand.u32 %v137, 4294901760
    %v373 = vsub.f32 %v137, %v372
    %v374 = vand.u32 %v373, 4294901760
    %v375 = vsub.f32 %v373, %v374
    %v376 = vand.u32 %v375, 4294901760
    %377 = vmatmul.mubr.f32.gmra.mxu0 %v376
    %v378 = vpop.f32.mrf.mxu0
    %v379 = vadd.f32 0.0, %v378
    %v380 = vpop.f32.mrf.mxu0
    %381 = vmatprep.mubr.f32.mxu0 0.0
    %v382 = vand.u32 %v140, 4294901760
    %v383 = vsub.f32 %v140, %v382
    %v384 = vand.u32 %v383, 4294901760
    %v385 = vsub.f32 %v383, %v384
    %v386 = vand.u32 %v385, 4294901760
    %387 = vmatmul.mubr.f32.gmra.mxu0 %v386
    %v388 = vpop.f32.mrf.mxu0
    %v389 = vadd.f32 0.0, %v388
    %v390 = vpop.f32.mrf.mxu0
    %391 = vmatprep.mubr.f32.mxu0 0.0
    %v392 = vand.u32 %v143, 4294901760
    %v393 = vsub.f32 %v143, %v392
    %v394 = vand.u32 %v393, 4294901760
    %v395 = vsub.f32 %v393, %v394
    %v396 = vand.u32 %v395, 4294901760
    %397 = vmatmul.mubr.f32.gmra.mxu0 %v396
    %v398 = vpop.f32.mrf.mxu0
    %v399 = vadd.f32 0.0, %v398
    %v400 = vpop.f32.mrf.mxu0
    %401 = vmatprep.mubr.f32.mxu0 0.0
    %v402 = vand.u32 %v146, 4294901760
    %v403 = vsub.f32 %v146, %v402
    %v404 = vand.u32 %v403, 4294901760
    %v405 = vsub.f32 %v403, %v404
    %v406 = vand.u32 %v405, 4294901760
    %407 = vmatmul.mubr.f32.gmra.mxu0 %v406
    %v408 = vpop.f32.mrf.mxu0
    %v409 = vadd.f32 0.0, %v408
    %v410 = vpop.f32.mrf.mxu0
    %411 = vmatprep.mubr.f32.mxu0 0.0
    %v412 = vand.u32 %v149, 4294901760
    %v413 = vsub.f32 %v149, %v412
    %v414 = vand.u32 %v413, 4294901760
    %v415 = vsub.f32 %v413, %v414
    %v416 = vand.u32 %v415, 4294901760
    %417 = vmatmul.mubr.f32.gmra.mxu0 %v416
    %v418 = vpop.f32.mrf.mxu0
    %v419 = vadd.f32 0.0, %v418
    %v420 = vpop.f32.mrf.mxu0
    %421 = vmatprep.mubr.f32.mxu0 0.0
    %v422 = vand.u32 %v152, 4294901760
    %v423 = vsub.f32 %v152, %v422
    %v424 = vand.u32 %v423, 4294901760
    %v425 = vsub.f32 %v423, %v424
    %v426 = vand.u32 %v425, 4294901760
    %427 = vmatmul.mubr.f32.gmra.mxu0 %v426
    %v428 = vpop.f32.mrf.mxu0
    %v429 = vadd.f32 0.0, %v428
    %v430 = vpop.f32.mrf.mxu0
    %431 = vmatprep.mubr.f32.mxu0 0.0
    %v432 = vand.u32 %v155, 4294901760
    %v433 = vsub.f32 %v155, %v432
    %v434 = vand.u32 %v433, 4294901760
    %v435 = vsub.f32 %v433, %v434
    %v436 = vand.u32 %v435, 4294901760
    %437 = vmatmul.mubr.f32.gmra.mxu0 %v436
    %v438 = vpop.f32.mrf.mxu0
    %v439 = vadd.f32 0.0, %v438
    %v440 = vpop.f32.mrf.mxu0
    %441 = vmatprep.mubr.f32.mxu0 0.0
    %v442 = vand.u32 %v158, 4294901760
    %v443 = vsub.f32 %v158, %v442
    %v444 = vand.u32 %v443, 4294901760
    %v445 = vsub.f32 %v443, %v444
    %v446 = vand.u32 %v445, 4294901760
    %447 = vmatmul.mubr.f32.gmra.mxu0 %v446
    %v448 = vpop.f32.mrf.mxu0
    %v449 = vadd.f32 0.0, %v448
    %v450 = vpop.f32.mrf.mxu0
    %451 = vmatprep.mubr.f32.mxu0 0.0
    %v452 = vand.u32 %v161, 4294901760
    %v453 = vsub.f32 %v161, %v452
    %v454 = vand.u32 %v453, 4294901760
    %v455 = vsub.f32 %v453, %v454
    %v456 = vand.u32 %v455, 4294901760
    %457 = vmatmul.mubr.f32.gmra.mxu0 %v456
    %v458 = vpop.f32.mrf.mxu0
    %v459 = vadd.f32 0.0, %v458
    %v460 = vpop.f32.mrf.mxu0
    %461 = vmatprep.mubr.f32.mxu0 0.0
    %v462 = vand.u32 %v164, 4294901760
    %v463 = vsub.f32 %v164, %v462
    %v464 = vand.u32 %v463, 4294901760
    %v465 = vsub.f32 %v463, %v464
    %v466 = vand.u32 %v465, 4294901760
    %467 = vmatmul.mubr.f32.gmra.mxu0 %v466
    %v468 = vpop.f32.mrf.mxu0
    %v469 = vadd.f32 0.0, %v468
    %v470 = vpop.f32.mrf.mxu0
    %471 = vmatprep.mubr.f32.mxu0 0.0
    %v472 = vand.u32 %v167, 4294901760
    %v473 = vsub.f32 %v167, %v472
    %v474 = vand.u32 %v473, 4294901760
    %v475 = vsub.f32 %v473, %v474
    %v476 = vand.u32 %v475, 4294901760
    %477 = vmatmul.mubr.f32.gmra.mxu0 %v476
    %v478 = vpop.f32.mrf.mxu0
    %v479 = vadd.f32 0.0, %v478
    %v480 = vpop.f32.mrf.mxu0
    %481 = vmatprep.mubr.f32.mxu0 0.0
    %v482 = vand.u32 %v170, 4294901760
    %v483 = vsub.f32 %v170, %v482
    %v484 = vand.u32 %v483, 4294901760
    %v485 = vsub.f32 %v483, %v484
    %v486 = vand.u32 %v485, 4294901760
    %487 = vmatmul.mubr.f32.gmra.mxu0 %v486
    %v488 = vpop.f32.mrf.mxu0
    %v489 = vadd.f32 0.0, %v488
    %v490 = vpop.f32.mrf.mxu0
    %491 = vmatprep.mubr.f32.mxu0 0.0
    %v492 = vand.u32 %v173, 4294901760
    %v493 = vsub.f32 %v173, %v492
    %v494 = vand.u32 %v493, 4294901760
    %v495 = vsub.f32 %v493, %v494
    %v496 = vand.u32 %v495, 4294901760
    %497 = vmatmul.mubr.f32.gmra.mxu0 %v496
    %v498 = vpop.f32.mrf.mxu0
    %v499 = vadd.f32 0.0, %v498
    %v500 = vpop.f32.mrf.mxu0
    %501 = vmatprep.mubr.f32.mxu0 0.0
    %v502 = vand.u32 %v176, 4294901760
    %v503 = vsub.f32 %v176, %v502
    %v504 = vand.u32 %v503, 4294901760
    %v505 = vsub.f32 %v503, %v504
    %v506 = vand.u32 %v505, 4294901760
    %507 = vmatmul.mubr.f32.gmra.mxu0 %v506
    %v508 = vpop.f32.mrf.mxu0
    %v509 = vadd.f32 0.0, %v508
    %v510 = vpop.f32.mrf.mxu0
    %511 = vmatprep.mubr.f32.mxu0 0.0
    %v512 = vand.u32 %v179, 4294901760
    %v513 = vsub.f32 %v179, %v512
    %v514 = vand.u32 %v513, 4294901760
    %v515 = vsub.f32 %v513, %v514
    %v516 = vand.u32 %v515, 4294901760
    %517 = vmatmul.mubr.f32.gmra.mxu0 %v516
    %v518 = vpop.f32.mrf.mxu0
    %v519 = vadd.f32 0.0, %v518
    %v520 = vpop.f32.mrf.mxu0
    %521 = vmatprep.mubr.f32.mxu0 0.0
    %v522 = vand.u32 %v182, 4294901760
    %v523 = vsub.f32 %v182, %v522
    %v524 = vand.u32 %v523, 4294901760
    %v525 = vsub.f32 %v523, %v524
    %v526 = vand.u32 %v525, 4294901760
    %527 = vmatmul.mubr.f32.gmra.mxu0 %v526
    %v528 = vpop.f32.mrf.mxu0
    %v529 = vadd.f32 0.0, %v528
    %v530 = vpop.f32.mrf.mxu0
    %531 = vmatprep.mubr.f32.mxu0 0.0
    %v532 = vand.u32 %v185, 4294901760
    %v533 = vsub.f32 %v185, %v532
    %v534 = vand.u32 %v533, 4294901760
    %v535 = vsub.f32 %v533, %v534
    %v536 = vand.u32 %v535, 4294901760
    %537 = vmatmul.mubr.f32.gmra.mxu0 %v536
    %v538 = vpop.f32.mrf.mxu0
    %v539 = vadd.f32 0.0, %v538
    %v540 = vpop.f32.mrf.mxu0
    %541 = vmatprep.mubr.f32.mxu0 0.0
    %v542 = vand.u32 %v188, 4294901760
    %v543 = vsub.f32 %v188, %v542
    %v544 = vand.u32 %v543, 4294901760
    %v545 = vsub.f32 %v543, %v544
    %v546 = vand.u32 %v545, 4294901760
    %547 = vmatmul.mubr.f32.gmra.mxu0 %v546
    %v548 = vpop.f32.mrf.mxu0
    %v549 = vadd.f32 0.0, %v548
    %v550 = vpop.f32.mrf.mxu0
    %551 = vmatprep.mubr.f32.mxu0 0.0
    %v552 = vand.u32 %v191, 4294901760
    %v553 = vsub.f32 %v191, %v552
    %v554 = vand.u32 %v553, 4294901760
    %v555 = vsub.f32 %v553, %v554
    %v556 = vand.u32 %v555, 4294901760
    %557 = vmatmul.mubr.f32.gmra.mxu0 %v556
    %v558 = vpop.f32.mrf.mxu0
    %v559 = vadd.f32 0.0, %v558
    %v560 = vpop.f32.mrf.mxu0
    %561 = vmatprep.mubr.f32.mxu0 0.0
    %v562 = vand.u32 %v194, 4294901760
    %v563 = vsub.f32 %v194, %v562
    %v564 = vand.u32 %v563, 4294901760
    %v565 = vsub.f32 %v563, %v564
    %v566 = vand.u32 %v565, 4294901760
    %567 = vmatmul.mubr.f32.gmra.mxu0 %v566
    %v568 = vpop.f32.mrf.mxu0
    %v569 = vadd.f32 0.0, %v568
    %v570 = vpop.f32.mrf.mxu0
    %571 = vmatprep.mubr.f32.mxu0 0.0
    %v572 = vand.u32 %v197, 4294901760
    %v573 = vsub.f32 %v197, %v572
    %v574 = vand.u32 %v573, 4294901760
    %v575 = vsub.f32 %v573, %v574
    %v576 = vand.u32 %v575, 4294901760
    %577 = vmatmul.mubr.f32.gmra.mxu0 %v576
    %v578 = vpop.f32.mrf.mxu0
    %v579 = vadd.f32 0.0, %v578
    %v580 = vpop.f32.mrf.mxu0
    %581 = vmatprep.mubr.f32.mxu0 0.0
    %v582 = vand.u32 %v200, 4294901760
    %v583 = vsub.f32 %v200, %v582
    %v584 = vand.u32 %v583, 4294901760
    %v585 = vsub.f32 %v583, %v584
    %v586 = vand.u32 %v585, 4294901760
    %587 = vmatmul.mubr.f32.gmra.mxu0 %v586
    %v588 = vpop.f32.mrf.mxu0
    %v589 = vadd.f32 0.0, %v588
    %v590 = vpop.f32.mrf.mxu0
    %591 = vmatprep.mubr.f32.mxu0 0.0
    %v592 = vand.u32 %v203, 4294901760
    %v593 = vsub.f32 %v203, %v592
    %v594 = vand.u32 %v593, 4294901760
    %v595 = vsub.f32 %v593, %v594
    %v596 = vand.u32 %v595, 4294901760
    %597 = vmatmul.mubr.f32.gmra.mxu0 %v596
    %v598 = vpop.f32.mrf.mxu0
    %v599 = vadd.f32 0.0, %v598
    %v600 = vpop.f32.mrf.mxu0
    %601 = vmatprep.mubr.f32.mxu0 0.0
    %v602 = vand.u32 %v206, 4294901760
    %v603 = vsub.f32 %v206, %v602
    %v604 = vand.u32 %v603, 4294901760
    %v605 = vsub.f32 %v603, %v604
    %v606 = vand.u32 %v605, 4294901760
    %607 = vmatmul.mubr.f32.gmra.mxu0 %v606
    %v608 = vpop.f32.mrf.mxu0
    %v609 = vadd.f32 0.0, %v608
    %v610 = vpop.f32.mrf.mxu0
    %611 = vmatprep.mubr.f32.mxu0 0.0
    %v612 = vand.u32 %v209, 4294901760
    %v613 = vsub.f32 %v209, %v612
    %v614 = vand.u32 %v613, 4294901760
    %v615 = vsub.f32 %v613, %v614
    %v616 = vand.u32 %v615, 4294901760
    %617 = vmatmul.mubr.f32.gmra.mxu0 %v616
    %v618 = vpop.f32.mrf.mxu0
    %v619 = vadd.f32 0.0, %v618
    %v620 = vpop.f32.mrf.mxu0
    %621 = vmatprep.mubr.f32.mxu0 0.0
    %v622 = vand.u32 %v212, 4294901760
    %v623 = vsub.f32 %v212, %v622
    %v624 = vand.u32 %v623, 4294901760
    %v625 = vsub.f32 %v623, %v624
    %v626 = vand.u32 %v625, 4294901760
    %627 = vmatmul.mubr.f32.gmra.mxu0 %v626
    %v628 = vpop.f32.mrf.mxu0
    %v629 = vadd.f32 0.0, %v628
    %v630 = vpop.f32.mrf.mxu0
    %631 = vmatprep.mubr.f32.mxu0 0.0
    %v632 = vand.u32 %v215, 4294901760
    %v633 = vsub.f32 %v215, %v632
    %v634 = vand.u32 %v633, 4294901760
    %v635 = vsub.f32 %v633, %v634
    %v636 = vand.u32 %v635, 4294901760
    %637 = vmatmul.mubr.f32.gmra.mxu0 %v636
    %v638 = vpop.f32.mrf.mxu0
    %v639 = vadd.f32 0.0, %v638
    %v640 = vpop.f32.mrf.mxu0
    %641 = vmatprep.mubr.f32.mxu0 0.0
    %v642 = vand.u32 %v218, 4294901760
    %v643 = vsub.f32 %v218, %v642
    %v644 = vand.u32 %v643, 4294901760
    %v645 = vsub.f32 %v643, %v644
    %v646 = vand.u32 %v645, 4294901760
    %647 = vmatmul.mubr.f32.gmra.mxu0 %v646
    %v648 = vpop.f32.mrf.mxu0
    %v649 = vadd.f32 0.0, %v648
    %v650 = vpop.f32.mrf.mxu0
    %651 = vmatprep.mubr.f32.mxu0 0.0
    %v652 = vand.u32 %v221, 4294901760
    %v653 = vsub.f32 %v221, %v652
    %v654 = vand.u32 %v653, 4294901760
    %v655 = vsub.f32 %v653, %v654
    %v656 = vand.u32 %v655, 4294901760
    %657 = vmatmul.mubr.f32.gmra.mxu0 %v656
    %v658 = vpop.f32.mrf.mxu0
    %v659 = vadd.f32 0.0, %v658
    %v660 = vpop.f32.mrf.mxu0
    %661 = vmatprep.mubr.f32.mxu0 0.0
    %v662 = vand.u32 %v224, 4294901760
    %v663 = vsub.f32 %v224, %v662
    %v664 = vand.u32 %v663, 4294901760
    %v665 = vsub.f32 %v663, %v664
    %v666 = vand.u32 %v665, 4294901760
    %667 = vmatmul.mubr.f32.gmra.mxu0 %v666
    %v668 = vpop.f32.mrf.mxu0
    %v669 = vadd.f32 0.0, %v668
    %v670 = vpop.f32.mrf.mxu0
    %671 = vdwg.mxu0
    %672 = vmatprep.subr.mxu0 0.0
    %673 = vmatpush1.msra.mxu0 0.0
    %674 = vmatprep.subr.mxu0 0.0
    %675 = vmatpush1.msra.mxu0 0.0
    %676 = vmatprep.subr.mxu0 0.0
    %677 = vmatpush1.msra.mxu0 0.0
    %678 = vmatprep.subr.mxu0 0.0
    %679 = vmatpush1.msra.mxu0 0.0
    %680 = vmatprep.subr.mxu0 0.0
    %681 = vmatpush1.msra.mxu0 0.0
    %682 = vmatprep.subr.mxu0 0.0
    %683 = vmatpush1.msra.mxu0 0.0
    %684 = vmatprep.subr.mxu0 0.0
    %685 = vmatpush1.msra.mxu0 0.0
    %686 = vmatprep.subr.mxu0 0.0
    %687 = vmatpush1.msra.mxu0 0.0
    %688 = vmatprep.subr.mxu0 0.0
    %689 = vmatpush1.msra.mxu0 0.0
    %690 = vmatprep.subr.mxu0 0.0
    %691 = vmatpush1.msra.mxu0 0.0
    %692 = vmatprep.subr.mxu0 0.0
    %693 = vmatpush1.msra.mxu0 0.0
    %694 = vmatprep.subr.mxu0 0.0
    %695 = vmatpush1.msra.mxu0 0.0
    %696 = vmatprep.subr.mxu0 0.0
    %697 = vmatpush1.msra.mxu0 0.0
    %698 = vmatprep.subr.mxu0 0.0
    %699 = vmatpush1.msra.mxu0 0.0
    %700 = vmatprep.subr.mxu0 0.0
    %701 = vmatpush1.msra.mxu0 0.0
    %702 = vmatprep.subr.mxu0 0.0
    %v703 = vand.u32 %v110, 4294901760
    %v704 = vsub.f32 %v110, %v703
    %v705 = vand.u32 %v704, 4294901760
    %v706 = vsub.f32 %v704, %v705
    %v707 = vand.u32 %v706, 4294901760
    %708 = vmatpush1.msra.mxu0 %v707
    %709 = vmatprep.subr.mxu0 0.0
    %710 = vmatpush2.msra.mxu0 0.0
    %711 = vmatprep.subr.mxu0 0.0
    %712 = vmatpush2.msra.mxu0 0.0
    %713 = vmatprep.subr.mxu0 0.0
    %714 = vmatpush2.msra.mxu0 0.0
    %715 = vmatprep.subr.mxu0 0.0
    %716 = vmatpush2.msra.mxu0 0.0
    %717 = vmatprep.subr.mxu0 0.0
    %718 = vmatpush2.msra.mxu0 0.0
    %719 = vmatprep.subr.mxu0 0.0
    %720 = vmatpush2.msra.mxu0 0.0
    %721 = vmatprep.subr.mxu0 0.0
    %722 = vmatpush2.msra.mxu0 0.0
    %723 = vmatprep.subr.mxu0 0.0
    %724 = vmatpush2.msra.mxu0 0.0
    %725 = vmatprep.subr.mxu0 0.0
    %726 = vmatpush2.msra.mxu0 0.0
    %727 = vmatprep.subr.mxu0 0.0
    %728 = vmatpush2.msra.mxu0 0.0
    %729 = vmatprep.subr.mxu0 0.0
    %730 = vmatpush2.msra.mxu0 0.0
    %731 = vmatprep.subr.mxu0 0.0
    %732 = vmatpush2.msra.mxu0 0.0
    %733 = vmatprep.subr.mxu0 0.0
    %734 = vmatpush2.msra.mxu0 0.0
    %735 = vmatprep.subr.mxu0 0.0
    %736 = vmatpush2.msra.mxu0 0.0
    %737 = vmatprep.subr.mxu0 0.0
    %738 = vmatpush2.msra.mxu0 0.0
    %739 = vmatprep.subr.mxu0 0.0
    %740 = vmatpush2.msra.mxu0 0.0
    %741 = vmatprep.mubr.f32.mxu0 0.0
    %v742 = vand.u32 %v113, 4294901760
    %743 = vmatmul.mubr.f32.gmra.mxu0 %v742
    %v744 = vpop.f32.mrf.mxu0
    %v745 = vadd.f32 %v299, %v744
    %v746 = vpop.f32.mrf.mxu0
    %747 = vmatprep.mubr.f32.mxu0 0.0
    %v748 = vand.u32 %v116, 4294901760
    %749 = vmatmul.mubr.f32.gmra.mxu0 %v748
    %v750 = vpop.f32.mrf.mxu0
    %v751 = vadd.f32 %v309, %v750
    %v752 = vpop.f32.mrf.mxu0
    %753 = vmatprep.mubr.f32.mxu0 0.0
    %v754 = vand.u32 %v119, 4294901760
    %755 = vmatmul.mubr.f32.gmra.mxu0 %v754
    %v756 = vpop.f32.mrf.mxu0
    %v757 = vadd.f32 %v319, %v756
    %v758 = vpop.f32.mrf.mxu0
    %759 = vmatprep.mubr.f32.mxu0 0.0
    %v760 = vand.u32 %v122, 4294901760
    %761 = vmatmul.mubr.f32.gmra.mxu0 %v760
    %v762 = vpop.f32.mrf.mxu0
    %v763 = vadd.f32 %v329, %v762
    %v764 = vpop.f32.mrf.mxu0
    %765 = vmatprep.mubr.f32.mxu0 0.0
    %v766 = vand.u32 %v125, 4294901760
    %767 = vmatmul.mubr.f32.gmra.mxu0 %v766
    %v768 = vpop.f32.mrf.mxu0
    %v769 = vadd.f32 %v339, %v768
    %v770 = vpop.f32.mrf.mxu0
    %771 = vmatprep.mubr.f32.mxu0 0.0
    %v772 = vand.u32 %v128, 4294901760
    %773 = vmatmul.mubr.f32.gmra.mxu0 %v772
    %v774 = vpop.f32.mrf.mxu0
    %v775 = vadd.f32 %v349, %v774
    %v776 = vpop.f32.mrf.mxu0
    %777 = vmatprep.mubr.f32.mxu0 0.0
    %v778 = vand.u32 %v131, 4294901760
    %779 = vmatmul.mubr.f32.gmra.mxu0 %v778
    %v780 = vpop.f32.mrf.mxu0
    %v781 = vadd.f32 %v359, %v780
    %v782 = vpop.f32.mrf.mxu0
    %783 = vmatprep.mubr.f32.mxu0 0.0
    %v784 = vand.u32 %v134, 4294901760
    %785 = vmatmul.mubr.f32.gmra.mxu0 %v784
    %v786 = vpop.f32.mrf.mxu0
    %v787 = vadd.f32 %v369, %v786
    %v788 = vpop.f32.mrf.mxu0
    %789 = vmatprep.mubr.f32.mxu0 0.0
    %v790 = vand.u32 %v137, 4294901760
    %791 = vmatmul.mubr.f32.gmra.mxu0 %v790
    %v792 = vpop.f32.mrf.mxu0
    %v793 = vadd.f32 %v379, %v792
    %v794 = vpop.f32.mrf.mxu0
    %795 = vmatprep.mubr.f32.mxu0 0.0
    %v796 = vand.u32 %v140, 4294901760
    %797 = vmatmul.mubr.f32.gmra.mxu0 %v796
    %v798 = vpop.f32.mrf.mxu0
    %v799 = vadd.f32 %v389, %v798
    %v800 = vpop.f32.mrf.mxu0
    %801 = vmatprep.mubr.f32.mxu0 0.0
    %v802 = vand.u32 %v143, 4294901760
    %803 = vmatmul.mubr.f32.gmra.mxu0 %v802
    %v804 = vpop.f32.mrf.mxu0
    %v805 = vadd.f32 %v399, %v804
    %v806 = vpop.f32.mrf.mxu0
    %807 = vmatprep.mubr.f32.mxu0 0.0
    %v808 = vand.u32 %v146, 4294901760
    %809 = vmatmul.mubr.f32.gmra.mxu0 %v808
    %v810 = vpop.f32.mrf.mxu0
    %v811 = vadd.f32 %v409, %v810
    %v812 = vpop.f32.mrf.mxu0
    %813 = vmatprep.mubr.f32.mxu0 0.0
    %v814 = vand.u32 %v149, 4294901760
    %815 = vmatmul.mubr.f32.gmra.mxu0 %v814
    %v816 = vpop.f32.mrf.mxu0
    %v817 = vadd.f32 %v419, %v816
    %v818 = vpop.f32.mrf.mxu0
    %819 = vmatprep.mubr.f32.mxu0 0.0
    %v820 = vand.u32 %v152, 4294901760
    %821 = vmatmul.mubr.f32.gmra.mxu0 %v820
    %v822 = vpop.f32.mrf.mxu0
    %v823 = vadd.f32 %v429, %v822
    %v824 = vpop.f32.mrf.mxu0
    %825 = vmatprep.mubr.f32.mxu0 0.0
    %v826 = vand.u32 %v155, 4294901760
    %827 = vmatmul.mubr.f32.gmra.mxu0 %v826
    %v828 = vpop.f32.mrf.mxu0
    %v829 = vadd.f32 %v439, %v828
    %v830 = vpop.f32.mrf.mxu0
    %831 = vmatprep.mubr.f32.mxu0 0.0
    %v832 = vand.u32 %v158, 4294901760
    %833 = vmatmul.mubr.f32.gmra.mxu0 %v832
    %v834 = vpop.f32.mrf.mxu0
    %v835 = vadd.f32 %v449, %v834
    %v836 = vpop.f32.mrf.mxu0
    %837 = vmatprep.mubr.f32.mxu0 0.0
    %v838 = vand.u32 %v161, 4294901760
    %839 = vmatmul.mubr.f32.gmra.mxu0 %v838
    %v840 = vpop.f32.mrf.mxu0
    %v841 = vadd.f32 %v459, %v840
    %v842 = vpop.f32.mrf.mxu0
    %843 = vmatprep.mubr.f32.mxu0 0.0
    %v844 = vand.u32 %v164, 4294901760
    %845 = vmatmul.mubr.f32.gmra.mxu0 %v844
    %v846 = vpop.f32.mrf.mxu0
    %v847 = vadd.f32 %v469, %v846
    %v848 = vpop.f32.mrf.mxu0
    %849 = vmatprep.mubr.f32.mxu0 0.0
    %v850 = vand.u32 %v167, 4294901760
    %851 = vmatmul.mubr.f32.gmra.mxu0 %v850
    %v852 = vpop.f32.mrf.mxu0
    %v853 = vadd.f32 %v479, %v852
    %v854 = vpop.f32.mrf.mxu0
    %855 = vmatprep.mubr.f32.mxu0 0.0
    %v856 = vand.u32 %v170, 4294901760
    %857 = vmatmul.mubr.f32.gmra.mxu0 %v856
    %v858 = vpop.f32.mrf.mxu0
    %v859 = vadd.f32 %v489, %v858
    %v860 = vpop.f32.mrf.mxu0
    %861 = vmatprep.mubr.f32.mxu0 0.0
    %v862 = vand.u32 %v173, 4294901760
    %863 = vmatmul.mubr.f32.gmra.mxu0 %v862
    %v864 = vpop.f32.mrf.mxu0
    %v865 = vadd.f32 %v499, %v864
    %v866 = vpop.f32.mrf.mxu0
    %867 = vmatprep.mubr.f32.mxu0 0.0
    %v868 = vand.u32 %v176, 4294901760
    %869 = vmatmul.mubr.f32.gmra.mxu0 %v868
    %v870 = vpop.f32.mrf.mxu0
    %v871 = vadd.f32 %v509, %v870
    %v872 = vpop.f32.mrf.mxu0
    %873 = vmatprep.mubr.f32.mxu0 0.0
    %v874 = vand.u32 %v179, 4294901760
    %875 = vmatmul.mubr.f32.gmra.mxu0 %v874
    %v876 = vpop.f32.mrf.mxu0
    %v877 = vadd.f32 %v519, %v876
    %v878 = vpop.f32.mrf.mxu0
    %879 = vmatprep.mubr.f32.mxu0 0.0
    %v880 = vand.u32 %v182, 4294901760
    %881 = vmatmul.mubr.f32.gmra.mxu0 %v880
    %v882 = vpop.f32.mrf.mxu0
    %v883 = vadd.f32 %v529, %v882
    %v884 = vpop.f32.mrf.mxu0
    %885 = vmatprep.mubr.f32.mxu0 0.0
    %v886 = vand.u32 %v185, 4294901760
    %887 = vmatmul.mubr.f32.gmra.mxu0 %v886
    %v888 = vpop.f32.mrf.mxu0
    %v889 = vadd.f32 %v539, %v888
    %v890 = vpop.f32.mrf.mxu0
    %891 = vmatprep.mubr.f32.mxu0 0.0
    %v892 = vand.u32 %v188, 4294901760
    %893 = vmatmul.mubr.f32.gmra.mxu0 %v892
    %v894 = vpop.f32.mrf.mxu0
    %v895 = vadd.f32 %v549, %v894
    %v896 = vpop.f32.mrf.mxu0
    %897 = vmatprep.mubr.f32.mxu0 0.0
    %v898 = vand.u32 %v191, 4294901760
    %899 = vmatmul.mubr.f32.gmra.mxu0 %v898
    %v900 = vpop.f32.mrf.mxu0
    %v901 = vadd.f32 %v559, %v900
    %v902 = vpop.f32.mrf.mxu0
    %903 = vmatprep.mubr.f32.mxu0 0.0
    %v904 = vand.u32 %v194, 4294901760
    %905 = vmatmul.mubr.f32.gmra.mxu0 %v904
    %v906 = vpop.f32.mrf.mxu0
    %v907 = vadd.f32 %v569, %v906
    %v908 = vpop.f32.mrf.mxu0
    %909 = vmatprep.mubr.f32.mxu0 0.0
    %v910 = vand.u32 %v197, 4294901760
    %911 = vmatmul.mubr.f32.gmra.mxu0 %v910
    %v912 = vpop.f32.mrf.mxu0
    %v913 = vadd.f32 %v579, %v912
    %v914 = vpop.f32.mrf.mxu0
    %915 = vmatprep.mubr.f32.mxu0 0.0
    %v916 = vand.u32 %v200, 4294901760
    %917 = vmatmul.mubr.f32.gmra.mxu0 %v916
    %v918 = vpop.f32.mrf.mxu0
    %v919 = vadd.f32 %v589, %v918
    %v920 = vpop.f32.mrf.mxu0
    %921 = vmatprep.mubr.f32.mxu0 0.0
    %v922 = vand.u32 %v203, 4294901760
    %923 = vmatmul.mubr.f32.gmra.mxu0 %v922
    %v924 = vpop.f32.mrf.mxu0
    %v925 = vadd.f32 %v599, %v924
    %v926 = vpop.f32.mrf.mxu0
    %927 = vmatprep.mubr.f32.mxu0 0.0
    %v928 = vand.u32 %v206, 4294901760
    %929 = vmatmul.mubr.f32.gmra.mxu0 %v928
    %v930 = vpop.f32.mrf.mxu0
    %v931 = vadd.f32 %v609, %v930
    %v932 = vpop.f32.mrf.mxu0
    %933 = vmatprep.mubr.f32.mxu0 0.0
    %v934 = vand.u32 %v209, 4294901760
    %935 = vmatmul.mubr.f32.gmra.mxu0 %v934
    %v936 = vpop.f32.mrf.mxu0
    %v937 = vadd.f32 %v619, %v936
    %v938 = vpop.f32.mrf.mxu0
    %939 = vmatprep.mubr.f32.mxu0 0.0
    %v940 = vand.u32 %v212, 4294901760
    %941 = vmatmul.mubr.f32.gmra.mxu0 %v940
    %v942 = vpop.f32.mrf.mxu0
    %v943 = vadd.f32 %v629, %v942
    %v944 = vpop.f32.mrf.mxu0
    %945 = vmatprep.mubr.f32.mxu0 0.0
    %v946 = vand.u32 %v215, 4294901760
    %947 = vmatmul.mubr.f32.gmra.mxu0 %v946
    %v948 = vpop.f32.mrf.mxu0
    %v949 = vadd.f32 %v639, %v948
    %v950 = vpop.f32.mrf.mxu0
    %951 = vmatprep.mubr.f32.mxu0 0.0
    %v952 = vand.u32 %v218, 4294901760
    %953 = vmatmul.mubr.f32.gmra.mxu0 %v952
    %v954 = vpop.f32.mrf.mxu0
    %v955 = vadd.f32 %v649, %v954
    %v956 = vpop.f32.mrf.mxu0
    %957 = vmatprep.mubr.f32.mxu0 0.0
    %v958 = vand.u32 %v221, 4294901760
    %959 = vmatmul.mubr.f32.gmra.mxu0 %v958
    %v960 = vpop.f32.mrf.mxu0
    %v961 = vadd.f32 %v659, %v960
    %v962 = vpop.f32.mrf.mxu0
    %963 = vmatprep.mubr.f32.mxu0 0.0
    %v964 = vand.u32 %v224, 4294901760
    %965 = vmatmul.mubr.f32.gmra.mxu0 %v964
    %v966 = vpop.f32.mrf.mxu0
    %v967 = vadd.f32 %v669, %v966
    %v968 = vpop.f32.mrf.mxu0
    %969 = vdwg.mxu0
    %970 = vmatprep.subr.mxu0 0.0
    %971 = vmatpush1.msra.mxu0 0.0
    %972 = vmatprep.subr.mxu0 0.0
    %973 = vmatpush1.msra.mxu0 0.0
    %974 = vmatprep.subr.mxu0 0.0
    %975 = vmatpush1.msra.mxu0 0.0
    %976 = vmatprep.subr.mxu0 0.0
    %977 = vmatpush1.msra.mxu0 0.0
    %978 = vmatprep.subr.mxu0 0.0
    %979 = vmatpush1.msra.mxu0 0.0
    %980 = vmatprep.subr.mxu0 0.0
    %981 = vmatpush1.msra.mxu0 0.0
    %982 = vmatprep.subr.mxu0 0.0
    %983 = vmatpush1.msra.mxu0 0.0
    %984 = vmatprep.subr.mxu0 0.0
    %985 = vmatpush1.msra.mxu0 0.0
    %986 = vmatprep.subr.mxu0 0.0
    %987 = vmatpush1.msra.mxu0 0.0
    %988 = vmatprep.subr.mxu0 0.0
    %989 = vmatpush1.msra.mxu0 0.0
    %990 = vmatprep.subr.mxu0 0.0
    %991 = vmatpush1.msra.mxu0 0.0
    %992 = vmatprep.subr.mxu0 0.0
    %993 = vmatpush1.msra.mxu0 0.0
    %994 = vmatprep.subr.mxu0 0.0
    %995 = vmatpush1.msra.mxu0 0.0
    %996 = vmatprep.subr.mxu0 0.0
    %997 = vmatpush1.msra.mxu0 0.0
    %998 = vmatprep.subr.mxu0 0.0
    %999 = vmatpush1.msra.mxu0 0.0
    %1000 = vmatprep.subr.mxu0 0.0
    %v1001 = vand.u32 %v110, 4294901760
    %v1002 = vsub.f32 %v110, %v1001
    %1003 = vmatpush1.msra.mxu0 %v1002
    %1004 = vmatprep.subr.mxu0 0.0
    %1005 = vmatpush2.msra.mxu0 0.0
    %1006 = vmatprep.subr.mxu0 0.0
    %1007 = vmatpush2.msra.mxu0 0.0
    %1008 = vmatprep.subr.mxu0 0.0
    %1009 = vmatpush2.msra.mxu0 0.0
    %1010 = vmatprep.subr.mxu0 0.0
    %1011 = vmatpush2.msra.mxu0 0.0
    %1012 = vmatprep.subr.mxu0 0.0
    %1013 = vmatpush2.msra.mxu0 0.0
    %1014 = vmatprep.subr.mxu0 0.0
    %1015 = vmatpush2.msra.mxu0 0.0
    %1016 = vmatprep.subr.mxu0 0.0
    %1017 = vmatpush2.msra.mxu0 0.0
    %1018 = vmatprep.subr.mxu0 0.0
    %1019 = vmatpush2.msra.mxu0 0.0
    %1020 = vmatprep.subr.mxu0 0.0
    %1021 = vmatpush2.msra.mxu0 0.0
    %1022 = vmatprep.subr.mxu0 0.0
    %1023 = vmatpush2.msra.mxu0 0.0
    %1024 = vmatprep.subr.mxu0 0.0
    %1025 = vmatpush2.msra.mxu0 0.0
    %1026 = vmatprep.subr.mxu0 0.0
    %1027 = vmatpush2.msra.mxu0 0.0
    %1028 = vmatprep.subr.mxu0 0.0
    %1029 = vmatpush2.msra.mxu0 0.0
    %1030 = vmatprep.subr.mxu0 0.0
    %1031 = vmatpush2.msra.mxu0 0.0
    %1032 = vmatprep.subr.mxu0 0.0
    %1033 = vmatpush2.msra.mxu0 0.0
    %1034 = vmatprep.subr.mxu0 0.0
    %1035 = vmatpush2.msra.mxu0 0.0
    %1036 = vmatprep.mubr.f32.mxu0 0.0
    %v1037 = vand.u32 %v113, 4294901760
    %v1038 = vsub.f32 %v113, %v1037
    %1039 = vmatmul.mubr.f32.gmra.mxu0 %v1038
    %v1040 = vpop.f32.mrf.mxu0
    %v1041 = vadd.f32 %v745, %v1040
    %v1042 = vpop.f32.mrf.mxu0
    %1043 = vmatprep.mubr.f32.mxu0 0.0
    %v1044 = vand.u32 %v116, 4294901760
    %v1045 = vsub.f32 %v116, %v1044
    %1046 = vmatmul.mubr.f32.gmra.mxu0 %v1045
    %v1047 = vpop.f32.mrf.mxu0
    %v1048 = vadd.f32 %v751, %v1047
    %v1049 = vpop.f32.mrf.mxu0
    %1050 = vmatprep.mubr.f32.mxu0 0.0
    %v1051 = vand.u32 %v119, 4294901760
    %v1052 = vsub.f32 %v119, %v1051
    %1053 = vmatmul.mubr.f32.gmra.mxu0 %v1052
    %v1054 = vpop.f32.mrf.mxu0
    %v1055 = vadd.f32 %v757, %v1054
    %v1056 = vpop.f32.mrf.mxu0
    %1057 = vmatprep.mubr.f32.mxu0 0.0
    %v1058 = vand.u32 %v122, 4294901760
    %v1059 = vsub.f32 %v122, %v1058
    %1060 = vmatmul.mubr.f32.gmra.mxu0 %v1059
    %v1061 = vpop.f32.mrf.mxu0
    %v1062 = vadd.f32 %v763, %v1061
    %v1063 = vpop.f32.mrf.mxu0
    %1064 = vmatprep.mubr.f32.mxu0 0.0
    %v1065 = vand.u32 %v125, 4294901760
    %v1066 = vsub.f32 %v125, %v1065
    %1067 = vmatmul.mubr.f32.gmra.mxu0 %v1066
    %v1068 = vpop.f32.mrf.mxu0
    %v1069 = vadd.f32 %v769, %v1068
    %v1070 = vpop.f32.mrf.mxu0
    %1071 = vmatprep.mubr.f32.mxu0 0.0
    %v1072 = vand.u32 %v128, 4294901760
    %v1073 = vsub.f32 %v128, %v1072
    %1074 = vmatmul.mubr.f32.gmra.mxu0 %v1073
    %v1075 = vpop.f32.mrf.mxu0
    %v1076 = vadd.f32 %v775, %v1075
    %v1077 = vpop.f32.mrf.mxu0
    %1078 = vmatprep.mubr.f32.mxu0 0.0
    %v1079 = vand.u32 %v131, 4294901760
    %v1080 = vsub.f32 %v131, %v1079
    %1081 = vmatmul.mubr.f32.gmra.mxu0 %v1080
    %v1082 = vpop.f32.mrf.mxu0
    %v1083 = vadd.f32 %v781, %v1082
    %v1084 = vpop.f32.mrf.mxu0
    %1085 = vmatprep.mubr.f32.mxu0 0.0
    %v1086 = vand.u32 %v134, 4294901760
    %v1087 = vsub.f32 %v134, %v1086
    %1088 = vmatmul.mubr.f32.gmra.mxu0 %v1087
    %v1089 = vpop.f32.mrf.mxu0
    %v1090 = vadd.f32 %v787, %v1089
    %v1091 = vpop.f32.mrf.mxu0
    %1092 = vmatprep.mubr.f32.mxu0 0.0
    %v1093 = vand.u32 %v137, 4294901760
    %v1094 = vsub.f32 %v137, %v1093
    %1095 = vmatmul.mubr.f32.gmra.mxu0 %v1094
    %v1096 = vpop.f32.mrf.mxu0
    %v1097 = vadd.f32 %v793, %v1096
    %v1098 = vpop.f32.mrf.mxu0
    %1099 = vmatprep.mubr.f32.mxu0 0.0
    %v1100 = vand.u32 %v140, 4294901760
    %v1101 = vsub.f32 %v140, %v1100
    %1102 = vmatmul.mubr.f32.gmra.mxu0 %v1101
    %v1103 = vpop.f32.mrf.mxu0
    %v1104 = vadd.f32 %v799, %v1103
    %v1105 = vpop.f32.mrf.mxu0
    %1106 = vmatprep.mubr.f32.mxu0 0.0
    %v1107 = vand.u32 %v143, 4294901760
    %v1108 = vsub.f32 %v143, %v1107
    %1109 = vmatmul.mubr.f32.gmra.mxu0 %v1108
    %v1110 = vpop.f32.mrf.mxu0
    %v1111 = vadd.f32 %v805, %v1110
    %v1112 = vpop.f32.mrf.mxu0
    %1113 = vmatprep.mubr.f32.mxu0 0.0
    %v1114 = vand.u32 %v146, 4294901760
    %v1115 = vsub.f32 %v146, %v1114
    %1116 = vmatmul.mubr.f32.gmra.mxu0 %v1115
    %v1117 = vpop.f32.mrf.mxu0
    %v1118 = vadd.f32 %v811, %v1117
    %v1119 = vpop.f32.mrf.mxu0
    %1120 = vmatprep.mubr.f32.mxu0 0.0
    %v1121 = vand.u32 %v149, 4294901760
    %v1122 = vsub.f32 %v149, %v1121
    %1123 = vmatmul.mubr.f32.gmra.mxu0 %v1122
    %v1124 = vpop.f32.mrf.mxu0
    %v1125 = vadd.f32 %v817, %v1124
    %v1126 = vpop.f32.mrf.mxu0
    %1127 = vmatprep.mubr.f32.mxu0 0.0
    %v1128 = vand.u32 %v152, 4294901760
    %v1129 = vsub.f32 %v152, %v1128
    %1130 = vmatmul.mubr.f32.gmra.mxu0 %v1129
    %v1131 = vpop.f32.mrf.mxu0
    %v1132 = vadd.f32 %v823, %v1131
    %v1133 = vpop.f32.mrf.mxu0
    %1134 = vmatprep.mubr.f32.mxu0 0.0
    %v1135 = vand.u32 %v155, 4294901760
    %v1136 = vsub.f32 %v155, %v1135
    %1137 = vmatmul.mubr.f32.gmra.mxu0 %v1136
    %v1138 = vpop.f32.mrf.mxu0
    %v1139 = vadd.f32 %v829, %v1138
    %v1140 = vpop.f32.mrf.mxu0
    %1141 = vmatprep.mubr.f32.mxu0 0.0
    %v1142 = vand.u32 %v158, 4294901760
    %v1143 = vsub.f32 %v158, %v1142
    %1144 = vmatmul.mubr.f32.gmra.mxu0 %v1143
    %v1145 = vpop.f32.mrf.mxu0
    %v1146 = vadd.f32 %v835, %v1145
    %v1147 = vpop.f32.mrf.mxu0
    %1148 = vmatprep.mubr.f32.mxu0 0.0
    %v1149 = vand.u32 %v161, 4294901760
    %v1150 = vsub.f32 %v161, %v1149
    %1151 = vmatmul.mubr.f32.gmra.mxu0 %v1150
    %v1152 = vpop.f32.mrf.mxu0
    %v1153 = vadd.f32 %v841, %v1152
    %v1154 = vpop.f32.mrf.mxu0
    %1155 = vmatprep.mubr.f32.mxu0 0.0
    %v1156 = vand.u32 %v164, 4294901760
    %v1157 = vsub.f32 %v164, %v1156
    %1158 = vmatmul.mubr.f32.gmra.mxu0 %v1157
    %v1159 = vpop.f32.mrf.mxu0
    %v1160 = vadd.f32 %v847, %v1159
    %v1161 = vpop.f32.mrf.mxu0
    %1162 = vmatprep.mubr.f32.mxu0 0.0
    %v1163 = vand.u32 %v167, 4294901760
    %v1164 = vsub.f32 %v167, %v1163
    %1165 = vmatmul.mubr.f32.gmra.mxu0 %v1164
    %v1166 = vpop.f32.mrf.mxu0
    %v1167 = vadd.f32 %v853, %v1166
    %v1168 = vpop.f32.mrf.mxu0
    %1169 = vmatprep.mubr.f32.mxu0 0.0
    %v1170 = vand.u32 %v170, 4294901760
    %v1171 = vsub.f32 %v170, %v1170
    %1172 = vmatmul.mubr.f32.gmra.mxu0 %v1171
    %v1173 = vpop.f32.mrf.mxu0
    %v1174 = vadd.f32 %v859, %v1173
    %v1175 = vpop.f32.mrf.mxu0
    %1176 = vmatprep.mubr.f32.mxu0 0.0
    %v1177 = vand.u32 %v173, 4294901760
    %v1178 = vsub.f32 %v173, %v1177
    %1179 = vmatmul.mubr.f32.gmra.mxu0 %v1178
    %v1180 = vpop.f32.mrf.mxu0
    %v1181 = vadd.f32 %v865, %v1180
    %v1182 = vpop.f32.mrf.mxu0
    %1183 = vmatprep.mubr.f32.mxu0 0.0
    %v1184 = vand.u32 %v176, 4294901760
    %v1185 = vsub.f32 %v176, %v1184
    %1186 = vmatmul.mubr.f32.gmra.mxu0 %v1185
    %v1187 = vpop.f32.mrf.mxu0
    %v1188 = vadd.f32 %v871, %v1187
    %v1189 = vpop.f32.mrf.mxu0
    %1190 = vmatprep.mubr.f32.mxu0 0.0
    %v1191 = vand.u32 %v179, 4294901760
    %v1192 = vsub.f32 %v179, %v1191
    %1193 = vmatmul.mubr.f32.gmra.mxu0 %v1192
    %v1194 = vpop.f32.mrf.mxu0
    %v1195 = vadd.f32 %v877, %v1194
    %v1196 = vpop.f32.mrf.mxu0
    %1197 = vmatprep.mubr.f32.mxu0 0.0
    %v1198 = vand.u32 %v182, 4294901760
    %v1199 = vsub.f32 %v182, %v1198
    %1200 = vmatmul.mubr.f32.gmra.mxu0 %v1199
    %v1201 = vpop.f32.mrf.mxu0
    %v1202 = vadd.f32 %v883, %v1201
    %v1203 = vpop.f32.mrf.mxu0
    %1204 = vmatprep.mubr.f32.mxu0 0.0
    %v1205 = vand.u32 %v185, 4294901760
    %v1206 = vsub.f32 %v185, %v1205
    %1207 = vmatmul.mubr.f32.gmra.mxu0 %v1206
    %v1208 = vpop.f32.mrf.mxu0
    %v1209 = vadd.f32 %v889, %v1208
    %v1210 = vpop.f32.mrf.mxu0
    %1211 = vmatprep.mubr.f32.mxu0 0.0
    %v1212 = vand.u32 %v188, 4294901760
    %v1213 = vsub.f32 %v188, %v1212
    %1214 = vmatmul.mubr.f32.gmra.mxu0 %v1213
    %v1215 = vpop.f32.mrf.mxu0
    %v1216 = vadd.f32 %v895, %v1215
    %v1217 = vpop.f32.mrf.mxu0
    %1218 = vmatprep.mubr.f32.mxu0 0.0
    %v1219 = vand.u32 %v191, 4294901760
    %v1220 = vsub.f32 %v191, %v1219
    %1221 = vmatmul.mubr.f32.gmra.mxu0 %v1220
    %v1222 = vpop.f32.mrf.mxu0
    %v1223 = vadd.f32 %v901, %v1222
    %v1224 = vpop.f32.mrf.mxu0
    %1225 = vmatprep.mubr.f32.mxu0 0.0
    %v1226 = vand.u32 %v194, 4294901760
    %v1227 = vsub.f32 %v194, %v1226
    %1228 = vmatmul.mubr.f32.gmra.mxu0 %v1227
    %v1229 = vpop.f32.mrf.mxu0
    %v1230 = vadd.f32 %v907, %v1229
    %v1231 = vpop.f32.mrf.mxu0
    %1232 = vmatprep.mubr.f32.mxu0 0.0
    %v1233 = vand.u32 %v197, 4294901760
    %v1234 = vsub.f32 %v197, %v1233
    %1235 = vmatmul.mubr.f32.gmra.mxu0 %v1234
    %v1236 = vpop.f32.mrf.mxu0
    %v1237 = vadd.f32 %v913, %v1236
    %v1238 = vpop.f32.mrf.mxu0
    %1239 = vmatprep.mubr.f32.mxu0 0.0
    %v1240 = vand.u32 %v200, 4294901760
    %v1241 = vsub.f32 %v200, %v1240
    %1242 = vmatmul.mubr.f32.gmra.mxu0 %v1241
    %v1243 = vpop.f32.mrf.mxu0
    %v1244 = vadd.f32 %v919, %v1243
    %v1245 = vpop.f32.mrf.mxu0
    %1246 = vmatprep.mubr.f32.mxu0 0.0
    %v1247 = vand.u32 %v203, 4294901760
    %v1248 = vsub.f32 %v203, %v1247
    %1249 = vmatmul.mubr.f32.gmra.mxu0 %v1248
    %v1250 = vpop.f32.mrf.mxu0
    %v1251 = vadd.f32 %v925, %v1250
    %v1252 = vpop.f32.mrf.mxu0
    %1253 = vmatprep.mubr.f32.mxu0 0.0
    %v1254 = vand.u32 %v206, 4294901760
    %v1255 = vsub.f32 %v206, %v1254
    %1256 = vmatmul.mubr.f32.gmra.mxu0 %v1255
    %v1257 = vpop.f32.mrf.mxu0
    %v1258 = vadd.f32 %v931, %v1257
    %v1259 = vpop.f32.mrf.mxu0
    %1260 = vmatprep.mubr.f32.mxu0 0.0
    %v1261 = vand.u32 %v209, 4294901760
    %v1262 = vsub.f32 %v209, %v1261
    %1263 = vmatmul.mubr.f32.gmra.mxu0 %v1262
    %v1264 = vpop.f32.mrf.mxu0
    %v1265 = vadd.f32 %v937, %v1264
    %v1266 = vpop.f32.mrf.mxu0
    %1267 = vmatprep.mubr.f32.mxu0 0.0
    %v1268 = vand.u32 %v212, 4294901760
    %v1269 = vsub.f32 %v212, %v1268
    %1270 = vmatmul.mubr.f32.gmra.mxu0 %v1269
    %v1271 = vpop.f32.mrf.mxu0
    %v1272 = vadd.f32 %v943, %v1271
    %v1273 = vpop.f32.mrf.mxu0
    %1274 = vmatprep.mubr.f32.mxu0 0.0
    %v1275 = vand.u32 %v215, 4294901760
    %v1276 = vsub.f32 %v215, %v1275
    %1277 = vmatmul.mubr.f32.gmra.mxu0 %v1276
    %v1278 = vpop.f32.mrf.mxu0
    %v1279 = vadd.f32 %v949, %v1278
    %v1280 = vpop.f32.mrf.mxu0
    %1281 = vmatprep.mubr.f32.mxu0 0.0
    %v1282 = vand.u32 %v218, 4294901760
    %v1283 = vsub.f32 %v218, %v1282
    %1284 = vmatmul.mubr.f32.gmra.mxu0 %v1283
    %v1285 = vpop.f32.mrf.mxu0
    %v1286 = vadd.f32 %v955, %v1285
    %v1287 = vpop.f32.mrf.mxu0
    %1288 = vmatprep.mubr.f32.mxu0 0.0
    %v1289 = vand.u32 %v221, 4294901760
    %v1290 = vsub.f32 %v221, %v1289
    %1291 = vmatmul.mubr.f32.gmra.mxu0 %v1290
    %v1292 = vpop.f32.mrf.mxu0
    %v1293 = vadd.f32 %v961, %v1292
    %v1294 = vpop.f32.mrf.mxu0
    %1295 = vmatprep.mubr.f32.mxu0 0.0
    %v1296 = vand.u32 %v224, 4294901760
    %v1297 = vsub.f32 %v224, %v1296
    %1298 = vmatmul.mubr.f32.gmra.mxu0 %v1297
    %v1299 = vpop.f32.mrf.mxu0
    %v1300 = vadd.f32 %v967, %v1299
    %v1301 = vpop.f32.mrf.mxu0
    %1302 = vdwg.mxu0
    %1303 = vmatprep.subr.mxu0 0.0
    %1304 = vmatpush1.msra.mxu0 0.0
    %1305 = vmatprep.subr.mxu0 0.0
    %1306 = vmatpush1.msra.mxu0 0.0
    %1307 = vmatprep.subr.mxu0 0.0
    %1308 = vmatpush1.msra.mxu0 0.0
    %1309 = vmatprep.subr.mxu0 0.0
    %1310 = vmatpush1.msra.mxu0 0.0
    %1311 = vmatprep.subr.mxu0 0.0
    %1312 = vmatpush1.msra.mxu0 0.0
    %1313 = vmatprep.subr.mxu0 0.0
    %1314 = vmatpush1.msra.mxu0 0.0
    %1315 = vmatprep.subr.mxu0 0.0
    %1316 = vmatpush1.msra.mxu0 0.0
    %1317 = vmatprep.subr.mxu0 0.0
    %1318 = vmatpush1.msra.mxu0 0.0
    %1319 = vmatprep.subr.mxu0 0.0
    %1320 = vmatpush1.msra.mxu0 0.0
    %1321 = vmatprep.subr.mxu0 0.0
    %1322 = vmatpush1.msra.mxu0 0.0
    %1323 = vmatprep.subr.mxu0 0.0
    %1324 = vmatpush1.msra.mxu0 0.0
    %1325 = vmatprep.subr.mxu0 0.0
    %1326 = vmatpush1.msra.mxu0 0.0
    %1327 = vmatprep.subr.mxu0 0.0
    %1328 = vmatpush1.msra.mxu0 0.0
    %1329 = vmatprep.subr.mxu0 0.0
    %1330 = vmatpush1.msra.mxu0 0.0
    %1331 = vmatprep.subr.mxu0 0.0
    %1332 = vmatpush1.msra.mxu0 0.0
    %1333 = vmatprep.subr.mxu0 0.0
    %v1334 = vand.u32 %v110, 4294901760
    %1335 = vmatpush1.msra.mxu0 %v1334
    %1336 = vmatprep.subr.mxu0 0.0
    %1337 = vmatpush2.msra.mxu0 0.0
    %1338 = vmatprep.subr.mxu0 0.0
    %1339 = vmatpush2.msra.mxu0 0.0
    %1340 = vmatprep.subr.mxu0 0.0
    %1341 = vmatpush2.msra.mxu0 0.0
    %1342 = vmatprep.subr.mxu0 0.0
    %1343 = vmatpush2.msra.mxu0 0.0
    %1344 = vmatprep.subr.mxu0 0.0
    %1345 = vmatpush2.msra.mxu0 0.0
    %1346 = vmatprep.subr.mxu0 0.0
    %1347 = vmatpush2.msra.mxu0 0.0
    %1348 = vmatprep.subr.mxu0 0.0
    %1349 = vmatpush2.msra.mxu0 0.0
    %1350 = vmatprep.subr.mxu0 0.0
    %1351 = vmatpush2.msra.mxu0 0.0
    %1352 = vmatprep.subr.mxu0 0.0
    %1353 = vmatpush2.msra.mxu0 0.0
    %1354 = vmatprep.subr.mxu0 0.0
    %1355 = vmatpush2.msra.mxu0 0.0
    %1356 = vmatprep.subr.mxu0 0.0
    %1357 = vmatpush2.msra.mxu0 0.0
    %1358 = vmatprep.subr.mxu0 0.0
    %1359 = vmatpush2.msra.mxu0 0.0
    %1360 = vmatprep.subr.mxu0 0.0
    %1361 = vmatpush2.msra.mxu0 0.0
    %1362 = vmatprep.subr.mxu0 0.0
    %1363 = vmatpush2.msra.mxu0 0.0
    %1364 = vmatprep.subr.mxu0 0.0
    %1365 = vmatpush2.msra.mxu0 0.0
    %1366 = vmatprep.subr.mxu0 0.0
    %1367 = vmatpush2.msra.mxu0 0.0
    %1368 = vmatprep.mubr.f32.mxu0 0.0
    %v1369 = vand.u32 %v113, 4294901760
    %v1370 = vsub.f32 %v113, %v1369
    %v1371 = vand.u32 %v1370, 4294901760
    %1372 = vmatmul.mubr.f32.gmra.mxu0 %v1371
    %v1373 = vpop.f32.mrf.mxu0
    %v1374 = vadd.f32 %v1041, %v1373
    %v1375 = vpop.f32.mrf.mxu0
    %1376 = vmatprep.mubr.f32.mxu0 0.0
    %v1377 = vand.u32 %v116, 4294901760
    %v1378 = vsub.f32 %v116, %v1377
    %v1379 = vand.u32 %v1378, 4294901760
    %1380 = vmatmul.mubr.f32.gmra.mxu0 %v1379
    %v1381 = vpop.f32.mrf.mxu0
    %v1382 = vadd.f32 %v1048, %v1381
    %v1383 = vpop.f32.mrf.mxu0
    %1384 = vmatprep.mubr.f32.mxu0 0.0
    %v1385 = vand.u32 %v119, 4294901760
    %v1386 = vsub.f32 %v119, %v1385
    %v1387 = vand.u32 %v1386, 4294901760
    %1388 = vmatmul.mubr.f32.gmra.mxu0 %v1387
    %v1389 = vpop.f32.mrf.mxu0
    %v1390 = vadd.f32 %v1055, %v1389
    %v1391 = vpop.f32.mrf.mxu0
    %1392 = vmatprep.mubr.f32.mxu0 0.0
    %v1393 = vand.u32 %v122, 4294901760
    %v1394 = vsub.f32 %v122, %v1393
    %v1395 = vand.u32 %v1394, 4294901760
    %1396 = vmatmul.mubr.f32.gmra.mxu0 %v1395
    %v1397 = vpop.f32.mrf.mxu0
    %v1398 = vadd.f32 %v1062, %v1397
    %v1399 = vpop.f32.mrf.mxu0
    %1400 = vmatprep.mubr.f32.mxu0 0.0
    %v1401 = vand.u32 %v125, 4294901760
    %v1402 = vsub.f32 %v125, %v1401
    %v1403 = vand.u32 %v1402, 4294901760
    %1404 = vmatmul.mubr.f32.gmra.mxu0 %v1403
    %v1405 = vpop.f32.mrf.mxu0
    %v1406 = vadd.f32 %v1069, %v1405
    %v1407 = vpop.f32.mrf.mxu0
    %1408 = vmatprep.mubr.f32.mxu0 0.0
    %v1409 = vand.u32 %v128, 4294901760
    %v1410 = vsub.f32 %v128, %v1409
    %v1411 = vand.u32 %v1410, 4294901760
    %1412 = vmatmul.mubr.f32.gmra.mxu0 %v1411
    %v1413 = vpop.f32.mrf.mxu0
    %v1414 = vadd.f32 %v1076, %v1413
    %v1415 = vpop.f32.mrf.mxu0
    %1416 = vmatprep.mubr.f32.mxu0 0.0
    %v1417 = vand.u32 %v131, 4294901760
    %v1418 = vsub.f32 %v131, %v1417
    %v1419 = vand.u32 %v1418, 4294901760
    %1420 = vmatmul.mubr.f32.gmra.mxu0 %v1419
    %v1421 = vpop.f32.mrf.mxu0
    %v1422 = vadd.f32 %v1083, %v1421
    %v1423 = vpop.f32.mrf.mxu0
    %1424 = vmatprep.mubr.f32.mxu0 0.0
    %v1425 = vand.u32 %v134, 4294901760
    %v1426 = vsub.f32 %v134, %v1425
    %v1427 = vand.u32 %v1426, 4294901760
    %1428 = vmatmul.mubr.f32.gmra.mxu0 %v1427
    %v1429 = vpop.f32.mrf.mxu0
    %v1430 = vadd.f32 %v1090, %v1429
    %v1431 = vpop.f32.mrf.mxu0
    %1432 = vmatprep.mubr.f32.mxu0 0.0
    %v1433 = vand.u32 %v137, 4294901760
    %v1434 = vsub.f32 %v137, %v1433
    %v1435 = vand.u32 %v1434, 4294901760
    %1436 = vmatmul.mubr.f32.gmra.mxu0 %v1435
    %v1437 = vpop.f32.mrf.mxu0
    %v1438 = vadd.f32 %v1097, %v1437
    %v1439 = vpop.f32.mrf.mxu0
    %1440 = vmatprep.mubr.f32.mxu0 0.0
    %v1441 = vand.u32 %v140, 4294901760
    %v1442 = vsub.f32 %v140, %v1441
    %v1443 = vand.u32 %v1442, 4294901760
    %1444 = vmatmul.mubr.f32.gmra.mxu0 %v1443
    %v1445 = vpop.f32.mrf.mxu0
    %v1446 = vadd.f32 %v1104, %v1445
    %v1447 = vpop.f32.mrf.mxu0
    %1448 = vmatprep.mubr.f32.mxu0 0.0
    %v1449 = vand.u32 %v143, 4294901760
    %v1450 = vsub.f32 %v143, %v1449
    %v1451 = vand.u32 %v1450, 4294901760
    %1452 = vmatmul.mubr.f32.gmra.mxu0 %v1451
    %v1453 = vpop.f32.mrf.mxu0
    %v1454 = vadd.f32 %v1111, %v1453
    %v1455 = vpop.f32.mrf.mxu0
    %1456 = vmatprep.mubr.f32.mxu0 0.0
    %v1457 = vand.u32 %v146, 4294901760
    %v1458 = vsub.f32 %v146, %v1457
    %v1459 = vand.u32 %v1458, 4294901760
    %1460 = vmatmul.mubr.f32.gmra.mxu0 %v1459
    %v1461 = vpop.f32.mrf.mxu0
    %v1462 = vadd.f32 %v1118, %v1461
    %v1463 = vpop.f32.mrf.mxu0
    %1464 = vmatprep.mubr.f32.mxu0 0.0
    %v1465 = vand.u32 %v149, 4294901760
    %v1466 = vsub.f32 %v149, %v1465
    %v1467 = vand.u32 %v1466, 4294901760
    %1468 = vmatmul.mubr.f32.gmra.mxu0 %v1467
    %v1469 = vpop.f32.mrf.mxu0
    %v1470 = vadd.f32 %v1125, %v1469
    %v1471 = vpop.f32.mrf.mxu0
    %1472 = vmatprep.mubr.f32.mxu0 0.0
    %v1473 = vand.u32 %v152, 4294901760
    %v1474 = vsub.f32 %v152, %v1473
    %v1475 = vand.u32 %v1474, 4294901760
    %1476 = vmatmul.mubr.f32.gmra.mxu0 %v1475
    %v1477 = vpop.f32.mrf.mxu0
    %v1478 = vadd.f32 %v1132, %v1477
    %v1479 = vpop.f32.mrf.mxu0
    %1480 = vmatprep.mubr.f32.mxu0 0.0
    %v1481 = vand.u32 %v155, 4294901760
    %v1482 = vsub.f32 %v155, %v1481
    %v1483 = vand.u32 %v1482, 4294901760
    %1484 = vmatmul.mubr.f32.gmra.mxu0 %v1483
    %v1485 = vpop.f32.mrf.mxu0
    %v1486 = vadd.f32 %v1139, %v1485
    %v1487 = vpop.f32.mrf.mxu0
    %1488 = vmatprep.mubr.f32.mxu0 0.0
    %v1489 = vand.u32 %v158, 4294901760
    %v1490 = vsub.f32 %v158, %v1489
    %v1491 = vand.u32 %v1490, 4294901760
    %1492 = vmatmul.mubr.f32.gmra.mxu0 %v1491
    %v1493 = vpop.f32.mrf.mxu0
    %v1494 = vadd.f32 %v1146, %v1493
    %v1495 = vpop.f32.mrf.mxu0
    %1496 = vmatprep.mubr.f32.mxu0 0.0
    %v1497 = vand.u32 %v161, 4294901760
    %v1498 = vsub.f32 %v161, %v1497
    %v1499 = vand.u32 %v1498, 4294901760
    %1500 = vmatmul.mubr.f32.gmra.mxu0 %v1499
    %v1501 = vpop.f32.mrf.mxu0
    %v1502 = vadd.f32 %v1153, %v1501
    %v1503 = vpop.f32.mrf.mxu0
    %1504 = vmatprep.mubr.f32.mxu0 0.0
    %v1505 = vand.u32 %v164, 4294901760
    %v1506 = vsub.f32 %v164, %v1505
    %v1507 = vand.u32 %v1506, 4294901760
    %1508 = vmatmul.mubr.f32.gmra.mxu0 %v1507
    %v1509 = vpop.f32.mrf.mxu0
    %v1510 = vadd.f32 %v1160, %v1509
    %v1511 = vpop.f32.mrf.mxu0
    %1512 = vmatprep.mubr.f32.mxu0 0.0
    %v1513 = vand.u32 %v167, 4294901760
    %v1514 = vsub.f32 %v167, %v1513
    %v1515 = vand.u32 %v1514, 4294901760
    %1516 = vmatmul.mubr.f32.gmra.mxu0 %v1515
    %v1517 = vpop.f32.mrf.mxu0
    %v1518 = vadd.f32 %v1167, %v1517
    %v1519 = vpop.f32.mrf.mxu0
    %1520 = vmatprep.mubr.f32.mxu0 0.0
    %v1521 = vand.u32 %v170, 4294901760
    %v1522 = vsub.f32 %v170, %v1521
    %v1523 = vand.u32 %v1522, 4294901760
    %1524 = vmatmul.mubr.f32.gmra.mxu0 %v1523
    %v1525 = vpop.f32.mrf.mxu0
    %v1526 = vadd.f32 %v1174, %v1525
    %v1527 = vpop.f32.mrf.mxu0
    %1528 = vmatprep.mubr.f32.mxu0 0.0
    %v1529 = vand.u32 %v173, 4294901760
    %v1530 = vsub.f32 %v173, %v1529
    %v1531 = vand.u32 %v1530, 4294901760
    %1532 = vmatmul.mubr.f32.gmra.mxu0 %v1531
    %v1533 = vpop.f32.mrf.mxu0
    %v1534 = vadd.f32 %v1181, %v1533
    %v1535 = vpop.f32.mrf.mxu0
    %1536 = vmatprep.mubr.f32.mxu0 0.0
    %v1537 = vand.u32 %v176, 4294901760
    %v1538 = vsub.f32 %v176, %v1537
    %v1539 = vand.u32 %v1538, 4294901760
    %1540 = vmatmul.mubr.f32.gmra.mxu0 %v1539
    %v1541 = vpop.f32.mrf.mxu0
    %v1542 = vadd.f32 %v1188, %v1541
    %v1543 = vpop.f32.mrf.mxu0
    %1544 = vmatprep.mubr.f32.mxu0 0.0
    %v1545 = vand.u32 %v179, 4294901760
    %v1546 = vsub.f32 %v179, %v1545
    %v1547 = vand.u32 %v1546, 4294901760
    %1548 = vmatmul.mubr.f32.gmra.mxu0 %v1547
    %v1549 = vpop.f32.mrf.mxu0
    %v1550 = vadd.f32 %v1195, %v1549
    %v1551 = vpop.f32.mrf.mxu0
    %1552 = vmatprep.mubr.f32.mxu0 0.0
    %v1553 = vand.u32 %v182, 4294901760
    %v1554 = vsub.f32 %v182, %v1553
    %v1555 = vand.u32 %v1554, 4294901760
    %1556 = vmatmul.mubr.f32.gmra.mxu0 %v1555
    %v1557 = vpop.f32.mrf.mxu0
    %v1558 = vadd.f32 %v1202, %v1557
    %v1559 = vpop.f32.mrf.mxu0
    %1560 = vmatprep.mubr.f32.mxu0 0.0
    %v1561 = vand.u32 %v185, 4294901760
    %v1562 = vsub.f32 %v185, %v1561
    %v1563 = vand.u32 %v1562, 4294901760
    %1564 = vmatmul.mubr.f32.gmra.mxu0 %v1563
    %v1565 = vpop.f32.mrf.mxu0
    %v1566 = vadd.f32 %v1209, %v1565
    %v1567 = vpop.f32.mrf.mxu0
    %1568 = vmatprep.mubr.f32.mxu0 0.0
    %v1569 = vand.u32 %v188, 4294901760
    %v1570 = vsub.f32 %v188, %v1569
    %v1571 = vand.u32 %v1570, 4294901760
    %1572 = vmatmul.mubr.f32.gmra.mxu0 %v1571
    %v1573 = vpop.f32.mrf.mxu0
    %v1574 = vadd.f32 %v1216, %v1573
    %v1575 = vpop.f32.mrf.mxu0
    %1576 = vmatprep.mubr.f32.mxu0 0.0
    %v1577 = vand.u32 %v191, 4294901760
    %v1578 = vsub.f32 %v191, %v1577
    %v1579 = vand.u32 %v1578, 4294901760
    %1580 = vmatmul.mubr.f32.gmra.mxu0 %v1579
    %v1581 = vpop.f32.mrf.mxu0
    %v1582 = vadd.f32 %v1223, %v1581
    %v1583 = vpop.f32.mrf.mxu0
    %1584 = vmatprep.mubr.f32.mxu0 0.0
    %v1585 = vand.u32 %v194, 4294901760
    %v1586 = vsub.f32 %v194, %v1585
    %v1587 = vand.u32 %v1586, 4294901760
    %1588 = vmatmul.mubr.f32.gmra.mxu0 %v1587
    %v1589 = vpop.f32.mrf.mxu0
    %v1590 = vadd.f32 %v1230, %v1589
    %v1591 = vpop.f32.mrf.mxu0
    %1592 = vmatprep.mubr.f32.mxu0 0.0
    %v1593 = vand.u32 %v197, 4294901760
    %v1594 = vsub.f32 %v197, %v1593
    %v1595 = vand.u32 %v1594, 4294901760
    %1596 = vmatmul.mubr.f32.gmra.mxu0 %v1595
    %v1597 = vpop.f32.mrf.mxu0
    %v1598 = vadd.f32 %v1237, %v1597
    %v1599 = vpop.f32.mrf.mxu0
    %1600 = vmatprep.mubr.f32.mxu0 0.0
    %v1601 = vand.u32 %v200, 4294901760
    %v1602 = vsub.f32 %v200, %v1601
    %v1603 = vand.u32 %v1602, 4294901760
    %1604 = vmatmul.mubr.f32.gmra.mxu0 %v1603
    %v1605 = vpop.f32.mrf.mxu0
    %v1606 = vadd.f32 %v1244, %v1605
    %v1607 = vpop.f32.mrf.mxu0
    %1608 = vmatprep.mubr.f32.mxu0 0.0
    %v1609 = vand.u32 %v203, 4294901760
    %v1610 = vsub.f32 %v203, %v1609
    %v1611 = vand.u32 %v1610, 4294901760
    %1612 = vmatmul.mubr.f32.gmra.mxu0 %v1611
    %v1613 = vpop.f32.mrf.mxu0
    %v1614 = vadd.f32 %v1251, %v1613
    %v1615 = vpop.f32.mrf.mxu0
    %1616 = vmatprep.mubr.f32.mxu0 0.0
    %v1617 = vand.u32 %v206, 4294901760
    %v1618 = vsub.f32 %v206, %v1617
    %v1619 = vand.u32 %v1618, 4294901760
    %1620 = vmatmul.mubr.f32.gmra.mxu0 %v1619
    %v1621 = vpop.f32.mrf.mxu0
    %v1622 = vadd.f32 %v1258, %v1621
    %v1623 = vpop.f32.mrf.mxu0
    %1624 = vmatprep.mubr.f32.mxu0 0.0
    %v1625 = vand.u32 %v209, 4294901760
    %v1626 = vsub.f32 %v209, %v1625
    %v1627 = vand.u32 %v1626, 4294901760
    %1628 = vmatmul.mubr.f32.gmra.mxu0 %v1627
    %v1629 = vpop.f32.mrf.mxu0
    %v1630 = vadd.f32 %v1265, %v1629
    %v1631 = vpop.f32.mrf.mxu0
    %1632 = vmatprep.mubr.f32.mxu0 0.0
    %v1633 = vand.u32 %v212, 4294901760
    %v1634 = vsub.f32 %v212, %v1633
    %v1635 = vand.u32 %v1634, 4294901760
    %1636 = vmatmul.mubr.f32.gmra.mxu0 %v1635
    %v1637 = vpop.f32.mrf.mxu0
    %v1638 = vadd.f32 %v1272, %v1637
    %v1639 = vpop.f32.mrf.mxu0
    %1640 = vmatprep.mubr.f32.mxu0 0.0
    %v1641 = vand.u32 %v215, 4294901760
    %v1642 = vsub.f32 %v215, %v1641
    %v1643 = vand.u32 %v1642, 4294901760
    %1644 = vmatmul.mubr.f32.gmra.mxu0 %v1643
    %v1645 = vpop.f32.mrf.mxu0
    %v1646 = vadd.f32 %v1279, %v1645
    %v1647 = vpop.f32.mrf.mxu0
    %1648 = vmatprep.mubr.f32.mxu0 0.0
    %v1649 = vand.u32 %v218, 4294901760
    %v1650 = vsub.f32 %v218, %v1649
    %v1651 = vand.u32 %v1650, 4294901760
    %1652 = vmatmul.mubr.f32.gmra.mxu0 %v1651
    %v1653 = vpop.f32.mrf.mxu0
    %v1654 = vadd.f32 %v1286, %v1653
    %v1655 = vpop.f32.mrf.mxu0
    %1656 = vmatprep.mubr.f32.mxu0 0.0
    %v1657 = vand.u32 %v221, 4294901760
    %v1658 = vsub.f32 %v221, %v1657
    %v1659 = vand.u32 %v1658, 4294901760
    %1660 = vmatmul.mubr.f32.gmra.mxu0 %v1659
    %v1661 = vpop.f32.mrf.mxu0
    %v1662 = vadd.f32 %v1293, %v1661
    %v1663 = vpop.f32.mrf.mxu0
    %1664 = vmatprep.mubr.f32.mxu0 0.0
    %v1665 = vand.u32 %v224, 4294901760
    %v1666 = vsub.f32 %v224, %v1665
    %v1667 = vand.u32 %v1666, 4294901760
    %1668 = vmatmul.mubr.f32.gmra.mxu0 %v1667
    %v1669 = vpop.f32.mrf.mxu0
    %v1670 = vadd.f32 %v1300, %v1669
    %v1671 = vpop.f32.mrf.mxu0
    %1672 = vdwg.mxu0
    %1673 = vmatprep.subr.mxu0 0.0
    %1674 = vmatpush1.msra.mxu0 0.0
    %1675 = vmatprep.subr.mxu0 0.0
    %1676 = vmatpush1.msra.mxu0 0.0
    %1677 = vmatprep.subr.mxu0 0.0
    %1678 = vmatpush1.msra.mxu0 0.0
    %1679 = vmatprep.subr.mxu0 0.0
    %1680 = vmatpush1.msra.mxu0 0.0
    %1681 = vmatprep.subr.mxu0 0.0
    %1682 = vmatpush1.msra.mxu0 0.0
    %1683 = vmatprep.subr.mxu0 0.0
    %1684 = vmatpush1.msra.mxu0 0.0
    %1685 = vmatprep.subr.mxu0 0.0
    %1686 = vmatpush1.msra.mxu0 0.0
    %1687 = vmatprep.subr.mxu0 0.0
    %1688 = vmatpush1.msra.mxu0 0.0
    %1689 = vmatprep.subr.mxu0 0.0
    %1690 = vmatpush1.msra.mxu0 0.0
    %1691 = vmatprep.subr.mxu0 0.0
    %1692 = vmatpush1.msra.mxu0 0.0
    %1693 = vmatprep.subr.mxu0 0.0
    %1694 = vmatpush1.msra.mxu0 0.0
    %1695 = vmatprep.subr.mxu0 0.0
    %1696 = vmatpush1.msra.mxu0 0.0
    %1697 = vmatprep.subr.mxu0 0.0
    %1698 = vmatpush1.msra.mxu0 0.0
    %1699 = vmatprep.subr.mxu0 0.0
    %1700 = vmatpush1.msra.mxu0 0.0
    %1701 = vmatprep.subr.mxu0 0.0
    %1702 = vmatpush1.msra.mxu0 0.0
    %1703 = vmatprep.subr.mxu0 0.0
    %v1704 = vand.u32 %v110, 4294901760
    %v1705 = vsub.f32 %v110, %v1704
    %v1706 = vand.u32 %v1705, 4294901760
    %1707 = vmatpush1.msra.mxu0 %v1706
    %1708 = vmatprep.subr.mxu0 0.0
    %1709 = vmatpush2.msra.mxu0 0.0
    %1710 = vmatprep.subr.mxu0 0.0
    %1711 = vmatpush2.msra.mxu0 0.0
    %1712 = vmatprep.subr.mxu0 0.0
    %1713 = vmatpush2.msra.mxu0 0.0
    %1714 = vmatprep.subr.mxu0 0.0
    %1715 = vmatpush2.msra.mxu0 0.0
    %1716 = vmatprep.subr.mxu0 0.0
    %1717 = vmatpush2.msra.mxu0 0.0
    %1718 = vmatprep.subr.mxu0 0.0
    %1719 = vmatpush2.msra.mxu0 0.0
    %1720 = vmatprep.subr.mxu0 0.0
    %1721 = vmatpush2.msra.mxu0 0.0
    %1722 = vmatprep.subr.mxu0 0.0
    %1723 = vmatpush2.msra.mxu0 0.0
    %1724 = vmatprep.subr.mxu0 0.0
    %1725 = vmatpush2.msra.mxu0 0.0
    %1726 = vmatprep.subr.mxu0 0.0
    %1727 = vmatpush2.msra.mxu0 0.0
    %1728 = vmatprep.subr.mxu0 0.0
    %1729 = vmatpush2.msra.mxu0 0.0
    %1730 = vmatprep.subr.mxu0 0.0
    %1731 = vmatpush2.msra.mxu0 0.0
    %1732 = vmatprep.subr.mxu0 0.0
    %1733 = vmatpush2.msra.mxu0 0.0
    %1734 = vmatprep.subr.mxu0 0.0
    %1735 = vmatpush2.msra.mxu0 0.0
    %1736 = vmatprep.subr.mxu0 0.0
    %1737 = vmatpush2.msra.mxu0 0.0
    %1738 = vmatprep.subr.mxu0 0.0
    %1739 = vmatpush2.msra.mxu0 0.0
    %1740 = vmatprep.mubr.f32.mxu0 0.0
    %v1741 = vand.u32 %v113, 4294901760
    %1742 = vmatmul.mubr.f32.gmra.mxu0 %v1741
    %v1743 = vpop.f32.mrf.mxu0
    %v1744 = vadd.f32 %v1374, %v1743
    %v1745 = vpop.f32.mrf.mxu0
    %1746 = vmatprep.mubr.f32.mxu0 0.0
    %v1747 = vand.u32 %v116, 4294901760
    %1748 = vmatmul.mubr.f32.gmra.mxu0 %v1747
    %v1749 = vpop.f32.mrf.mxu0
    %v1750 = vadd.f32 %v1382, %v1749
    %v1751 = vpop.f32.mrf.mxu0
    %1752 = vmatprep.mubr.f32.mxu0 0.0
    %v1753 = vand.u32 %v119, 4294901760
    %1754 = vmatmul.mubr.f32.gmra.mxu0 %v1753
    %v1755 = vpop.f32.mrf.mxu0
    %v1756 = vadd.f32 %v1390, %v1755
    %v1757 = vpop.f32.mrf.mxu0
    %1758 = vmatprep.mubr.f32.mxu0 0.0
    %v1759 = vand.u32 %v122, 4294901760
    %1760 = vmatmul.mubr.f32.gmra.mxu0 %v1759
    %v1761 = vpop.f32.mrf.mxu0
    %v1762 = vadd.f32 %v1398, %v1761
    %v1763 = vpop.f32.mrf.mxu0
    %1764 = vmatprep.mubr.f32.mxu0 0.0
    %v1765 = vand.u32 %v125, 4294901760
    %1766 = vmatmul.mubr.f32.gmra.mxu0 %v1765
    %v1767 = vpop.f32.mrf.mxu0
    %v1768 = vadd.f32 %v1406, %v1767
    %v1769 = vpop.f32.mrf.mxu0
    %1770 = vmatprep.mubr.f32.mxu0 0.0
    %v1771 = vand.u32 %v128, 4294901760
    %1772 = vmatmul.mubr.f32.gmra.mxu0 %v1771
    %v1773 = vpop.f32.mrf.mxu0
    %v1774 = vadd.f32 %v1414, %v1773
    %v1775 = vpop.f32.mrf.mxu0
    %1776 = vmatprep.mubr.f32.mxu0 0.0
    %v1777 = vand.u32 %v131, 4294901760
    %1778 = vmatmul.mubr.f32.gmra.mxu0 %v1777
    %v1779 = vpop.f32.mrf.mxu0
    %v1780 = vadd.f32 %v1422, %v1779
    %v1781 = vpop.f32.mrf.mxu0
    %1782 = vmatprep.mubr.f32.mxu0 0.0
    %v1783 = vand.u32 %v134, 4294901760
    %1784 = vmatmul.mubr.f32.gmra.mxu0 %v1783
    %v1785 = vpop.f32.mrf.mxu0
    %v1786 = vadd.f32 %v1430, %v1785
    %v1787 = vpop.f32.mrf.mxu0
    %1788 = vmatprep.mubr.f32.mxu0 0.0
    %v1789 = vand.u32 %v137, 4294901760
    %1790 = vmatmul.mubr.f32.gmra.mxu0 %v1789
    %v1791 = vpop.f32.mrf.mxu0
    %v1792 = vadd.f32 %v1438, %v1791
    %v1793 = vpop.f32.mrf.mxu0
    %1794 = vmatprep.mubr.f32.mxu0 0.0
    %v1795 = vand.u32 %v140, 4294901760
    %1796 = vmatmul.mubr.f32.gmra.mxu0 %v1795
    %v1797 = vpop.f32.mrf.mxu0
    %v1798 = vadd.f32 %v1446, %v1797
    %v1799 = vpop.f32.mrf.mxu0
    %1800 = vmatprep.mubr.f32.mxu0 0.0
    %v1801 = vand.u32 %v143, 4294901760
    %1802 = vmatmul.mubr.f32.gmra.mxu0 %v1801
    %v1803 = vpop.f32.mrf.mxu0
    %v1804 = vadd.f32 %v1454, %v1803
    %v1805 = vpop.f32.mrf.mxu0
    %1806 = vmatprep.mubr.f32.mxu0 0.0
    %v1807 = vand.u32 %v146, 4294901760
    %1808 = vmatmul.mubr.f32.gmra.mxu0 %v1807
    %v1809 = vpop.f32.mrf.mxu0
    %v1810 = vadd.f32 %v1462, %v1809
    %v1811 = vpop.f32.mrf.mxu0
    %1812 = vmatprep.mubr.f32.mxu0 0.0
    %v1813 = vand.u32 %v149, 4294901760
    %1814 = vmatmul.mubr.f32.gmra.mxu0 %v1813
    %v1815 = vpop.f32.mrf.mxu0
    %v1816 = vadd.f32 %v1470, %v1815
    %v1817 = vpop.f32.mrf.mxu0
    %1818 = vmatprep.mubr.f32.mxu0 0.0
    %v1819 = vand.u32 %v152, 4294901760
    %1820 = vmatmul.mubr.f32.gmra.mxu0 %v1819
    %v1821 = vpop.f32.mrf.mxu0
    %v1822 = vadd.f32 %v1478, %v1821
    %v1823 = vpop.f32.mrf.mxu0
    %1824 = vmatprep.mubr.f32.mxu0 0.0
    %v1825 = vand.u32 %v155, 4294901760
    %1826 = vmatmul.mubr.f32.gmra.mxu0 %v1825
    %v1827 = vpop.f32.mrf.mxu0
    %v1828 = vadd.f32 %v1486, %v1827
    %v1829 = vpop.f32.mrf.mxu0
    %1830 = vmatprep.mubr.f32.mxu0 0.0
    %v1831 = vand.u32 %v158, 4294901760
    %1832 = vmatmul.mubr.f32.gmra.mxu0 %v1831
    %v1833 = vpop.f32.mrf.mxu0
    %v1834 = vadd.f32 %v1494, %v1833
    %v1835 = vpop.f32.mrf.mxu0
    %1836 = vmatprep.mubr.f32.mxu0 0.0
    %v1837 = vand.u32 %v161, 4294901760
    %1838 = vmatmul.mubr.f32.gmra.mxu0 %v1837
    %v1839 = vpop.f32.mrf.mxu0
    %v1840 = vadd.f32 %v1502, %v1839
    %v1841 = vpop.f32.mrf.mxu0
    %1842 = vmatprep.mubr.f32.mxu0 0.0
    %v1843 = vand.u32 %v164, 4294901760
    %1844 = vmatmul.mubr.f32.gmra.mxu0 %v1843
    %v1845 = vpop.f32.mrf.mxu0
    %v1846 = vadd.f32 %v1510, %v1845
    %v1847 = vpop.f32.mrf.mxu0
    %1848 = vmatprep.mubr.f32.mxu0 0.0
    %v1849 = vand.u32 %v167, 4294901760
    %1850 = vmatmul.mubr.f32.gmra.mxu0 %v1849
    %v1851 = vpop.f32.mrf.mxu0
    %v1852 = vadd.f32 %v1518, %v1851
    %v1853 = vpop.f32.mrf.mxu0
    %1854 = vmatprep.mubr.f32.mxu0 0.0
    %v1855 = vand.u32 %v170, 4294901760
    %1856 = vmatmul.mubr.f32.gmra.mxu0 %v1855
    %v1857 = vpop.f32.mrf.mxu0
    %v1858 = vadd.f32 %v1526, %v1857
    %v1859 = vpop.f32.mrf.mxu0
    %1860 = vmatprep.mubr.f32.mxu0 0.0
    %v1861 = vand.u32 %v173, 4294901760
    %1862 = vmatmul.mubr.f32.gmra.mxu0 %v1861
    %v1863 = vpop.f32.mrf.mxu0
    %v1864 = vadd.f32 %v1534, %v1863
    %v1865 = vpop.f32.mrf.mxu0
    %1866 = vmatprep.mubr.f32.mxu0 0.0
    %v1867 = vand.u32 %v176, 4294901760
    %1868 = vmatmul.mubr.f32.gmra.mxu0 %v1867
    %v1869 = vpop.f32.mrf.mxu0
    %v1870 = vadd.f32 %v1542, %v1869
    %v1871 = vpop.f32.mrf.mxu0
    %1872 = vmatprep.mubr.f32.mxu0 0.0
    %v1873 = vand.u32 %v179, 4294901760
    %1874 = vmatmul.mubr.f32.gmra.mxu0 %v1873
    %v1875 = vpop.f32.mrf.mxu0
    %v1876 = vadd.f32 %v1550, %v1875
    %v1877 = vpop.f32.mrf.mxu0
    %1878 = vmatprep.mubr.f32.mxu0 0.0
    %v1879 = vand.u32 %v182, 4294901760
    %1880 = vmatmul.mubr.f32.gmra.mxu0 %v1879
    %v1881 = vpop.f32.mrf.mxu0
    %v1882 = vadd.f32 %v1558, %v1881
    %v1883 = vpop.f32.mrf.mxu0
    %1884 = vmatprep.mubr.f32.mxu0 0.0
    %v1885 = vand.u32 %v185, 4294901760
    %1886 = vmatmul.mubr.f32.gmra.mxu0 %v1885
    %v1887 = vpop.f32.mrf.mxu0
    %v1888 = vadd.f32 %v1566, %v1887
    %v1889 = vpop.f32.mrf.mxu0
    %1890 = vmatprep.mubr.f32.mxu0 0.0
    %v1891 = vand.u32 %v188, 4294901760
    %1892 = vmatmul.mubr.f32.gmra.mxu0 %v1891
    %v1893 = vpop.f32.mrf.mxu0
    %v1894 = vadd.f32 %v1574, %v1893
    %v1895 = vpop.f32.mrf.mxu0
    %1896 = vmatprep.mubr.f32.mxu0 0.0
    %v1897 = vand.u32 %v191, 4294901760
    %1898 = vmatmul.mubr.f32.gmra.mxu0 %v1897
    %v1899 = vpop.f32.mrf.mxu0
    %v1900 = vadd.f32 %v1582, %v1899
    %v1901 = vpop.f32.mrf.mxu0
    %1902 = vmatprep.mubr.f32.mxu0 0.0
    %v1903 = vand.u32 %v194, 4294901760
    %1904 = vmatmul.mubr.f32.gmra.mxu0 %v1903
    %v1905 = vpop.f32.mrf.mxu0
    %v1906 = vadd.f32 %v1590, %v1905
    %v1907 = vpop.f32.mrf.mxu0
    %1908 = vmatprep.mubr.f32.mxu0 0.0
    %v1909 = vand.u32 %v197, 4294901760
    %1910 = vmatmul.mubr.f32.gmra.mxu0 %v1909
    %v1911 = vpop.f32.mrf.mxu0
    %v1912 = vadd.f32 %v1598, %v1911
    %v1913 = vpop.f32.mrf.mxu0
    %1914 = vmatprep.mubr.f32.mxu0 0.0
    %v1915 = vand.u32 %v200, 4294901760
    %1916 = vmatmul.mubr.f32.gmra.mxu0 %v1915
    %v1917 = vpop.f32.mrf.mxu0
    %v1918 = vadd.f32 %v1606, %v1917
    %v1919 = vpop.f32.mrf.mxu0
    %1920 = vmatprep.mubr.f32.mxu0 0.0
    %v1921 = vand.u32 %v203, 4294901760
    %1922 = vmatmul.mubr.f32.gmra.mxu0 %v1921
    %v1923 = vpop.f32.mrf.mxu0
    %v1924 = vadd.f32 %v1614, %v1923
    %v1925 = vpop.f32.mrf.mxu0
    %1926 = vmatprep.mubr.f32.mxu0 0.0
    %v1927 = vand.u32 %v206, 4294901760
    %1928 = vmatmul.mubr.f32.gmra.mxu0 %v1927
    %v1929 = vpop.f32.mrf.mxu0
    %v1930 = vadd.f32 %v1622, %v1929
    %v1931 = vpop.f32.mrf.mxu0
    %1932 = vmatprep.mubr.f32.mxu0 0.0
    %v1933 = vand.u32 %v209, 4294901760
    %1934 = vmatmul.mubr.f32.gmra.mxu0 %v1933
    %v1935 = vpop.f32.mrf.mxu0
    %v1936 = vadd.f32 %v1630, %v1935
    %v1937 = vpop.f32.mrf.mxu0
    %1938 = vmatprep.mubr.f32.mxu0 0.0
    %v1939 = vand.u32 %v212, 4294901760
    %1940 = vmatmul.mubr.f32.gmra.mxu0 %v1939
    %v1941 = vpop.f32.mrf.mxu0
    %v1942 = vadd.f32 %v1638, %v1941
    %v1943 = vpop.f32.mrf.mxu0
    %1944 = vmatprep.mubr.f32.mxu0 0.0
    %v1945 = vand.u32 %v215, 4294901760
    %1946 = vmatmul.mubr.f32.gmra.mxu0 %v1945
    %v1947 = vpop.f32.mrf.mxu0
    %v1948 = vadd.f32 %v1646, %v1947
    %v1949 = vpop.f32.mrf.mxu0
    %1950 = vmatprep.mubr.f32.mxu0 0.0
    %v1951 = vand.u32 %v218, 4294901760
    %1952 = vmatmul.mubr.f32.gmra.mxu0 %v1951
    %v1953 = vpop.f32.mrf.mxu0
    %v1954 = vadd.f32 %v1654, %v1953
    %v1955 = vpop.f32.mrf.mxu0
    %1956 = vmatprep.mubr.f32.mxu0 0.0
    %v1957 = vand.u32 %v221, 4294901760
    %1958 = vmatmul.mubr.f32.gmra.mxu0 %v1957
    %v1959 = vpop.f32.mrf.mxu0
    %v1960 = vadd.f32 %v1662, %v1959
    %v1961 = vpop.f32.mrf.mxu0
    %1962 = vmatprep.mubr.f32.mxu0 0.0
    %v1963 = vand.u32 %v224, 4294901760
    %1964 = vmatmul.mubr.f32.gmra.mxu0 %v1963
    %v1965 = vpop.f32.mrf.mxu0
    %v1966 = vadd.f32 %v1670, %v1965
    %v1967 = vpop.f32.mrf.mxu0
    %1968 = vdwg.mxu0
    %1969 = vmatprep.subr.mxu0 0.0
    %1970 = vmatpush1.msra.mxu0 0.0
    %1971 = vmatprep.subr.mxu0 0.0
    %1972 = vmatpush1.msra.mxu0 0.0
    %1973 = vmatprep.subr.mxu0 0.0
    %1974 = vmatpush1.msra.mxu0 0.0
    %1975 = vmatprep.subr.mxu0 0.0
    %1976 = vmatpush1.msra.mxu0 0.0
    %1977 = vmatprep.subr.mxu0 0.0
    %1978 = vmatpush1.msra.mxu0 0.0
    %1979 = vmatprep.subr.mxu0 0.0
    %1980 = vmatpush1.msra.mxu0 0.0
    %1981 = vmatprep.subr.mxu0 0.0
    %1982 = vmatpush1.msra.mxu0 0.0
    %1983 = vmatprep.subr.mxu0 0.0
    %1984 = vmatpush1.msra.mxu0 0.0
    %1985 = vmatprep.subr.mxu0 0.0
    %1986 = vmatpush1.msra.mxu0 0.0
    %1987 = vmatprep.subr.mxu0 0.0
    %1988 = vmatpush1.msra.mxu0 0.0
    %1989 = vmatprep.subr.mxu0 0.0
    %1990 = vmatpush1.msra.mxu0 0.0
    %1991 = vmatprep.subr.mxu0 0.0
    %1992 = vmatpush1.msra.mxu0 0.0
    %1993 = vmatprep.subr.mxu0 0.0
    %1994 = vmatpush1.msra.mxu0 0.0
    %1995 = vmatprep.subr.mxu0 0.0
    %1996 = vmatpush1.msra.mxu0 0.0
    %1997 = vmatprep.subr.mxu0 0.0
    %1998 = vmatpush1.msra.mxu0 0.0
    %1999 = vmatprep.subr.mxu0 0.0
    %v2000 = vand.u32 %v110, 4294901760
    %2001 = vmatpush1.msra.mxu0 %v2000
    %2002 = vmatprep.subr.mxu0 0.0
    %2003 = vmatpush2.msra.mxu0 0.0
    %2004 = vmatprep.subr.mxu0 0.0
    %2005 = vmatpush2.msra.mxu0 0.0
    %2006 = vmatprep.subr.mxu0 0.0
    %2007 = vmatpush2.msra.mxu0 0.0
    %2008 = vmatprep.subr.mxu0 0.0
    %2009 = vmatpush2.msra.mxu0 0.0
    %2010 = vmatprep.subr.mxu0 0.0
    %2011 = vmatpush2.msra.mxu0 0.0
    %2012 = vmatprep.subr.mxu0 0.0
    %2013 = vmatpush2.msra.mxu0 0.0
    %2014 = vmatprep.subr.mxu0 0.0
    %2015 = vmatpush2.msra.mxu0 0.0
    %2016 = vmatprep.subr.mxu0 0.0
    %2017 = vmatpush2.msra.mxu0 0.0
    %2018 = vmatprep.subr.mxu0 0.0
    %2019 = vmatpush2.msra.mxu0 0.0
    %2020 = vmatprep.subr.mxu0 0.0
    %2021 = vmatpush2.msra.mxu0 0.0
    %2022 = vmatprep.subr.mxu0 0.0
    %2023 = vmatpush2.msra.mxu0 0.0
    %2024 = vmatprep.subr.mxu0 0.0
    %2025 = vmatpush2.msra.mxu0 0.0
    %2026 = vmatprep.subr.mxu0 0.0
    %2027 = vmatpush2.msra.mxu0 0.0
    %2028 = vmatprep.subr.mxu0 0.0
    %2029 = vmatpush2.msra.mxu0 0.0
    %2030 = vmatprep.subr.mxu0 0.0
    %2031 = vmatpush2.msra.mxu0 0.0
    %2032 = vmatprep.subr.mxu0 0.0
    %2033 = vmatpush2.msra.mxu0 0.0
    %2034 = vmatprep.mubr.f32.mxu0 0.0
    %v2035 = vand.u32 %v113, 4294901760
    %2036 = vmatmul.mubr.f32.gmra.mxu0 %v2035
    %v2037 = vpop.f32.mrf.mxu0
    %v2038 = vadd.f32 %v1744, %v2037
    %v2039 = vpop.f32.mrf.mxu0
    %2040 = vmatprep.mubr.f32.mxu0 0.0
    %v2041 = vand.u32 %v116, 4294901760
    %2042 = vmatmul.mubr.f32.gmra.mxu0 %v2041
    %v2043 = vpop.f32.mrf.mxu0
    %v2044 = vadd.f32 %v1750, %v2043
    %v2045 = vpop.f32.mrf.mxu0
    %2046 = vmatprep.mubr.f32.mxu0 0.0
    %v2047 = vand.u32 %v119, 4294901760
    %2048 = vmatmul.mubr.f32.gmra.mxu0 %v2047
    %v2049 = vpop.f32.mrf.mxu0
    %v2050 = vadd.f32 %v1756, %v2049
    %v2051 = vpop.f32.mrf.mxu0
    %2052 = vmatprep.mubr.f32.mxu0 0.0
    %v2053 = vand.u32 %v122, 4294901760
    %2054 = vmatmul.mubr.f32.gmra.mxu0 %v2053
    %v2055 = vpop.f32.mrf.mxu0
    %v2056 = vadd.f32 %v1762, %v2055
    %v2057 = vpop.f32.mrf.mxu0
    %2058 = vmatprep.mubr.f32.mxu0 0.0
    %v2059 = vand.u32 %v125, 4294901760
    %2060 = vmatmul.mubr.f32.gmra.mxu0 %v2059
    %v2061 = vpop.f32.mrf.mxu0
    %v2062 = vadd.f32 %v1768, %v2061
    %v2063 = vpop.f32.mrf.mxu0
    %2064 = vmatprep.mubr.f32.mxu0 0.0
    %v2065 = vand.u32 %v128, 4294901760
    %2066 = vmatmul.mubr.f32.gmra.mxu0 %v2065
    %v2067 = vpop.f32.mrf.mxu0
    %v2068 = vadd.f32 %v1774, %v2067
    %v2069 = vpop.f32.mrf.mxu0
    %2070 = vmatprep.mubr.f32.mxu0 0.0
    %v2071 = vand.u32 %v131, 4294901760
    %2072 = vmatmul.mubr.f32.gmra.mxu0 %v2071
    %v2073 = vpop.f32.mrf.mxu0
    %v2074 = vadd.f32 %v1780, %v2073
    %v2075 = vpop.f32.mrf.mxu0
    %2076 = vmatprep.mubr.f32.mxu0 0.0
    %v2077 = vand.u32 %v134, 4294901760
    %2078 = vmatmul.mubr.f32.gmra.mxu0 %v2077
    %v2079 = vpop.f32.mrf.mxu0
    %v2080 = vadd.f32 %v1786, %v2079
    %v2081 = vpop.f32.mrf.mxu0
    %2082 = vmatprep.mubr.f32.mxu0 0.0
    %v2083 = vand.u32 %v137, 4294901760
    %2084 = vmatmul.mubr.f32.gmra.mxu0 %v2083
    %v2085 = vpop.f32.mrf.mxu0
    %v2086 = vadd.f32 %v1792, %v2085
    %v2087 = vpop.f32.mrf.mxu0
    %2088 = vmatprep.mubr.f32.mxu0 0.0
    %v2089 = vand.u32 %v140, 4294901760
    %2090 = vmatmul.mubr.f32.gmra.mxu0 %v2089
    %v2091 = vpop.f32.mrf.mxu0
    %v2092 = vadd.f32 %v1798, %v2091
    %v2093 = vpop.f32.mrf.mxu0
    %2094 = vmatprep.mubr.f32.mxu0 0.0
    %v2095 = vand.u32 %v143, 4294901760
    %2096 = vmatmul.mubr.f32.gmra.mxu0 %v2095
    %v2097 = vpop.f32.mrf.mxu0
    %v2098 = vadd.f32 %v1804, %v2097
    %v2099 = vpop.f32.mrf.mxu0
    %2100 = vmatprep.mubr.f32.mxu0 0.0
    %v2101 = vand.u32 %v146, 4294901760
    %2102 = vmatmul.mubr.f32.gmra.mxu0 %v2101
    %v2103 = vpop.f32.mrf.mxu0
    %v2104 = vadd.f32 %v1810, %v2103
    %v2105 = vpop.f32.mrf.mxu0
    %2106 = vmatprep.mubr.f32.mxu0 0.0
    %v2107 = vand.u32 %v149, 4294901760
    %2108 = vmatmul.mubr.f32.gmra.mxu0 %v2107
    %v2109 = vpop.f32.mrf.mxu0
    %v2110 = vadd.f32 %v1816, %v2109
    %v2111 = vpop.f32.mrf.mxu0
    %2112 = vmatprep.mubr.f32.mxu0 0.0
    %v2113 = vand.u32 %v152, 4294901760
    %2114 = vmatmul.mubr.f32.gmra.mxu0 %v2113
    %v2115 = vpop.f32.mrf.mxu0
    %v2116 = vadd.f32 %v1822, %v2115
    %v2117 = vpop.f32.mrf.mxu0
    %2118 = vmatprep.mubr.f32.mxu0 0.0
    %v2119 = vand.u32 %v155, 4294901760
    %2120 = vmatmul.mubr.f32.gmra.mxu0 %v2119
    %v2121 = vpop.f32.mrf.mxu0
    %v2122 = vadd.f32 %v1828, %v2121
    %v2123 = vpop.f32.mrf.mxu0
    %2124 = vmatprep.mubr.f32.mxu0 0.0
    %v2125 = vand.u32 %v158, 4294901760
    %2126 = vmatmul.mubr.f32.gmra.mxu0 %v2125
    %v2127 = vpop.f32.mrf.mxu0
    %v2128 = vadd.f32 %v1834, %v2127
    %v2129 = vpop.f32.mrf.mxu0
    %2130 = vmatprep.mubr.f32.mxu0 0.0
    %v2131 = vand.u32 %v161, 4294901760
    %2132 = vmatmul.mubr.f32.gmra.mxu0 %v2131
    %v2133 = vpop.f32.mrf.mxu0
    %v2134 = vadd.f32 %v1840, %v2133
    %v2135 = vpop.f32.mrf.mxu0
    %2136 = vmatprep.mubr.f32.mxu0 0.0
    %v2137 = vand.u32 %v164, 4294901760
    %2138 = vmatmul.mubr.f32.gmra.mxu0 %v2137
    %v2139 = vpop.f32.mrf.mxu0
    %v2140 = vadd.f32 %v1846, %v2139
    %v2141 = vpop.f32.mrf.mxu0
    %2142 = vmatprep.mubr.f32.mxu0 0.0
    %v2143 = vand.u32 %v167, 4294901760
    %2144 = vmatmul.mubr.f32.gmra.mxu0 %v2143
    %v2145 = vpop.f32.mrf.mxu0
    %v2146 = vadd.f32 %v1852, %v2145
    %v2147 = vpop.f32.mrf.mxu0
    %2148 = vmatprep.mubr.f32.mxu0 0.0
    %v2149 = vand.u32 %v170, 4294901760
    %2150 = vmatmul.mubr.f32.gmra.mxu0 %v2149
    %v2151 = vpop.f32.mrf.mxu0
    %v2152 = vadd.f32 %v1858, %v2151
    %v2153 = vpop.f32.mrf.mxu0
    %2154 = vmatprep.mubr.f32.mxu0 0.0
    %v2155 = vand.u32 %v173, 4294901760
    %2156 = vmatmul.mubr.f32.gmra.mxu0 %v2155
    %v2157 = vpop.f32.mrf.mxu0
    %v2158 = vadd.f32 %v1864, %v2157
    %v2159 = vpop.f32.mrf.mxu0
    %2160 = vmatprep.mubr.f32.mxu0 0.0
    %v2161 = vand.u32 %v176, 4294901760
    %2162 = vmatmul.mubr.f32.gmra.mxu0 %v2161
    %v2163 = vpop.f32.mrf.mxu0
    %v2164 = vadd.f32 %v1870, %v2163
    %v2165 = vpop.f32.mrf.mxu0
    %2166 = vmatprep.mubr.f32.mxu0 0.0
    %v2167 = vand.u32 %v179, 4294901760
    %2168 = vmatmul.mubr.f32.gmra.mxu0 %v2167
    %v2169 = vpop.f32.mrf.mxu0
    %v2170 = vadd.f32 %v1876, %v2169
    %v2171 = vpop.f32.mrf.mxu0
    %2172 = vmatprep.mubr.f32.mxu0 0.0
    %v2173 = vand.u32 %v182, 4294901760
    %2174 = vmatmul.mubr.f32.gmra.mxu0 %v2173
    %v2175 = vpop.f32.mrf.mxu0
    %v2176 = vadd.f32 %v1882, %v2175
    %v2177 = vpop.f32.mrf.mxu0
    %2178 = vmatprep.mubr.f32.mxu0 0.0
    %v2179 = vand.u32 %v185, 4294901760
    %2180 = vmatmul.mubr.f32.gmra.mxu0 %v2179
    %v2181 = vpop.f32.mrf.mxu0
    %v2182 = vadd.f32 %v1888, %v2181
    %v2183 = vpop.f32.mrf.mxu0
    %2184 = vmatprep.mubr.f32.mxu0 0.0
    %v2185 = vand.u32 %v188, 4294901760
    %2186 = vmatmul.mubr.f32.gmra.mxu0 %v2185
    %v2187 = vpop.f32.mrf.mxu0
    %v2188 = vadd.f32 %v1894, %v2187
    %v2189 = vpop.f32.mrf.mxu0
    %2190 = vmatprep.mubr.f32.mxu0 0.0
    %v2191 = vand.u32 %v191, 4294901760
    %2192 = vmatmul.mubr.f32.gmra.mxu0 %v2191
    %v2193 = vpop.f32.mrf.mxu0
    %v2194 = vadd.f32 %v1900, %v2193
    %v2195 = vpop.f32.mrf.mxu0
    %2196 = vmatprep.mubr.f32.mxu0 0.0
    %v2197 = vand.u32 %v194, 4294901760
    %2198 = vmatmul.mubr.f32.gmra.mxu0 %v2197
    %v2199 = vpop.f32.mrf.mxu0
    %v2200 = vadd.f32 %v1906, %v2199
    %v2201 = vpop.f32.mrf.mxu0
    %2202 = vmatprep.mubr.f32.mxu0 0.0
    %v2203 = vand.u32 %v197, 4294901760
    %2204 = vmatmul.mubr.f32.gmra.mxu0 %v2203
    %v2205 = vpop.f32.mrf.mxu0
    %v2206 = vadd.f32 %v1912, %v2205
    %v2207 = vpop.f32.mrf.mxu0
    %2208 = vmatprep.mubr.f32.mxu0 0.0
    %v2209 = vand.u32 %v200, 4294901760
    %2210 = vmatmul.mubr.f32.gmra.mxu0 %v2209
    %v2211 = vpop.f32.mrf.mxu0
    %v2212 = vadd.f32 %v1918, %v2211
    %v2213 = vpop.f32.mrf.mxu0
    %2214 = vmatprep.mubr.f32.mxu0 0.0
    %v2215 = vand.u32 %v203, 4294901760
    %2216 = vmatmul.mubr.f32.gmra.mxu0 %v2215
    %v2217 = vpop.f32.mrf.mxu0
    %v2218 = vadd.f32 %v1924, %v2217
    %v2219 = vpop.f32.mrf.mxu0
    %2220 = vmatprep.mubr.f32.mxu0 0.0
    %v2221 = vand.u32 %v206, 4294901760
    %2222 = vmatmul.mubr.f32.gmra.mxu0 %v2221
    %v2223 = vpop.f32.mrf.mxu0
    %v2224 = vadd.f32 %v1930, %v2223
    %v2225 = vpop.f32.mrf.mxu0
    %2226 = vmatprep.mubr.f32.mxu0 0.0
    %v2227 = vand.u32 %v209, 4294901760
    %2228 = vmatmul.mubr.f32.gmra.mxu0 %v2227
    %v2229 = vpop.f32.mrf.mxu0
    %v2230 = vadd.f32 %v1936, %v2229
    %v2231 = vpop.f32.mrf.mxu0
    %2232 = vmatprep.mubr.f32.mxu0 0.0
    %v2233 = vand.u32 %v212, 4294901760
    %2234 = vmatmul.mubr.f32.gmra.mxu0 %v2233
    %v2235 = vpop.f32.mrf.mxu0
    %v2236 = vadd.f32 %v1942, %v2235
    %v2237 = vpop.f32.mrf.mxu0
    %2238 = vmatprep.mubr.f32.mxu0 0.0
    %v2239 = vand.u32 %v215, 4294901760
    %2240 = vmatmul.mubr.f32.gmra.mxu0 %v2239
    %v2241 = vpop.f32.mrf.mxu0
    %v2242 = vadd.f32 %v1948, %v2241
    %v2243 = vpop.f32.mrf.mxu0
    %2244 = vmatprep.mubr.f32.mxu0 0.0
    %v2245 = vand.u32 %v218, 4294901760
    %2246 = vmatmul.mubr.f32.gmra.mxu0 %v2245
    %v2247 = vpop.f32.mrf.mxu0
    %v2248 = vadd.f32 %v1954, %v2247
    %v2249 = vpop.f32.mrf.mxu0
    %2250 = vmatprep.mubr.f32.mxu0 0.0
    %v2251 = vand.u32 %v221, 4294901760
    %2252 = vmatmul.mubr.f32.gmra.mxu0 %v2251
    %v2253 = vpop.f32.mrf.mxu0
    %v2254 = vadd.f32 %v1960, %v2253
    %v2255 = vpop.f32.mrf.mxu0
    %2256 = vmatprep.mubr.f32.mxu0 0.0
    %v2257 = vand.u32 %v224, 4294901760
    %2258 = vmatmul.mubr.f32.gmra.mxu0 %v2257
    %v2259 = vpop.f32.mrf.mxu0
    %v2260 = vadd.f32 %v1966, %v2259
    %v2261 = vpop.f32.mrf.mxu0
    %2262 = vdwg.mxu0
    %vm2263 = vcmask 261120
    %v2265 = vsel %vm2263, %v30, 0
    %v2268 = vsel %vm2263, %v31, 0
    %v2271 = vsel %vm2263, %v32, 0
    %v2274 = vsel %vm2263, %v33, 0
    %v2277 = vsel %vm2263, %v34, 0
    %v2280 = vsel %vm2263, %v35, 0
    %v2283 = vsel %vm2263, %v36, 0
    %v2286 = vsel %vm2263, %v37, 0
    %v2289 = vsel %vm2263, %v38, 0
    %v2292 = vsel %vm2263, %v39, 0
    %v2295 = vsel %vm2263, %v40, 0
    %v2298 = vsel %vm2263, %v41, 0
    %v2301 = vsel %vm2263, %v42, 0
    %v2304 = vsel %vm2263, %v43, 0
    %v2307 = vsel %vm2263, %v44, 0
    %v2310 = vsel %vm2263, %v45, 0
    %v2313 = vsel %vm2263, %v46, 0
    %v2316 = vsel %vm2263, %v47, 0
    %v2319 = vsel %vm2263, %v48, 0
    %v2322 = vsel %vm2263, %v49, 0
    %v2325 = vsel %vm2263, %v50, 0
    %v2328 = vsel %vm2263, %v51, 0
    %v2331 = vsel %vm2263, %v52, 0
    %v2334 = vsel %vm2263, %v53, 0
    %v2337 = vsel %vm2263, %v54, 0
    %v2340 = vsel %vm2263, %v55, 0
    %v2343 = vsel %vm2263, %v56, 0
    %v2346 = vsel %vm2263, %v57, 0
    %v2349 = vsel %vm2263, %v58, 0
    %v2352 = vsel %vm2263, %v59, 0
    %v2355 = vsel %vm2263, %v60, 0
    %v2358 = vsel %vm2263, %v61, 0
    %v2361 = vsel %vm2263, %v62, 0
    %v2364 = vsel %vm2263, %v63, 0
    %v2367 = vsel %vm2263, %v64, 0
    %v2370 = vsel %vm2263, %v65, 0
    %v2373 = vsel %vm2263, %v66, 0
    %v2376 = vsel %vm2263, %v67, 0
    %2378 = vmatprep.subr.mxu0 0.0
    %2379 = vmatpush1.msra.mxu0 0.0
    %2380 = vmatprep.subr.mxu0 0.0
    %2381 = vmatpush1.msra.mxu0 0.0
    %2382 = vmatprep.subr.mxu0 0.0
    %2383 = vmatpush1.msra.mxu0 0.0
    %2384 = vmatprep.subr.mxu0 0.0
    %2385 = vmatpush1.msra.mxu0 0.0
    %2386 = vmatprep.subr.mxu0 0.0
    %2387 = vmatpush1.msra.mxu0 0.0
    %2388 = vmatprep.subr.mxu0 0.0
    %2389 = vmatpush1.msra.mxu0 0.0
    %2390 = vmatprep.subr.mxu0 0.0
    %2391 = vmatpush1.msra.mxu0 0.0
    %2392 = vmatprep.subr.mxu0 0.0
    %2393 = vmatpush1.msra.mxu0 0.0
    %2394 = vmatprep.subr.mxu0 0.0
    %2395 = vmatpush1.msra.mxu0 0.0
    %2396 = vmatprep.subr.mxu0 0.0
    %2397 = vmatpush1.msra.mxu0 0.0
    %2398 = vmatprep.subr.mxu0 0.0
    %2399 = vmatpush1.msra.mxu0 0.0
    %2400 = vmatprep.subr.mxu0 0.0
    %2401 = vmatpush1.msra.mxu0 0.0
    %2402 = vmatprep.subr.mxu0 0.0
    %v2403 = vand.u32 %v109, 4294901760
    %2404 = vmatpush1.msra.mxu0 %v2403
    %2405 = vmatprep.subr.mxu0 0.0
    %v2406 = vand.u32 %v108, 4294901760
    %2407 = vmatpush1.msra.mxu0 %v2406
    %2408 = vmatprep.subr.mxu0 0.0
    %v2409 = vand.u32 %v107, 4294901760
    %2410 = vmatpush1.msra.mxu0 %v2409
    %2411 = vmatprep.subr.mxu0 0.0
    %v2412 = vand.u32 %v106, 4294901760
    %2413 = vmatpush1.msra.mxu0 %v2412
    %2414 = vmatprep.subr.mxu0 0.0
    %2415 = vmatpush2.msra.mxu0 0.0
    %2416 = vmatprep.subr.mxu0 0.0
    %2417 = vmatpush2.msra.mxu0 0.0
    %2418 = vmatprep.subr.mxu0 0.0
    %2419 = vmatpush2.msra.mxu0 0.0
    %2420 = vmatprep.subr.mxu0 0.0
    %2421 = vmatpush2.msra.mxu0 0.0
    %2422 = vmatprep.subr.mxu0 0.0
    %2423 = vmatpush2.msra.mxu0 0.0
    %2424 = vmatprep.subr.mxu0 0.0
    %2425 = vmatpush2.msra.mxu0 0.0
    %2426 = vmatprep.subr.mxu0 0.0
    %2427 = vmatpush2.msra.mxu0 0.0
    %2428 = vmatprep.subr.mxu0 0.0
    %2429 = vmatpush2.msra.mxu0 0.0
    %2430 = vmatprep.subr.mxu0 0.0
    %2431 = vmatpush2.msra.mxu0 0.0
    %2432 = vmatprep.subr.mxu0 0.0
    %2433 = vmatpush2.msra.mxu0 0.0
    %2434 = vmatprep.subr.mxu0 0.0
    %2435 = vmatpush2.msra.mxu0 0.0
    %2436 = vmatprep.subr.mxu0 0.0
    %2437 = vmatpush2.msra.mxu0 0.0
    %2438 = vmatprep.subr.mxu0 0.0
    %2439 = vmatpush2.msra.mxu0 0.0
    %2440 = vmatprep.subr.mxu0 0.0
    %2441 = vmatpush2.msra.mxu0 0.0
    %2442 = vmatprep.subr.mxu0 0.0
    %2443 = vmatpush2.msra.mxu0 0.0
    %2444 = vmatprep.subr.mxu0 0.0
    %2445 = vmatpush2.msra.mxu0 0.0
    %2446 = vmatprep.mubr.f32.mxu0 0.0
    %v2447 = vand.u32 %v2265, 4294901760
    %v2448 = vsub.f32 %v2265, %v2447
    %v2449 = vand.u32 %v2448, 4294901760
    %v2450 = vsub.f32 %v2448, %v2449
    %v2451 = vand.u32 %v2450, 4294901760
    %2452 = vmatmul.mubr.f32.gmra.mxu0 %v2451
    %v2453 = vpop.f32.mrf.mxu0
    %v2454 = vadd.f32 %v2038, %v2453
    %v2455 = vpop.f32.mrf.mxu0
    %2456 = vmatprep.mubr.f32.mxu0 0.0
    %v2457 = vand.u32 %v2268, 4294901760
    %v2458 = vsub.f32 %v2268, %v2457
    %v2459 = vand.u32 %v2458, 4294901760
    %v2460 = vsub.f32 %v2458, %v2459
    %v2461 = vand.u32 %v2460, 4294901760
    %2462 = vmatmul.mubr.f32.gmra.mxu0 %v2461
    %v2463 = vpop.f32.mrf.mxu0
    %v2464 = vadd.f32 %v2044, %v2463
    %v2465 = vpop.f32.mrf.mxu0
    %2466 = vmatprep.mubr.f32.mxu0 0.0
    %v2467 = vand.u32 %v2271, 4294901760
    %v2468 = vsub.f32 %v2271, %v2467
    %v2469 = vand.u32 %v2468, 4294901760
    %v2470 = vsub.f32 %v2468, %v2469
    %v2471 = vand.u32 %v2470, 4294901760
    %2472 = vmatmul.mubr.f32.gmra.mxu0 %v2471
    %v2473 = vpop.f32.mrf.mxu0
    %v2474 = vadd.f32 %v2050, %v2473
    %v2475 = vpop.f32.mrf.mxu0
    %2476 = vmatprep.mubr.f32.mxu0 0.0
    %v2477 = vand.u32 %v2274, 4294901760
    %v2478 = vsub.f32 %v2274, %v2477
    %v2479 = vand.u32 %v2478, 4294901760
    %v2480 = vsub.f32 %v2478, %v2479
    %v2481 = vand.u32 %v2480, 4294901760
    %2482 = vmatmul.mubr.f32.gmra.mxu0 %v2481
    %v2483 = vpop.f32.mrf.mxu0
    %v2484 = vadd.f32 %v2056, %v2483
    %v2485 = vpop.f32.mrf.mxu0
    %2486 = vmatprep.mubr.f32.mxu0 0.0
    %v2487 = vand.u32 %v2277, 4294901760
    %v2488 = vsub.f32 %v2277, %v2487
    %v2489 = vand.u32 %v2488, 4294901760
    %v2490 = vsub.f32 %v2488, %v2489
    %v2491 = vand.u32 %v2490, 4294901760
    %2492 = vmatmul.mubr.f32.gmra.mxu0 %v2491
    %v2493 = vpop.f32.mrf.mxu0
    %v2494 = vadd.f32 %v2062, %v2493
    %v2495 = vpop.f32.mrf.mxu0
    %2496 = vmatprep.mubr.f32.mxu0 0.0
    %v2497 = vand.u32 %v2280, 4294901760
    %v2498 = vsub.f32 %v2280, %v2497
    %v2499 = vand.u32 %v2498, 4294901760
    %v2500 = vsub.f32 %v2498, %v2499
    %v2501 = vand.u32 %v2500, 4294901760
    %2502 = vmatmul.mubr.f32.gmra.mxu0 %v2501
    %v2503 = vpop.f32.mrf.mxu0
    %v2504 = vadd.f32 %v2068, %v2503
    %v2505 = vpop.f32.mrf.mxu0
    %2506 = vmatprep.mubr.f32.mxu0 0.0
    %v2507 = vand.u32 %v2283, 4294901760
    %v2508 = vsub.f32 %v2283, %v2507
    %v2509 = vand.u32 %v2508, 4294901760
    %v2510 = vsub.f32 %v2508, %v2509
    %v2511 = vand.u32 %v2510, 4294901760
    %2512 = vmatmul.mubr.f32.gmra.mxu0 %v2511
    %v2513 = vpop.f32.mrf.mxu0
    %v2514 = vadd.f32 %v2074, %v2513
    %v2515 = vpop.f32.mrf.mxu0
    %2516 = vmatprep.mubr.f32.mxu0 0.0
    %v2517 = vand.u32 %v2286, 4294901760
    %v2518 = vsub.f32 %v2286, %v2517
    %v2519 = vand.u32 %v2518, 4294901760
    %v2520 = vsub.f32 %v2518, %v2519
    %v2521 = vand.u32 %v2520, 4294901760
    %2522 = vmatmul.mubr.f32.gmra.mxu0 %v2521
    %v2523 = vpop.f32.mrf.mxu0
    %v2524 = vadd.f32 %v2080, %v2523
    %v2525 = vpop.f32.mrf.mxu0
    %2526 = vmatprep.mubr.f32.mxu0 0.0
    %v2527 = vand.u32 %v2289, 4294901760
    %v2528 = vsub.f32 %v2289, %v2527
    %v2529 = vand.u32 %v2528, 4294901760
    %v2530 = vsub.f32 %v2528, %v2529
    %v2531 = vand.u32 %v2530, 4294901760
    %2532 = vmatmul.mubr.f32.gmra.mxu0 %v2531
    %v2533 = vpop.f32.mrf.mxu0
    %v2534 = vadd.f32 %v2086, %v2533
    %v2535 = vpop.f32.mrf.mxu0
    %2536 = vmatprep.mubr.f32.mxu0 0.0
    %v2537 = vand.u32 %v2292, 4294901760
    %v2538 = vsub.f32 %v2292, %v2537
    %v2539 = vand.u32 %v2538, 4294901760
    %v2540 = vsub.f32 %v2538, %v2539
    %v2541 = vand.u32 %v2540, 4294901760
    %2542 = vmatmul.mubr.f32.gmra.mxu0 %v2541
    %v2543 = vpop.f32.mrf.mxu0
    %v2544 = vadd.f32 %v2092, %v2543
    %v2545 = vpop.f32.mrf.mxu0
    %2546 = vmatprep.mubr.f32.mxu0 0.0
    %v2547 = vand.u32 %v2295, 4294901760
    %v2548 = vsub.f32 %v2295, %v2547
    %v2549 = vand.u32 %v2548, 4294901760
    %v2550 = vsub.f32 %v2548, %v2549
    %v2551 = vand.u32 %v2550, 4294901760
    %2552 = vmatmul.mubr.f32.gmra.mxu0 %v2551
    %v2553 = vpop.f32.mrf.mxu0
    %v2554 = vadd.f32 %v2098, %v2553
    %v2555 = vpop.f32.mrf.mxu0
    %2556 = vmatprep.mubr.f32.mxu0 0.0
    %v2557 = vand.u32 %v2298, 4294901760
    %v2558 = vsub.f32 %v2298, %v2557
    %v2559 = vand.u32 %v2558, 4294901760
    %v2560 = vsub.f32 %v2558, %v2559
    %v2561 = vand.u32 %v2560, 4294901760
    %2562 = vmatmul.mubr.f32.gmra.mxu0 %v2561
    %v2563 = vpop.f32.mrf.mxu0
    %v2564 = vadd.f32 %v2104, %v2563
    %v2565 = vpop.f32.mrf.mxu0
    %2566 = vmatprep.mubr.f32.mxu0 0.0
    %v2567 = vand.u32 %v2301, 4294901760
    %v2568 = vsub.f32 %v2301, %v2567
    %v2569 = vand.u32 %v2568, 4294901760
    %v2570 = vsub.f32 %v2568, %v2569
    %v2571 = vand.u32 %v2570, 4294901760
    %2572 = vmatmul.mubr.f32.gmra.mxu0 %v2571
    %v2573 = vpop.f32.mrf.mxu0
    %v2574 = vadd.f32 %v2110, %v2573
    %v2575 = vpop.f32.mrf.mxu0
    %2576 = vmatprep.mubr.f32.mxu0 0.0
    %v2577 = vand.u32 %v2304, 4294901760
    %v2578 = vsub.f32 %v2304, %v2577
    %v2579 = vand.u32 %v2578, 4294901760
    %v2580 = vsub.f32 %v2578, %v2579
    %v2581 = vand.u32 %v2580, 4294901760
    %2582 = vmatmul.mubr.f32.gmra.mxu0 %v2581
    %v2583 = vpop.f32.mrf.mxu0
    %v2584 = vadd.f32 %v2116, %v2583
    %v2585 = vpop.f32.mrf.mxu0
    %2586 = vmatprep.mubr.f32.mxu0 0.0
    %v2587 = vand.u32 %v2307, 4294901760
    %v2588 = vsub.f32 %v2307, %v2587
    %v2589 = vand.u32 %v2588, 4294901760
    %v2590 = vsub.f32 %v2588, %v2589
    %v2591 = vand.u32 %v2590, 4294901760
    %2592 = vmatmul.mubr.f32.gmra.mxu0 %v2591
    %v2593 = vpop.f32.mrf.mxu0
    %v2594 = vadd.f32 %v2122, %v2593
    %v2595 = vpop.f32.mrf.mxu0
    %2596 = vmatprep.mubr.f32.mxu0 0.0
    %v2597 = vand.u32 %v2310, 4294901760
    %v2598 = vsub.f32 %v2310, %v2597
    %v2599 = vand.u32 %v2598, 4294901760
    %v2600 = vsub.f32 %v2598, %v2599
    %v2601 = vand.u32 %v2600, 4294901760
    %2602 = vmatmul.mubr.f32.gmra.mxu0 %v2601
    %v2603 = vpop.f32.mrf.mxu0
    %v2604 = vadd.f32 %v2128, %v2603
    %v2605 = vpop.f32.mrf.mxu0
    %2606 = vmatprep.mubr.f32.mxu0 0.0
    %v2607 = vand.u32 %v2313, 4294901760
    %v2608 = vsub.f32 %v2313, %v2607
    %v2609 = vand.u32 %v2608, 4294901760
    %v2610 = vsub.f32 %v2608, %v2609
    %v2611 = vand.u32 %v2610, 4294901760
    %2612 = vmatmul.mubr.f32.gmra.mxu0 %v2611
    %v2613 = vpop.f32.mrf.mxu0
    %v2614 = vadd.f32 %v2134, %v2613
    %v2615 = vpop.f32.mrf.mxu0
    %2616 = vmatprep.mubr.f32.mxu0 0.0
    %v2617 = vand.u32 %v2316, 4294901760
    %v2618 = vsub.f32 %v2316, %v2617
    %v2619 = vand.u32 %v2618, 4294901760
    %v2620 = vsub.f32 %v2618, %v2619
    %v2621 = vand.u32 %v2620, 4294901760
    %2622 = vmatmul.mubr.f32.gmra.mxu0 %v2621
    %v2623 = vpop.f32.mrf.mxu0
    %v2624 = vadd.f32 %v2140, %v2623
    %v2625 = vpop.f32.mrf.mxu0
    %2626 = vmatprep.mubr.f32.mxu0 0.0
    %v2627 = vand.u32 %v2319, 4294901760
    %v2628 = vsub.f32 %v2319, %v2627
    %v2629 = vand.u32 %v2628, 4294901760
    %v2630 = vsub.f32 %v2628, %v2629
    %v2631 = vand.u32 %v2630, 4294901760
    %2632 = vmatmul.mubr.f32.gmra.mxu0 %v2631
    %v2633 = vpop.f32.mrf.mxu0
    %v2634 = vadd.f32 %v2146, %v2633
    %v2635 = vpop.f32.mrf.mxu0
    %2636 = vmatprep.mubr.f32.mxu0 0.0
    %v2637 = vand.u32 %v2322, 4294901760
    %v2638 = vsub.f32 %v2322, %v2637
    %v2639 = vand.u32 %v2638, 4294901760
    %v2640 = vsub.f32 %v2638, %v2639
    %v2641 = vand.u32 %v2640, 4294901760
    %2642 = vmatmul.mubr.f32.gmra.mxu0 %v2641
    %v2643 = vpop.f32.mrf.mxu0
    %v2644 = vadd.f32 %v2152, %v2643
    %v2645 = vpop.f32.mrf.mxu0
    %2646 = vmatprep.mubr.f32.mxu0 0.0
    %v2647 = vand.u32 %v2325, 4294901760
    %v2648 = vsub.f32 %v2325, %v2647
    %v2649 = vand.u32 %v2648, 4294901760
    %v2650 = vsub.f32 %v2648, %v2649
    %v2651 = vand.u32 %v2650, 4294901760
    %2652 = vmatmul.mubr.f32.gmra.mxu0 %v2651
    %v2653 = vpop.f32.mrf.mxu0
    %v2654 = vadd.f32 %v2158, %v2653
    %v2655 = vpop.f32.mrf.mxu0
    %2656 = vmatprep.mubr.f32.mxu0 0.0
    %v2657 = vand.u32 %v2328, 4294901760
    %v2658 = vsub.f32 %v2328, %v2657
    %v2659 = vand.u32 %v2658, 4294901760
    %v2660 = vsub.f32 %v2658, %v2659
    %v2661 = vand.u32 %v2660, 4294901760
    %2662 = vmatmul.mubr.f32.gmra.mxu0 %v2661
    %v2663 = vpop.f32.mrf.mxu0
    %v2664 = vadd.f32 %v2164, %v2663
    %v2665 = vpop.f32.mrf.mxu0
    %2666 = vmatprep.mubr.f32.mxu0 0.0
    %v2667 = vand.u32 %v2331, 4294901760
    %v2668 = vsub.f32 %v2331, %v2667
    %v2669 = vand.u32 %v2668, 4294901760
    %v2670 = vsub.f32 %v2668, %v2669
    %v2671 = vand.u32 %v2670, 4294901760
    %2672 = vmatmul.mubr.f32.gmra.mxu0 %v2671
    %v2673 = vpop.f32.mrf.mxu0
    %v2674 = vadd.f32 %v2170, %v2673
    %v2675 = vpop.f32.mrf.mxu0
    %2676 = vmatprep.mubr.f32.mxu0 0.0
    %v2677 = vand.u32 %v2334, 4294901760
    %v2678 = vsub.f32 %v2334, %v2677
    %v2679 = vand.u32 %v2678, 4294901760
    %v2680 = vsub.f32 %v2678, %v2679
    %v2681 = vand.u32 %v2680, 4294901760
    %2682 = vmatmul.mubr.f32.gmra.mxu0 %v2681
    %v2683 = vpop.f32.mrf.mxu0
    %v2684 = vadd.f32 %v2176, %v2683
    %v2685 = vpop.f32.mrf.mxu0
    %2686 = vmatprep.mubr.f32.mxu0 0.0
    %v2687 = vand.u32 %v2337, 4294901760
    %v2688 = vsub.f32 %v2337, %v2687
    %v2689 = vand.u32 %v2688, 4294901760
    %v2690 = vsub.f32 %v2688, %v2689
    %v2691 = vand.u32 %v2690, 4294901760
    %2692 = vmatmul.mubr.f32.gmra.mxu0 %v2691
    %v2693 = vpop.f32.mrf.mxu0
    %v2694 = vadd.f32 %v2182, %v2693
    %v2695 = vpop.f32.mrf.mxu0
    %2696 = vmatprep.mubr.f32.mxu0 0.0
    %v2697 = vand.u32 %v2340, 4294901760
    %v2698 = vsub.f32 %v2340, %v2697
    %v2699 = vand.u32 %v2698, 4294901760
    %v2700 = vsub.f32 %v2698, %v2699
    %v2701 = vand.u32 %v2700, 4294901760
    %2702 = vmatmul.mubr.f32.gmra.mxu0 %v2701
    %v2703 = vpop.f32.mrf.mxu0
    %v2704 = vadd.f32 %v2188, %v2703
    %v2705 = vpop.f32.mrf.mxu0
    %2706 = vmatprep.mubr.f32.mxu0 0.0
    %v2707 = vand.u32 %v2343, 4294901760
    %v2708 = vsub.f32 %v2343, %v2707
    %v2709 = vand.u32 %v2708, 4294901760
    %v2710 = vsub.f32 %v2708, %v2709
    %v2711 = vand.u32 %v2710, 4294901760
    %2712 = vmatmul.mubr.f32.gmra.mxu0 %v2711
    %v2713 = vpop.f32.mrf.mxu0
    %v2714 = vadd.f32 %v2194, %v2713
    %v2715 = vpop.f32.mrf.mxu0
    %2716 = vmatprep.mubr.f32.mxu0 0.0
    %v2717 = vand.u32 %v2346, 4294901760
    %v2718 = vsub.f32 %v2346, %v2717
    %v2719 = vand.u32 %v2718, 4294901760
    %v2720 = vsub.f32 %v2718, %v2719
    %v2721 = vand.u32 %v2720, 4294901760
    %2722 = vmatmul.mubr.f32.gmra.mxu0 %v2721
    %v2723 = vpop.f32.mrf.mxu0
    %v2724 = vadd.f32 %v2200, %v2723
    %v2725 = vpop.f32.mrf.mxu0
    %2726 = vmatprep.mubr.f32.mxu0 0.0
    %v2727 = vand.u32 %v2349, 4294901760
    %v2728 = vsub.f32 %v2349, %v2727
    %v2729 = vand.u32 %v2728, 4294901760
    %v2730 = vsub.f32 %v2728, %v2729
    %v2731 = vand.u32 %v2730, 4294901760
    %2732 = vmatmul.mubr.f32.gmra.mxu0 %v2731
    %v2733 = vpop.f32.mrf.mxu0
    %v2734 = vadd.f32 %v2206, %v2733
    %v2735 = vpop.f32.mrf.mxu0
    %2736 = vmatprep.mubr.f32.mxu0 0.0
    %v2737 = vand.u32 %v2352, 4294901760
    %v2738 = vsub.f32 %v2352, %v2737
    %v2739 = vand.u32 %v2738, 4294901760
    %v2740 = vsub.f32 %v2738, %v2739
    %v2741 = vand.u32 %v2740, 4294901760
    %2742 = vmatmul.mubr.f32.gmra.mxu0 %v2741
    %v2743 = vpop.f32.mrf.mxu0
    %v2744 = vadd.f32 %v2212, %v2743
    %v2745 = vpop.f32.mrf.mxu0
    %2746 = vmatprep.mubr.f32.mxu0 0.0
    %v2747 = vand.u32 %v2355, 4294901760
    %v2748 = vsub.f32 %v2355, %v2747
    %v2749 = vand.u32 %v2748, 4294901760
    %v2750 = vsub.f32 %v2748, %v2749
    %v2751 = vand.u32 %v2750, 4294901760
    %2752 = vmatmul.mubr.f32.gmra.mxu0 %v2751
    %v2753 = vpop.f32.mrf.mxu0
    %v2754 = vadd.f32 %v2218, %v2753
    %v2755 = vpop.f32.mrf.mxu0
    %2756 = vmatprep.mubr.f32.mxu0 0.0
    %v2757 = vand.u32 %v2358, 4294901760
    %v2758 = vsub.f32 %v2358, %v2757
    %v2759 = vand.u32 %v2758, 4294901760
    %v2760 = vsub.f32 %v2758, %v2759
    %v2761 = vand.u32 %v2760, 4294901760
    %2762 = vmatmul.mubr.f32.gmra.mxu0 %v2761
    %v2763 = vpop.f32.mrf.mxu0
    %v2764 = vadd.f32 %v2224, %v2763
    %v2765 = vpop.f32.mrf.mxu0
    %2766 = vmatprep.mubr.f32.mxu0 0.0
    %v2767 = vand.u32 %v2361, 4294901760
    %v2768 = vsub.f32 %v2361, %v2767
    %v2769 = vand.u32 %v2768, 4294901760
    %v2770 = vsub.f32 %v2768, %v2769
    %v2771 = vand.u32 %v2770, 4294901760
    %2772 = vmatmul.mubr.f32.gmra.mxu0 %v2771
    %v2773 = vpop.f32.mrf.mxu0
    %v2774 = vadd.f32 %v2230, %v2773
    %v2775 = vpop.f32.mrf.mxu0
    %2776 = vmatprep.mubr.f32.mxu0 0.0
    %v2777 = vand.u32 %v2364, 4294901760
    %v2778 = vsub.f32 %v2364, %v2777
    %v2779 = vand.u32 %v2778, 4294901760
    %v2780 = vsub.f32 %v2778, %v2779
    %v2781 = vand.u32 %v2780, 4294901760
    %2782 = vmatmul.mubr.f32.gmra.mxu0 %v2781
    %v2783 = vpop.f32.mrf.mxu0
    %v2784 = vadd.f32 %v2236, %v2783
    %v2785 = vpop.f32.mrf.mxu0
    %2786 = vmatprep.mubr.f32.mxu0 0.0
    %v2787 = vand.u32 %v2367, 4294901760
    %v2788 = vsub.f32 %v2367, %v2787
    %v2789 = vand.u32 %v2788, 4294901760
    %v2790 = vsub.f32 %v2788, %v2789
    %v2791 = vand.u32 %v2790, 4294901760
    %2792 = vmatmul.mubr.f32.gmra.mxu0 %v2791
    %v2793 = vpop.f32.mrf.mxu0
    %v2794 = vadd.f32 %v2242, %v2793
    %v2795 = vpop.f32.mrf.mxu0
    %2796 = vmatprep.mubr.f32.mxu0 0.0
    %v2797 = vand.u32 %v2370, 4294901760
    %v2798 = vsub.f32 %v2370, %v2797
    %v2799 = vand.u32 %v2798, 4294901760
    %v2800 = vsub.f32 %v2798, %v2799
    %v2801 = vand.u32 %v2800, 4294901760
    %2802 = vmatmul.mubr.f32.gmra.mxu0 %v2801
    %v2803 = vpop.f32.mrf.mxu0
    %v2804 = vadd.f32 %v2248, %v2803
    %v2805 = vpop.f32.mrf.mxu0
    %2806 = vmatprep.mubr.f32.mxu0 0.0
    %v2807 = vand.u32 %v2373, 4294901760
    %v2808 = vsub.f32 %v2373, %v2807
    %v2809 = vand.u32 %v2808, 4294901760
    %v2810 = vsub.f32 %v2808, %v2809
    %v2811 = vand.u32 %v2810, 4294901760
    %2812 = vmatmul.mubr.f32.gmra.mxu0 %v2811
    %v2813 = vpop.f32.mrf.mxu0
    %v2814 = vadd.f32 %v2254, %v2813
    %v2815 = vpop.f32.mrf.mxu0
    %2816 = vmatprep.mubr.f32.mxu0 0.0
    %v2817 = vand.u32 %v2376, 4294901760
    %v2818 = vsub.f32 %v2376, %v2817
    %v2819 = vand.u32 %v2818, 4294901760
    %v2820 = vsub.f32 %v2818, %v2819
    %v2821 = vand.u32 %v2820, 4294901760
    %2822 = vmatmul.mubr.f32.gmra.mxu0 %v2821
    %v2823 = vpop.f32.mrf.mxu0
    %v2824 = vadd.f32 %v2260, %v2823
    %v2825 = vpop.f32.mrf.mxu0
    %2826 = vdwg.mxu0
    %2827 = vmatprep.subr.mxu0 0.0
    %2828 = vmatpush1.msra.mxu0 0.0
    %2829 = vmatprep.subr.mxu0 0.0
    %2830 = vmatpush1.msra.mxu0 0.0
    %2831 = vmatprep.subr.mxu0 0.0
    %2832 = vmatpush1.msra.mxu0 0.0
    %2833 = vmatprep.subr.mxu0 0.0
    %2834 = vmatpush1.msra.mxu0 0.0
    %2835 = vmatprep.subr.mxu0 0.0
    %2836 = vmatpush1.msra.mxu0 0.0
    %2837 = vmatprep.subr.mxu0 0.0
    %2838 = vmatpush1.msra.mxu0 0.0
    %2839 = vmatprep.subr.mxu0 0.0
    %2840 = vmatpush1.msra.mxu0 0.0
    %2841 = vmatprep.subr.mxu0 0.0
    %2842 = vmatpush1.msra.mxu0 0.0
    %2843 = vmatprep.subr.mxu0 0.0
    %2844 = vmatpush1.msra.mxu0 0.0
    %2845 = vmatprep.subr.mxu0 0.0
    %2846 = vmatpush1.msra.mxu0 0.0
    %2847 = vmatprep.subr.mxu0 0.0
    %2848 = vmatpush1.msra.mxu0 0.0
    %2849 = vmatprep.subr.mxu0 0.0
    %2850 = vmatpush1.msra.mxu0 0.0
    %2851 = vmatprep.subr.mxu0 0.0
    %v2852 = vand.u32 %v109, 4294901760
    %v2853 = vsub.f32 %v109, %v2852
    %v2854 = vand.u32 %v2853, 4294901760
    %v2855 = vsub.f32 %v2853, %v2854
    %v2856 = vand.u32 %v2855, 4294901760
    %2857 = vmatpush1.msra.mxu0 %v2856
    %2858 = vmatprep.subr.mxu0 0.0
    %v2859 = vand.u32 %v108, 4294901760
    %v2860 = vsub.f32 %v108, %v2859
    %v2861 = vand.u32 %v2860, 4294901760
    %v2862 = vsub.f32 %v2860, %v2861
    %v2863 = vand.u32 %v2862, 4294901760
    %2864 = vmatpush1.msra.mxu0 %v2863
    %2865 = vmatprep.subr.mxu0 0.0
    %v2866 = vand.u32 %v107, 4294901760
    %v2867 = vsub.f32 %v107, %v2866
    %v2868 = vand.u32 %v2867, 4294901760
    %v2869 = vsub.f32 %v2867, %v2868
    %v2870 = vand.u32 %v2869, 4294901760
    %2871 = vmatpush1.msra.mxu0 %v2870
    %2872 = vmatprep.subr.mxu0 0.0
    %v2873 = vand.u32 %v106, 4294901760
    %v2874 = vsub.f32 %v106, %v2873
    %v2875 = vand.u32 %v2874, 4294901760
    %v2876 = vsub.f32 %v2874, %v2875
    %v2877 = vand.u32 %v2876, 4294901760
    %2878 = vmatpush1.msra.mxu0 %v2877
    %2879 = vmatprep.subr.mxu0 0.0
    %2880 = vmatpush2.msra.mxu0 0.0
    %2881 = vmatprep.subr.mxu0 0.0
    %2882 = vmatpush2.msra.mxu0 0.0
    %2883 = vmatprep.subr.mxu0 0.0
    %2884 = vmatpush2.msra.mxu0 0.0
    %2885 = vmatprep.subr.mxu0 0.0
    %2886 = vmatpush2.msra.mxu0 0.0
    %2887 = vmatprep.subr.mxu0 0.0
    %2888 = vmatpush2.msra.mxu0 0.0
    %2889 = vmatprep.subr.mxu0 0.0
    %2890 = vmatpush2.msra.mxu0 0.0
    %2891 = vmatprep.subr.mxu0 0.0
    %2892 = vmatpush2.msra.mxu0 0.0
    %2893 = vmatprep.subr.mxu0 0.0
    %2894 = vmatpush2.msra.mxu0 0.0
    %2895 = vmatprep.subr.mxu0 0.0
    %2896 = vmatpush2.msra.mxu0 0.0
    %2897 = vmatprep.subr.mxu0 0.0
    %2898 = vmatpush2.msra.mxu0 0.0
    %2899 = vmatprep.subr.mxu0 0.0
    %2900 = vmatpush2.msra.mxu0 0.0
    %2901 = vmatprep.subr.mxu0 0.0
    %2902 = vmatpush2.msra.mxu0 0.0
    %2903 = vmatprep.subr.mxu0 0.0
    %2904 = vmatpush2.msra.mxu0 0.0
    %2905 = vmatprep.subr.mxu0 0.0
    %2906 = vmatpush2.msra.mxu0 0.0
    %2907 = vmatprep.subr.mxu0 0.0
    %2908 = vmatpush2.msra.mxu0 0.0
    %2909 = vmatprep.subr.mxu0 0.0
    %2910 = vmatpush2.msra.mxu0 0.0
    %2911 = vmatprep.mubr.f32.mxu0 0.0
    %v2912 = vand.u32 %v2265, 4294901760
    %2913 = vmatmul.mubr.f32.gmra.mxu0 %v2912
    %v2914 = vpop.f32.mrf.mxu0
    %v2915 = vadd.f32 %v2454, %v2914
    %v2916 = vpop.f32.mrf.mxu0
    %2917 = vmatprep.mubr.f32.mxu0 0.0
    %v2918 = vand.u32 %v2268, 4294901760
    %2919 = vmatmul.mubr.f32.gmra.mxu0 %v2918
    %v2920 = vpop.f32.mrf.mxu0
    %v2921 = vadd.f32 %v2464, %v2920
    %v2922 = vpop.f32.mrf.mxu0
    %2923 = vmatprep.mubr.f32.mxu0 0.0
    %v2924 = vand.u32 %v2271, 4294901760
    %2925 = vmatmul.mubr.f32.gmra.mxu0 %v2924
    %v2926 = vpop.f32.mrf.mxu0
    %v2927 = vadd.f32 %v2474, %v2926
    %v2928 = vpop.f32.mrf.mxu0
    %2929 = vmatprep.mubr.f32.mxu0 0.0
    %v2930 = vand.u32 %v2274, 4294901760
    %2931 = vmatmul.mubr.f32.gmra.mxu0 %v2930
    %v2932 = vpop.f32.mrf.mxu0
    %v2933 = vadd.f32 %v2484, %v2932
    %v2934 = vpop.f32.mrf.mxu0
    %2935 = vmatprep.mubr.f32.mxu0 0.0
    %v2936 = vand.u32 %v2277, 4294901760
    %2937 = vmatmul.mubr.f32.gmra.mxu0 %v2936
    %v2938 = vpop.f32.mrf.mxu0
    %v2939 = vadd.f32 %v2494, %v2938
    %v2940 = vpop.f32.mrf.mxu0
    %2941 = vmatprep.mubr.f32.mxu0 0.0
    %v2942 = vand.u32 %v2280, 4294901760
    %2943 = vmatmul.mubr.f32.gmra.mxu0 %v2942
    %v2944 = vpop.f32.mrf.mxu0
    %v2945 = vadd.f32 %v2504, %v2944
    %v2946 = vpop.f32.mrf.mxu0
    %2947 = vmatprep.mubr.f32.mxu0 0.0
    %v2948 = vand.u32 %v2283, 4294901760
    %2949 = vmatmul.mubr.f32.gmra.mxu0 %v2948
    %v2950 = vpop.f32.mrf.mxu0
    %v2951 = vadd.f32 %v2514, %v2950
    %v2952 = vpop.f32.mrf.mxu0
    %2953 = vmatprep.mubr.f32.mxu0 0.0
    %v2954 = vand.u32 %v2286, 4294901760
    %2955 = vmatmul.mubr.f32.gmra.mxu0 %v2954
    %v2956 = vpop.f32.mrf.mxu0
    %v2957 = vadd.f32 %v2524, %v2956
    %v2958 = vpop.f32.mrf.mxu0
    %2959 = vmatprep.mubr.f32.mxu0 0.0
    %v2960 = vand.u32 %v2289, 4294901760
    %2961 = vmatmul.mubr.f32.gmra.mxu0 %v2960
    %v2962 = vpop.f32.mrf.mxu0
    %v2963 = vadd.f32 %v2534, %v2962
    %v2964 = vpop.f32.mrf.mxu0
    %2965 = vmatprep.mubr.f32.mxu0 0.0
    %v2966 = vand.u32 %v2292, 4294901760
    %2967 = vmatmul.mubr.f32.gmra.mxu0 %v2966
    %v2968 = vpop.f32.mrf.mxu0
    %v2969 = vadd.f32 %v2544, %v2968
    %v2970 = vpop.f32.mrf.mxu0
    %2971 = vmatprep.mubr.f32.mxu0 0.0
    %v2972 = vand.u32 %v2295, 4294901760
    %2973 = vmatmul.mubr.f32.gmra.mxu0 %v2972
    %v2974 = vpop.f32.mrf.mxu0
    %v2975 = vadd.f32 %v2554, %v2974
    %v2976 = vpop.f32.mrf.mxu0
    %2977 = vmatprep.mubr.f32.mxu0 0.0
    %v2978 = vand.u32 %v2298, 4294901760
    %2979 = vmatmul.mubr.f32.gmra.mxu0 %v2978
    %v2980 = vpop.f32.mrf.mxu0
    %v2981 = vadd.f32 %v2564, %v2980
    %v2982 = vpop.f32.mrf.mxu0
    %2983 = vmatprep.mubr.f32.mxu0 0.0
    %v2984 = vand.u32 %v2301, 4294901760
    %2985 = vmatmul.mubr.f32.gmra.mxu0 %v2984
    %v2986 = vpop.f32.mrf.mxu0
    %v2987 = vadd.f32 %v2574, %v2986
    %v2988 = vpop.f32.mrf.mxu0
    %2989 = vmatprep.mubr.f32.mxu0 0.0
    %v2990 = vand.u32 %v2304, 4294901760
    %2991 = vmatmul.mubr.f32.gmra.mxu0 %v2990
    %v2992 = vpop.f32.mrf.mxu0
    %v2993 = vadd.f32 %v2584, %v2992
    %v2994 = vpop.f32.mrf.mxu0
    %2995 = vmatprep.mubr.f32.mxu0 0.0
    %v2996 = vand.u32 %v2307, 4294901760
    %2997 = vmatmul.mubr.f32.gmra.mxu0 %v2996
    %v2998 = vpop.f32.mrf.mxu0
    %v2999 = vadd.f32 %v2594, %v2998
    %v3000 = vpop.f32.mrf.mxu0
    %3001 = vmatprep.mubr.f32.mxu0 0.0
    %v3002 = vand.u32 %v2310, 4294901760
    %3003 = vmatmul.mubr.f32.gmra.mxu0 %v3002
    %v3004 = vpop.f32.mrf.mxu0
    %v3005 = vadd.f32 %v2604, %v3004
    %v3006 = vpop.f32.mrf.mxu0
    %3007 = vmatprep.mubr.f32.mxu0 0.0
    %v3008 = vand.u32 %v2313, 4294901760
    %3009 = vmatmul.mubr.f32.gmra.mxu0 %v3008
    %v3010 = vpop.f32.mrf.mxu0
    %v3011 = vadd.f32 %v2614, %v3010
    %v3012 = vpop.f32.mrf.mxu0
    %3013 = vmatprep.mubr.f32.mxu0 0.0
    %v3014 = vand.u32 %v2316, 4294901760
    %3015 = vmatmul.mubr.f32.gmra.mxu0 %v3014
    %v3016 = vpop.f32.mrf.mxu0
    %v3017 = vadd.f32 %v2624, %v3016
    %v3018 = vpop.f32.mrf.mxu0
    %3019 = vmatprep.mubr.f32.mxu0 0.0
    %v3020 = vand.u32 %v2319, 4294901760
    %3021 = vmatmul.mubr.f32.gmra.mxu0 %v3020
    %v3022 = vpop.f32.mrf.mxu0
    %v3023 = vadd.f32 %v2634, %v3022
    %v3024 = vpop.f32.mrf.mxu0
    %3025 = vmatprep.mubr.f32.mxu0 0.0
    %v3026 = vand.u32 %v2322, 4294901760
    %3027 = vmatmul.mubr.f32.gmra.mxu0 %v3026
    %v3028 = vpop.f32.mrf.mxu0
    %v3029 = vadd.f32 %v2644, %v3028
    %v3030 = vpop.f32.mrf.mxu0
    %3031 = vmatprep.mubr.f32.mxu0 0.0
    %v3032 = vand.u32 %v2325, 4294901760
    %3033 = vmatmul.mubr.f32.gmra.mxu0 %v3032
    %v3034 = vpop.f32.mrf.mxu0
    %v3035 = vadd.f32 %v2654, %v3034
    %v3036 = vpop.f32.mrf.mxu0
    %3037 = vmatprep.mubr.f32.mxu0 0.0
    %v3038 = vand.u32 %v2328, 4294901760
    %3039 = vmatmul.mubr.f32.gmra.mxu0 %v3038
    %v3040 = vpop.f32.mrf.mxu0
    %v3041 = vadd.f32 %v2664, %v3040
    %v3042 = vpop.f32.mrf.mxu0
    %3043 = vmatprep.mubr.f32.mxu0 0.0
    %v3044 = vand.u32 %v2331, 4294901760
    %3045 = vmatmul.mubr.f32.gmra.mxu0 %v3044
    %v3046 = vpop.f32.mrf.mxu0
    %v3047 = vadd.f32 %v2674, %v3046
    %v3048 = vpop.f32.mrf.mxu0
    %3049 = vmatprep.mubr.f32.mxu0 0.0
    %v3050 = vand.u32 %v2334, 4294901760
    %3051 = vmatmul.mubr.f32.gmra.mxu0 %v3050
    %v3052 = vpop.f32.mrf.mxu0
    %v3053 = vadd.f32 %v2684, %v3052
    %v3054 = vpop.f32.mrf.mxu0
    %3055 = vmatprep.mubr.f32.mxu0 0.0
    %v3056 = vand.u32 %v2337, 4294901760
    %3057 = vmatmul.mubr.f32.gmra.mxu0 %v3056
    %v3058 = vpop.f32.mrf.mxu0
    %v3059 = vadd.f32 %v2694, %v3058
    %v3060 = vpop.f32.mrf.mxu0
    %3061 = vmatprep.mubr.f32.mxu0 0.0
    %v3062 = vand.u32 %v2340, 4294901760
    %3063 = vmatmul.mubr.f32.gmra.mxu0 %v3062
    %v3064 = vpop.f32.mrf.mxu0
    %v3065 = vadd.f32 %v2704, %v3064
    %v3066 = vpop.f32.mrf.mxu0
    %3067 = vmatprep.mubr.f32.mxu0 0.0
    %v3068 = vand.u32 %v2343, 4294901760
    %3069 = vmatmul.mubr.f32.gmra.mxu0 %v3068
    %v3070 = vpop.f32.mrf.mxu0
    %v3071 = vadd.f32 %v2714, %v3070
    %v3072 = vpop.f32.mrf.mxu0
    %3073 = vmatprep.mubr.f32.mxu0 0.0
    %v3074 = vand.u32 %v2346, 4294901760
    %3075 = vmatmul.mubr.f32.gmra.mxu0 %v3074
    %v3076 = vpop.f32.mrf.mxu0
    %v3077 = vadd.f32 %v2724, %v3076
    %v3078 = vpop.f32.mrf.mxu0
    %3079 = vmatprep.mubr.f32.mxu0 0.0
    %v3080 = vand.u32 %v2349, 4294901760
    %3081 = vmatmul.mubr.f32.gmra.mxu0 %v3080
    %v3082 = vpop.f32.mrf.mxu0
    %v3083 = vadd.f32 %v2734, %v3082
    %v3084 = vpop.f32.mrf.mxu0
    %3085 = vmatprep.mubr.f32.mxu0 0.0
    %v3086 = vand.u32 %v2352, 4294901760
    %3087 = vmatmul.mubr.f32.gmra.mxu0 %v3086
    %v3088 = vpop.f32.mrf.mxu0
    %v3089 = vadd.f32 %v2744, %v3088
    %v3090 = vpop.f32.mrf.mxu0
    %3091 = vmatprep.mubr.f32.mxu0 0.0
    %v3092 = vand.u32 %v2355, 4294901760
    %3093 = vmatmul.mubr.f32.gmra.mxu0 %v3092
    %v3094 = vpop.f32.mrf.mxu0
    %v3095 = vadd.f32 %v2754, %v3094
    %v3096 = vpop.f32.mrf.mxu0
    %3097 = vmatprep.mubr.f32.mxu0 0.0
    %v3098 = vand.u32 %v2358, 4294901760
    %3099 = vmatmul.mubr.f32.gmra.mxu0 %v3098
    %v3100 = vpop.f32.mrf.mxu0
    %v3101 = vadd.f32 %v2764, %v3100
    %v3102 = vpop.f32.mrf.mxu0
    %3103 = vmatprep.mubr.f32.mxu0 0.0
    %v3104 = vand.u32 %v2361, 4294901760
    %3105 = vmatmul.mubr.f32.gmra.mxu0 %v3104
    %v3106 = vpop.f32.mrf.mxu0
    %v3107 = vadd.f32 %v2774, %v3106
    %v3108 = vpop.f32.mrf.mxu0
    %3109 = vmatprep.mubr.f32.mxu0 0.0
    %v3110 = vand.u32 %v2364, 4294901760
    %3111 = vmatmul.mubr.f32.gmra.mxu0 %v3110
    %v3112 = vpop.f32.mrf.mxu0
    %v3113 = vadd.f32 %v2784, %v3112
    %v3114 = vpop.f32.mrf.mxu0
    %3115 = vmatprep.mubr.f32.mxu0 0.0
    %v3116 = vand.u32 %v2367, 4294901760
    %3117 = vmatmul.mubr.f32.gmra.mxu0 %v3116
    %v3118 = vpop.f32.mrf.mxu0
    %v3119 = vadd.f32 %v2794, %v3118
    %v3120 = vpop.f32.mrf.mxu0
    %3121 = vmatprep.mubr.f32.mxu0 0.0
    %v3122 = vand.u32 %v2370, 4294901760
    %3123 = vmatmul.mubr.f32.gmra.mxu0 %v3122
    %v3124 = vpop.f32.mrf.mxu0
    %v3125 = vadd.f32 %v2804, %v3124
    %v3126 = vpop.f32.mrf.mxu0
    %3127 = vmatprep.mubr.f32.mxu0 0.0
    %v3128 = vand.u32 %v2373, 4294901760
    %3129 = vmatmul.mubr.f32.gmra.mxu0 %v3128
    %v3130 = vpop.f32.mrf.mxu0
    %v3131 = vadd.f32 %v2814, %v3130
    %v3132 = vpop.f32.mrf.mxu0
    %3133 = vmatprep.mubr.f32.mxu0 0.0
    %v3134 = vand.u32 %v2376, 4294901760
    %3135 = vmatmul.mubr.f32.gmra.mxu0 %v3134
    %v3136 = vpop.f32.mrf.mxu0
    %v3137 = vadd.f32 %v2824, %v3136
    %v3138 = vpop.f32.mrf.mxu0
    %3139 = vdwg.mxu0
    %3140 = vmatprep.subr.mxu0 0.0
    %3141 = vmatpush1.msra.mxu0 0.0
    %3142 = vmatprep.subr.mxu0 0.0
    %3143 = vmatpush1.msra.mxu0 0.0
    %3144 = vmatprep.subr.mxu0 0.0
    %3145 = vmatpush1.msra.mxu0 0.0
    %3146 = vmatprep.subr.mxu0 0.0
    %3147 = vmatpush1.msra.mxu0 0.0
    %3148 = vmatprep.subr.mxu0 0.0
    %3149 = vmatpush1.msra.mxu0 0.0
    %3150 = vmatprep.subr.mxu0 0.0
    %3151 = vmatpush1.msra.mxu0 0.0
    %3152 = vmatprep.subr.mxu0 0.0
    %3153 = vmatpush1.msra.mxu0 0.0
    %3154 = vmatprep.subr.mxu0 0.0
    %3155 = vmatpush1.msra.mxu0 0.0
    %3156 = vmatprep.subr.mxu0 0.0
    %3157 = vmatpush1.msra.mxu0 0.0
    %3158 = vmatprep.subr.mxu0 0.0
    %3159 = vmatpush1.msra.mxu0 0.0
    %3160 = vmatprep.subr.mxu0 0.0
    %3161 = vmatpush1.msra.mxu0 0.0
    %3162 = vmatprep.subr.mxu0 0.0
    %3163 = vmatpush1.msra.mxu0 0.0
    %3164 = vmatprep.subr.mxu0 0.0
    %v3165 = vand.u32 %v109, 4294901760
    %v3166 = vsub.f32 %v109, %v3165
    %3167 = vmatpush1.msra.mxu0 %v3166
    %3168 = vmatprep.subr.mxu0 0.0
    %v3169 = vand.u32 %v108, 4294901760
    %v3170 = vsub.f32 %v108, %v3169
    %3171 = vmatpush1.msra.mxu0 %v3170
    %3172 = vmatprep.subr.mxu0 0.0
    %v3173 = vand.u32 %v107, 4294901760
    %v3174 = vsub.f32 %v107, %v3173
    %3175 = vmatpush1.msra.mxu0 %v3174
    %3176 = vmatprep.subr.mxu0 0.0
    %v3177 = vand.u32 %v106, 4294901760
    %v3178 = vsub.f32 %v106, %v3177
    %3179 = vmatpush1.msra.mxu0 %v3178
    %3180 = vmatprep.subr.mxu0 0.0
    %3181 = vmatpush2.msra.mxu0 0.0
    %3182 = vmatprep.subr.mxu0 0.0
    %3183 = vmatpush2.msra.mxu0 0.0
    %3184 = vmatprep.subr.mxu0 0.0
    %3185 = vmatpush2.msra.mxu0 0.0
    %3186 = vmatprep.subr.mxu0 0.0
    %3187 = vmatpush2.msra.mxu0 0.0
    %3188 = vmatprep.subr.mxu0 0.0
    %3189 = vmatpush2.msra.mxu0 0.0
    %3190 = vmatprep.subr.mxu0 0.0
    %3191 = vmatpush2.msra.mxu0 0.0
    %3192 = vmatprep.subr.mxu0 0.0
    %3193 = vmatpush2.msra.mxu0 0.0
    %3194 = vmatprep.subr.mxu0 0.0
    %3195 = vmatpush2.msra.mxu0 0.0
    %3196 = vmatprep.subr.mxu0 0.0
    %3197 = vmatpush2.msra.mxu0 0.0
    %3198 = vmatprep.subr.mxu0 0.0
    %3199 = vmatpush2.msra.mxu0 0.0
    %3200 = vmatprep.subr.mxu0 0.0
    %3201 = vmatpush2.msra.mxu0 0.0
    %3202 = vmatprep.subr.mxu0 0.0
    %3203 = vmatpush2.msra.mxu0 0.0
    %3204 = vmatprep.subr.mxu0 0.0
    %3205 = vmatpush2.msra.mxu0 0.0
    %3206 = vmatprep.subr.mxu0 0.0
    %3207 = vmatpush2.msra.mxu0 0.0
    %3208 = vmatprep.subr.mxu0 0.0
    %3209 = vmatpush2.msra.mxu0 0.0
    %3210 = vmatprep.subr.mxu0 0.0
    %3211 = vmatpush2.msra.mxu0 0.0
    %3212 = vmatprep.mubr.f32.mxu0 0.0
    %v3213 = vand.u32 %v2265, 4294901760
    %v3214 = vsub.f32 %v2265, %v3213
    %3215 = vmatmul.mubr.f32.gmra.mxu0 %v3214
    %v3216 = vpop.f32.mrf.mxu0
    %v3217 = vadd.f32 %v2915, %v3216
    %v3218 = vpop.f32.mrf.mxu0
    %3219 = vmatprep.mubr.f32.mxu0 0.0
    %v3220 = vand.u32 %v2268, 4294901760
    %v3221 = vsub.f32 %v2268, %v3220
    %3222 = vmatmul.mubr.f32.gmra.mxu0 %v3221
    %v3223 = vpop.f32.mrf.mxu0
    %v3224 = vadd.f32 %v2921, %v3223
    %v3225 = vpop.f32.mrf.mxu0
    %3226 = vmatprep.mubr.f32.mxu0 0.0
    %v3227 = vand.u32 %v2271, 4294901760
    %v3228 = vsub.f32 %v2271, %v3227
    %3229 = vmatmul.mubr.f32.gmra.mxu0 %v3228
    %v3230 = vpop.f32.mrf.mxu0
    %v3231 = vadd.f32 %v2927, %v3230
    %v3232 = vpop.f32.mrf.mxu0
    %3233 = vmatprep.mubr.f32.mxu0 0.0
    %v3234 = vand.u32 %v2274, 4294901760
    %v3235 = vsub.f32 %v2274, %v3234
    %3236 = vmatmul.mubr.f32.gmra.mxu0 %v3235
    %v3237 = vpop.f32.mrf.mxu0
    %v3238 = vadd.f32 %v2933, %v3237
    %v3239 = vpop.f32.mrf.mxu0
    %3240 = vmatprep.mubr.f32.mxu0 0.0
    %v3241 = vand.u32 %v2277, 4294901760
    %v3242 = vsub.f32 %v2277, %v3241
    %3243 = vmatmul.mubr.f32.gmra.mxu0 %v3242
    %v3244 = vpop.f32.mrf.mxu0
    %v3245 = vadd.f32 %v2939, %v3244
    %v3246 = vpop.f32.mrf.mxu0
    %3247 = vmatprep.mubr.f32.mxu0 0.0
    %v3248 = vand.u32 %v2280, 4294901760
    %v3249 = vsub.f32 %v2280, %v3248
    %3250 = vmatmul.mubr.f32.gmra.mxu0 %v3249
    %v3251 = vpop.f32.mrf.mxu0
    %v3252 = vadd.f32 %v2945, %v3251
    %v3253 = vpop.f32.mrf.mxu0
    %3254 = vmatprep.mubr.f32.mxu0 0.0
    %v3255 = vand.u32 %v2283, 4294901760
    %v3256 = vsub.f32 %v2283, %v3255
    %3257 = vmatmul.mubr.f32.gmra.mxu0 %v3256
    %v3258 = vpop.f32.mrf.mxu0
    %v3259 = vadd.f32 %v2951, %v3258
    %v3260 = vpop.f32.mrf.mxu0
    %3261 = vmatprep.mubr.f32.mxu0 0.0
    %v3262 = vand.u32 %v2286, 4294901760
    %v3263 = vsub.f32 %v2286, %v3262
    %3264 = vmatmul.mubr.f32.gmra.mxu0 %v3263
    %v3265 = vpop.f32.mrf.mxu0
    %v3266 = vadd.f32 %v2957, %v3265
    %v3267 = vpop.f32.mrf.mxu0
    %3268 = vmatprep.mubr.f32.mxu0 0.0
    %v3269 = vand.u32 %v2289, 4294901760
    %v3270 = vsub.f32 %v2289, %v3269
    %3271 = vmatmul.mubr.f32.gmra.mxu0 %v3270
    %v3272 = vpop.f32.mrf.mxu0
    %v3273 = vadd.f32 %v2963, %v3272
    %v3274 = vpop.f32.mrf.mxu0
    %3275 = vmatprep.mubr.f32.mxu0 0.0
    %v3276 = vand.u32 %v2292, 4294901760
    %v3277 = vsub.f32 %v2292, %v3276
    %3278 = vmatmul.mubr.f32.gmra.mxu0 %v3277
    %v3279 = vpop.f32.mrf.mxu0
    %v3280 = vadd.f32 %v2969, %v3279
    %v3281 = vpop.f32.mrf.mxu0
    %3282 = vmatprep.mubr.f32.mxu0 0.0
    %v3283 = vand.u32 %v2295, 4294901760
    %v3284 = vsub.f32 %v2295, %v3283
    %3285 = vmatmul.mubr.f32.gmra.mxu0 %v3284
    %v3286 = vpop.f32.mrf.mxu0
    %v3287 = vadd.f32 %v2975, %v3286
    %v3288 = vpop.f32.mrf.mxu0
    %3289 = vmatprep.mubr.f32.mxu0 0.0
    %v3290 = vand.u32 %v2298, 4294901760
    %v3291 = vsub.f32 %v2298, %v3290
    %3292 = vmatmul.mubr.f32.gmra.mxu0 %v3291
    %v3293 = vpop.f32.mrf.mxu0
    %v3294 = vadd.f32 %v2981, %v3293
    %v3295 = vpop.f32.mrf.mxu0
    %3296 = vmatprep.mubr.f32.mxu0 0.0
    %v3297 = vand.u32 %v2301, 4294901760
    %v3298 = vsub.f32 %v2301, %v3297
    %3299 = vmatmul.mubr.f32.gmra.mxu0 %v3298
    %v3300 = vpop.f32.mrf.mxu0
    %v3301 = vadd.f32 %v2987, %v3300
    %v3302 = vpop.f32.mrf.mxu0
    %3303 = vmatprep.mubr.f32.mxu0 0.0
    %v3304 = vand.u32 %v2304, 4294901760
    %v3305 = vsub.f32 %v2304, %v3304
    %3306 = vmatmul.mubr.f32.gmra.mxu0 %v3305
    %v3307 = vpop.f32.mrf.mxu0
    %v3308 = vadd.f32 %v2993, %v3307
    %v3309 = vpop.f32.mrf.mxu0
    %3310 = vmatprep.mubr.f32.mxu0 0.0
    %v3311 = vand.u32 %v2307, 4294901760
    %v3312 = vsub.f32 %v2307, %v3311
    %3313 = vmatmul.mubr.f32.gmra.mxu0 %v3312
    %v3314 = vpop.f32.mrf.mxu0
    %v3315 = vadd.f32 %v2999, %v3314
    %v3316 = vpop.f32.mrf.mxu0
    %3317 = vmatprep.mubr.f32.mxu0 0.0
    %v3318 = vand.u32 %v2310, 4294901760
    %v3319 = vsub.f32 %v2310, %v3318
    %3320 = vmatmul.mubr.f32.gmra.mxu0 %v3319
    %v3321 = vpop.f32.mrf.mxu0
    %v3322 = vadd.f32 %v3005, %v3321
    %v3323 = vpop.f32.mrf.mxu0
    %3324 = vmatprep.mubr.f32.mxu0 0.0
    %v3325 = vand.u32 %v2313, 4294901760
    %v3326 = vsub.f32 %v2313, %v3325
    %3327 = vmatmul.mubr.f32.gmra.mxu0 %v3326
    %v3328 = vpop.f32.mrf.mxu0
    %v3329 = vadd.f32 %v3011, %v3328
    %v3330 = vpop.f32.mrf.mxu0
    %3331 = vmatprep.mubr.f32.mxu0 0.0
    %v3332 = vand.u32 %v2316, 4294901760
    %v3333 = vsub.f32 %v2316, %v3332
    %3334 = vmatmul.mubr.f32.gmra.mxu0 %v3333
    %v3335 = vpop.f32.mrf.mxu0
    %v3336 = vadd.f32 %v3017, %v3335
    %v3337 = vpop.f32.mrf.mxu0
    %3338 = vmatprep.mubr.f32.mxu0 0.0
    %v3339 = vand.u32 %v2319, 4294901760
    %v3340 = vsub.f32 %v2319, %v3339
    %3341 = vmatmul.mubr.f32.gmra.mxu0 %v3340
    %v3342 = vpop.f32.mrf.mxu0
    %v3343 = vadd.f32 %v3023, %v3342
    %v3344 = vpop.f32.mrf.mxu0
    %3345 = vmatprep.mubr.f32.mxu0 0.0
    %v3346 = vand.u32 %v2322, 4294901760
    %v3347 = vsub.f32 %v2322, %v3346
    %3348 = vmatmul.mubr.f32.gmra.mxu0 %v3347
    %v3349 = vpop.f32.mrf.mxu0
    %v3350 = vadd.f32 %v3029, %v3349
    %v3351 = vpop.f32.mrf.mxu0
    %3352 = vmatprep.mubr.f32.mxu0 0.0
    %v3353 = vand.u32 %v2325, 4294901760
    %v3354 = vsub.f32 %v2325, %v3353
    %3355 = vmatmul.mubr.f32.gmra.mxu0 %v3354
    %v3356 = vpop.f32.mrf.mxu0
    %v3357 = vadd.f32 %v3035, %v3356
    %v3358 = vpop.f32.mrf.mxu0
    %3359 = vmatprep.mubr.f32.mxu0 0.0
    %v3360 = vand.u32 %v2328, 4294901760
    %v3361 = vsub.f32 %v2328, %v3360
    %3362 = vmatmul.mubr.f32.gmra.mxu0 %v3361
    %v3363 = vpop.f32.mrf.mxu0
    %v3364 = vadd.f32 %v3041, %v3363
    %v3365 = vpop.f32.mrf.mxu0
    %3366 = vmatprep.mubr.f32.mxu0 0.0
    %v3367 = vand.u32 %v2331, 4294901760
    %v3368 = vsub.f32 %v2331, %v3367
    %3369 = vmatmul.mubr.f32.gmra.mxu0 %v3368
    %v3370 = vpop.f32.mrf.mxu0
    %v3371 = vadd.f32 %v3047, %v3370
    %v3372 = vpop.f32.mrf.mxu0
    %3373 = vmatprep.mubr.f32.mxu0 0.0
    %v3374 = vand.u32 %v2334, 4294901760
    %v3375 = vsub.f32 %v2334, %v3374
    %3376 = vmatmul.mubr.f32.gmra.mxu0 %v3375
    %v3377 = vpop.f32.mrf.mxu0
    %v3378 = vadd.f32 %v3053, %v3377
    %v3379 = vpop.f32.mrf.mxu0
    %3380 = vmatprep.mubr.f32.mxu0 0.0
    %v3381 = vand.u32 %v2337, 4294901760
    %v3382 = vsub.f32 %v2337, %v3381
    %3383 = vmatmul.mubr.f32.gmra.mxu0 %v3382
    %v3384 = vpop.f32.mrf.mxu0
    %v3385 = vadd.f32 %v3059, %v3384
    %v3386 = vpop.f32.mrf.mxu0
    %3387 = vmatprep.mubr.f32.mxu0 0.0
    %v3388 = vand.u32 %v2340, 4294901760
    %v3389 = vsub.f32 %v2340, %v3388
    %3390 = vmatmul.mubr.f32.gmra.mxu0 %v3389
    %v3391 = vpop.f32.mrf.mxu0
    %v3392 = vadd.f32 %v3065, %v3391
    %v3393 = vpop.f32.mrf.mxu0
    %3394 = vmatprep.mubr.f32.mxu0 0.0
    %v3395 = vand.u32 %v2343, 4294901760
    %v3396 = vsub.f32 %v2343, %v3395
    %3397 = vmatmul.mubr.f32.gmra.mxu0 %v3396
    %v3398 = vpop.f32.mrf.mxu0
    %v3399 = vadd.f32 %v3071, %v3398
    %v3400 = vpop.f32.mrf.mxu0
    %3401 = vmatprep.mubr.f32.mxu0 0.0
    %v3402 = vand.u32 %v2346, 4294901760
    %v3403 = vsub.f32 %v2346, %v3402
    %3404 = vmatmul.mubr.f32.gmra.mxu0 %v3403
    %v3405 = vpop.f32.mrf.mxu0
    %v3406 = vadd.f32 %v3077, %v3405
    %v3407 = vpop.f32.mrf.mxu0
    %3408 = vmatprep.mubr.f32.mxu0 0.0
    %v3409 = vand.u32 %v2349, 4294901760
    %v3410 = vsub.f32 %v2349, %v3409
    %3411 = vmatmul.mubr.f32.gmra.mxu0 %v3410
    %v3412 = vpop.f32.mrf.mxu0
    %v3413 = vadd.f32 %v3083, %v3412
    %v3414 = vpop.f32.mrf.mxu0
    %3415 = vmatprep.mubr.f32.mxu0 0.0
    %v3416 = vand.u32 %v2352, 4294901760
    %v3417 = vsub.f32 %v2352, %v3416
    %3418 = vmatmul.mubr.f32.gmra.mxu0 %v3417
    %v3419 = vpop.f32.mrf.mxu0
    %v3420 = vadd.f32 %v3089, %v3419
    %v3421 = vpop.f32.mrf.mxu0
    %3422 = vmatprep.mubr.f32.mxu0 0.0
    %v3423 = vand.u32 %v2355, 4294901760
    %v3424 = vsub.f32 %v2355, %v3423
    %3425 = vmatmul.mubr.f32.gmra.mxu0 %v3424
    %v3426 = vpop.f32.mrf.mxu0
    %v3427 = vadd.f32 %v3095, %v3426
    %v3428 = vpop.f32.mrf.mxu0
    %3429 = vmatprep.mubr.f32.mxu0 0.0
    %v3430 = vand.u32 %v2358, 4294901760
    %v3431 = vsub.f32 %v2358, %v3430
    %3432 = vmatmul.mubr.f32.gmra.mxu0 %v3431
    %v3433 = vpop.f32.mrf.mxu0
    %v3434 = vadd.f32 %v3101, %v3433
    %v3435 = vpop.f32.mrf.mxu0
    %3436 = vmatprep.mubr.f32.mxu0 0.0
    %v3437 = vand.u32 %v2361, 4294901760
    %v3438 = vsub.f32 %v2361, %v3437
    %3439 = vmatmul.mubr.f32.gmra.mxu0 %v3438
    %v3440 = vpop.f32.mrf.mxu0
    %v3441 = vadd.f32 %v3107, %v3440
    %v3442 = vpop.f32.mrf.mxu0
    %3443 = vmatprep.mubr.f32.mxu0 0.0
    %v3444 = vand.u32 %v2364, 4294901760
    %v3445 = vsub.f32 %v2364, %v3444
    %3446 = vmatmul.mubr.f32.gmra.mxu0 %v3445
    %v3447 = vpop.f32.mrf.mxu0
    %v3448 = vadd.f32 %v3113, %v3447
    %v3449 = vpop.f32.mrf.mxu0
    %3450 = vmatprep.mubr.f32.mxu0 0.0
    %v3451 = vand.u32 %v2367, 4294901760
    %v3452 = vsub.f32 %v2367, %v3451
    %3453 = vmatmul.mubr.f32.gmra.mxu0 %v3452
    %v3454 = vpop.f32.mrf.mxu0
    %v3455 = vadd.f32 %v3119, %v3454
    %v3456 = vpop.f32.mrf.mxu0
    %3457 = vmatprep.mubr.f32.mxu0 0.0
    %v3458 = vand.u32 %v2370, 4294901760
    %v3459 = vsub.f32 %v2370, %v3458
    %3460 = vmatmul.mubr.f32.gmra.mxu0 %v3459
    %v3461 = vpop.f32.mrf.mxu0
    %v3462 = vadd.f32 %v3125, %v3461
    %v3463 = vpop.f32.mrf.mxu0
    %3464 = vmatprep.mubr.f32.mxu0 0.0
    %v3465 = vand.u32 %v2373, 4294901760
    %v3466 = vsub.f32 %v2373, %v3465
    %3467 = vmatmul.mubr.f32.gmra.mxu0 %v3466
    %v3468 = vpop.f32.mrf.mxu0
    %v3469 = vadd.f32 %v3131, %v3468
    %v3470 = vpop.f32.mrf.mxu0
    %3471 = vmatprep.mubr.f32.mxu0 0.0
    %v3472 = vand.u32 %v2376, 4294901760
    %v3473 = vsub.f32 %v2376, %v3472
    %3474 = vmatmul.mubr.f32.gmra.mxu0 %v3473
    %v3475 = vpop.f32.mrf.mxu0
    %v3476 = vadd.f32 %v3137, %v3475
    %v3477 = vpop.f32.mrf.mxu0
    %3478 = vdwg.mxu0
    %3479 = vmatprep.subr.mxu0 0.0
    %3480 = vmatpush1.msra.mxu0 0.0
    %3481 = vmatprep.subr.mxu0 0.0
    %3482 = vmatpush1.msra.mxu0 0.0
    %3483 = vmatprep.subr.mxu0 0.0
    %3484 = vmatpush1.msra.mxu0 0.0
    %3485 = vmatprep.subr.mxu0 0.0
    %3486 = vmatpush1.msra.mxu0 0.0
    %3487 = vmatprep.subr.mxu0 0.0
    %3488 = vmatpush1.msra.mxu0 0.0
    %3489 = vmatprep.subr.mxu0 0.0
    %3490 = vmatpush1.msra.mxu0 0.0
    %3491 = vmatprep.subr.mxu0 0.0
    %3492 = vmatpush1.msra.mxu0 0.0
    %3493 = vmatprep.subr.mxu0 0.0
    %3494 = vmatpush1.msra.mxu0 0.0
    %3495 = vmatprep.subr.mxu0 0.0
    %3496 = vmatpush1.msra.mxu0 0.0
    %3497 = vmatprep.subr.mxu0 0.0
    %3498 = vmatpush1.msra.mxu0 0.0
    %3499 = vmatprep.subr.mxu0 0.0
    %3500 = vmatpush1.msra.mxu0 0.0
    %3501 = vmatprep.subr.mxu0 0.0
    %3502 = vmatpush1.msra.mxu0 0.0
    %3503 = vmatprep.subr.mxu0 0.0
    %v3504 = vand.u32 %v109, 4294901760
    %3505 = vmatpush1.msra.mxu0 %v3504
    %3506 = vmatprep.subr.mxu0 0.0
    %v3507 = vand.u32 %v108, 4294901760
    %3508 = vmatpush1.msra.mxu0 %v3507
    %3509 = vmatprep.subr.mxu0 0.0
    %v3510 = vand.u32 %v107, 4294901760
    %3511 = vmatpush1.msra.mxu0 %v3510
    %3512 = vmatprep.subr.mxu0 0.0
    %v3513 = vand.u32 %v106, 4294901760
    %3514 = vmatpush1.msra.mxu0 %v3513
    %3515 = vmatprep.subr.mxu0 0.0
    %3516 = vmatpush2.msra.mxu0 0.0
    %3517 = vmatprep.subr.mxu0 0.0
    %3518 = vmatpush2.msra.mxu0 0.0
    %3519 = vmatprep.subr.mxu0 0.0
    %3520 = vmatpush2.msra.mxu0 0.0
    %3521 = vmatprep.subr.mxu0 0.0
    %3522 = vmatpush2.msra.mxu0 0.0
    %3523 = vmatprep.subr.mxu0 0.0
    %3524 = vmatpush2.msra.mxu0 0.0
    %3525 = vmatprep.subr.mxu0 0.0
    %3526 = vmatpush2.msra.mxu0 0.0
    %3527 = vmatprep.subr.mxu0 0.0
    %3528 = vmatpush2.msra.mxu0 0.0
    %3529 = vmatprep.subr.mxu0 0.0
    %3530 = vmatpush2.msra.mxu0 0.0
    %3531 = vmatprep.subr.mxu0 0.0
    %3532 = vmatpush2.msra.mxu0 0.0
    %3533 = vmatprep.subr.mxu0 0.0
    %3534 = vmatpush2.msra.mxu0 0.0
    %3535 = vmatprep.subr.mxu0 0.0
    %3536 = vmatpush2.msra.mxu0 0.0
    %3537 = vmatprep.subr.mxu0 0.0
    %3538 = vmatpush2.msra.mxu0 0.0
    %3539 = vmatprep.subr.mxu0 0.0
    %3540 = vmatpush2.msra.mxu0 0.0
    %3541 = vmatprep.subr.mxu0 0.0
    %3542 = vmatpush2.msra.mxu0 0.0
    %3543 = vmatprep.subr.mxu0 0.0
    %3544 = vmatpush2.msra.mxu0 0.0
    %3545 = vmatprep.subr.mxu0 0.0
    %3546 = vmatpush2.msra.mxu0 0.0
    %3547 = vmatprep.mubr.f32.mxu0 0.0
    %v3548 = vand.u32 %v2265, 4294901760
    %v3549 = vsub.f32 %v2265, %v3548
    %v3550 = vand.u32 %v3549, 4294901760
    %3551 = vmatmul.mubr.f32.gmra.mxu0 %v3550
    %v3552 = vpop.f32.mrf.mxu0
    %v3553 = vadd.f32 %v3217, %v3552
    %v3554 = vpop.f32.mrf.mxu0
    %3555 = vmatprep.mubr.f32.mxu0 0.0
    %v3556 = vand.u32 %v2268, 4294901760
    %v3557 = vsub.f32 %v2268, %v3556
    %v3558 = vand.u32 %v3557, 4294901760
    %3559 = vmatmul.mubr.f32.gmra.mxu0 %v3558
    %v3560 = vpop.f32.mrf.mxu0
    %v3561 = vadd.f32 %v3224, %v3560
    %v3562 = vpop.f32.mrf.mxu0
    %3563 = vmatprep.mubr.f32.mxu0 0.0
    %v3564 = vand.u32 %v2271, 4294901760
    %v3565 = vsub.f32 %v2271, %v3564
    %v3566 = vand.u32 %v3565, 4294901760
    %3567 = vmatmul.mubr.f32.gmra.mxu0 %v3566
    %v3568 = vpop.f32.mrf.mxu0
    %v3569 = vadd.f32 %v3231, %v3568
    %v3570 = vpop.f32.mrf.mxu0
    %3571 = vmatprep.mubr.f32.mxu0 0.0
    %v3572 = vand.u32 %v2274, 4294901760
    %v3573 = vsub.f32 %v2274, %v3572
    %v3574 = vand.u32 %v3573, 4294901760
    %3575 = vmatmul.mubr.f32.gmra.mxu0 %v3574
    %v3576 = vpop.f32.mrf.mxu0
    %v3577 = vadd.f32 %v3238, %v3576
    %v3578 = vpop.f32.mrf.mxu0
    %3579 = vmatprep.mubr.f32.mxu0 0.0
    %v3580 = vand.u32 %v2277, 4294901760
    %v3581 = vsub.f32 %v2277, %v3580
    %v3582 = vand.u32 %v3581, 4294901760
    %3583 = vmatmul.mubr.f32.gmra.mxu0 %v3582
    %v3584 = vpop.f32.mrf.mxu0
    %v3585 = vadd.f32 %v3245, %v3584
    %v3586 = vpop.f32.mrf.mxu0
    %3587 = vmatprep.mubr.f32.mxu0 0.0
    %v3588 = vand.u32 %v2280, 4294901760
    %v3589 = vsub.f32 %v2280, %v3588
    %v3590 = vand.u32 %v3589, 4294901760
    %3591 = vmatmul.mubr.f32.gmra.mxu0 %v3590
    %v3592 = vpop.f32.mrf.mxu0
    %v3593 = vadd.f32 %v3252, %v3592
    %v3594 = vpop.f32.mrf.mxu0
    %3595 = vmatprep.mubr.f32.mxu0 0.0
    %v3596 = vand.u32 %v2283, 4294901760
    %v3597 = vsub.f32 %v2283, %v3596
    %v3598 = vand.u32 %v3597, 4294901760
    %3599 = vmatmul.mubr.f32.gmra.mxu0 %v3598
    %v3600 = vpop.f32.mrf.mxu0
    %v3601 = vadd.f32 %v3259, %v3600
    %v3602 = vpop.f32.mrf.mxu0
    %3603 = vmatprep.mubr.f32.mxu0 0.0
    %v3604 = vand.u32 %v2286, 4294901760
    %v3605 = vsub.f32 %v2286, %v3604
    %v3606 = vand.u32 %v3605, 4294901760
    %3607 = vmatmul.mubr.f32.gmra.mxu0 %v3606
    %v3608 = vpop.f32.mrf.mxu0
    %v3609 = vadd.f32 %v3266, %v3608
    %v3610 = vpop.f32.mrf.mxu0
    %3611 = vmatprep.mubr.f32.mxu0 0.0
    %v3612 = vand.u32 %v2289, 4294901760
    %v3613 = vsub.f32 %v2289, %v3612
    %v3614 = vand.u32 %v3613, 4294901760
    %3615 = vmatmul.mubr.f32.gmra.mxu0 %v3614
    %v3616 = vpop.f32.mrf.mxu0
    %v3617 = vadd.f32 %v3273, %v3616
    %v3618 = vpop.f32.mrf.mxu0
    %3619 = vmatprep.mubr.f32.mxu0 0.0
    %v3620 = vand.u32 %v2292, 4294901760
    %v3621 = vsub.f32 %v2292, %v3620
    %v3622 = vand.u32 %v3621, 4294901760
    %3623 = vmatmul.mubr.f32.gmra.mxu0 %v3622
    %v3624 = vpop.f32.mrf.mxu0
    %v3625 = vadd.f32 %v3280, %v3624
    %v3626 = vpop.f32.mrf.mxu0
    %3627 = vmatprep.mubr.f32.mxu0 0.0
    %v3628 = vand.u32 %v2295, 4294901760
    %v3629 = vsub.f32 %v2295, %v3628
    %v3630 = vand.u32 %v3629, 4294901760
    %3631 = vmatmul.mubr.f32.gmra.mxu0 %v3630
    %v3632 = vpop.f32.mrf.mxu0
    %v3633 = vadd.f32 %v3287, %v3632
    %v3634 = vpop.f32.mrf.mxu0
    %3635 = vmatprep.mubr.f32.mxu0 0.0
    %v3636 = vand.u32 %v2298, 4294901760
    %v3637 = vsub.f32 %v2298, %v3636
    %v3638 = vand.u32 %v3637, 4294901760
    %3639 = vmatmul.mubr.f32.gmra.mxu0 %v3638
    %v3640 = vpop.f32.mrf.mxu0
    %v3641 = vadd.f32 %v3294, %v3640
    %v3642 = vpop.f32.mrf.mxu0
    %3643 = vmatprep.mubr.f32.mxu0 0.0
    %v3644 = vand.u32 %v2301, 4294901760
    %v3645 = vsub.f32 %v2301, %v3644
    %v3646 = vand.u32 %v3645, 4294901760
    %3647 = vmatmul.mubr.f32.gmra.mxu0 %v3646
    %v3648 = vpop.f32.mrf.mxu0
    %v3649 = vadd.f32 %v3301, %v3648
    %v3650 = vpop.f32.mrf.mxu0
    %3651 = vmatprep.mubr.f32.mxu0 0.0
    %v3652 = vand.u32 %v2304, 4294901760
    %v3653 = vsub.f32 %v2304, %v3652
    %v3654 = vand.u32 %v3653, 4294901760
    %3655 = vmatmul.mubr.f32.gmra.mxu0 %v3654
    %v3656 = vpop.f32.mrf.mxu0
    %v3657 = vadd.f32 %v3308, %v3656
    %v3658 = vpop.f32.mrf.mxu0
    %3659 = vmatprep.mubr.f32.mxu0 0.0
    %v3660 = vand.u32 %v2307, 4294901760
    %v3661 = vsub.f32 %v2307, %v3660
    %v3662 = vand.u32 %v3661, 4294901760
    %3663 = vmatmul.mubr.f32.gmra.mxu0 %v3662
    %v3664 = vpop.f32.mrf.mxu0
    %v3665 = vadd.f32 %v3315, %v3664
    %v3666 = vpop.f32.mrf.mxu0
    %3667 = vmatprep.mubr.f32.mxu0 0.0
    %v3668 = vand.u32 %v2310, 4294901760
    %v3669 = vsub.f32 %v2310, %v3668
    %v3670 = vand.u32 %v3669, 4294901760
    %3671 = vmatmul.mubr.f32.gmra.mxu0 %v3670
    %v3672 = vpop.f32.mrf.mxu0
    %v3673 = vadd.f32 %v3322, %v3672
    %v3674 = vpop.f32.mrf.mxu0
    %3675 = vmatprep.mubr.f32.mxu0 0.0
    %v3676 = vand.u32 %v2313, 4294901760
    %v3677 = vsub.f32 %v2313, %v3676
    %v3678 = vand.u32 %v3677, 4294901760
    %3679 = vmatmul.mubr.f32.gmra.mxu0 %v3678
    %v3680 = vpop.f32.mrf.mxu0
    %v3681 = vadd.f32 %v3329, %v3680
    %v3682 = vpop.f32.mrf.mxu0
    %3683 = vmatprep.mubr.f32.mxu0 0.0
    %v3684 = vand.u32 %v2316, 4294901760
    %v3685 = vsub.f32 %v2316, %v3684
    %v3686 = vand.u32 %v3685, 4294901760
    %3687 = vmatmul.mubr.f32.gmra.mxu0 %v3686
    %v3688 = vpop.f32.mrf.mxu0
    %v3689 = vadd.f32 %v3336, %v3688
    %v3690 = vpop.f32.mrf.mxu0
    %3691 = vmatprep.mubr.f32.mxu0 0.0
    %v3692 = vand.u32 %v2319, 4294901760
    %v3693 = vsub.f32 %v2319, %v3692
    %v3694 = vand.u32 %v3693, 4294901760
    %3695 = vmatmul.mubr.f32.gmra.mxu0 %v3694
    %v3696 = vpop.f32.mrf.mxu0
    %v3697 = vadd.f32 %v3343, %v3696
    %v3698 = vpop.f32.mrf.mxu0
    %3699 = vmatprep.mubr.f32.mxu0 0.0
    %v3700 = vand.u32 %v2322, 4294901760
    %v3701 = vsub.f32 %v2322, %v3700
    %v3702 = vand.u32 %v3701, 4294901760
    %3703 = vmatmul.mubr.f32.gmra.mxu0 %v3702
    %v3704 = vpop.f32.mrf.mxu0
    %v3705 = vadd.f32 %v3350, %v3704
    %v3706 = vpop.f32.mrf.mxu0
    %3707 = vmatprep.mubr.f32.mxu0 0.0
    %v3708 = vand.u32 %v2325, 4294901760
    %v3709 = vsub.f32 %v2325, %v3708
    %v3710 = vand.u32 %v3709, 4294901760
    %3711 = vmatmul.mubr.f32.gmra.mxu0 %v3710
    %v3712 = vpop.f32.mrf.mxu0
    %v3713 = vadd.f32 %v3357, %v3712
    %v3714 = vpop.f32.mrf.mxu0
    %3715 = vmatprep.mubr.f32.mxu0 0.0
    %v3716 = vand.u32 %v2328, 4294901760
    %v3717 = vsub.f32 %v2328, %v3716
    %v3718 = vand.u32 %v3717, 4294901760
    %3719 = vmatmul.mubr.f32.gmra.mxu0 %v3718
    %v3720 = vpop.f32.mrf.mxu0
    %v3721 = vadd.f32 %v3364, %v3720
    %v3722 = vpop.f32.mrf.mxu0
    %3723 = vmatprep.mubr.f32.mxu0 0.0
    %v3724 = vand.u32 %v2331, 4294901760
    %v3725 = vsub.f32 %v2331, %v3724
    %v3726 = vand.u32 %v3725, 4294901760
    %3727 = vmatmul.mubr.f32.gmra.mxu0 %v3726
    %v3728 = vpop.f32.mrf.mxu0
    %v3729 = vadd.f32 %v3371, %v3728
    %v3730 = vpop.f32.mrf.mxu0
    %3731 = vmatprep.mubr.f32.mxu0 0.0
    %v3732 = vand.u32 %v2334, 4294901760
    %v3733 = vsub.f32 %v2334, %v3732
    %v3734 = vand.u32 %v3733, 4294901760
    %3735 = vmatmul.mubr.f32.gmra.mxu0 %v3734
    %v3736 = vpop.f32.mrf.mxu0
    %v3737 = vadd.f32 %v3378, %v3736
    %v3738 = vpop.f32.mrf.mxu0
    %3739 = vmatprep.mubr.f32.mxu0 0.0
    %v3740 = vand.u32 %v2337, 4294901760
    %v3741 = vsub.f32 %v2337, %v3740
    %v3742 = vand.u32 %v3741, 4294901760
    %3743 = vmatmul.mubr.f32.gmra.mxu0 %v3742
    %v3744 = vpop.f32.mrf.mxu0
    %v3745 = vadd.f32 %v3385, %v3744
    %v3746 = vpop.f32.mrf.mxu0
    %3747 = vmatprep.mubr.f32.mxu0 0.0
    %v3748 = vand.u32 %v2340, 4294901760
    %v3749 = vsub.f32 %v2340, %v3748
    %v3750 = vand.u32 %v3749, 4294901760
    %3751 = vmatmul.mubr.f32.gmra.mxu0 %v3750
    %v3752 = vpop.f32.mrf.mxu0
    %v3753 = vadd.f32 %v3392, %v3752
    %v3754 = vpop.f32.mrf.mxu0
    %3755 = vmatprep.mubr.f32.mxu0 0.0
    %v3756 = vand.u32 %v2343, 4294901760
    %v3757 = vsub.f32 %v2343, %v3756
    %v3758 = vand.u32 %v3757, 4294901760
    %3759 = vmatmul.mubr.f32.gmra.mxu0 %v3758
    %v3760 = vpop.f32.mrf.mxu0
    %v3761 = vadd.f32 %v3399, %v3760
    %v3762 = vpop.f32.mrf.mxu0
    %3763 = vmatprep.mubr.f32.mxu0 0.0
    %v3764 = vand.u32 %v2346, 4294901760
    %v3765 = vsub.f32 %v2346, %v3764
    %v3766 = vand.u32 %v3765, 4294901760
    %3767 = vmatmul.mubr.f32.gmra.mxu0 %v3766
    %v3768 = vpop.f32.mrf.mxu0
    %v3769 = vadd.f32 %v3406, %v3768
    %v3770 = vpop.f32.mrf.mxu0
    %3771 = vmatprep.mubr.f32.mxu0 0.0
    %v3772 = vand.u32 %v2349, 4294901760
    %v3773 = vsub.f32 %v2349, %v3772
    %v3774 = vand.u32 %v3773, 4294901760
    %3775 = vmatmul.mubr.f32.gmra.mxu0 %v3774
    %v3776 = vpop.f32.mrf.mxu0
    %v3777 = vadd.f32 %v3413, %v3776
    %v3778 = vpop.f32.mrf.mxu0
    %3779 = vmatprep.mubr.f32.mxu0 0.0
    %v3780 = vand.u32 %v2352, 4294901760
    %v3781 = vsub.f32 %v2352, %v3780
    %v3782 = vand.u32 %v3781, 4294901760
    %3783 = vmatmul.mubr.f32.gmra.mxu0 %v3782
    %v3784 = vpop.f32.mrf.mxu0
    %v3785 = vadd.f32 %v3420, %v3784
    %v3786 = vpop.f32.mrf.mxu0
    %3787 = vmatprep.mubr.f32.mxu0 0.0
    %v3788 = vand.u32 %v2355, 4294901760
    %v3789 = vsub.f32 %v2355, %v3788
    %v3790 = vand.u32 %v3789, 4294901760
    %3791 = vmatmul.mubr.f32.gmra.mxu0 %v3790
    %v3792 = vpop.f32.mrf.mxu0
    %v3793 = vadd.f32 %v3427, %v3792
    %v3794 = vpop.f32.mrf.mxu0
    %3795 = vmatprep.mubr.f32.mxu0 0.0
    %v3796 = vand.u32 %v2358, 4294901760
    %v3797 = vsub.f32 %v2358, %v3796
    %v3798 = vand.u32 %v3797, 4294901760
    %3799 = vmatmul.mubr.f32.gmra.mxu0 %v3798
    %v3800 = vpop.f32.mrf.mxu0
    %v3801 = vadd.f32 %v3434, %v3800
    %v3802 = vpop.f32.mrf.mxu0
    %3803 = vmatprep.mubr.f32.mxu0 0.0
    %v3804 = vand.u32 %v2361, 4294901760
    %v3805 = vsub.f32 %v2361, %v3804
    %v3806 = vand.u32 %v3805, 4294901760
    %3807 = vmatmul.mubr.f32.gmra.mxu0 %v3806
    %v3808 = vpop.f32.mrf.mxu0
    %v3809 = vadd.f32 %v3441, %v3808
    %v3810 = vpop.f32.mrf.mxu0
    %3811 = vmatprep.mubr.f32.mxu0 0.0
    %v3812 = vand.u32 %v2364, 4294901760
    %v3813 = vsub.f32 %v2364, %v3812
    %v3814 = vand.u32 %v3813, 4294901760
    %3815 = vmatmul.mubr.f32.gmra.mxu0 %v3814
    %v3816 = vpop.f32.mrf.mxu0
    %v3817 = vadd.f32 %v3448, %v3816
    %v3818 = vpop.f32.mrf.mxu0
    %3819 = vmatprep.mubr.f32.mxu0 0.0
    %v3820 = vand.u32 %v2367, 4294901760
    %v3821 = vsub.f32 %v2367, %v3820
    %v3822 = vand.u32 %v3821, 4294901760
    %3823 = vmatmul.mubr.f32.gmra.mxu0 %v3822
    %v3824 = vpop.f32.mrf.mxu0
    %v3825 = vadd.f32 %v3455, %v3824
    %v3826 = vpop.f32.mrf.mxu0
    %3827 = vmatprep.mubr.f32.mxu0 0.0
    %v3828 = vand.u32 %v2370, 4294901760
    %v3829 = vsub.f32 %v2370, %v3828
    %v3830 = vand.u32 %v3829, 4294901760
    %3831 = vmatmul.mubr.f32.gmra.mxu0 %v3830
    %v3832 = vpop.f32.mrf.mxu0
    %v3833 = vadd.f32 %v3462, %v3832
    %v3834 = vpop.f32.mrf.mxu0
    %3835 = vmatprep.mubr.f32.mxu0 0.0
    %v3836 = vand.u32 %v2373, 4294901760
    %v3837 = vsub.f32 %v2373, %v3836
    %v3838 = vand.u32 %v3837, 4294901760
    %3839 = vmatmul.mubr.f32.gmra.mxu0 %v3838
    %v3840 = vpop.f32.mrf.mxu0
    %v3841 = vadd.f32 %v3469, %v3840
    %v3842 = vpop.f32.mrf.mxu0
    %3843 = vmatprep.mubr.f32.mxu0 0.0
    %v3844 = vand.u32 %v2376, 4294901760
    %v3845 = vsub.f32 %v2376, %v3844
    %v3846 = vand.u32 %v3845, 4294901760
    %3847 = vmatmul.mubr.f32.gmra.mxu0 %v3846
    %v3848 = vpop.f32.mrf.mxu0
    %v3849 = vadd.f32 %v3476, %v3848
    %v3850 = vpop.f32.mrf.mxu0
    %3851 = vdwg.mxu0
    %3852 = vmatprep.subr.mxu0 0.0
    %3853 = vmatpush1.msra.mxu0 0.0
    %3854 = vmatprep.subr.mxu0 0.0
    %3855 = vmatpush1.msra.mxu0 0.0
    %3856 = vmatprep.subr.mxu0 0.0
    %3857 = vmatpush1.msra.mxu0 0.0
    %3858 = vmatprep.subr.mxu0 0.0
    %3859 = vmatpush1.msra.mxu0 0.0
    %3860 = vmatprep.subr.mxu0 0.0
    %3861 = vmatpush1.msra.mxu0 0.0
    %3862 = vmatprep.subr.mxu0 0.0
    %3863 = vmatpush1.msra.mxu0 0.0
    %3864 = vmatprep.subr.mxu0 0.0
    %3865 = vmatpush1.msra.mxu0 0.0
    %3866 = vmatprep.subr.mxu0 0.0
    %3867 = vmatpush1.msra.mxu0 0.0
    %3868 = vmatprep.subr.mxu0 0.0
    %3869 = vmatpush1.msra.mxu0 0.0
    %3870 = vmatprep.subr.mxu0 0.0
    %3871 = vmatpush1.msra.mxu0 0.0
    %3872 = vmatprep.subr.mxu0 0.0
    %3873 = vmatpush1.msra.mxu0 0.0
    %3874 = vmatprep.subr.mxu0 0.0
    %3875 = vmatpush1.msra.mxu0 0.0
    %3876 = vmatprep.subr.mxu0 0.0
    %v3877 = vand.u32 %v109, 4294901760
    %v3878 = vsub.f32 %v109, %v3877
    %v3879 = vand.u32 %v3878, 4294901760
    %3880 = vmatpush1.msra.mxu0 %v3879
    %3881 = vmatprep.subr.mxu0 0.0
    %v3882 = vand.u32 %v108, 4294901760
    %v3883 = vsub.f32 %v108, %v3882
    %v3884 = vand.u32 %v3883, 4294901760
    %3885 = vmatpush1.msra.mxu0 %v3884
    %3886 = vmatprep.subr.mxu0 0.0
    %v3887 = vand.u32 %v107, 4294901760
    %v3888 = vsub.f32 %v107, %v3887
    %v3889 = vand.u32 %v3888, 4294901760
    %3890 = vmatpush1.msra.mxu0 %v3889
    %3891 = vmatprep.subr.mxu0 0.0
    %v3892 = vand.u32 %v106, 4294901760
    %v3893 = vsub.f32 %v106, %v3892
    %v3894 = vand.u32 %v3893, 4294901760
    %3895 = vmatpush1.msra.mxu0 %v3894
    %3896 = vmatprep.subr.mxu0 0.0
    %3897 = vmatpush2.msra.mxu0 0.0
    %3898 = vmatprep.subr.mxu0 0.0
    %3899 = vmatpush2.msra.mxu0 0.0
    %3900 = vmatprep.subr.mxu0 0.0
    %3901 = vmatpush2.msra.mxu0 0.0
    %3902 = vmatprep.subr.mxu0 0.0
    %3903 = vmatpush2.msra.mxu0 0.0
    %3904 = vmatprep.subr.mxu0 0.0
    %3905 = vmatpush2.msra.mxu0 0.0
    %3906 = vmatprep.subr.mxu0 0.0
    %3907 = vmatpush2.msra.mxu0 0.0
    %3908 = vmatprep.subr.mxu0 0.0
    %3909 = vmatpush2.msra.mxu0 0.0
    %3910 = vmatprep.subr.mxu0 0.0
    %3911 = vmatpush2.msra.mxu0 0.0
    %3912 = vmatprep.subr.mxu0 0.0
    %3913 = vmatpush2.msra.mxu0 0.0
    %3914 = vmatprep.subr.mxu0 0.0
    %3915 = vmatpush2.msra.mxu0 0.0
    %3916 = vmatprep.subr.mxu0 0.0
    %3917 = vmatpush2.msra.mxu0 0.0
    %3918 = vmatprep.subr.mxu0 0.0
    %3919 = vmatpush2.msra.mxu0 0.0
    %3920 = vmatprep.subr.mxu0 0.0
    %3921 = vmatpush2.msra.mxu0 0.0
    %3922 = vmatprep.subr.mxu0 0.0
    %3923 = vmatpush2.msra.mxu0 0.0
    %3924 = vmatprep.subr.mxu0 0.0
    %3925 = vmatpush2.msra.mxu0 0.0
    %3926 = vmatprep.subr.mxu0 0.0
    %3927 = vmatpush2.msra.mxu0 0.0
    %3928 = vmatprep.mubr.f32.mxu0 0.0
    %v3929 = vand.u32 %v2265, 4294901760
    %3930 = vmatmul.mubr.f32.gmra.mxu0 %v3929
    %v3931 = vpop.f32.mrf.mxu0
    %v3932 = vadd.f32 %v3553, %v3931
    %v3933 = vpop.f32.mrf.mxu0
    %3934 = vmatprep.mubr.f32.mxu0 0.0
    %v3935 = vand.u32 %v2268, 4294901760
    %3936 = vmatmul.mubr.f32.gmra.mxu0 %v3935
    %v3937 = vpop.f32.mrf.mxu0
    %v3938 = vadd.f32 %v3561, %v3937
    %v3939 = vpop.f32.mrf.mxu0
    %3940 = vmatprep.mubr.f32.mxu0 0.0
    %v3941 = vand.u32 %v2271, 4294901760
    %3942 = vmatmul.mubr.f32.gmra.mxu0 %v3941
    %v3943 = vpop.f32.mrf.mxu0
    %v3944 = vadd.f32 %v3569, %v3943
    %v3945 = vpop.f32.mrf.mxu0
    %3946 = vmatprep.mubr.f32.mxu0 0.0
    %v3947 = vand.u32 %v2274, 4294901760
    %3948 = vmatmul.mubr.f32.gmra.mxu0 %v3947
    %v3949 = vpop.f32.mrf.mxu0
    %v3950 = vadd.f32 %v3577, %v3949
    %v3951 = vpop.f32.mrf.mxu0
    %3952 = vmatprep.mubr.f32.mxu0 0.0
    %v3953 = vand.u32 %v2277, 4294901760
    %3954 = vmatmul.mubr.f32.gmra.mxu0 %v3953
    %v3955 = vpop.f32.mrf.mxu0
    %v3956 = vadd.f32 %v3585, %v3955
    %v3957 = vpop.f32.mrf.mxu0
    %3958 = vmatprep.mubr.f32.mxu0 0.0
    %v3959 = vand.u32 %v2280, 4294901760
    %3960 = vmatmul.mubr.f32.gmra.mxu0 %v3959
    %v3961 = vpop.f32.mrf.mxu0
    %v3962 = vadd.f32 %v3593, %v3961
    %v3963 = vpop.f32.mrf.mxu0
    %3964 = vmatprep.mubr.f32.mxu0 0.0
    %v3965 = vand.u32 %v2283, 4294901760
    %3966 = vmatmul.mubr.f32.gmra.mxu0 %v3965
    %v3967 = vpop.f32.mrf.mxu0
    %v3968 = vadd.f32 %v3601, %v3967
    %v3969 = vpop.f32.mrf.mxu0
    %3970 = vmatprep.mubr.f32.mxu0 0.0
    %v3971 = vand.u32 %v2286, 4294901760
    %3972 = vmatmul.mubr.f32.gmra.mxu0 %v3971
    %v3973 = vpop.f32.mrf.mxu0
    %v3974 = vadd.f32 %v3609, %v3973
    %v3975 = vpop.f32.mrf.mxu0
    %3976 = vmatprep.mubr.f32.mxu0 0.0
    %v3977 = vand.u32 %v2289, 4294901760
    %3978 = vmatmul.mubr.f32.gmra.mxu0 %v3977
    %v3979 = vpop.f32.mrf.mxu0
    %v3980 = vadd.f32 %v3617, %v3979
    %v3981 = vpop.f32.mrf.mxu0
    %3982 = vmatprep.mubr.f32.mxu0 0.0
    %v3983 = vand.u32 %v2292, 4294901760
    %3984 = vmatmul.mubr.f32.gmra.mxu0 %v3983
    %v3985 = vpop.f32.mrf.mxu0
    %v3986 = vadd.f32 %v3625, %v3985
    %v3987 = vpop.f32.mrf.mxu0
    %3988 = vmatprep.mubr.f32.mxu0 0.0
    %v3989 = vand.u32 %v2295, 4294901760
    %3990 = vmatmul.mubr.f32.gmra.mxu0 %v3989
    %v3991 = vpop.f32.mrf.mxu0
    %v3992 = vadd.f32 %v3633, %v3991
    %v3993 = vpop.f32.mrf.mxu0
    %3994 = vmatprep.mubr.f32.mxu0 0.0
    %v3995 = vand.u32 %v2298, 4294901760
    %3996 = vmatmul.mubr.f32.gmra.mxu0 %v3995
    %v3997 = vpop.f32.mrf.mxu0
    %v3998 = vadd.f32 %v3641, %v3997
    %v3999 = vpop.f32.mrf.mxu0
    %4000 = vmatprep.mubr.f32.mxu0 0.0
    %v4001 = vand.u32 %v2301, 4294901760
    %4002 = vmatmul.mubr.f32.gmra.mxu0 %v4001
    %v4003 = vpop.f32.mrf.mxu0
    %v4004 = vadd.f32 %v3649, %v4003
    %v4005 = vpop.f32.mrf.mxu0
    %4006 = vmatprep.mubr.f32.mxu0 0.0
    %v4007 = vand.u32 %v2304, 4294901760
    %4008 = vmatmul.mubr.f32.gmra.mxu0 %v4007
    %v4009 = vpop.f32.mrf.mxu0
    %v4010 = vadd.f32 %v3657, %v4009
    %v4011 = vpop.f32.mrf.mxu0
    %4012 = vmatprep.mubr.f32.mxu0 0.0
    %v4013 = vand.u32 %v2307, 4294901760
    %4014 = vmatmul.mubr.f32.gmra.mxu0 %v4013
    %v4015 = vpop.f32.mrf.mxu0
    %v4016 = vadd.f32 %v3665, %v4015
    %v4017 = vpop.f32.mrf.mxu0
    %4018 = vmatprep.mubr.f32.mxu0 0.0
    %v4019 = vand.u32 %v2310, 4294901760
    %4020 = vmatmul.mubr.f32.gmra.mxu0 %v4019
    %v4021 = vpop.f32.mrf.mxu0
    %v4022 = vadd.f32 %v3673, %v4021
    %v4023 = vpop.f32.mrf.mxu0
    %4024 = vmatprep.mubr.f32.mxu0 0.0
    %v4025 = vand.u32 %v2313, 4294901760
    %4026 = vmatmul.mubr.f32.gmra.mxu0 %v4025
    %v4027 = vpop.f32.mrf.mxu0
    %v4028 = vadd.f32 %v3681, %v4027
    %v4029 = vpop.f32.mrf.mxu0
    %4030 = vmatprep.mubr.f32.mxu0 0.0
    %v4031 = vand.u32 %v2316, 4294901760
    %4032 = vmatmul.mubr.f32.gmra.mxu0 %v4031
    %v4033 = vpop.f32.mrf.mxu0
    %v4034 = vadd.f32 %v3689, %v4033
    %v4035 = vpop.f32.mrf.mxu0
    %4036 = vmatprep.mubr.f32.mxu0 0.0
    %v4037 = vand.u32 %v2319, 4294901760
    %4038 = vmatmul.mubr.f32.gmra.mxu0 %v4037
    %v4039 = vpop.f32.mrf.mxu0
    %v4040 = vadd.f32 %v3697, %v4039
    %v4041 = vpop.f32.mrf.mxu0
    %4042 = vmatprep.mubr.f32.mxu0 0.0
    %v4043 = vand.u32 %v2322, 4294901760
    %4044 = vmatmul.mubr.f32.gmra.mxu0 %v4043
    %v4045 = vpop.f32.mrf.mxu0
    %v4046 = vadd.f32 %v3705, %v4045
    %v4047 = vpop.f32.mrf.mxu0
    %4048 = vmatprep.mubr.f32.mxu0 0.0
    %v4049 = vand.u32 %v2325, 4294901760
    %4050 = vmatmul.mubr.f32.gmra.mxu0 %v4049
    %v4051 = vpop.f32.mrf.mxu0
    %v4052 = vadd.f32 %v3713, %v4051
    %v4053 = vpop.f32.mrf.mxu0
    %4054 = vmatprep.mubr.f32.mxu0 0.0
    %v4055 = vand.u32 %v2328, 4294901760
    %4056 = vmatmul.mubr.f32.gmra.mxu0 %v4055
    %v4057 = vpop.f32.mrf.mxu0
    %v4058 = vadd.f32 %v3721, %v4057
    %v4059 = vpop.f32.mrf.mxu0
    %4060 = vmatprep.mubr.f32.mxu0 0.0
    %v4061 = vand.u32 %v2331, 4294901760
    %4062 = vmatmul.mubr.f32.gmra.mxu0 %v4061
    %v4063 = vpop.f32.mrf.mxu0
    %v4064 = vadd.f32 %v3729, %v4063
    %v4065 = vpop.f32.mrf.mxu0
    %4066 = vmatprep.mubr.f32.mxu0 0.0
    %v4067 = vand.u32 %v2334, 4294901760
    %4068 = vmatmul.mubr.f32.gmra.mxu0 %v4067
    %v4069 = vpop.f32.mrf.mxu0
    %v4070 = vadd.f32 %v3737, %v4069
    %v4071 = vpop.f32.mrf.mxu0
    %4072 = vmatprep.mubr.f32.mxu0 0.0
    %v4073 = vand.u32 %v2337, 4294901760
    %4074 = vmatmul.mubr.f32.gmra.mxu0 %v4073
    %v4075 = vpop.f32.mrf.mxu0
    %v4076 = vadd.f32 %v3745, %v4075
    %v4077 = vpop.f32.mrf.mxu0
    %4078 = vmatprep.mubr.f32.mxu0 0.0
    %v4079 = vand.u32 %v2340, 4294901760
    %4080 = vmatmul.mubr.f32.gmra.mxu0 %v4079
    %v4081 = vpop.f32.mrf.mxu0
    %v4082 = vadd.f32 %v3753, %v4081
    %v4083 = vpop.f32.mrf.mxu0
    %4084 = vmatprep.mubr.f32.mxu0 0.0
    %v4085 = vand.u32 %v2343, 4294901760
    %4086 = vmatmul.mubr.f32.gmra.mxu0 %v4085
    %v4087 = vpop.f32.mrf.mxu0
    %v4088 = vadd.f32 %v3761, %v4087
    %v4089 = vpop.f32.mrf.mxu0
    %4090 = vmatprep.mubr.f32.mxu0 0.0
    %v4091 = vand.u32 %v2346, 4294901760
    %4092 = vmatmul.mubr.f32.gmra.mxu0 %v4091
    %v4093 = vpop.f32.mrf.mxu0
    %v4094 = vadd.f32 %v3769, %v4093
    %v4095 = vpop.f32.mrf.mxu0
    %4096 = vmatprep.mubr.f32.mxu0 0.0
    %v4097 = vand.u32 %v2349, 4294901760
    %4098 = vmatmul.mubr.f32.gmra.mxu0 %v4097
    %v4099 = vpop.f32.mrf.mxu0
    %v4100 = vadd.f32 %v3777, %v4099
    %v4101 = vpop.f32.mrf.mxu0
    %4102 = vmatprep.mubr.f32.mxu0 0.0
    %v4103 = vand.u32 %v2352, 4294901760
    %4104 = vmatmul.mubr.f32.gmra.mxu0 %v4103
    %v4105 = vpop.f32.mrf.mxu0
    %v4106 = vadd.f32 %v3785, %v4105
    %v4107 = vpop.f32.mrf.mxu0
    %4108 = vmatprep.mubr.f32.mxu0 0.0
    %v4109 = vand.u32 %v2355, 4294901760
    %4110 = vmatmul.mubr.f32.gmra.mxu0 %v4109
    %v4111 = vpop.f32.mrf.mxu0
    %v4112 = vadd.f32 %v3793, %v4111
    %v4113 = vpop.f32.mrf.mxu0
    %4114 = vmatprep.mubr.f32.mxu0 0.0
    %v4115 = vand.u32 %v2358, 4294901760
    %4116 = vmatmul.mubr.f32.gmra.mxu0 %v4115
    %v4117 = vpop.f32.mrf.mxu0
    %v4118 = vadd.f32 %v3801, %v4117
    %v4119 = vpop.f32.mrf.mxu0
    %4120 = vmatprep.mubr.f32.mxu0 0.0
    %v4121 = vand.u32 %v2361, 4294901760
    %4122 = vmatmul.mubr.f32.gmra.mxu0 %v4121
    %v4123 = vpop.f32.mrf.mxu0
    %v4124 = vadd.f32 %v3809, %v4123
    %v4125 = vpop.f32.mrf.mxu0
    %4126 = vmatprep.mubr.f32.mxu0 0.0
    %v4127 = vand.u32 %v2364, 4294901760
    %4128 = vmatmul.mubr.f32.gmra.mxu0 %v4127
    %v4129 = vpop.f32.mrf.mxu0
    %v4130 = vadd.f32 %v3817, %v4129
    %v4131 = vpop.f32.mrf.mxu0
    %4132 = vmatprep.mubr.f32.mxu0 0.0
    %v4133 = vand.u32 %v2367, 4294901760
    %4134 = vmatmul.mubr.f32.gmra.mxu0 %v4133
    %v4135 = vpop.f32.mrf.mxu0
    %v4136 = vadd.f32 %v3825, %v4135
    %v4137 = vpop.f32.mrf.mxu0
    %4138 = vmatprep.mubr.f32.mxu0 0.0
    %v4139 = vand.u32 %v2370, 4294901760
    %4140 = vmatmul.mubr.f32.gmra.mxu0 %v4139
    %v4141 = vpop.f32.mrf.mxu0
    %v4142 = vadd.f32 %v3833, %v4141
    %v4143 = vpop.f32.mrf.mxu0
    %4144 = vmatprep.mubr.f32.mxu0 0.0
    %v4145 = vand.u32 %v2373, 4294901760
    %4146 = vmatmul.mubr.f32.gmra.mxu0 %v4145
    %v4147 = vpop.f32.mrf.mxu0
    %v4148 = vadd.f32 %v3841, %v4147
    %v4149 = vpop.f32.mrf.mxu0
    %4150 = vmatprep.mubr.f32.mxu0 0.0
    %v4151 = vand.u32 %v2376, 4294901760
    %4152 = vmatmul.mubr.f32.gmra.mxu0 %v4151
    %v4153 = vpop.f32.mrf.mxu0
    %v4154 = vadd.f32 %v3849, %v4153
    %v4155 = vpop.f32.mrf.mxu0
    %4156 = vdwg.mxu0
    %4157 = vmatprep.subr.mxu0 0.0
    %4158 = vmatpush1.msra.mxu0 0.0
    %4159 = vmatprep.subr.mxu0 0.0
    %4160 = vmatpush1.msra.mxu0 0.0
    %4161 = vmatprep.subr.mxu0 0.0
    %4162 = vmatpush1.msra.mxu0 0.0
    %4163 = vmatprep.subr.mxu0 0.0
    %4164 = vmatpush1.msra.mxu0 0.0
    %4165 = vmatprep.subr.mxu0 0.0
    %4166 = vmatpush1.msra.mxu0 0.0
    %4167 = vmatprep.subr.mxu0 0.0
    %4168 = vmatpush1.msra.mxu0 0.0
    %4169 = vmatprep.subr.mxu0 0.0
    %4170 = vmatpush1.msra.mxu0 0.0
    %4171 = vmatprep.subr.mxu0 0.0
    %4172 = vmatpush1.msra.mxu0 0.0
    %4173 = vmatprep.subr.mxu0 0.0
    %4174 = vmatpush1.msra.mxu0 0.0
    %4175 = vmatprep.subr.mxu0 0.0
    %4176 = vmatpush1.msra.mxu0 0.0
    %4177 = vmatprep.subr.mxu0 0.0
    %4178 = vmatpush1.msra.mxu0 0.0
    %4179 = vmatprep.subr.mxu0 0.0
    %4180 = vmatpush1.msra.mxu0 0.0
    %4181 = vmatprep.subr.mxu0 0.0
    %v4182 = vand.u32 %v109, 4294901760
    %4183 = vmatpush1.msra.mxu0 %v4182
    %4184 = vmatprep.subr.mxu0 0.0
    %v4185 = vand.u32 %v108, 4294901760
    %4186 = vmatpush1.msra.mxu0 %v4185
    %4187 = vmatprep.subr.mxu0 0.0
    %v4188 = vand.u32 %v107, 4294901760
    %4189 = vmatpush1.msra.mxu0 %v4188
    %4190 = vmatprep.subr.mxu0 0.0
    %v4191 = vand.u32 %v106, 4294901760
    %4192 = vmatpush1.msra.mxu0 %v4191
    %4193 = vmatprep.subr.mxu0 0.0
    %4194 = vmatpush2.msra.mxu0 0.0
    %4195 = vmatprep.subr.mxu0 0.0
    %4196 = vmatpush2.msra.mxu0 0.0
    %4197 = vmatprep.subr.mxu0 0.0
    %4198 = vmatpush2.msra.mxu0 0.0
    %4199 = vmatprep.subr.mxu0 0.0
    %4200 = vmatpush2.msra.mxu0 0.0
    %4201 = vmatprep.subr.mxu0 0.0
    %4202 = vmatpush2.msra.mxu0 0.0
    %4203 = vmatprep.subr.mxu0 0.0
    %4204 = vmatpush2.msra.mxu0 0.0
    %4205 = vmatprep.subr.mxu0 0.0
    %4206 = vmatpush2.msra.mxu0 0.0
    %4207 = vmatprep.subr.mxu0 0.0
    %4208 = vmatpush2.msra.mxu0 0.0
    %4209 = vmatprep.subr.mxu0 0.0
    %4210 = vmatpush2.msra.mxu0 0.0
    %4211 = vmatprep.subr.mxu0 0.0
    %4212 = vmatpush2.msra.mxu0 0.0
    %4213 = vmatprep.subr.mxu0 0.0
    %4214 = vmatpush2.msra.mxu0 0.0
    %4215 = vmatprep.subr.mxu0 0.0
    %4216 = vmatpush2.msra.mxu0 0.0
    %4217 = vmatprep.subr.mxu0 0.0
    %4218 = vmatpush2.msra.mxu0 0.0
    %4219 = vmatprep.subr.mxu0 0.0
    %4220 = vmatpush2.msra.mxu0 0.0
    %4221 = vmatprep.subr.mxu0 0.0
    %4222 = vmatpush2.msra.mxu0 0.0
    %4223 = vmatprep.subr.mxu0 0.0
    %4224 = vmatpush2.msra.mxu0 0.0
    %4225 = vmatprep.mubr.f32.mxu0 0.0
    %v4226 = vand.u32 %v2265, 4294901760
    %4227 = vmatmul.mubr.f32.gmra.mxu0 %v4226
    %v4228 = vpop.f32.mrf.mxu0
    %v4229 = vadd.f32 %v3932, %v4228
    %v4230 = vpop.f32.mrf.mxu0
    %4231 = vmatprep.mubr.f32.mxu0 0.0
    %v4232 = vand.u32 %v2268, 4294901760
    %4233 = vmatmul.mubr.f32.gmra.mxu0 %v4232
    %v4234 = vpop.f32.mrf.mxu0
    %v4235 = vadd.f32 %v3938, %v4234
    %v4236 = vpop.f32.mrf.mxu0
    %4237 = vmatprep.mubr.f32.mxu0 0.0
    %v4238 = vand.u32 %v2271, 4294901760
    %4239 = vmatmul.mubr.f32.gmra.mxu0 %v4238
    %v4240 = vpop.f32.mrf.mxu0
    %v4241 = vadd.f32 %v3944, %v4240
    %v4242 = vpop.f32.mrf.mxu0
    %4243 = vmatprep.mubr.f32.mxu0 0.0
    %v4244 = vand.u32 %v2274, 4294901760
    %4245 = vmatmul.mubr.f32.gmra.mxu0 %v4244
    %v4246 = vpop.f32.mrf.mxu0
    %v4247 = vadd.f32 %v3950, %v4246
    %v4248 = vpop.f32.mrf.mxu0
    %4249 = vmatprep.mubr.f32.mxu0 0.0
    %v4250 = vand.u32 %v2277, 4294901760
    %4251 = vmatmul.mubr.f32.gmra.mxu0 %v4250
    %v4252 = vpop.f32.mrf.mxu0
    %v4253 = vadd.f32 %v3956, %v4252
    %v4254 = vpop.f32.mrf.mxu0
    %4255 = vmatprep.mubr.f32.mxu0 0.0
    %v4256 = vand.u32 %v2280, 4294901760
    %4257 = vmatmul.mubr.f32.gmra.mxu0 %v4256
    %v4258 = vpop.f32.mrf.mxu0
    %v4259 = vadd.f32 %v3962, %v4258
    %v4260 = vpop.f32.mrf.mxu0
    %4261 = vmatprep.mubr.f32.mxu0 0.0
    %v4262 = vand.u32 %v2283, 4294901760
    %4263 = vmatmul.mubr.f32.gmra.mxu0 %v4262
    %v4264 = vpop.f32.mrf.mxu0
    %v4265 = vadd.f32 %v3968, %v4264
    %v4266 = vpop.f32.mrf.mxu0
    %4267 = vmatprep.mubr.f32.mxu0 0.0
    %v4268 = vand.u32 %v2286, 4294901760
    %4269 = vmatmul.mubr.f32.gmra.mxu0 %v4268
    %v4270 = vpop.f32.mrf.mxu0
    %v4271 = vadd.f32 %v3974, %v4270
    %v4272 = vpop.f32.mrf.mxu0
    %4273 = vmatprep.mubr.f32.mxu0 0.0
    %v4274 = vand.u32 %v2289, 4294901760
    %4275 = vmatmul.mubr.f32.gmra.mxu0 %v4274
    %v4276 = vpop.f32.mrf.mxu0
    %v4277 = vadd.f32 %v3980, %v4276
    %v4278 = vpop.f32.mrf.mxu0
    %4279 = vmatprep.mubr.f32.mxu0 0.0
    %v4280 = vand.u32 %v2292, 4294901760
    %4281 = vmatmul.mubr.f32.gmra.mxu0 %v4280
    %v4282 = vpop.f32.mrf.mxu0
    %v4283 = vadd.f32 %v3986, %v4282
    %v4284 = vpop.f32.mrf.mxu0
    %4285 = vmatprep.mubr.f32.mxu0 0.0
    %v4286 = vand.u32 %v2295, 4294901760
    %4287 = vmatmul.mubr.f32.gmra.mxu0 %v4286
    %v4288 = vpop.f32.mrf.mxu0
    %v4289 = vadd.f32 %v3992, %v4288
    %v4290 = vpop.f32.mrf.mxu0
    %4291 = vmatprep.mubr.f32.mxu0 0.0
    %v4292 = vand.u32 %v2298, 4294901760
    %4293 = vmatmul.mubr.f32.gmra.mxu0 %v4292
    %v4294 = vpop.f32.mrf.mxu0
    %v4295 = vadd.f32 %v3998, %v4294
    %v4296 = vpop.f32.mrf.mxu0
    %4297 = vmatprep.mubr.f32.mxu0 0.0
    %v4298 = vand.u32 %v2301, 4294901760
    %4299 = vmatmul.mubr.f32.gmra.mxu0 %v4298
    %v4300 = vpop.f32.mrf.mxu0
    %v4301 = vadd.f32 %v4004, %v4300
    %v4302 = vpop.f32.mrf.mxu0
    %4303 = vmatprep.mubr.f32.mxu0 0.0
    %v4304 = vand.u32 %v2304, 4294901760
    %4305 = vmatmul.mubr.f32.gmra.mxu0 %v4304
    %v4306 = vpop.f32.mrf.mxu0
    %v4307 = vadd.f32 %v4010, %v4306
    %v4308 = vpop.f32.mrf.mxu0
    %4309 = vmatprep.mubr.f32.mxu0 0.0
    %v4310 = vand.u32 %v2307, 4294901760
    %4311 = vmatmul.mubr.f32.gmra.mxu0 %v4310
    %v4312 = vpop.f32.mrf.mxu0
    %v4313 = vadd.f32 %v4016, %v4312
    %v4314 = vpop.f32.mrf.mxu0
    %4315 = vmatprep.mubr.f32.mxu0 0.0
    %v4316 = vand.u32 %v2310, 4294901760
    %4317 = vmatmul.mubr.f32.gmra.mxu0 %v4316
    %v4318 = vpop.f32.mrf.mxu0
    %v4319 = vadd.f32 %v4022, %v4318
    %v4320 = vpop.f32.mrf.mxu0
    %4321 = vmatprep.mubr.f32.mxu0 0.0
    %v4322 = vand.u32 %v2313, 4294901760
    %4323 = vmatmul.mubr.f32.gmra.mxu0 %v4322
    %v4324 = vpop.f32.mrf.mxu0
    %v4325 = vadd.f32 %v4028, %v4324
    %v4326 = vpop.f32.mrf.mxu0
    %4327 = vmatprep.mubr.f32.mxu0 0.0
    %v4328 = vand.u32 %v2316, 4294901760
    %4329 = vmatmul.mubr.f32.gmra.mxu0 %v4328
    %v4330 = vpop.f32.mrf.mxu0
    %v4331 = vadd.f32 %v4034, %v4330
    %v4332 = vpop.f32.mrf.mxu0
    %4333 = vmatprep.mubr.f32.mxu0 0.0
    %v4334 = vand.u32 %v2319, 4294901760
    %4335 = vmatmul.mubr.f32.gmra.mxu0 %v4334
    %v4336 = vpop.f32.mrf.mxu0
    %v4337 = vadd.f32 %v4040, %v4336
    %v4338 = vpop.f32.mrf.mxu0
    %4339 = vmatprep.mubr.f32.mxu0 0.0
    %v4340 = vand.u32 %v2322, 4294901760
    %4341 = vmatmul.mubr.f32.gmra.mxu0 %v4340
    %v4342 = vpop.f32.mrf.mxu0
    %v4343 = vadd.f32 %v4046, %v4342
    %v4344 = vpop.f32.mrf.mxu0
    %4345 = vmatprep.mubr.f32.mxu0 0.0
    %v4346 = vand.u32 %v2325, 4294901760
    %4347 = vmatmul.mubr.f32.gmra.mxu0 %v4346
    %v4348 = vpop.f32.mrf.mxu0
    %v4349 = vadd.f32 %v4052, %v4348
    %v4350 = vpop.f32.mrf.mxu0
    %4351 = vmatprep.mubr.f32.mxu0 0.0
    %v4352 = vand.u32 %v2328, 4294901760
    %4353 = vmatmul.mubr.f32.gmra.mxu0 %v4352
    %v4354 = vpop.f32.mrf.mxu0
    %v4355 = vadd.f32 %v4058, %v4354
    %v4356 = vpop.f32.mrf.mxu0
    %4357 = vmatprep.mubr.f32.mxu0 0.0
    %v4358 = vand.u32 %v2331, 4294901760
    %4359 = vmatmul.mubr.f32.gmra.mxu0 %v4358
    %v4360 = vpop.f32.mrf.mxu0
    %v4361 = vadd.f32 %v4064, %v4360
    %v4362 = vpop.f32.mrf.mxu0
    %4363 = vmatprep.mubr.f32.mxu0 0.0
    %v4364 = vand.u32 %v2334, 4294901760
    %4365 = vmatmul.mubr.f32.gmra.mxu0 %v4364
    %v4366 = vpop.f32.mrf.mxu0
    %v4367 = vadd.f32 %v4070, %v4366
    %v4368 = vpop.f32.mrf.mxu0
    %4369 = vmatprep.mubr.f32.mxu0 0.0
    %v4370 = vand.u32 %v2337, 4294901760
    %4371 = vmatmul.mubr.f32.gmra.mxu0 %v4370
    %v4372 = vpop.f32.mrf.mxu0
    %v4373 = vadd.f32 %v4076, %v4372
    %v4374 = vpop.f32.mrf.mxu0
    %4375 = vmatprep.mubr.f32.mxu0 0.0
    %v4376 = vand.u32 %v2340, 4294901760
    %4377 = vmatmul.mubr.f32.gmra.mxu0 %v4376
    %v4378 = vpop.f32.mrf.mxu0
    %v4379 = vadd.f32 %v4082, %v4378
    %v4380 = vpop.f32.mrf.mxu0
    %4381 = vmatprep.mubr.f32.mxu0 0.0
    %v4382 = vand.u32 %v2343, 4294901760
    %4383 = vmatmul.mubr.f32.gmra.mxu0 %v4382
    %v4384 = vpop.f32.mrf.mxu0
    %v4385 = vadd.f32 %v4088, %v4384
    %v4386 = vpop.f32.mrf.mxu0
    %4387 = vmatprep.mubr.f32.mxu0 0.0
    %v4388 = vand.u32 %v2346, 4294901760
    %4389 = vmatmul.mubr.f32.gmra.mxu0 %v4388
    %v4390 = vpop.f32.mrf.mxu0
    %v4391 = vadd.f32 %v4094, %v4390
    %v4392 = vpop.f32.mrf.mxu0
    %4393 = vmatprep.mubr.f32.mxu0 0.0
    %v4394 = vand.u32 %v2349, 4294901760
    %4395 = vmatmul.mubr.f32.gmra.mxu0 %v4394
    %v4396 = vpop.f32.mrf.mxu0
    %v4397 = vadd.f32 %v4100, %v4396
    %v4398 = vpop.f32.mrf.mxu0
    %4399 = vmatprep.mubr.f32.mxu0 0.0
    %v4400 = vand.u32 %v2352, 4294901760
    %4401 = vmatmul.mubr.f32.gmra.mxu0 %v4400
    %v4402 = vpop.f32.mrf.mxu0
    %v4403 = vadd.f32 %v4106, %v4402
    %v4404 = vpop.f32.mrf.mxu0
    %4405 = vmatprep.mubr.f32.mxu0 0.0
    %v4406 = vand.u32 %v2355, 4294901760
    %4407 = vmatmul.mubr.f32.gmra.mxu0 %v4406
    %v4408 = vpop.f32.mrf.mxu0
    %v4409 = vadd.f32 %v4112, %v4408
    %v4410 = vpop.f32.mrf.mxu0
    %4411 = vmatprep.mubr.f32.mxu0 0.0
    %v4412 = vand.u32 %v2358, 4294901760
    %4413 = vmatmul.mubr.f32.gmra.mxu0 %v4412
    %v4414 = vpop.f32.mrf.mxu0
    %v4415 = vadd.f32 %v4118, %v4414
    %v4416 = vpop.f32.mrf.mxu0
    %4417 = vmatprep.mubr.f32.mxu0 0.0
    %v4418 = vand.u32 %v2361, 4294901760
    %4419 = vmatmul.mubr.f32.gmra.mxu0 %v4418
    %v4420 = vpop.f32.mrf.mxu0
    %v4421 = vadd.f32 %v4124, %v4420
    %v4422 = vpop.f32.mrf.mxu0
    %4423 = vmatprep.mubr.f32.mxu0 0.0
    %v4424 = vand.u32 %v2364, 4294901760
    %4425 = vmatmul.mubr.f32.gmra.mxu0 %v4424
    %v4426 = vpop.f32.mrf.mxu0
    %v4427 = vadd.f32 %v4130, %v4426
    %v4428 = vpop.f32.mrf.mxu0
    %4429 = vmatprep.mubr.f32.mxu0 0.0
    %v4430 = vand.u32 %v2367, 4294901760
    %4431 = vmatmul.mubr.f32.gmra.mxu0 %v4430
    %v4432 = vpop.f32.mrf.mxu0
    %v4433 = vadd.f32 %v4136, %v4432
    %v4434 = vpop.f32.mrf.mxu0
    %4435 = vmatprep.mubr.f32.mxu0 0.0
    %v4436 = vand.u32 %v2370, 4294901760
    %4437 = vmatmul.mubr.f32.gmra.mxu0 %v4436
    %v4438 = vpop.f32.mrf.mxu0
    %v4439 = vadd.f32 %v4142, %v4438
    %v4440 = vpop.f32.mrf.mxu0
    %4441 = vmatprep.mubr.f32.mxu0 0.0
    %v4442 = vand.u32 %v2373, 4294901760
    %4443 = vmatmul.mubr.f32.gmra.mxu0 %v4442
    %v4444 = vpop.f32.mrf.mxu0
    %v4445 = vadd.f32 %v4148, %v4444
    %v4446 = vpop.f32.mrf.mxu0
    %4447 = vmatprep.mubr.f32.mxu0 0.0
    %v4448 = vand.u32 %v2376, 4294901760
    %4449 = vmatmul.mubr.f32.gmra.mxu0 %v4448
    %v4450 = vpop.f32.mrf.mxu0
    %v4451 = vadd.f32 %v4154, %v4450
    %v4452 = vpop.f32.mrf.mxu0
    %4453 = vdwg.mxu0
    %v4454 = vld [vmem:[%s4] sm:$0x1]
    %v4456 = vlaneseq
    %v4457 = vshrl.u32 %v4456, 7
    %v4458 = vsub.s32 0, %v4457
    %v4459 = vrot.slane %v4454, %v4458
    %v4461 = vadd.f32 %v4229, %v4459
    %v4462 = vadd.f32 %v4235, %v4459
    %v4463 = vadd.f32 %v4241, %v4459
    %v4464 = vadd.f32 %v4247, %v4459
    %v4465 = vadd.f32 %v4253, %v4459
    %v4466 = vadd.f32 %v4259, %v4459
    %v4467 = vadd.f32 %v4265, %v4459
    %v4468 = vadd.f32 %v4271, %v4459
    %v4469 = vadd.f32 %v4277, %v4459
    %v4470 = vadd.f32 %v4283, %v4459
    %v4471 = vadd.f32 %v4289, %v4459
    %v4472 = vadd.f32 %v4295, %v4459
    %v4473 = vadd.f32 %v4301, %v4459
    %v4474 = vadd.f32 %v4307, %v4459
    %v4475 = vadd.f32 %v4313, %v4459
    %v4476 = vadd.f32 %v4319, %v4459
    %v4477 = vadd.f32 %v4325, %v4459
    %v4478 = vadd.f32 %v4331, %v4459
    %v4479 = vadd.f32 %v4337, %v4459
    %v4480 = vadd.f32 %v4343, %v4459
    %v4481 = vadd.f32 %v4349, %v4459
    %v4482 = vadd.f32 %v4355, %v4459
    %v4483 = vadd.f32 %v4361, %v4459
    %v4484 = vadd.f32 %v4367, %v4459
    %v4485 = vadd.f32 %v4373, %v4459
    %v4486 = vadd.f32 %v4379, %v4459
    %v4487 = vadd.f32 %v4385, %v4459
    %v4488 = vadd.f32 %v4391, %v4459
    %v4489 = vadd.f32 %v4397, %v4459
    %v4490 = vadd.f32 %v4403, %v4459
    %v4491 = vadd.f32 %v4409, %v4459
    %v4492 = vadd.f32 %v4415, %v4459
    %v4493 = vadd.f32 %v4421, %v4459
    %v4494 = vadd.f32 %v4427, %v4459
    %v4495 = vadd.f32 %v4433, %v4459
    %v4496 = vadd.f32 %v4439, %v4459
    %v4497 = vadd.f32 %v4445, %v4459
    %v4498 = vadd.f32 %v4451, %v4459
    %v4499 = vsel %vm2263, %v4461, 0.0
    %4500 = vadd.xlane.f32.xlu0 %v4499
    %v4501 = vpop.xlane.xlu0 %4500
    %v4502 = vsel %vm2263, %v4462, 0.0
    %4503 = vadd.xlane.f32.xlu0 %v4502
    %v4504 = vpop.xlane.xlu0 %4503
    %v4505 = vsel %vm2263, %v4463, 0.0
    %4506 = vadd.xlane.f32.xlu0 %v4505
    %v4507 = vpop.xlane.xlu0 %4506
    %v4508 = vsel %vm2263, %v4464, 0.0
    %4509 = vadd.xlane.f32.xlu0 %v4508
    %v4510 = vpop.xlane.xlu0 %4509
    %v4511 = vsel %vm2263, %v4465, 0.0
    %4512 = vadd.xlane.f32.xlu0 %v4511
    %v4513 = vpop.xlane.xlu0 %4512
    %v4514 = vsel %vm2263, %v4466, 0.0
    %4515 = vadd.xlane.f32.xlu0 %v4514
    %v4516 = vpop.xlane.xlu0 %4515
    %v4517 = vsel %vm2263, %v4467, 0.0
    %4518 = vadd.xlane.f32.xlu0 %v4517
    %v4519 = vpop.xlane.xlu0 %4518
    %v4520 = vsel %vm2263, %v4468, 0.0
    %4521 = vadd.xlane.f32.xlu0 %v4520
    %v4522 = vpop.xlane.xlu0 %4521
    %v4523 = vsel %vm2263, %v4469, 0.0
    %4524 = vadd.xlane.f32.xlu0 %v4523
    %v4525 = vpop.xlane.xlu0 %4524
    %v4526 = vsel %vm2263, %v4470, 0.0
    %4527 = vadd.xlane.f32.xlu0 %v4526
    %v4528 = vpop.xlane.xlu0 %4527
    %v4529 = vsel %vm2263, %v4471, 0.0
    %4530 = vadd.xlane.f32.xlu0 %v4529
    %v4531 = vpop.xlane.xlu0 %4530
    %v4532 = vsel %vm2263, %v4472, 0.0
    %4533 = vadd.xlane.f32.xlu0 %v4532
    %v4534 = vpop.xlane.xlu0 %4533
    %v4535 = vsel %vm2263, %v4473, 0.0
    %4536 = vadd.xlane.f32.xlu0 %v4535
    %v4537 = vpop.xlane.xlu0 %4536
    %v4538 = vsel %vm2263, %v4474, 0.0
    %4539 = vadd.xlane.f32.xlu0 %v4538
    %v4540 = vpop.xlane.xlu0 %4539
    %v4541 = vsel %vm2263, %v4475, 0.0
    %4542 = vadd.xlane.f32.xlu0 %v4541
    %v4543 = vpop.xlane.xlu0 %4542
    %v4544 = vsel %vm2263, %v4476, 0.0
    %4545 = vadd.xlane.f32.xlu0 %v4544
    %v4546 = vpop.xlane.xlu0 %4545
    %v4547 = vsel %vm2263, %v4477, 0.0
    %4548 = vadd.xlane.f32.xlu0 %v4547
    %v4549 = vpop.xlane.xlu0 %4548
    %v4550 = vsel %vm2263, %v4478, 0.0
    %4551 = vadd.xlane.f32.xlu0 %v4550
    %v4552 = vpop.xlane.xlu0 %4551
    %v4553 = vsel %vm2263, %v4479, 0.0
    %4554 = vadd.xlane.f32.xlu0 %v4553
    %v4555 = vpop.xlane.xlu0 %4554
    %v4556 = vsel %vm2263, %v4480, 0.0
    %4557 = vadd.xlane.f32.xlu0 %v4556
    %v4558 = vpop.xlane.xlu0 %4557
    %v4559 = vsel %vm2263, %v4481, 0.0
    %4560 = vadd.xlane.f32.xlu0 %v4559
    %v4561 = vpop.xlane.xlu0 %4560
    %v4562 = vsel %vm2263, %v4482, 0.0
    %4563 = vadd.xlane.f32.xlu0 %v4562
    %v4564 = vpop.xlane.xlu0 %4563
    %v4565 = vsel %vm2263, %v4483, 0.0
    %4566 = vadd.xlane.f32.xlu0 %v4565
    %v4567 = vpop.xlane.xlu0 %4566
    %v4568 = vsel %vm2263, %v4484, 0.0
    %4569 = vadd.xlane.f32.xlu0 %v4568
    %v4570 = vpop.xlane.xlu0 %4569
    %v4571 = vsel %vm2263, %v4485, 0.0
    %4572 = vadd.xlane.f32.xlu0 %v4571
    %v4573 = vpop.xlane.xlu0 %4572
    %v4574 = vsel %vm2263, %v4486, 0.0
    %4575 = vadd.xlane.f32.xlu0 %v4574
    %v4576 = vpop.xlane.xlu0 %4575
    %v4577 = vsel %vm2263, %v4487, 0.0
    %4578 = vadd.xlane.f32.xlu0 %v4577
    %v4579 = vpop.xlane.xlu0 %4578
    %v4580 = vsel %vm2263, %v4488, 0.0
    %4581 = vadd.xlane.f32.xlu0 %v4580
    %v4582 = vpop.xlane.xlu0 %4581
    %v4583 = vsel %vm2263, %v4489, 0.0
    %4584 = vadd.xlane.f32.xlu0 %v4583
    %v4585 = vpop.xlane.xlu0 %4584
    %v4586 = vsel %vm2263, %v4490, 0.0
    %4587 = vadd.xlane.f32.xlu0 %v4586
    %v4588 = vpop.xlane.xlu0 %4587
    %v4589 = vsel %vm2263, %v4491, 0.0
    %4590 = vadd.xlane.f32.xlu0 %v4589
    %v4591 = vpop.xlane.xlu0 %4590
    %v4592 = vsel %vm2263, %v4492, 0.0
    %4593 = vadd.xlane.f32.xlu0 %v4592
    %v4594 = vpop.xlane.xlu0 %4593
    %v4595 = vsel %vm2263, %v4493, 0.0
    %4596 = vadd.xlane.f32.xlu0 %v4595
    %v4597 = vpop.xlane.xlu0 %4596
    %v4598 = vsel %vm2263, %v4494, 0.0
    %4599 = vadd.xlane.f32.xlu0 %v4598
    %v4600 = vpop.xlane.xlu0 %4599
    %v4601 = vsel %vm2263, %v4495, 0.0
    %4602 = vadd.xlane.f32.xlu0 %v4601
    %v4603 = vpop.xlane.xlu0 %4602
    %v4604 = vsel %vm2263, %v4496, 0.0
    %4605 = vadd.xlane.f32.xlu0 %v4604
    %v4606 = vpop.xlane.xlu0 %4605
    %v4607 = vsel %vm2263, %v4497, 0.0
    %4608 = vadd.xlane.f32.xlu0 %v4607
    %v4609 = vpop.xlane.xlu0 %4608
    %v4610 = vsel %vm2263, %v4498, 0.0
    %4611 = vadd.xlane.f32.xlu0 %v4610
    %v4612 = vpop.xlane.xlu0 %4611
    %v4613 = vrcp.pop 32.0
    %v4614 = vmul.f32 %v4501, %v4613
    %v4615 = vmul.f32 %v4504, %v4613
    %v4616 = vmul.f32 %v4507, %v4613
    %v4617 = vmul.f32 %v4510, %v4613
    %v4618 = vmul.f32 %v4513, %v4613
    %v4619 = vmul.f32 %v4516, %v4613
    %v4620 = vmul.f32 %v4519, %v4613
    %v4621 = vmul.f32 %v4522, %v4613
    %v4622 = vmul.f32 %v4525, %v4613
    %v4623 = vmul.f32 %v4528, %v4613
    %v4624 = vmul.f32 %v4531, %v4613
    %v4625 = vmul.f32 %v4534, %v4613
    %v4626 = vmul.f32 %v4537, %v4613
    %v4627 = vmul.f32 %v4540, %v4613
    %v4628 = vmul.f32 %v4543, %v4613
    %v4629 = vmul.f32 %v4546, %v4613
    %v4630 = vmul.f32 %v4549, %v4613
    %v4631 = vmul.f32 %v4552, %v4613
    %v4632 = vmul.f32 %v4555, %v4613
    %v4633 = vmul.f32 %v4558, %v4613
    %v4634 = vmul.f32 %v4561, %v4613
    %v4635 = vmul.f32 %v4564, %v4613
    %v4636 = vmul.f32 %v4567, %v4613
    %v4637 = vmul.f32 %v4570, %v4613
    %v4638 = vmul.f32 %v4573, %v4613
    %v4639 = vmul.f32 %v4576, %v4613
    %v4640 = vmul.f32 %v4579, %v4613
    %v4641 = vmul.f32 %v4582, %v4613
    %v4642 = vmul.f32 %v4585, %v4613
    %v4643 = vmul.f32 %v4588, %v4613
    %v4644 = vmul.f32 %v4591, %v4613
    %v4645 = vmul.f32 %v4594, %v4613
    %v4646 = vmul.f32 %v4597, %v4613
    %v4647 = vmul.f32 %v4600, %v4613
    %v4648 = vmul.f32 %v4603, %v4613
    %v4649 = vmul.f32 %v4606, %v4613
    %v4650 = vmul.f32 %v4609, %v4613
    %v4651 = vmul.f32 %v4612, %v4613
    %v4652 = vsub.f32 %v4461, %v4614
    %v4653 = vsub.f32 %v4462, %v4615
    %v4654 = vsub.f32 %v4463, %v4616
    %v4655 = vsub.f32 %v4464, %v4617
    %v4656 = vsub.f32 %v4465, %v4618
    %v4657 = vsub.f32 %v4466, %v4619
    %v4658 = vsub.f32 %v4467, %v4620
    %v4659 = vsub.f32 %v4468, %v4621
    %v4660 = vsub.f32 %v4469, %v4622
    %v4661 = vsub.f32 %v4470, %v4623
    %v4662 = vsub.f32 %v4471, %v4624
    %v4663 = vsub.f32 %v4472, %v4625
    %v4664 = vsub.f32 %v4473, %v4626
    %v4665 = vsub.f32 %v4474, %v4627
    %v4666 = vsub.f32 %v4475, %v4628
    %v4667 = vsub.f32 %v4476, %v4629
    %v4668 = vsub.f32 %v4477, %v4630
    %v4669 = vsub.f32 %v4478, %v4631
    %v4670 = vsub.f32 %v4479, %v4632
    %v4671 = vsub.f32 %v4480, %v4633
    %v4672 = vsub.f32 %v4481, %v4634
    %v4673 = vsub.f32 %v4482, %v4635
    %v4674 = vsub.f32 %v4483, %v4636
    %v4675 = vsub.f32 %v4484, %v4637
    %v4676 = vsub.f32 %v4485, %v4638
    %v4677 = vsub.f32 %v4486, %v4639
    %v4678 = vsub.f32 %v4487, %v4640
    %v4679 = vsub.f32 %v4488, %v4641
    %v4680 = vsub.f32 %v4489, %v4642
    %v4681 = vsub.f32 %v4490, %v4643
    %v4682 = vsub.f32 %v4491, %v4644
    %v4683 = vsub.f32 %v4492, %v4645
    %v4684 = vsub.f32 %v4493, %v4646
    %v4685 = vsub.f32 %v4494, %v4647
    %v4686 = vsub.f32 %v4495, %v4648
    %v4687 = vsub.f32 %v4496, %v4649
    %v4688 = vsub.f32 %v4497, %v4650
    %v4689 = vsub.f32 %v4498, %v4651
    %v4690 = vmul.f32 %v4652, %v4652
    %v4691 = vmul.f32 %v4653, %v4653
    %v4692 = vmul.f32 %v4654, %v4654
    %v4693 = vmul.f32 %v4655, %v4655
    %v4694 = vmul.f32 %v4656, %v4656
    %v4695 = vmul.f32 %v4657, %v4657
    %v4696 = vmul.f32 %v4658, %v4658
    %v4697 = vmul.f32 %v4659, %v4659
    %v4698 = vmul.f32 %v4660, %v4660
    %v4699 = vmul.f32 %v4661, %v4661
    %v4700 = vmul.f32 %v4662, %v4662
    %v4701 = vmul.f32 %v4663, %v4663
    %v4702 = vmul.f32 %v4664, %v4664
    %v4703 = vmul.f32 %v4665, %v4665
    %v4704 = vmul.f32 %v4666, %v4666
    %v4705 = vmul.f32 %v4667, %v4667
    %v4706 = vmul.f32 %v4668, %v4668
    %v4707 = vmul.f32 %v4669, %v4669
    %v4708 = vmul.f32 %v4670, %v4670
    %v4709 = vmul.f32 %v4671, %v4671
    %v4710 = vmul.f32 %v4672, %v4672
    %v4711 = vmul.f32 %v4673, %v4673
    %v4712 = vmul.f32 %v4674, %v4674
    %v4713 = vmul.f32 %v4675, %v4675
    %v4714 = vmul.f32 %v4676, %v4676
    %v4715 = vmul.f32 %v4677, %v4677
    %v4716 = vmul.f32 %v4678, %v4678
    %v4717 = vmul.f32 %v4679, %v4679
    %v4718 = vmul.f32 %v4680, %v4680
    %v4719 = vmul.f32 %v4681, %v4681
    %v4720 = vmul.f32 %v4682, %v4682
    %v4721 = vmul.f32 %v4683, %v4683
    %v4722 = vmul.f32 %v4684, %v4684
    %v4723 = vmul.f32 %v4685, %v4685
    %v4724 = vmul.f32 %v4686, %v4686
    %v4725 = vmul.f32 %v4687, %v4687
    %v4726 = vmul.f32 %v4688, %v4688
    %v4727 = vmul.f32 %v4689, %v4689
    %v4728 = vsel %vm2263, %v4690, 0.0
    %4729 = vadd.xlane.f32.xlu0 %v4728
    %v4730 = vpop.xlane.xlu0 %4729
    %v4731 = vsel %vm2263, %v4691, 0.0
    %4732 = vadd.xlane.f32.xlu0 %v4731
    %v4733 = vpop.xlane.xlu0 %4732
    %v4734 = vsel %vm2263, %v4692, 0.0
    %4735 = vadd.xlane.f32.xlu0 %v4734
    %v4736 = vpop.xlane.xlu0 %4735
    %v4737 = vsel %vm2263, %v4693, 0.0
    %4738 = vadd.xlane.f32.xlu0 %v4737
    %v4739 = vpop.xlane.xlu0 %4738
    %v4740 = vsel %vm2263, %v4694, 0.0
    %4741 = vadd.xlane.f32.xlu0 %v4740
    %v4742 = vpop.xlane.xlu0 %4741
    %v4743 = vsel %vm2263, %v4695, 0.0
    %4744 = vadd.xlane.f32.xlu0 %v4743
    %v4745 = vpop.xlane.xlu0 %4744
    %v4746 = vsel %vm2263, %v4696, 0.0
    %4747 = vadd.xlane.f32.xlu0 %v4746
    %v4748 = vpop.xlane.xlu0 %4747
    %v4749 = vsel %vm2263, %v4697, 0.0
    %4750 = vadd.xlane.f32.xlu0 %v4749
    %v4751 = vpop.xlane.xlu0 %4750
    %v4752 = vsel %vm2263, %v4698, 0.0
    %4753 = vadd.xlane.f32.xlu0 %v4752
    %v4754 = vpop.xlane.xlu0 %4753
    %v4755 = vsel %vm2263, %v4699, 0.0
    %4756 = vadd.xlane.f32.xlu0 %v4755
    %v4757 = vpop.xlane.xlu0 %4756
    %v4758 = vsel %vm2263, %v4700, 0.0
    %4759 = vadd.xlane.f32.xlu0 %v4758
    %v4760 = vpop.xlane.xlu0 %4759
    %v4761 = vsel %vm2263, %v4701, 0.0
    %4762 = vadd.xlane.f32.xlu0 %v4761
    %v4763 = vpop.xlane.xlu0 %4762
    %v4764 = vsel %vm2263, %v4702, 0.0
    %4765 = vadd.xlane.f32.xlu0 %v4764
    %v4766 = vpop.xlane.xlu0 %4765
    %v4767 = vsel %vm2263, %v4703, 0.0
    %4768 = vadd.xlane.f32.xlu0 %v4767
    %v4769 = vpop.xlane.xlu0 %4768
    %v4770 = vsel %vm2263, %v4704, 0.0
    %4771 = vadd.xlane.f32.xlu0 %v4770
    %v4772 = vpop.xlane.xlu0 %4771
    %v4773 = vsel %vm2263, %v4705, 0.0
    %4774 = vadd.xlane.f32.xlu0 %v4773
    %v4775 = vpop.xlane.xlu0 %4774
    %v4776 = vsel %vm2263, %v4706, 0.0
    %4777 = vadd.xlane.f32.xlu0 %v4776
    %v4778 = vpop.xlane.xlu0 %4777
    %v4779 = vsel %vm2263, %v4707, 0.0
    %4780 = vadd.xlane.f32.xlu0 %v4779
    %v4781 = vpop.xlane.xlu0 %4780
    %v4782 = vsel %vm2263, %v4708, 0.0
    %4783 = vadd.xlane.f32.xlu0 %v4782
    %v4784 = vpop.xlane.xlu0 %4783
    %v4785 = vsel %vm2263, %v4709, 0.0
    %4786 = vadd.xlane.f32.xlu0 %v4785
    %v4787 = vpop.xlane.xlu0 %4786
    %v4788 = vsel %vm2263, %v4710, 0.0
    %4789 = vadd.xlane.f32.xlu0 %v4788
    %v4790 = vpop.xlane.xlu0 %4789
    %v4791 = vsel %vm2263, %v4711, 0.0
    %4792 = vadd.xlane.f32.xlu0 %v4791
    %v4793 = vpop.xlane.xlu0 %4792
    %v4794 = vsel %vm2263, %v4712, 0.0
    %4795 = vadd.xlane.f32.xlu0 %v4794
    %v4796 = vpop.xlane.xlu0 %4795
    %v4797 = vsel %vm2263, %v4713, 0.0
    %4798 = vadd.xlane.f32.xlu0 %v4797
    %v4799 = vpop.xlane.xlu0 %4798
    %v4800 = vsel %vm2263, %v4714, 0.0
    %4801 = vadd.xlane.f32.xlu0 %v4800
    %v4802 = vpop.xlane.xlu0 %4801
    %v4803 = vsel %vm2263, %v4715, 0.0
    %4804 = vadd.xlane.f32.xlu0 %v4803
    %v4805 = vpop.xlane.xlu0 %4804
    %v4806 = vsel %vm2263, %v4716, 0.0
    %4807 = vadd.xlane.f32.xlu0 %v4806
    %v4808 = vpop.xlane.xlu0 %4807
    %v4809 = vsel %vm2263, %v4717, 0.0
    %4810 = vadd.xlane.f32.xlu0 %v4809
    %v4811 = vpop.xlane.xlu0 %4810
    %v4812 = vsel %vm2263, %v4718, 0.0
    %4813 = vadd.xlane.f32.xlu0 %v4812
    %v4814 = vpop.xlane.xlu0 %4813
    %v4815 = vsel %vm2263, %v4719, 0.0
    %4816 = vadd.xlane.f32.xlu0 %v4815
    %v4817 = vpop.xlane.xlu0 %4816
    %v4818 = vsel %vm2263, %v4720, 0.0
    %4819 = vadd.xlane.f32.xlu0 %v4818
    %v4820 = vpop.xlane.xlu0 %4819
    %v4821 = vsel %vm2263, %v4721, 0.0
    %4822 = vadd.xlane.f32.xlu0 %v4821
    %v4823 = vpop.xlane.xlu0 %4822
    %v4824 = vsel %vm2263, %v4722, 0.0
    %4825 = vadd.xlane.f32.xlu0 %v4824
    %v4826 = vpop.xlane.xlu0 %4825
    %v4827 = vsel %vm2263, %v4723, 0.0
    %4828 = vadd.xlane.f32.xlu0 %v4827
    %v4829 = vpop.xlane.xlu0 %4828
    %v4830 = vsel %vm2263, %v4724, 0.0
    %4831 = vadd.xlane.f32.xlu0 %v4830
    %v4832 = vpop.xlane.xlu0 %4831
    %v4833 = vsel %vm2263, %v4725, 0.0
    %4834 = vadd.xlane.f32.xlu0 %v4833
    %v4835 = vpop.xlane.xlu0 %4834
    %v4836 = vsel %vm2263, %v4726, 0.0
    %4837 = vadd.xlane.f32.xlu0 %v4836
    %v4838 = vpop.xlane.xlu0 %4837
    %v4839 = vsel %vm2263, %v4727, 0.0
    %4840 = vadd.xlane.f32.xlu0 %v4839
    %v4841 = vpop.xlane.xlu0 %4840
    %v4842 = vmul.f32 %v4730, %v4613
    %v4843 = vmul.f32 %v4733, %v4613
    %v4844 = vmul.f32 %v4736, %v4613
    %v4845 = vmul.f32 %v4739, %v4613
    %v4846 = vmul.f32 %v4742, %v4613
    %v4847 = vmul.f32 %v4745, %v4613
    %v4848 = vmul.f32 %v4748, %v4613
    %v4849 = vmul.f32 %v4751, %v4613
    %v4850 = vmul.f32 %v4754, %v4613
    %v4851 = vmul.f32 %v4757, %v4613
    %v4852 = vmul.f32 %v4760, %v4613
    %v4853 = vmul.f32 %v4763, %v4613
    %v4854 = vmul.f32 %v4766, %v4613
    %v4855 = vmul.f32 %v4769, %v4613
    %v4856 = vmul.f32 %v4772, %v4613
    %v4857 = vmul.f32 %v4775, %v4613
    %v4858 = vmul.f32 %v4778, %v4613
    %v4859 = vmul.f32 %v4781, %v4613
    %v4860 = vmul.f32 %v4784, %v4613
    %v4861 = vmul.f32 %v4787, %v4613
    %v4862 = vmul.f32 %v4790, %v4613
    %v4863 = vmul.f32 %v4793, %v4613
    %v4864 = vmul.f32 %v4796, %v4613
    %v4865 = vmul.f32 %v4799, %v4613
    %v4866 = vmul.f32 %v4802, %v4613
    %v4867 = vmul.f32 %v4805, %v4613
    %v4868 = vmul.f32 %v4808, %v4613
    %v4869 = vmul.f32 %v4811, %v4613
    %v4870 = vmul.f32 %v4814, %v4613
    %v4871 = vmul.f32 %v4817, %v4613
    %v4872 = vmul.f32 %v4820, %v4613
    %v4873 = vmul.f32 %v4823, %v4613
    %v4874 = vmul.f32 %v4826, %v4613
    %v4875 = vmul.f32 %v4829, %v4613
    %v4876 = vmul.f32 %v4832, %v4613
    %v4877 = vmul.f32 %v4835, %v4613
    %v4878 = vmul.f32 %v4838, %v4613
    %v4879 = vmul.f32 %v4841, %v4613
    %v4880 = vadd.f32 %v4842, 1e-05
    %v4881 = vadd.f32 %v4843, 1e-05
    %v4882 = vadd.f32 %v4844, 1e-05
    %v4883 = vadd.f32 %v4845, 1e-05
    %v4884 = vadd.f32 %v4846, 1e-05
    %v4885 = vadd.f32 %v4847, 1e-05
    %v4886 = vadd.f32 %v4848, 1e-05
    %v4887 = vadd.f32 %v4849, 1e-05
    %v4888 = vadd.f32 %v4850, 1e-05
    %v4889 = vadd.f32 %v4851, 1e-05
    %v4890 = vadd.f32 %v4852, 1e-05
    %v4891 = vadd.f32 %v4853, 1e-05
    %v4892 = vadd.f32 %v4854, 1e-05
    %v4893 = vadd.f32 %v4855, 1e-05
    %v4894 = vadd.f32 %v4856, 1e-05
    %v4895 = vadd.f32 %v4857, 1e-05
    %v4896 = vadd.f32 %v4858, 1e-05
    %v4897 = vadd.f32 %v4859, 1e-05
    %v4898 = vadd.f32 %v4860, 1e-05
    %v4899 = vadd.f32 %v4861, 1e-05
    %v4900 = vadd.f32 %v4862, 1e-05
    %v4901 = vadd.f32 %v4863, 1e-05
    %v4902 = vadd.f32 %v4864, 1e-05
    %v4903 = vadd.f32 %v4865, 1e-05
    %v4904 = vadd.f32 %v4866, 1e-05
    %v4905 = vadd.f32 %v4867, 1e-05
    %v4906 = vadd.f32 %v4868, 1e-05
    %v4907 = vadd.f32 %v4869, 1e-05
    %v4908 = vadd.f32 %v4870, 1e-05
    %v4909 = vadd.f32 %v4871, 1e-05
    %v4910 = vadd.f32 %v4872, 1e-05
    %v4911 = vadd.f32 %v4873, 1e-05
    %v4912 = vadd.f32 %v4874, 1e-05
    %v4913 = vadd.f32 %v4875, 1e-05
    %v4914 = vadd.f32 %v4876, 1e-05
    %v4915 = vadd.f32 %v4877, 1e-05
    %v4916 = vadd.f32 %v4878, 1e-05
    %v4917 = vadd.f32 %v4879, 1e-05
    %v4918 = vrsqrt.pop %v4880
    %v4919 = vrsqrt.pop %v4881
    %v4920 = vrsqrt.pop %v4882
    %v4921 = vrsqrt.pop %v4883
    %v4922 = vrsqrt.pop %v4884
    %v4923 = vrsqrt.pop %v4885
    %v4924 = vrsqrt.pop %v4886
    %v4925 = vrsqrt.pop %v4887
    %v4926 = vrsqrt.pop %v4888
    %v4927 = vrsqrt.pop %v4889
    %v4928 = vrsqrt.pop %v4890
    %v4929 = vrsqrt.pop %v4891
    %v4930 = vrsqrt.pop %v4892
    %v4931 = vrsqrt.pop %v4893
    %v4932 = vrsqrt.pop %v4894
    %v4933 = vrsqrt.pop %v4895
    %v4934 = vrsqrt.pop %v4896
    %v4935 = vrsqrt.pop %v4897
    %v4936 = vrsqrt.pop %v4898
    %v4937 = vrsqrt.pop %v4899
    %v4938 = vrsqrt.pop %v4900
    %v4939 = vrsqrt.pop %v4901
    %v4940 = vrsqrt.pop %v4902
    %v4941 = vrsqrt.pop %v4903
    %v4942 = vrsqrt.pop %v4904
    %v4943 = vrsqrt.pop %v4905
    %v4944 = vrsqrt.pop %v4906
    %v4945 = vrsqrt.pop %v4907
    %v4946 = vrsqrt.pop %v4908
    %v4947 = vrsqrt.pop %v4909
    %v4948 = vrsqrt.pop %v4910
    %v4949 = vrsqrt.pop %v4911
    %v4950 = vrsqrt.pop %v4912
    %v4951 = vrsqrt.pop %v4913
    %v4952 = vrsqrt.pop %v4914
    %v4953 = vrsqrt.pop %v4915
    %v4954 = vrsqrt.pop %v4916
    %v4955 = vrsqrt.pop %v4917
    %v4956 = vmul.f32 %v4652, %v4918
    %v4957 = vmul.f32 %v4653, %v4919
    %v4958 = vmul.f32 %v4654, %v4920
    %v4959 = vmul.f32 %v4655, %v4921
    %v4960 = vmul.f32 %v4656, %v4922
    %v4961 = vmul.f32 %v4657, %v4923
    %v4962 = vmul.f32 %v4658, %v4924
    %v4963 = vmul.f32 %v4659, %v4925
    %v4964 = vmul.f32 %v4660, %v4926
    %v4965 = vmul.f32 %v4661, %v4927
    %v4966 = vmul.f32 %v4662, %v4928
    %v4967 = vmul.f32 %v4663, %v4929
    %v4968 = vmul.f32 %v4664, %v4930
    %v4969 = vmul.f32 %v4665, %v4931
    %v4970 = vmul.f32 %v4666, %v4932
    %v4971 = vmul.f32 %v4667, %v4933
    %v4972 = vmul.f32 %v4668, %v4934
    %v4973 = vmul.f32 %v4669, %v4935
    %v4974 = vmul.f32 %v4670, %v4936
    %v4975 = vmul.f32 %v4671, %v4937
    %v4976 = vmul.f32 %v4672, %v4938
    %v4977 = vmul.f32 %v4673, %v4939
    %v4978 = vmul.f32 %v4674, %v4940
    %v4979 = vmul.f32 %v4675, %v4941
    %v4980 = vmul.f32 %v4676, %v4942
    %v4981 = vmul.f32 %v4677, %v4943
    %v4982 = vmul.f32 %v4678, %v4944
    %v4983 = vmul.f32 %v4679, %v4945
    %v4984 = vmul.f32 %v4680, %v4946
    %v4985 = vmul.f32 %v4681, %v4947
    %v4986 = vmul.f32 %v4682, %v4948
    %v4987 = vmul.f32 %v4683, %v4949
    %v4988 = vmul.f32 %v4684, %v4950
    %v4989 = vmul.f32 %v4685, %v4951
    %v4990 = vmul.f32 %v4686, %v4952
    %v4991 = vmul.f32 %v4687, %v4953
    %v4992 = vmul.f32 %v4688, %v4954
    %v4993 = vmul.f32 %v4689, %v4955
    %v4994 = vld [vmem:[%s5] sm:$0x1]
    %v4996 = vlaneseq
    %v4997 = vshrl.u32 %v4996, 7
    %v4998 = vsub.s32 0, %v4997
    %v4999 = vrot.slane %v4994, %v4998
    %v5001 = vmul.f32 %v4956, %v4999
    %v5002 = vmul.f32 %v4957, %v4999
    %v5003 = vmul.f32 %v4958, %v4999
    %v5004 = vmul.f32 %v4959, %v4999
    %v5005 = vmul.f32 %v4960, %v4999
    %v5006 = vmul.f32 %v4961, %v4999
    %v5007 = vmul.f32 %v4962, %v4999
    %v5008 = vmul.f32 %v4963, %v4999
    %v5009 = vmul.f32 %v4964, %v4999
    %v5010 = vmul.f32 %v4965, %v4999
    %v5011 = vmul.f32 %v4966, %v4999
    %v5012 = vmul.f32 %v4967, %v4999
    %v5013 = vmul.f32 %v4968, %v4999
    %v5014 = vmul.f32 %v4969, %v4999
    %v5015 = vmul.f32 %v4970, %v4999
    %v5016 = vmul.f32 %v4971, %v4999
    %v5017 = vmul.f32 %v4972, %v4999
    %v5018 = vmul.f32 %v4973, %v4999
    %v5019 = vmul.f32 %v4974, %v4999
    %v5020 = vmul.f32 %v4975, %v4999
    %v5021 = vmul.f32 %v4976, %v4999
    %v5022 = vmul.f32 %v4977, %v4999
    %v5023 = vmul.f32 %v4978, %v4999
    %v5024 = vmul.f32 %v4979, %v4999
    %v5025 = vmul.f32 %v4980, %v4999
    %v5026 = vmul.f32 %v4981, %v4999
    %v5027 = vmul.f32 %v4982, %v4999
    %v5028 = vmul.f32 %v4983, %v4999
    %v5029 = vmul.f32 %v4984, %v4999
    %v5030 = vmul.f32 %v4985, %v4999
    %v5031 = vmul.f32 %v4986, %v4999
    %v5032 = vmul.f32 %v4987, %v4999
    %v5033 = vmul.f32 %v4988, %v4999
    %v5034 = vmul.f32 %v4989, %v4999
    %v5035 = vmul.f32 %v4990, %v4999
    %v5036 = vmul.f32 %v4991, %v4999
    %v5037 = vmul.f32 %v4992, %v4999
    %v5038 = vmul.f32 %v4993, %v4999
    %v5039 = vld [vmem:[%s6] sm:$0x1]
    %v5041 = vlaneseq
    %v5042 = vshrl.u32 %v5041, 7
    %v5043 = vsub.s32 0, %v5042
    %v5044 = vrot.slane %v5039, %v5043
    %v5046 = vadd.f32 %v5001, %v5044
    %v5047 = vadd.f32 %v5002, %v5044
    %v5048 = vadd.f32 %v5003, %v5044
    %v5049 = vadd.f32 %v5004, %v5044
    %v5050 = vadd.f32 %v5005, %v5044
    %v5051 = vadd.f32 %v5006, %v5044
    %v5052 = vadd.f32 %v5007, %v5044
    %v5053 = vadd.f32 %v5008, %v5044
    %v5054 = vadd.f32 %v5009, %v5044
    %v5055 = vadd.f32 %v5010, %v5044
    %v5056 = vadd.f32 %v5011, %v5044
    %v5057 = vadd.f32 %v5012, %v5044
    %v5058 = vadd.f32 %v5013, %v5044
    %v5059 = vadd.f32 %v5014, %v5044
    %v5060 = vadd.f32 %v5015, %v5044
    %v5061 = vadd.f32 %v5016, %v5044
    %v5062 = vadd.f32 %v5017, %v5044
    %v5063 = vadd.f32 %v5018, %v5044
    %v5064 = vadd.f32 %v5019, %v5044
    %v5065 = vadd.f32 %v5020, %v5044
    %v5066 = vadd.f32 %v5021, %v5044
    %v5067 = vadd.f32 %v5022, %v5044
    %v5068 = vadd.f32 %v5023, %v5044
    %v5069 = vadd.f32 %v5024, %v5044
    %v5070 = vadd.f32 %v5025, %v5044
    %v5071 = vadd.f32 %v5026, %v5044
    %v5072 = vadd.f32 %v5027, %v5044
    %v5073 = vadd.f32 %v5028, %v5044
    %v5074 = vadd.f32 %v5029, %v5044
    %v5075 = vadd.f32 %v5030, %v5044
    %v5076 = vadd.f32 %v5031, %v5044
    %v5077 = vadd.f32 %v5032, %v5044
    %v5078 = vadd.f32 %v5033, %v5044
    %v5079 = vadd.f32 %v5034, %v5044
    %v5080 = vadd.f32 %v5035, %v5044
    %v5081 = vadd.f32 %v5036, %v5044
    %v5082 = vadd.f32 %v5037, %v5044
    %v5083 = vadd.f32 %v5038, %v5044
    %v5084 = vmin.f32 %v5046, 20.0
    %v5085 = vmin.f32 %v5047, 20.0
    %v5086 = vmin.f32 %v5048, 20.0
    %v5087 = vmin.f32 %v5049, 20.0
    %v5088 = vmin.f32 %v5050, 20.0
    %v5089 = vmin.f32 %v5051, 20.0
    %v5090 = vmin.f32 %v5052, 20.0
    %v5091 = vmin.f32 %v5053, 20.0
    %v5092 = vmin.f32 %v5054, 20.0
    %v5093 = vmin.f32 %v5055, 20.0
    %v5094 = vmin.f32 %v5056, 20.0
    %v5095 = vmin.f32 %v5057, 20.0
    %v5096 = vmin.f32 %v5058, 20.0
    %v5097 = vmin.f32 %v5059, 20.0
    %v5098 = vmin.f32 %v5060, 20.0
    %v5099 = vmin.f32 %v5061, 20.0
    %v5100 = vmin.f32 %v5062, 20.0
    %v5101 = vmin.f32 %v5063, 20.0
    %v5102 = vmin.f32 %v5064, 20.0
    %v5103 = vmin.f32 %v5065, 20.0
    %v5104 = vmin.f32 %v5066, 20.0
    %v5105 = vmin.f32 %v5067, 20.0
    %v5106 = vmin.f32 %v5068, 20.0
    %v5107 = vmin.f32 %v5069, 20.0
    %v5108 = vmin.f32 %v5070, 20.0
    %v5109 = vmin.f32 %v5071, 20.0
    %v5110 = vmin.f32 %v5072, 20.0
    %v5111 = vmin.f32 %v5073, 20.0
    %v5112 = vmin.f32 %v5074, 20.0
    %v5113 = vmin.f32 %v5075, 20.0
    %v5114 = vmin.f32 %v5076, 20.0
    %v5115 = vmin.f32 %v5077, 20.0
    %v5116 = vmin.f32 %v5078, 20.0
    %v5117 = vmin.f32 %v5079, 20.0
    %v5118 = vmin.f32 %v5080, 20.0
    %v5119 = vmin.f32 %v5081, 20.0
    %v5120 = vmin.f32 %v5082, 20.0
    %v5121 = vmin.f32 %v5083, 20.0
    %v5122 = vmul.f32 %v5084, 1.442695
    %v5123 = vpow.pop %v5122
    %v5124 = vmul.f32 %v5085, 1.442695
    %v5125 = vpow.pop %v5124
    %v5126 = vmul.f32 %v5086, 1.442695
    %v5127 = vpow.pop %v5126
    %v5128 = vmul.f32 %v5087, 1.442695
    %v5129 = vpow.pop %v5128
    %v5130 = vmul.f32 %v5088, 1.442695
    %v5131 = vpow.pop %v5130
    %v5132 = vmul.f32 %v5089, 1.442695
    %v5133 = vpow.pop %v5132
    %v5134 = vmul.f32 %v5090, 1.442695
    %v5135 = vpow.pop %v5134
    %v5136 = vmul.f32 %v5091, 1.442695
    %v5137 = vpow.pop %v5136
    %v5138 = vmul.f32 %v5092, 1.442695
    %v5139 = vpow.pop %v5138
    %v5140 = vmul.f32 %v5093, 1.442695
    %v5141 = vpow.pop %v5140
    %v5142 = vmul.f32 %v5094, 1.442695
    %v5143 = vpow.pop %v5142
    %v5144 = vmul.f32 %v5095, 1.442695
    %v5145 = vpow.pop %v5144
    %v5146 = vmul.f32 %v5096, 1.442695
    %v5147 = vpow.pop %v5146
    %v5148 = vmul.f32 %v5097, 1.442695
    %v5149 = vpow.pop %v5148
    %v5150 = vmul.f32 %v5098, 1.442695
    %v5151 = vpow.pop %v5150
    %v5152 = vmul.f32 %v5099, 1.442695
    %v5153 = vpow.pop %v5152
    %v5154 = vmul.f32 %v5100, 1.442695
    %v5155 = vpow.pop %v5154
    %v5156 = vmul.f32 %v5101, 1.442695
    %v5157 = vpow.pop %v5156
    %v5158 = vmul.f32 %v5102, 1.442695
    %v5159 = vpow.pop %v5158
    %v5160 = vmul.f32 %v5103, 1.442695
    %v5161 = vpow.pop %v5160
    %v5162 = vmul.f32 %v5104, 1.442695
    %v5163 = vpow.pop %v5162
    %v5164 = vmul.f32 %v5105, 1.442695
    %v5165 = vpow.pop %v5164
    %v5166 = vmul.f32 %v5106, 1.442695
    %v5167 = vpow.pop %v5166
    %v5168 = vmul.f32 %v5107, 1.442695
    %v5169 = vpow.pop %v5168
    %v5170 = vmul.f32 %v5108, 1.442695
    %v5171 = vpow.pop %v5170
    %v5172 = vmul.f32 %v5109, 1.442695
    %v5173 = vpow.pop %v5172
    %v5174 = vmul.f32 %v5110, 1.442695
    %v5175 = vpow.pop %v5174
    %v5176 = vmul.f32 %v5111, 1.442695
    %v5177 = vpow.pop %v5176
    %v5178 = vmul.f32 %v5112, 1.442695
    %v5179 = vpow.pop %v5178
    %v5180 = vmul.f32 %v5113, 1.442695
    %v5181 = vpow.pop %v5180
    %v5182 = vmul.f32 %v5114, 1.442695
    %v5183 = vpow.pop %v5182
    %v5184 = vmul.f32 %v5115, 1.442695
    %v5185 = vpow.pop %v5184
    %v5186 = vmul.f32 %v5116, 1.442695
    %v5187 = vpow.pop %v5186
    %v5188 = vmul.f32 %v5117, 1.442695
    %v5189 = vpow.pop %v5188
    %v5190 = vmul.f32 %v5118, 1.442695
    %v5191 = vpow.pop %v5190
    %v5192 = vmul.f32 %v5119, 1.442695
    %v5193 = vpow.pop %v5192
    %v5194 = vmul.f32 %v5120, 1.442695
    %v5195 = vpow.pop %v5194
    %v5196 = vmul.f32 %v5121, 1.442695
    %v5197 = vpow.pop %v5196
    %v5198 = vadd.f32 %v5123, 2.0
    %v5199 = vadd.f32 %v5125, 2.0
    %v5200 = vadd.f32 %v5127, 2.0
    %v5201 = vadd.f32 %v5129, 2.0
    %v5202 = vadd.f32 %v5131, 2.0
    %v5203 = vadd.f32 %v5133, 2.0
    %v5204 = vadd.f32 %v5135, 2.0
    %v5205 = vadd.f32 %v5137, 2.0
    %v5206 = vadd.f32 %v5139, 2.0
    %v5207 = vadd.f32 %v5141, 2.0
    %v5208 = vadd.f32 %v5143, 2.0
    %v5209 = vadd.f32 %v5145, 2.0
    %v5210 = vadd.f32 %v5147, 2.0
    %v5211 = vadd.f32 %v5149, 2.0
    %v5212 = vadd.f32 %v5151, 2.0
    %v5213 = vadd.f32 %v5153, 2.0
    %v5214 = vadd.f32 %v5155, 2.0
    %v5215 = vadd.f32 %v5157, 2.0
    %v5216 = vadd.f32 %v5159, 2.0
    %v5217 = vadd.f32 %v5161, 2.0
    %v5218 = vadd.f32 %v5163, 2.0
    %v5219 = vadd.f32 %v5165, 2.0
    %v5220 = vadd.f32 %v5167, 2.0
    %v5221 = vadd.f32 %v5169, 2.0
    %v5222 = vadd.f32 %v5171, 2.0
    %v5223 = vadd.f32 %v5173, 2.0
    %v5224 = vadd.f32 %v5175, 2.0
    %v5225 = vadd.f32 %v5177, 2.0
    %v5226 = vadd.f32 %v5179, 2.0
    %v5227 = vadd.f32 %v5181, 2.0
    %v5228 = vadd.f32 %v5183, 2.0
    %v5229 = vadd.f32 %v5185, 2.0
    %v5230 = vadd.f32 %v5187, 2.0
    %v5231 = vadd.f32 %v5189, 2.0
    %v5232 = vadd.f32 %v5191, 2.0
    %v5233 = vadd.f32 %v5193, 2.0
    %v5234 = vadd.f32 %v5195, 2.0
    %v5235 = vadd.f32 %v5197, 2.0
    %v5236 = vmul.f32 %v5123, %v5198
    %v5237 = vmul.f32 %v5125, %v5199
    %v5238 = vmul.f32 %v5127, %v5200
    %v5239 = vmul.f32 %v5129, %v5201
    %v5240 = vmul.f32 %v5131, %v5202
    %v5241 = vmul.f32 %v5133, %v5203
    %v5242 = vmul.f32 %v5135, %v5204
    %v5243 = vmul.f32 %v5137, %v5205
    %v5244 = vmul.f32 %v5139, %v5206
    %v5245 = vmul.f32 %v5141, %v5207
    %v5246 = vmul.f32 %v5143, %v5208
    %v5247 = vmul.f32 %v5145, %v5209
    %v5248 = vmul.f32 %v5147, %v5210
    %v5249 = vmul.f32 %v5149, %v5211
    %v5250 = vmul.f32 %v5151, %v5212
    %v5251 = vmul.f32 %v5153, %v5213
    %v5252 = vmul.f32 %v5155, %v5214
    %v5253 = vmul.f32 %v5157, %v5215
    %v5254 = vmul.f32 %v5159, %v5216
    %v5255 = vmul.f32 %v5161, %v5217
    %v5256 = vmul.f32 %v5163, %v5218
    %v5257 = vmul.f32 %v5165, %v5219
    %v5258 = vmul.f32 %v5167, %v5220
    %v5259 = vmul.f32 %v5169, %v5221
    %v5260 = vmul.f32 %v5171, %v5222
    %v5261 = vmul.f32 %v5173, %v5223
    %v5262 = vmul.f32 %v5175, %v5224
    %v5263 = vmul.f32 %v5177, %v5225
    %v5264 = vmul.f32 %v5179, %v5226
    %v5265 = vmul.f32 %v5181, %v5227
    %v5266 = vmul.f32 %v5183, %v5228
    %v5267 = vmul.f32 %v5185, %v5229
    %v5268 = vmul.f32 %v5187, %v5230
    %v5269 = vmul.f32 %v5189, %v5231
    %v5270 = vmul.f32 %v5191, %v5232
    %v5271 = vmul.f32 %v5193, %v5233
    %v5272 = vmul.f32 %v5195, %v5234
    %v5273 = vmul.f32 %v5197, %v5235
    %v5274 = vadd.f32 %v5236, 2.0
    %v5275 = vadd.f32 %v5237, 2.0
    %v5276 = vadd.f32 %v5238, 2.0
    %v5277 = vadd.f32 %v5239, 2.0
    %v5278 = vadd.f32 %v5240, 2.0
    %v5279 = vadd.f32 %v5241, 2.0
    %v5280 = vadd.f32 %v5242, 2.0
    %v5281 = vadd.f32 %v5243, 2.0
    %v5282 = vadd.f32 %v5244, 2.0
    %v5283 = vadd.f32 %v5245, 2.0
    %v5284 = vadd.f32 %v5246, 2.0
    %v5285 = vadd.f32 %v5247, 2.0
    %v5286 = vadd.f32 %v5248, 2.0
    %v5287 = vadd.f32 %v5249, 2.0
    %v5288 = vadd.f32 %v5250, 2.0
    %v5289 = vadd.f32 %v5251, 2.0
    %v5290 = vadd.f32 %v5252, 2.0
    %v5291 = vadd.f32 %v5253, 2.0
    %v5292 = vadd.f32 %v5254, 2.0
    %v5293 = vadd.f32 %v5255, 2.0
    %v5294 = vadd.f32 %v5256, 2.0
    %v5295 = vadd.f32 %v5257, 2.0
    %v5296 = vadd.f32 %v5258, 2.0
    %v5297 = vadd.f32 %v5259, 2.0
    %v5298 = vadd.f32 %v5260, 2.0
    %v5299 = vadd.f32 %v5261, 2.0
    %v5300 = vadd.f32 %v5262, 2.0
    %v5301 = vadd.f32 %v5263, 2.0
    %v5302 = vadd.f32 %v5264, 2.0
    %v5303 = vadd.f32 %v5265, 2.0
    %v5304 = vadd.f32 %v5266, 2.0
    %v5305 = vadd.f32 %v5267, 2.0
    %v5306 = vadd.f32 %v5268, 2.0
    %v5307 = vadd.f32 %v5269, 2.0
    %v5308 = vadd.f32 %v5270, 2.0
    %v5309 = vadd.f32 %v5271, 2.0
    %v5310 = vadd.f32 %v5272, 2.0
    %v5311 = vadd.f32 %v5273, 2.0
    %v5312 = vrcp.pop %v5274
    %v5313 = vmul.f32 %v5236, %v5312
    %v5314 = vrcp.pop %v5275
    %v5315 = vmul.f32 %v5237, %v5314
    %v5316 = vrcp.pop %v5276
    %v5317 = vmul.f32 %v5238, %v5316
    %v5318 = vrcp.pop %v5277
    %v5319 = vmul.f32 %v5239, %v5318
    %v5320 = vrcp.pop %v5278
    %v5321 = vmul.f32 %v5240, %v5320
    %v5322 = vrcp.pop %v5279
    %v5323 = vmul.f32 %v5241, %v5322
    %v5324 = vrcp.pop %v5280
    %v5325 = vmul.f32 %v5242, %v5324
    %v5326 = vrcp.pop %v5281
    %v5327 = vmul.f32 %v5243, %v5326
    %v5328 = vrcp.pop %v5282
    %v5329 = vmul.f32 %v5244, %v5328
    %v5330 = vrcp.pop %v5283
    %v5331 = vmul.f32 %v5245, %v5330
    %v5332 = vrcp.pop %v5284
    %v5333 = vmul.f32 %v5246, %v5332
    %v5334 = vrcp.pop %v5285
    %v5335 = vmul.f32 %v5247, %v5334
    %v5336 = vrcp.pop %v5286
    %v5337 = vmul.f32 %v5248, %v5336
    %v5338 = vrcp.pop %v5287
    %v5339 = vmul.f32 %v5249, %v5338
    %v5340 = vrcp.pop %v5288
    %v5341 = vmul.f32 %v5250, %v5340
    %v5342 = vrcp.pop %v5289
    %v5343 = vmul.f32 %v5251, %v5342
    %v5344 = vrcp.pop %v5290
    %v5345 = vmul.f32 %v5252, %v5344
    %v5346 = vrcp.pop %v5291
    %v5347 = vmul.f32 %v5253, %v5346
    %v5348 = vrcp.pop %v5292
    %v5349 = vmul.f32 %v5254, %v5348
    %v5350 = vrcp.pop %v5293
    %v5351 = vmul.f32 %v5255, %v5350
    %v5352 = vrcp.pop %v5294
    %v5353 = vmul.f32 %v5256, %v5352
    %v5354 = vrcp.pop %v5295
    %v5355 = vmul.f32 %v5257, %v5354
    %v5356 = vrcp.pop %v5296
    %v5357 = vmul.f32 %v5258, %v5356
    %v5358 = vrcp.pop %v5297
    %v5359 = vmul.f32 %v5259, %v5358
    %v5360 = vrcp.pop %v5298
    %v5361 = vmul.f32 %v5260, %v5360
    %v5362 = vrcp.pop %v5299
    %v5363 = vmul.f32 %v5261, %v5362
    %v5364 = vrcp.pop %v5300
    %v5365 = vmul.f32 %v5262, %v5364
    %v5366 = vrcp.pop %v5301
    %v5367 = vmul.f32 %v5263, %v5366
    %v5368 = vrcp.pop %v5302
    %v5369 = vmul.f32 %v5264, %v5368
    %v5370 = vrcp.pop %v5303
    %v5371 = vmul.f32 %v5265, %v5370
    %v5372 = vrcp.pop %v5304
    %v5373 = vmul.f32 %v5266, %v5372
    %v5374 = vrcp.pop %v5305
    %v5375 = vmul.f32 %v5267, %v5374
    %v5376 = vrcp.pop %v5306
    %v5377 = vmul.f32 %v5268, %v5376
    %v5378 = vrcp.pop %v5307
    %v5379 = vmul.f32 %v5269, %v5378
    %v5380 = vrcp.pop %v5308
    %v5381 = vmul.f32 %v5270, %v5380
    %v5382 = vrcp.pop %v5309
    %v5383 = vmul.f32 %v5271, %v5382
    %v5384 = vrcp.pop %v5310
    %v5385 = vmul.f32 %v5272, %v5384
    %v5386 = vrcp.pop %v5311
    %v5387 = vmul.f32 %v5273, %v5386
    %vm5388 = vcmp.gt.f32.partialorder %v5046, 20.0
    %vm5389 = vcmp.gt.f32.partialorder %v5047, 20.0
    %vm5390 = vcmp.gt.f32.partialorder %v5048, 20.0
    %vm5391 = vcmp.gt.f32.partialorder %v5049, 20.0
    %vm5392 = vcmp.gt.f32.partialorder %v5050, 20.0
    %vm5393 = vcmp.gt.f32.partialorder %v5051, 20.0
    %vm5394 = vcmp.gt.f32.partialorder %v5052, 20.0
    %vm5395 = vcmp.gt.f32.partialorder %v5053, 20.0
    %vm5396 = vcmp.gt.f32.partialorder %v5054, 20.0
    %vm5397 = vcmp.gt.f32.partialorder %v5055, 20.0
    %vm5398 = vcmp.gt.f32.partialorder %v5056, 20.0
    %vm5399 = vcmp.gt.f32.partialorder %v5057, 20.0
    %vm5400 = vcmp.gt.f32.partialorder %v5058, 20.0
    %vm5401 = vcmp.gt.f32.partialorder %v5059, 20.0
    %vm5402 = vcmp.gt.f32.partialorder %v5060, 20.0
    %vm5403 = vcmp.gt.f32.partialorder %v5061, 20.0
    %vm5404 = vcmp.gt.f32.partialorder %v5062, 20.0
    %vm5405 = vcmp.gt.f32.partialorder %v5063, 20.0
    %vm5406 = vcmp.gt.f32.partialorder %v5064, 20.0
    %vm5407 = vcmp.gt.f32.partialorder %v5065, 20.0
    %vm5408 = vcmp.gt.f32.partialorder %v5066, 20.0
    %vm5409 = vcmp.gt.f32.partialorder %v5067, 20.0
    %vm5410 = vcmp.gt.f32.partialorder %v5068, 20.0
    %vm5411 = vcmp.gt.f32.partialorder %v5069, 20.0
    %vm5412 = vcmp.gt.f32.partialorder %v5070, 20.0
    %vm5413 = vcmp.gt.f32.partialorder %v5071, 20.0
    %vm5414 = vcmp.gt.f32.partialorder %v5072, 20.0
    %vm5415 = vcmp.gt.f32.partialorder %v5073, 20.0
    %vm5416 = vcmp.gt.f32.partialorder %v5074, 20.0
    %vm5417 = vcmp.gt.f32.partialorder %v5075, 20.0
    %vm5418 = vcmp.gt.f32.partialorder %v5076, 20.0
    %vm5419 = vcmp.gt.f32.partialorder %v5077, 20.0
    %vm5420 = vcmp.gt.f32.partialorder %v5078, 20.0
    %vm5421 = vcmp.gt.f32.partialorder %v5079, 20.0
    %vm5422 = vcmp.gt.f32.partialorder %v5080, 20.0
    %vm5423 = vcmp.gt.f32.partialorder %v5081, 20.0
    %vm5424 = vcmp.gt.f32.partialorder %v5082, 20.0
    %vm5425 = vcmp.gt.f32.partialorder %v5083, 20.0
    %v5426 = vmul.f32 %v5046, %v5313
    %v5427 = vmul.f32 %v5047, %v5315
    %v5428 = vmul.f32 %v5048, %v5317
    %v5429 = vmul.f32 %v5049, %v5319
    %v5430 = vmul.f32 %v5050, %v5321
    %v5431 = vmul.f32 %v5051, %v5323
    %v5432 = vmul.f32 %v5052, %v5325
    %v5433 = vmul.f32 %v5053, %v5327
    %v5434 = vmul.f32 %v5054, %v5329
    %v5435 = vmul.f32 %v5055, %v5331
    %v5436 = vmul.f32 %v5056, %v5333
    %v5437 = vmul.f32 %v5057, %v5335
    %v5438 = vmul.f32 %v5058, %v5337
    %v5439 = vmul.f32 %v5059, %v5339
    %v5440 = vmul.f32 %v5060, %v5341
    %v5441 = vmul.f32 %v5061, %v5343
    %v5442 = vmul.f32 %v5062, %v5345
    %v5443 = vmul.f32 %v5063, %v5347
    %v5444 = vmul.f32 %v5064, %v5349
    %v5445 = vmul.f32 %v5065, %v5351
    %v5446 = vmul.f32 %v5066, %v5353
    %v5447 = vmul.f32 %v5067, %v5355
    %v5448 = vmul.f32 %v5068, %v5357
    %v5449 = vmul.f32 %v5069, %v5359
    %v5450 = vmul.f32 %v5070, %v5361
    %v5451 = vmul.f32 %v5071, %v5363
    %v5452 = vmul.f32 %v5072, %v5365
    %v5453 = vmul.f32 %v5073, %v5367
    %v5454 = vmul.f32 %v5074, %v5369
    %v5455 = vmul.f32 %v5075, %v5371
    %v5456 = vmul.f32 %v5076, %v5373
    %v5457 = vmul.f32 %v5077, %v5375
    %v5458 = vmul.f32 %v5078, %v5377
    %v5459 = vmul.f32 %v5079, %v5379
    %v5460 = vmul.f32 %v5080, %v5381
    %v5461 = vmul.f32 %v5081, %v5383
    %v5462 = vmul.f32 %v5082, %v5385
    %v5463 = vmul.f32 %v5083, %v5387
    %v5464 = vsel %vm5388, %v5046, %v5426
    %v5465 = vsel %vm5389, %v5047, %v5427
    %v5466 = vsel %vm5390, %v5048, %v5428
    %v5467 = vsel %vm5391, %v5049, %v5429
    %v5468 = vsel %vm5392, %v5050, %v5430
    %v5469 = vsel %vm5393, %v5051, %v5431
    %v5470 = vsel %vm5394, %v5052, %v5432
    %v5471 = vsel %vm5395, %v5053, %v5433
    %v5472 = vsel %vm5396, %v5054, %v5434
    %v5473 = vsel %vm5397, %v5055, %v5435
    %v5474 = vsel %vm5398, %v5056, %v5436
    %v5475 = vsel %vm5399, %v5057, %v5437
    %v5476 = vsel %vm5400, %v5058, %v5438
    %v5477 = vsel %vm5401, %v5059, %v5439
    %v5478 = vsel %vm5402, %v5060, %v5440
    %v5479 = vsel %vm5403, %v5061, %v5441
    %v5480 = vsel %vm5404, %v5062, %v5442
    %v5481 = vsel %vm5405, %v5063, %v5443
    %v5482 = vsel %vm5406, %v5064, %v5444
    %v5483 = vsel %vm5407, %v5065, %v5445
    %v5484 = vsel %vm5408, %v5066, %v5446
    %v5485 = vsel %vm5409, %v5067, %v5447
    %v5486 = vsel %vm5410, %v5068, %v5448
    %v5487 = vsel %vm5411, %v5069, %v5449
    %v5488 = vsel %vm5412, %v5070, %v5450
    %v5489 = vsel %vm5413, %v5071, %v5451
    %v5490 = vsel %vm5414, %v5072, %v5452
    %v5491 = vsel %vm5415, %v5073, %v5453
    %v5492 = vsel %vm5416, %v5074, %v5454
    %v5493 = vsel %vm5417, %v5075, %v5455
    %v5494 = vsel %vm5418, %v5076, %v5456
    %v5495 = vsel %vm5419, %v5077, %v5457
    %v5496 = vsel %vm5420, %v5078, %v5458
    %v5497 = vsel %vm5421, %v5079, %v5459
    %v5498 = vsel %vm5422, %v5080, %v5460
    %v5499 = vsel %vm5423, %v5081, %v5461
    %v5500 = vsel %vm5424, %v5082, %v5462
    %v5501 = vsel %vm5425, %v5083, %v5463
    %v5502 = vld [vmem:[%s7] sm:$0xff]
    %v5504 = vsel %vm2263, %v5502, 0
    %v5507 = vsel %vm2263, %v5464, 0
    %v5510 = vsel %vm2263, %v5465, 0
    %v5513 = vsel %vm2263, %v5466, 0
    %v5516 = vsel %vm2263, %v5467, 0
    %v5519 = vsel %vm2263, %v5468, 0
    %v5522 = vsel %vm2263, %v5469, 0
    %v5525 = vsel %vm2263, %v5470, 0
    %v5528 = vsel %vm2263, %v5471, 0
    %v5531 = vsel %vm2263, %v5472, 0
    %v5534 = vsel %vm2263, %v5473, 0
    %v5537 = vsel %vm2263, %v5474, 0
    %v5540 = vsel %vm2263, %v5475, 0
    %v5543 = vsel %vm2263, %v5476, 0
    %v5546 = vsel %vm2263, %v5477, 0
    %v5549 = vsel %vm2263, %v5478, 0
    %v5552 = vsel %vm2263, %v5479, 0
    %v5555 = vsel %vm2263, %v5480, 0
    %v5558 = vsel %vm2263, %v5481, 0
    %v5561 = vsel %vm2263, %v5482, 0
    %v5564 = vsel %vm2263, %v5483, 0
    %v5567 = vsel %vm2263, %v5484, 0
    %v5570 = vsel %vm2263, %v5485, 0
    %v5573 = vsel %vm2263, %v5486, 0
    %v5576 = vsel %vm2263, %v5487, 0
    %v5579 = vsel %vm2263, %v5488, 0
    %v5582 = vsel %vm2263, %v5489, 0
    %v5585 = vsel %vm2263, %v5490, 0
    %v5588 = vsel %vm2263, %v5491, 0
    %v5591 = vsel %vm2263, %v5492, 0
    %v5594 = vsel %vm2263, %v5493, 0
    %v5597 = vsel %vm2263, %v5494, 0
    %v5600 = vsel %vm2263, %v5495, 0
    %v5603 = vsel %vm2263, %v5496, 0
    %v5606 = vsel %vm2263, %v5497, 0
    %v5609 = vsel %vm2263, %v5498, 0
    %v5612 = vsel %vm2263, %v5499, 0
    %v5615 = vsel %vm2263, %v5500, 0
    %v5618 = vsel %vm2263, %v5501, 0
    %5620 = vmatprep.subr.mxu0 0.0
    %v5621 = vand.u32 %v5552, 4294901760
    %5622 = vmatpush1.xpose.msra.mxu0 %v5621
    %5623 = vmatprep.subr.mxu0 0.0
    %v5624 = vand.u32 %v5549, 4294901760
    %5625 = vmatpush1.xpose.msra.mxu0 %v5624
    %5626 = vmatprep.subr.mxu0 0.0
    %v5627 = vand.u32 %v5546, 4294901760
    %5628 = vmatpush1.xpose.msra.mxu0 %v5627
    %5629 = vmatprep.subr.mxu0 0.0
    %v5630 = vand.u32 %v5543, 4294901760
    %5631 = vmatpush1.xpose.msra.mxu0 %v5630
    %5632 = vmatprep.subr.mxu0 0.0
    %v5633 = vand.u32 %v5540, 4294901760
    %5634 = vmatpush1.xpose.msra.mxu0 %v5633
    %5635 = vmatprep.subr.mxu0 0.0
    %v5636 = vand.u32 %v5537, 4294901760
    %5637 = vmatpush1.xpose.msra.mxu0 %v5636
    %5638 = vmatprep.subr.mxu0 0.0
    %v5639 = vand.u32 %v5534, 4294901760
    %5640 = vmatpush1.xpose.msra.mxu0 %v5639
    %5641 = vmatprep.subr.mxu0 0.0
    %v5642 = vand.u32 %v5531, 4294901760
    %5643 = vmatpush1.xpose.msra.mxu0 %v5642
    %5644 = vmatprep.subr.mxu0 0.0
    %v5645 = vand.u32 %v5528, 4294901760
    %5646 = vmatpush1.xpose.msra.mxu0 %v5645
    %5647 = vmatprep.subr.mxu0 0.0
    %v5648 = vand.u32 %v5525, 4294901760
    %5649 = vmatpush1.xpose.msra.mxu0 %v5648
    %5650 = vmatprep.subr.mxu0 0.0
    %v5651 = vand.u32 %v5522, 4294901760
    %5652 = vmatpush1.xpose.msra.mxu0 %v5651
    %5653 = vmatprep.subr.mxu0 0.0
    %v5654 = vand.u32 %v5519, 4294901760
    %5655 = vmatpush1.xpose.msra.mxu0 %v5654
    %5656 = vmatprep.subr.mxu0 0.0
    %v5657 = vand.u32 %v5516, 4294901760
    %5658 = vmatpush1.xpose.msra.mxu0 %v5657
    %5659 = vmatprep.subr.mxu0 0.0
    %v5660 = vand.u32 %v5513, 4294901760
    %5661 = vmatpush1.xpose.msra.mxu0 %v5660
    %5662 = vmatprep.subr.mxu0 0.0
    %v5663 = vand.u32 %v5510, 4294901760
    %5664 = vmatpush1.xpose.msra.mxu0 %v5663
    %5665 = vmatprep.subr.mxu0 0.0
    %v5666 = vand.u32 %v5507, 4294901760
    %5667 = vmatpush1.xpose.msra.mxu0 %v5666
    %5668 = vmatprep.subr.mxu0 0.0
    %v5669 = vand.u32 %v5600, 4294901760
    %5670 = vmatpush2.xpose.msra.mxu0 %v5669
    %5671 = vmatprep.subr.mxu0 0.0
    %v5672 = vand.u32 %v5597, 4294901760
    %5673 = vmatpush2.xpose.msra.mxu0 %v5672
    %5674 = vmatprep.subr.mxu0 0.0
    %v5675 = vand.u32 %v5594, 4294901760
    %5676 = vmatpush2.xpose.msra.mxu0 %v5675
    %5677 = vmatprep.subr.mxu0 0.0
    %v5678 = vand.u32 %v5591, 4294901760
    %5679 = vmatpush2.xpose.msra.mxu0 %v5678
    %5680 = vmatprep.subr.mxu0 0.0
    %v5681 = vand.u32 %v5588, 4294901760
    %5682 = vmatpush2.xpose.msra.mxu0 %v5681
    %5683 = vmatprep.subr.mxu0 0.0
    %v5684 = vand.u32 %v5585, 4294901760
    %5685 = vmatpush2.xpose.msra.mxu0 %v5684
    %5686 = vmatprep.subr.mxu0 0.0
    %v5687 = vand.u32 %v5582, 4294901760
    %5688 = vmatpush2.xpose.msra.mxu0 %v5687
    %5689 = vmatprep.subr.mxu0 0.0
    %v5690 = vand.u32 %v5579, 4294901760
    %5691 = vmatpush2.xpose.msra.mxu0 %v5690
    %5692 = vmatprep.subr.mxu0 0.0
    %v5693 = vand.u32 %v5576, 4294901760
    %5694 = vmatpush2.xpose.msra.mxu0 %v5693
    %5695 = vmatprep.subr.mxu0 0.0
    %v5696 = vand.u32 %v5573, 4294901760
    %5697 = vmatpush2.xpose.msra.mxu0 %v5696
    %5698 = vmatprep.subr.mxu0 0.0
    %v5699 = vand.u32 %v5570, 4294901760
    %5700 = vmatpush2.xpose.msra.mxu0 %v5699
    %5701 = vmatprep.subr.mxu0 0.0
    %v5702 = vand.u32 %v5567, 4294901760
    %5703 = vmatpush2.xpose.msra.mxu0 %v5702
    %5704 = vmatprep.subr.mxu0 0.0
    %v5705 = vand.u32 %v5564, 4294901760
    %5706 = vmatpush2.xpose.msra.mxu0 %v5705
    %5707 = vmatprep.subr.mxu0 0.0
    %v5708 = vand.u32 %v5561, 4294901760
    %5709 = vmatpush2.xpose.msra.mxu0 %v5708
    %5710 = vmatprep.subr.mxu0 0.0
    %v5711 = vand.u32 %v5558, 4294901760
    %5712 = vmatpush2.xpose.msra.mxu0 %v5711
    %5713 = vmatprep.subr.mxu0 0.0
    %v5714 = vand.u32 %v5555, 4294901760
    %5715 = vmatpush2.xpose.msra.mxu0 %v5714
    %5716 = vmatprep.mubr.f32.mxu0 0.0
    %v5717 = vand.u32 %v5504, 4294901760
    %v5718 = vsub.f32 %v5504, %v5717
    %v5719 = vand.u32 %v5718, 4294901760
    %v5720 = vsub.f32 %v5718, %v5719
    %v5721 = vand.u32 %v5720, 4294901760
    %5722 = vmatmul.mubr.f32.gmra.mxu0 %v5721
    %v5723 = vpop.f32.mrf.mxu0
    %v5724 = vadd.f32 0.0, %v5723
    %v5725 = vpop.f32.mrf.mxu0
    %v5726 = vadd.f32 0.0, %v5725
    %5727 = vdwg.mxu0
    %5728 = vmatprep.subr.mxu0 0.0
    %v5729 = vand.u32 %v5552, 4294901760
    %v5730 = vsub.f32 %v5552, %v5729
    %v5731 = vand.u32 %v5730, 4294901760
    %v5732 = vsub.f32 %v5730, %v5731
    %v5733 = vand.u32 %v5732, 4294901760
    %5734 = vmatpush1.xpose.msra.mxu0 %v5733
    %5735 = vmatprep.subr.mxu0 0.0
    %v5736 = vand.u32 %v5549, 4294901760
    %v5737 = vsub.f32 %v5549, %v5736
    %v5738 = vand.u32 %v5737, 4294901760
    %v5739 = vsub.f32 %v5737, %v5738
    %v5740 = vand.u32 %v5739, 4294901760
    %5741 = vmatpush1.xpose.msra.mxu0 %v5740
    %5742 = vmatprep.subr.mxu0 0.0
    %v5743 = vand.u32 %v5546, 4294901760
    %v5744 = vsub.f32 %v5546, %v5743
    %v5745 = vand.u32 %v5744, 4294901760
    %v5746 = vsub.f32 %v5744, %v5745
    %v5747 = vand.u32 %v5746, 4294901760
    %5748 = vmatpush1.xpose.msra.mxu0 %v5747
    %5749 = vmatprep.subr.mxu0 0.0
    %v5750 = vand.u32 %v5543, 4294901760
    %v5751 = vsub.f32 %v5543, %v5750
    %v5752 = vand.u32 %v5751, 4294901760
    %v5753 = vsub.f32 %v5751, %v5752
    %v5754 = vand.u32 %v5753, 4294901760
    %5755 = vmatpush1.xpose.msra.mxu0 %v5754
    %5756 = vmatprep.subr.mxu0 0.0
    %v5757 = vand.u32 %v5540, 4294901760
    %v5758 = vsub.f32 %v5540, %v5757
    %v5759 = vand.u32 %v5758, 4294901760
    %v5760 = vsub.f32 %v5758, %v5759
    %v5761 = vand.u32 %v5760, 4294901760
    %5762 = vmatpush1.xpose.msra.mxu0 %v5761
    %5763 = vmatprep.subr.mxu0 0.0
    %v5764 = vand.u32 %v5537, 4294901760
    %v5765 = vsub.f32 %v5537, %v5764
    %v5766 = vand.u32 %v5765, 4294901760
    %v5767 = vsub.f32 %v5765, %v5766
    %v5768 = vand.u32 %v5767, 4294901760
    %5769 = vmatpush1.xpose.msra.mxu0 %v5768
    %5770 = vmatprep.subr.mxu0 0.0
    %v5771 = vand.u32 %v5534, 4294901760
    %v5772 = vsub.f32 %v5534, %v5771
    %v5773 = vand.u32 %v5772, 4294901760
    %v5774 = vsub.f32 %v5772, %v5773
    %v5775 = vand.u32 %v5774, 4294901760
    %5776 = vmatpush1.xpose.msra.mxu0 %v5775
    %5777 = vmatprep.subr.mxu0 0.0
    %v5778 = vand.u32 %v5531, 4294901760
    %v5779 = vsub.f32 %v5531, %v5778
    %v5780 = vand.u32 %v5779, 4294901760
    %v5781 = vsub.f32 %v5779, %v5780
    %v5782 = vand.u32 %v5781, 4294901760
    %5783 = vmatpush1.xpose.msra.mxu0 %v5782
    %5784 = vmatprep.subr.mxu0 0.0
    %v5785 = vand.u32 %v5528, 4294901760
    %v5786 = vsub.f32 %v5528, %v5785
    %v5787 = vand.u32 %v5786, 4294901760
    %v5788 = vsub.f32 %v5786, %v5787
    %v5789 = vand.u32 %v5788, 4294901760
    %5790 = vmatpush1.xpose.msra.mxu0 %v5789
    %5791 = vmatprep.subr.mxu0 0.0
    %v5792 = vand.u32 %v5525, 4294901760
    %v5793 = vsub.f32 %v5525, %v5792
    %v5794 = vand.u32 %v5793, 4294901760
    %v5795 = vsub.f32 %v5793, %v5794
    %v5796 = vand.u32 %v5795, 4294901760
    %5797 = vmatpush1.xpose.msra.mxu0 %v5796
    %5798 = vmatprep.subr.mxu0 0.0
    %v5799 = vand.u32 %v5522, 4294901760
    %v5800 = vsub.f32 %v5522, %v5799
    %v5801 = vand.u32 %v5800, 4294901760
    %v5802 = vsub.f32 %v5800, %v5801
    %v5803 = vand.u32 %v5802, 4294901760
    %5804 = vmatpush1.xpose.msra.mxu0 %v5803
    %5805 = vmatprep.subr.mxu0 0.0
    %v5806 = vand.u32 %v5519, 4294901760
    %v5807 = vsub.f32 %v5519, %v5806
    %v5808 = vand.u32 %v5807, 4294901760
    %v5809 = vsub.f32 %v5807, %v5808
    %v5810 = vand.u32 %v5809, 4294901760
    %5811 = vmatpush1.xpose.msra.mxu0 %v5810
    %5812 = vmatprep.subr.mxu0 0.0
    %v5813 = vand.u32 %v5516, 4294901760
    %v5814 = vsub.f32 %v5516, %v5813
    %v5815 = vand.u32 %v5814, 4294901760
    %v5816 = vsub.f32 %v5814, %v5815
    %v5817 = vand.u32 %v5816, 4294901760
    %5818 = vmatpush1.xpose.msra.mxu0 %v5817
    %5819 = vmatprep.subr.mxu0 0.0
    %v5820 = vand.u32 %v5513, 4294901760
    %v5821 = vsub.f32 %v5513, %v5820
    %v5822 = vand.u32 %v5821, 4294901760
    %v5823 = vsub.f32 %v5821, %v5822
    %v5824 = vand.u32 %v5823, 4294901760
    %5825 = vmatpush1.xpose.msra.mxu0 %v5824
    %5826 = vmatprep.subr.mxu0 0.0
    %v5827 = vand.u32 %v5510, 4294901760
    %v5828 = vsub.f32 %v5510, %v5827
    %v5829 = vand.u32 %v5828, 4294901760
    %v5830 = vsub.f32 %v5828, %v5829
    %v5831 = vand.u32 %v5830, 4294901760
    %5832 = vmatpush1.xpose.msra.mxu0 %v5831
    %5833 = vmatprep.subr.mxu0 0.0
    %v5834 = vand.u32 %v5507, 4294901760
    %v5835 = vsub.f32 %v5507, %v5834
    %v5836 = vand.u32 %v5835, 4294901760
    %v5837 = vsub.f32 %v5835, %v5836
    %v5838 = vand.u32 %v5837, 4294901760
    %5839 = vmatpush1.xpose.msra.mxu0 %v5838
    %5840 = vmatprep.subr.mxu0 0.0
    %v5841 = vand.u32 %v5600, 4294901760
    %v5842 = vsub.f32 %v5600, %v5841
    %v5843 = vand.u32 %v5842, 4294901760
    %v5844 = vsub.f32 %v5842, %v5843
    %v5845 = vand.u32 %v5844, 4294901760
    %5846 = vmatpush2.xpose.msra.mxu0 %v5845
    %5847 = vmatprep.subr.mxu0 0.0
    %v5848 = vand.u32 %v5597, 4294901760
    %v5849 = vsub.f32 %v5597, %v5848
    %v5850 = vand.u32 %v5849, 4294901760
    %v5851 = vsub.f32 %v5849, %v5850
    %v5852 = vand.u32 %v5851, 4294901760
    %5853 = vmatpush2.xpose.msra.mxu0 %v5852
    %5854 = vmatprep.subr.mxu0 0.0
    %v5855 = vand.u32 %v5594, 4294901760
    %v5856 = vsub.f32 %v5594, %v5855
    %v5857 = vand.u32 %v5856, 4294901760
    %v5858 = vsub.f32 %v5856, %v5857
    %v5859 = vand.u32 %v5858, 4294901760
    %5860 = vmatpush2.xpose.msra.mxu0 %v5859
    %5861 = vmatprep.subr.mxu0 0.0
    %v5862 = vand.u32 %v5591, 4294901760
    %v5863 = vsub.f32 %v5591, %v5862
    %v5864 = vand.u32 %v5863, 4294901760
    %v5865 = vsub.f32 %v5863, %v5864
    %v5866 = vand.u32 %v5865, 4294901760
    %5867 = vmatpush2.xpose.msra.mxu0 %v5866
    %5868 = vmatprep.subr.mxu0 0.0
    %v5869 = vand.u32 %v5588, 4294901760
    %v5870 = vsub.f32 %v5588, %v5869
    %v5871 = vand.u32 %v5870, 4294901760
    %v5872 = vsub.f32 %v5870, %v5871
    %v5873 = vand.u32 %v5872, 4294901760
    %5874 = vmatpush2.xpose.msra.mxu0 %v5873
    %5875 = vmatprep.subr.mxu0 0.0
    %v5876 = vand.u32 %v5585, 4294901760
    %v5877 = vsub.f32 %v5585, %v5876
    %v5878 = vand.u32 %v5877, 4294901760
    %v5879 = vsub.f32 %v5877, %v5878
    %v5880 = vand.u32 %v5879, 4294901760
    %5881 = vmatpush2.xpose.msra.mxu0 %v5880
    %5882 = vmatprep.subr.mxu0 0.0
    %v5883 = vand.u32 %v5582, 4294901760
    %v5884 = vsub.f32 %v5582, %v5883
    %v5885 = vand.u32 %v5884, 4294901760
    %v5886 = vsub.f32 %v5884, %v5885
    %v5887 = vand.u32 %v5886, 4294901760
    %5888 = vmatpush2.xpose.msra.mxu0 %v5887
    %5889 = vmatprep.subr.mxu0 0.0
    %v5890 = vand.u32 %v5579, 4294901760
    %v5891 = vsub.f32 %v5579, %v5890
    %v5892 = vand.u32 %v5891, 4294901760
    %v5893 = vsub.f32 %v5891, %v5892
    %v5894 = vand.u32 %v5893, 4294901760
    %5895 = vmatpush2.xpose.msra.mxu0 %v5894
    %5896 = vmatprep.subr.mxu0 0.0
    %v5897 = vand.u32 %v5576, 4294901760
    %v5898 = vsub.f32 %v5576, %v5897
    %v5899 = vand.u32 %v5898, 4294901760
    %v5900 = vsub.f32 %v5898, %v5899
    %v5901 = vand.u32 %v5900, 4294901760
    %5902 = vmatpush2.xpose.msra.mxu0 %v5901
    %5903 = vmatprep.subr.mxu0 0.0
    %v5904 = vand.u32 %v5573, 4294901760
    %v5905 = vsub.f32 %v5573, %v5904
    %v5906 = vand.u32 %v5905, 4294901760
    %v5907 = vsub.f32 %v5905, %v5906
    %v5908 = vand.u32 %v5907, 4294901760
    %5909 = vmatpush2.xpose.msra.mxu0 %v5908
    %5910 = vmatprep.subr.mxu0 0.0
    %v5911 = vand.u32 %v5570, 4294901760
    %v5912 = vsub.f32 %v5570, %v5911
    %v5913 = vand.u32 %v5912, 4294901760
    %v5914 = vsub.f32 %v5912, %v5913
    %v5915 = vand.u32 %v5914, 4294901760
    %5916 = vmatpush2.xpose.msra.mxu0 %v5915
    %5917 = vmatprep.subr.mxu0 0.0
    %v5918 = vand.u32 %v5567, 4294901760
    %v5919 = vsub.f32 %v5567, %v5918
    %v5920 = vand.u32 %v5919, 4294901760
    %v5921 = vsub.f32 %v5919, %v5920
    %v5922 = vand.u32 %v5921, 4294901760
    %5923 = vmatpush2.xpose.msra.mxu0 %v5922
    %5924 = vmatprep.subr.mxu0 0.0
    %v5925 = vand.u32 %v5564, 4294901760
    %v5926 = vsub.f32 %v5564, %v5925
    %v5927 = vand.u32 %v5926, 4294901760
    %v5928 = vsub.f32 %v5926, %v5927
    %v5929 = vand.u32 %v5928, 4294901760
    %5930 = vmatpush2.xpose.msra.mxu0 %v5929
    %5931 = vmatprep.subr.mxu0 0.0
    %v5932 = vand.u32 %v5561, 4294901760
    %v5933 = vsub.f32 %v5561, %v5932
    %v5934 = vand.u32 %v5933, 4294901760
    %v5935 = vsub.f32 %v5933, %v5934
    %v5936 = vand.u32 %v5935, 4294901760
    %5937 = vmatpush2.xpose.msra.mxu0 %v5936
    %5938 = vmatprep.subr.mxu0 0.0
    %v5939 = vand.u32 %v5558, 4294901760
    %v5940 = vsub.f32 %v5558, %v5939
    %v5941 = vand.u32 %v5940, 4294901760
    %v5942 = vsub.f32 %v5940, %v5941
    %v5943 = vand.u32 %v5942, 4294901760
    %5944 = vmatpush2.xpose.msra.mxu0 %v5943
    %5945 = vmatprep.subr.mxu0 0.0
    %v5946 = vand.u32 %v5555, 4294901760
    %v5947 = vsub.f32 %v5555, %v5946
    %v5948 = vand.u32 %v5947, 4294901760
    %v5949 = vsub.f32 %v5947, %v5948
    %v5950 = vand.u32 %v5949, 4294901760
    %5951 = vmatpush2.xpose.msra.mxu0 %v5950
    %5952 = vmatprep.mubr.f32.mxu0 0.0
    %v5953 = vand.u32 %v5504, 4294901760
    %5954 = vmatmul.mubr.f32.gmra.mxu0 %v5953
    %v5955 = vpop.f32.mrf.mxu0
    %v5956 = vadd.f32 %v5724, %v5955
    %v5957 = vpop.f32.mrf.mxu0
    %v5958 = vadd.f32 %v5726, %v5957
    %5959 = vdwg.mxu0
    %5960 = vmatprep.subr.mxu0 0.0
    %v5961 = vand.u32 %v5552, 4294901760
    %v5962 = vsub.f32 %v5552, %v5961
    %5963 = vmatpush1.xpose.msra.mxu0 %v5962
    %5964 = vmatprep.subr.mxu0 0.0
    %v5965 = vand.u32 %v5549, 4294901760
    %v5966 = vsub.f32 %v5549, %v5965
    %5967 = vmatpush1.xpose.msra.mxu0 %v5966
    %5968 = vmatprep.subr.mxu0 0.0
    %v5969 = vand.u32 %v5546, 4294901760
    %v5970 = vsub.f32 %v5546, %v5969
    %5971 = vmatpush1.xpose.msra.mxu0 %v5970
    %5972 = vmatprep.subr.mxu0 0.0
    %v5973 = vand.u32 %v5543, 4294901760
    %v5974 = vsub.f32 %v5543, %v5973
    %5975 = vmatpush1.xpose.msra.mxu0 %v5974
    %5976 = vmatprep.subr.mxu0 0.0
    %v5977 = vand.u32 %v5540, 4294901760
    %v5978 = vsub.f32 %v5540, %v5977
    %5979 = vmatpush1.xpose.msra.mxu0 %v5978
    %5980 = vmatprep.subr.mxu0 0.0
    %v5981 = vand.u32 %v5537, 4294901760
    %v5982 = vsub.f32 %v5537, %v5981
    %5983 = vmatpush1.xpose.msra.mxu0 %v5982
    %5984 = vmatprep.subr.mxu0 0.0
    %v5985 = vand.u32 %v5534, 4294901760
    %v5986 = vsub.f32 %v5534, %v5985
    %5987 = vmatpush1.xpose.msra.mxu0 %v5986
    %5988 = vmatprep.subr.mxu0 0.0
    %v5989 = vand.u32 %v5531, 4294901760
    %v5990 = vsub.f32 %v5531, %v5989
    %5991 = vmatpush1.xpose.msra.mxu0 %v5990
    %5992 = vmatprep.subr.mxu0 0.0
    %v5993 = vand.u32 %v5528, 4294901760
    %v5994 = vsub.f32 %v5528, %v5993
    %5995 = vmatpush1.xpose.msra.mxu0 %v5994
    %5996 = vmatprep.subr.mxu0 0.0
    %v5997 = vand.u32 %v5525, 4294901760
    %v5998 = vsub.f32 %v5525, %v5997
    %5999 = vmatpush1.xpose.msra.mxu0 %v5998
    %6000 = vmatprep.subr.mxu0 0.0
    %v6001 = vand.u32 %v5522, 4294901760
    %v6002 = vsub.f32 %v5522, %v6001
    %6003 = vmatpush1.xpose.msra.mxu0 %v6002
    %6004 = vmatprep.subr.mxu0 0.0
    %v6005 = vand.u32 %v5519, 4294901760
    %v6006 = vsub.f32 %v5519, %v6005
    %6007 = vmatpush1.xpose.msra.mxu0 %v6006
    %6008 = vmatprep.subr.mxu0 0.0
    %v6009 = vand.u32 %v5516, 4294901760
    %v6010 = vsub.f32 %v5516, %v6009
    %6011 = vmatpush1.xpose.msra.mxu0 %v6010
    %6012 = vmatprep.subr.mxu0 0.0
    %v6013 = vand.u32 %v5513, 4294901760
    %v6014 = vsub.f32 %v5513, %v6013
    %6015 = vmatpush1.xpose.msra.mxu0 %v6014
    %6016 = vmatprep.subr.mxu0 0.0
    %v6017 = vand.u32 %v5510, 4294901760
    %v6018 = vsub.f32 %v5510, %v6017
    %6019 = vmatpush1.xpose.msra.mxu0 %v6018
    %6020 = vmatprep.subr.mxu0 0.0
    %v6021 = vand.u32 %v5507, 4294901760
    %v6022 = vsub.f32 %v5507, %v6021
    %6023 = vmatpush1.xpose.msra.mxu0 %v6022
    %6024 = vmatprep.subr.mxu0 0.0
    %v6025 = vand.u32 %v5600, 4294901760
    %v6026 = vsub.f32 %v5600, %v6025
    %6027 = vmatpush2.xpose.msra.mxu0 %v6026
    %6028 = vmatprep.subr.mxu0 0.0
    %v6029 = vand.u32 %v5597, 4294901760
    %v6030 = vsub.f32 %v5597, %v6029
    %6031 = vmatpush2.xpose.msra.mxu0 %v6030
    %6032 = vmatprep.subr.mxu0 0.0
    %v6033 = vand.u32 %v5594, 4294901760
    %v6034 = vsub.f32 %v5594, %v6033
    %6035 = vmatpush2.xpose.msra.mxu0 %v6034
    %6036 = vmatprep.subr.mxu0 0.0
    %v6037 = vand.u32 %v5591, 4294901760
    %v6038 = vsub.f32 %v5591, %v6037
    %6039 = vmatpush2.xpose.msra.mxu0 %v6038
    %6040 = vmatprep.subr.mxu0 0.0
    %v6041 = vand.u32 %v5588, 4294901760
    %v6042 = vsub.f32 %v5588, %v6041
    %6043 = vmatpush2.xpose.msra.mxu0 %v6042
    %6044 = vmatprep.subr.mxu0 0.0
    %v6045 = vand.u32 %v5585, 4294901760
    %v6046 = vsub.f32 %v5585, %v6045
    %6047 = vmatpush2.xpose.msra.mxu0 %v6046
    %6048 = vmatprep.subr.mxu0 0.0
    %v6049 = vand.u32 %v5582, 4294901760
    %v6050 = vsub.f32 %v5582, %v6049
    %6051 = vmatpush2.xpose.msra.mxu0 %v6050
    %6052 = vmatprep.subr.mxu0 0.0
    %v6053 = vand.u32 %v5579, 4294901760
    %v6054 = vsub.f32 %v5579, %v6053
    %6055 = vmatpush2.xpose.msra.mxu0 %v6054
    %6056 = vmatprep.subr.mxu0 0.0
    %v6057 = vand.u32 %v5576, 4294901760
    %v6058 = vsub.f32 %v5576, %v6057
    %6059 = vmatpush2.xpose.msra.mxu0 %v6058
    %6060 = vmatprep.subr.mxu0 0.0
    %v6061 = vand.u32 %v5573, 4294901760
    %v6062 = vsub.f32 %v5573, %v6061
    %6063 = vmatpush2.xpose.msra.mxu0 %v6062
    %6064 = vmatprep.subr.mxu0 0.0
    %v6065 = vand.u32 %v5570, 4294901760
    %v6066 = vsub.f32 %v5570, %v6065
    %6067 = vmatpush2.xpose.msra.mxu0 %v6066
    %6068 = vmatprep.subr.mxu0 0.0
    %v6069 = vand.u32 %v5567, 4294901760
    %v6070 = vsub.f32 %v5567, %v6069
    %6071 = vmatpush2.xpose.msra.mxu0 %v6070
    %6072 = vmatprep.subr.mxu0 0.0
    %v6073 = vand.u32 %v5564, 4294901760
    %v6074 = vsub.f32 %v5564, %v6073
    %6075 = vmatpush2.xpose.msra.mxu0 %v6074
    %6076 = vmatprep.subr.mxu0 0.0
    %v6077 = vand.u32 %v5561, 4294901760
    %v6078 = vsub.f32 %v5561, %v6077
    %6079 = vmatpush2.xpose.msra.mxu0 %v6078
    %6080 = vmatprep.subr.mxu0 0.0
    %v6081 = vand.u32 %v5558, 4294901760
    %v6082 = vsub.f32 %v5558, %v6081
    %6083 = vmatpush2.xpose.msra.mxu0 %v6082
    %6084 = vmatprep.subr.mxu0 0.0
    %v6085 = vand.u32 %v5555, 4294901760
    %v6086 = vsub.f32 %v5555, %v6085
    %6087 = vmatpush2.xpose.msra.mxu0 %v6086
    %6088 = vmatprep.mubr.f32.mxu0 0.0
    %v6089 = vand.u32 %v5504, 4294901760
    %v6090 = vsub.f32 %v5504, %v6089
    %6091 = vmatmul.mubr.f32.gmra.mxu0 %v6090
    %v6092 = vpop.f32.mrf.mxu0
    %v6093 = vadd.f32 %v5956, %v6092
    %v6094 = vpop.f32.mrf.mxu0
    %v6095 = vadd.f32 %v5958, %v6094
    %6096 = vdwg.mxu0
    %6097 = vmatprep.subr.mxu0 0.0
    %v6098 = vand.u32 %v5552, 4294901760
    %6099 = vmatpush1.xpose.msra.mxu0 %v6098
    %6100 = vmatprep.subr.mxu0 0.0
    %v6101 = vand.u32 %v5549, 4294901760
    %6102 = vmatpush1.xpose.msra.mxu0 %v6101
    %6103 = vmatprep.subr.mxu0 0.0
    %v6104 = vand.u32 %v5546, 4294901760
    %6105 = vmatpush1.xpose.msra.mxu0 %v6104
    %6106 = vmatprep.subr.mxu0 0.0
    %v6107 = vand.u32 %v5543, 4294901760
    %6108 = vmatpush1.xpose.msra.mxu0 %v6107
    %6109 = vmatprep.subr.mxu0 0.0
    %v6110 = vand.u32 %v5540, 4294901760
    %6111 = vmatpush1.xpose.msra.mxu0 %v6110
    %6112 = vmatprep.subr.mxu0 0.0
    %v6113 = vand.u32 %v5537, 4294901760
    %6114 = vmatpush1.xpose.msra.mxu0 %v6113
    %6115 = vmatprep.subr.mxu0 0.0
    %v6116 = vand.u32 %v5534, 4294901760
    %6117 = vmatpush1.xpose.msra.mxu0 %v6116
    %6118 = vmatprep.subr.mxu0 0.0
    %v6119 = vand.u32 %v5531, 4294901760
    %6120 = vmatpush1.xpose.msra.mxu0 %v6119
    %6121 = vmatprep.subr.mxu0 0.0
    %v6122 = vand.u32 %v5528, 4294901760
    %6123 = vmatpush1.xpose.msra.mxu0 %v6122
    %6124 = vmatprep.subr.mxu0 0.0
    %v6125 = vand.u32 %v5525, 4294901760
    %6126 = vmatpush1.xpose.msra.mxu0 %v6125
    %6127 = vmatprep.subr.mxu0 0.0
    %v6128 = vand.u32 %v5522, 4294901760
    %6129 = vmatpush1.xpose.msra.mxu0 %v6128
    %6130 = vmatprep.subr.mxu0 0.0
    %v6131 = vand.u32 %v5519, 4294901760
    %6132 = vmatpush1.xpose.msra.mxu0 %v6131
    %6133 = vmatprep.subr.mxu0 0.0
    %v6134 = vand.u32 %v5516, 4294901760
    %6135 = vmatpush1.xpose.msra.mxu0 %v6134
    %6136 = vmatprep.subr.mxu0 0.0
    %v6137 = vand.u32 %v5513, 4294901760
    %6138 = vmatpush1.xpose.msra.mxu0 %v6137
    %6139 = vmatprep.subr.mxu0 0.0
    %v6140 = vand.u32 %v5510, 4294901760
    %6141 = vmatpush1.xpose.msra.mxu0 %v6140
    %6142 = vmatprep.subr.mxu0 0.0
    %v6143 = vand.u32 %v5507, 4294901760
    %6144 = vmatpush1.xpose.msra.mxu0 %v6143
    %6145 = vmatprep.subr.mxu0 0.0
    %v6146 = vand.u32 %v5600, 4294901760
    %6147 = vmatpush2.xpose.msra.mxu0 %v6146
    %6148 = vmatprep.subr.mxu0 0.0
    %v6149 = vand.u32 %v5597, 4294901760
    %6150 = vmatpush2.xpose.msra.mxu0 %v6149
    %6151 = vmatprep.subr.mxu0 0.0
    %v6152 = vand.u32 %v5594, 4294901760
    %6153 = vmatpush2.xpose.msra.mxu0 %v6152
    %6154 = vmatprep.subr.mxu0 0.0
    %v6155 = vand.u32 %v5591, 4294901760
    %6156 = vmatpush2.xpose.msra.mxu0 %v6155
    %6157 = vmatprep.subr.mxu0 0.0
    %v6158 = vand.u32 %v5588, 4294901760
    %6159 = vmatpush2.xpose.msra.mxu0 %v6158
    %6160 = vmatprep.subr.mxu0 0.0
    %v6161 = vand.u32 %v5585, 4294901760
    %6162 = vmatpush2.xpose.msra.mxu0 %v6161
    %6163 = vmatprep.subr.mxu0 0.0
    %v6164 = vand.u32 %v5582, 4294901760
    %6165 = vmatpush2.xpose.msra.mxu0 %v6164
    %6166 = vmatprep.subr.mxu0 0.0
    %v6167 = vand.u32 %v5579, 4294901760
    %6168 = vmatpush2.xpose.msra.mxu0 %v6167
    %6169 = vmatprep.subr.mxu0 0.0
    %v6170 = vand.u32 %v5576, 4294901760
    %6171 = vmatpush2.xpose.msra.mxu0 %v6170
    %6172 = vmatprep.subr.mxu0 0.0
    %v6173 = vand.u32 %v5573, 4294901760
    %6174 = vmatpush2.xpose.msra.mxu0 %v6173
    %6175 = vmatprep.subr.mxu0 0.0
    %v6176 = vand.u32 %v5570, 4294901760
    %6177 = vmatpush2.xpose.msra.mxu0 %v6176
    %6178 = vmatprep.subr.mxu0 0.0
    %v6179 = vand.u32 %v5567, 4294901760
    %6180 = vmatpush2.xpose.msra.mxu0 %v6179
    %6181 = vmatprep.subr.mxu0 0.0
    %v6182 = vand.u32 %v5564, 4294901760
    %6183 = vmatpush2.xpose.msra.mxu0 %v6182
    %6184 = vmatprep.subr.mxu0 0.0
    %v6185 = vand.u32 %v5561, 4294901760
    %6186 = vmatpush2.xpose.msra.mxu0 %v6185
    %6187 = vmatprep.subr.mxu0 0.0
    %v6188 = vand.u32 %v5558, 4294901760
    %6189 = vmatpush2.xpose.msra.mxu0 %v6188
    %6190 = vmatprep.subr.mxu0 0.0
    %v6191 = vand.u32 %v5555, 4294901760
    %6192 = vmatpush2.xpose.msra.mxu0 %v6191
    %6193 = vmatprep.mubr.f32.mxu0 0.0
    %v6194 = vand.u32 %v5504, 4294901760
    %v6195 = vsub.f32 %v5504, %v6194
    %v6196 = vand.u32 %v6195, 4294901760
    %6197 = vmatmul.mubr.f32.gmra.mxu0 %v6196
    %v6198 = vpop.f32.mrf.mxu0
    %v6199 = vadd.f32 %v6093, %v6198
    %v6200 = vpop.f32.mrf.mxu0
    %v6201 = vadd.f32 %v6095, %v6200
    %6202 = vdwg.mxu0
    %6203 = vmatprep.subr.mxu0 0.0
    %v6204 = vand.u32 %v5552, 4294901760
    %v6205 = vsub.f32 %v5552, %v6204
    %v6206 = vand.u32 %v6205, 4294901760
    %6207 = vmatpush1.xpose.msra.mxu0 %v6206
    %6208 = vmatprep.subr.mxu0 0.0
    %v6209 = vand.u32 %v5549, 4294901760
    %v6210 = vsub.f32 %v5549, %v6209
    %v6211 = vand.u32 %v6210, 4294901760
    %6212 = vmatpush1.xpose.msra.mxu0 %v6211
    %6213 = vmatprep.subr.mxu0 0.0
    %v6214 = vand.u32 %v5546, 4294901760
    %v6215 = vsub.f32 %v5546, %v6214
    %v6216 = vand.u32 %v6215, 4294901760
    %6217 = vmatpush1.xpose.msra.mxu0 %v6216
    %6218 = vmatprep.subr.mxu0 0.0
    %v6219 = vand.u32 %v5543, 4294901760
    %v6220 = vsub.f32 %v5543, %v6219
    %v6221 = vand.u32 %v6220, 4294901760
    %6222 = vmatpush1.xpose.msra.mxu0 %v6221
    %6223 = vmatprep.subr.mxu0 0.0
    %v6224 = vand.u32 %v5540, 4294901760
    %v6225 = vsub.f32 %v5540, %v6224
    %v6226 = vand.u32 %v6225, 4294901760
    %6227 = vmatpush1.xpose.msra.mxu0 %v6226
    %6228 = vmatprep.subr.mxu0 0.0
    %v6229 = vand.u32 %v5537, 4294901760
    %v6230 = vsub.f32 %v5537, %v6229
    %v6231 = vand.u32 %v6230, 4294901760
    %6232 = vmatpush1.xpose.msra.mxu0 %v6231
    %6233 = vmatprep.subr.mxu0 0.0
    %v6234 = vand.u32 %v5534, 4294901760
    %v6235 = vsub.f32 %v5534, %v6234
    %v6236 = vand.u32 %v6235, 4294901760
    %6237 = vmatpush1.xpose.msra.mxu0 %v6236
    %6238 = vmatprep.subr.mxu0 0.0
    %v6239 = vand.u32 %v5531, 4294901760
    %v6240 = vsub.f32 %v5531, %v6239
    %v6241 = vand.u32 %v6240, 4294901760
    %6242 = vmatpush1.xpose.msra.mxu0 %v6241
    %6243 = vmatprep.subr.mxu0 0.0
    %v6244 = vand.u32 %v5528, 4294901760
    %v6245 = vsub.f32 %v5528, %v6244
    %v6246 = vand.u32 %v6245, 4294901760
    %6247 = vmatpush1.xpose.msra.mxu0 %v6246
    %6248 = vmatprep.subr.mxu0 0.0
    %v6249 = vand.u32 %v5525, 4294901760
    %v6250 = vsub.f32 %v5525, %v6249
    %v6251 = vand.u32 %v6250, 4294901760
    %6252 = vmatpush1.xpose.msra.mxu0 %v6251
    %6253 = vmatprep.subr.mxu0 0.0
    %v6254 = vand.u32 %v5522, 4294901760
    %v6255 = vsub.f32 %v5522, %v6254
    %v6256 = vand.u32 %v6255, 4294901760
    %6257 = vmatpush1.xpose.msra.mxu0 %v6256
    %6258 = vmatprep.subr.mxu0 0.0
    %v6259 = vand.u32 %v5519, 4294901760
    %v6260 = vsub.f32 %v5519, %v6259
    %v6261 = vand.u32 %v6260, 4294901760
    %6262 = vmatpush1.xpose.msra.mxu0 %v6261
    %6263 = vmatprep.subr.mxu0 0.0
    %v6264 = vand.u32 %v5516, 4294901760
    %v6265 = vsub.f32 %v5516, %v6264
    %v6266 = vand.u32 %v6265, 4294901760
    %6267 = vmatpush1.xpose.msra.mxu0 %v6266
    %6268 = vmatprep.subr.mxu0 0.0
    %v6269 = vand.u32 %v5513, 4294901760
    %v6270 = vsub.f32 %v5513, %v6269
    %v6271 = vand.u32 %v6270, 4294901760
    %6272 = vmatpush1.xpose.msra.mxu0 %v6271
    %6273 = vmatprep.subr.mxu0 0.0
    %v6274 = vand.u32 %v5510, 4294901760
    %v6275 = vsub.f32 %v5510, %v6274
    %v6276 = vand.u32 %v6275, 4294901760
    %6277 = vmatpush1.xpose.msra.mxu0 %v6276
    %6278 = vmatprep.subr.mxu0 0.0
    %v6279 = vand.u32 %v5507, 4294901760
    %v6280 = vsub.f32 %v5507, %v6279
    %v6281 = vand.u32 %v6280, 4294901760
    %6282 = vmatpush1.xpose.msra.mxu0 %v6281
    %6283 = vmatprep.subr.mxu0 0.0
    %v6284 = vand.u32 %v5600, 4294901760
    %v6285 = vsub.f32 %v5600, %v6284
    %v6286 = vand.u32 %v6285, 4294901760
    %6287 = vmatpush2.xpose.msra.mxu0 %v6286
    %6288 = vmatprep.subr.mxu0 0.0
    %v6289 = vand.u32 %v5597, 4294901760
    %v6290 = vsub.f32 %v5597, %v6289
    %v6291 = vand.u32 %v6290, 4294901760
    %6292 = vmatpush2.xpose.msra.mxu0 %v6291
    %6293 = vmatprep.subr.mxu0 0.0
    %v6294 = vand.u32 %v5594, 4294901760
    %v6295 = vsub.f32 %v5594, %v6294
    %v6296 = vand.u32 %v6295, 4294901760
    %6297 = vmatpush2.xpose.msra.mxu0 %v6296
    %6298 = vmatprep.subr.mxu0 0.0
    %v6299 = vand.u32 %v5591, 4294901760
    %v6300 = vsub.f32 %v5591, %v6299
    %v6301 = vand.u32 %v6300, 4294901760
    %6302 = vmatpush2.xpose.msra.mxu0 %v6301
    %6303 = vmatprep.subr.mxu0 0.0
    %v6304 = vand.u32 %v5588, 4294901760
    %v6305 = vsub.f32 %v5588, %v6304
    %v6306 = vand.u32 %v6305, 4294901760
    %6307 = vmatpush2.xpose.msra.mxu0 %v6306
    %6308 = vmatprep.subr.mxu0 0.0
    %v6309 = vand.u32 %v5585, 4294901760
    %v6310 = vsub.f32 %v5585, %v6309
    %v6311 = vand.u32 %v6310, 4294901760
    %6312 = vmatpush2.xpose.msra.mxu0 %v6311
    %6313 = vmatprep.subr.mxu0 0.0
    %v6314 = vand.u32 %v5582, 4294901760
    %v6315 = vsub.f32 %v5582, %v6314
    %v6316 = vand.u32 %v6315, 4294901760
    %6317 = vmatpush2.xpose.msra.mxu0 %v6316
    %6318 = vmatprep.subr.mxu0 0.0
    %v6319 = vand.u32 %v5579, 4294901760
    %v6320 = vsub.f32 %v5579, %v6319
    %v6321 = vand.u32 %v6320, 4294901760
    %6322 = vmatpush2.xpose.msra.mxu0 %v6321
    %6323 = vmatprep.subr.mxu0 0.0
    %v6324 = vand.u32 %v5576, 4294901760
    %v6325 = vsub.f32 %v5576, %v6324
    %v6326 = vand.u32 %v6325, 4294901760
    %6327 = vmatpush2.xpose.msra.mxu0 %v6326
    %6328 = vmatprep.subr.mxu0 0.0
    %v6329 = vand.u32 %v5573, 4294901760
    %v6330 = vsub.f32 %v5573, %v6329
    %v6331 = vand.u32 %v6330, 4294901760
    %6332 = vmatpush2.xpose.msra.mxu0 %v6331
    %6333 = vmatprep.subr.mxu0 0.0
    %v6334 = vand.u32 %v5570, 4294901760
    %v6335 = vsub.f32 %v5570, %v6334
    %v6336 = vand.u32 %v6335, 4294901760
    %6337 = vmatpush2.xpose.msra.mxu0 %v6336
    %6338 = vmatprep.subr.mxu0 0.0
    %v6339 = vand.u32 %v5567, 4294901760
    %v6340 = vsub.f32 %v5567, %v6339
    %v6341 = vand.u32 %v6340, 4294901760
    %6342 = vmatpush2.xpose.msra.mxu0 %v6341
    %6343 = vmatprep.subr.mxu0 0.0
    %v6344 = vand.u32 %v5564, 4294901760
    %v6345 = vsub.f32 %v5564, %v6344
    %v6346 = vand.u32 %v6345, 4294901760
    %6347 = vmatpush2.xpose.msra.mxu0 %v6346
    %6348 = vmatprep.subr.mxu0 0.0
    %v6349 = vand.u32 %v5561, 4294901760
    %v6350 = vsub.f32 %v5561, %v6349
    %v6351 = vand.u32 %v6350, 4294901760
    %6352 = vmatpush2.xpose.msra.mxu0 %v6351
    %6353 = vmatprep.subr.mxu0 0.0
    %v6354 = vand.u32 %v5558, 4294901760
    %v6355 = vsub.f32 %v5558, %v6354
    %v6356 = vand.u32 %v6355, 4294901760
    %6357 = vmatpush2.xpose.msra.mxu0 %v6356
    %6358 = vmatprep.subr.mxu0 0.0
    %v6359 = vand.u32 %v5555, 4294901760
    %v6360 = vsub.f32 %v5555, %v6359
    %v6361 = vand.u32 %v6360, 4294901760
    %6362 = vmatpush2.xpose.msra.mxu0 %v6361
    %6363 = vmatprep.mubr.f32.mxu0 0.0
    %v6364 = vand.u32 %v5504, 4294901760
    %6365 = vmatmul.mubr.f32.gmra.mxu0 %v6364
    %v6366 = vpop.f32.mrf.mxu0
    %v6367 = vadd.f32 %v6199, %v6366
    %v6368 = vpop.f32.mrf.mxu0
    %v6369 = vadd.f32 %v6201, %v6368
    %6370 = vdwg.mxu0
    %6371 = vmatprep.subr.mxu0 0.0
    %v6372 = vand.u32 %v5552, 4294901760
    %6373 = vmatpush1.xpose.msra.mxu0 %v6372
    %6374 = vmatprep.subr.mxu0 0.0
    %v6375 = vand.u32 %v5549, 4294901760
    %6376 = vmatpush1.xpose.msra.mxu0 %v6375
    %6377 = vmatprep.subr.mxu0 0.0
    %v6378 = vand.u32 %v5546, 4294901760
    %6379 = vmatpush1.xpose.msra.mxu0 %v6378
    %6380 = vmatprep.subr.mxu0 0.0
    %v6381 = vand.u32 %v5543, 4294901760
    %6382 = vmatpush1.xpose.msra.mxu0 %v6381
    %6383 = vmatprep.subr.mxu0 0.0
    %v6384 = vand.u32 %v5540, 4294901760
    %6385 = vmatpush1.xpose.msra.mxu0 %v6384
    %6386 = vmatprep.subr.mxu0 0.0
    %v6387 = vand.u32 %v5537, 4294901760
    %6388 = vmatpush1.xpose.msra.mxu0 %v6387
    %6389 = vmatprep.subr.mxu0 0.0
    %v6390 = vand.u32 %v5534, 4294901760
    %6391 = vmatpush1.xpose.msra.mxu0 %v6390
    %6392 = vmatprep.subr.mxu0 0.0
    %v6393 = vand.u32 %v5531, 4294901760
    %6394 = vmatpush1.xpose.msra.mxu0 %v6393
    %6395 = vmatprep.subr.mxu0 0.0
    %v6396 = vand.u32 %v5528, 4294901760
    %6397 = vmatpush1.xpose.msra.mxu0 %v6396
    %6398 = vmatprep.subr.mxu0 0.0
    %v6399 = vand.u32 %v5525, 4294901760
    %6400 = vmatpush1.xpose.msra.mxu0 %v6399
    %6401 = vmatprep.subr.mxu0 0.0
    %v6402 = vand.u32 %v5522, 4294901760
    %6403 = vmatpush1.xpose.msra.mxu0 %v6402
    %6404 = vmatprep.subr.mxu0 0.0
    %v6405 = vand.u32 %v5519, 4294901760
    %6406 = vmatpush1.xpose.msra.mxu0 %v6405
    %6407 = vmatprep.subr.mxu0 0.0
    %v6408 = vand.u32 %v5516, 4294901760
    %6409 = vmatpush1.xpose.msra.mxu0 %v6408
    %6410 = vmatprep.subr.mxu0 0.0
    %v6411 = vand.u32 %v5513, 4294901760
    %6412 = vmatpush1.xpose.msra.mxu0 %v6411
    %6413 = vmatprep.subr.mxu0 0.0
    %v6414 = vand.u32 %v5510, 4294901760
    %6415 = vmatpush1.xpose.msra.mxu0 %v6414
    %6416 = vmatprep.subr.mxu0 0.0
    %v6417 = vand.u32 %v5507, 4294901760
    %6418 = vmatpush1.xpose.msra.mxu0 %v6417
    %6419 = vmatprep.subr.mxu0 0.0
    %v6420 = vand.u32 %v5600, 4294901760
    %6421 = vmatpush2.xpose.msra.mxu0 %v6420
    %6422 = vmatprep.subr.mxu0 0.0
    %v6423 = vand.u32 %v5597, 4294901760
    %6424 = vmatpush2.xpose.msra.mxu0 %v6423
    %6425 = vmatprep.subr.mxu0 0.0
    %v6426 = vand.u32 %v5594, 4294901760
    %6427 = vmatpush2.xpose.msra.mxu0 %v6426
    %6428 = vmatprep.subr.mxu0 0.0
    %v6429 = vand.u32 %v5591, 4294901760
    %6430 = vmatpush2.xpose.msra.mxu0 %v6429
    %6431 = vmatprep.subr.mxu0 0.0
    %v6432 = vand.u32 %v5588, 4294901760
    %6433 = vmatpush2.xpose.msra.mxu0 %v6432
    %6434 = vmatprep.subr.mxu0 0.0
    %v6435 = vand.u32 %v5585, 4294901760
    %6436 = vmatpush2.xpose.msra.mxu0 %v6435
    %6437 = vmatprep.subr.mxu0 0.0
    %v6438 = vand.u32 %v5582, 4294901760
    %6439 = vmatpush2.xpose.msra.mxu0 %v6438
    %6440 = vmatprep.subr.mxu0 0.0
    %v6441 = vand.u32 %v5579, 4294901760
    %6442 = vmatpush2.xpose.msra.mxu0 %v6441
    %6443 = vmatprep.subr.mxu0 0.0
    %v6444 = vand.u32 %v5576, 4294901760
    %6445 = vmatpush2.xpose.msra.mxu0 %v6444
    %6446 = vmatprep.subr.mxu0 0.0
    %v6447 = vand.u32 %v5573, 4294901760
    %6448 = vmatpush2.xpose.msra.mxu0 %v6447
    %6449 = vmatprep.subr.mxu0 0.0
    %v6450 = vand.u32 %v5570, 4294901760
    %6451 = vmatpush2.xpose.msra.mxu0 %v6450
    %6452 = vmatprep.subr.mxu0 0.0
    %v6453 = vand.u32 %v5567, 4294901760
    %6454 = vmatpush2.xpose.msra.mxu0 %v6453
    %6455 = vmatprep.subr.mxu0 0.0
    %v6456 = vand.u32 %v5564, 4294901760
    %6457 = vmatpush2.xpose.msra.mxu0 %v6456
    %6458 = vmatprep.subr.mxu0 0.0
    %v6459 = vand.u32 %v5561, 4294901760
    %6460 = vmatpush2.xpose.msra.mxu0 %v6459
    %6461 = vmatprep.subr.mxu0 0.0
    %v6462 = vand.u32 %v5558, 4294901760
    %6463 = vmatpush2.xpose.msra.mxu0 %v6462
    %6464 = vmatprep.subr.mxu0 0.0
    %v6465 = vand.u32 %v5555, 4294901760
    %6466 = vmatpush2.xpose.msra.mxu0 %v6465
    %6467 = vmatprep.mubr.f32.mxu0 0.0
    %v6468 = vand.u32 %v5504, 4294901760
    %6469 = vmatmul.mubr.f32.gmra.mxu0 %v6468
    %v6470 = vpop.f32.mrf.mxu0
    %v6471 = vadd.f32 %v6367, %v6470
    %v6472 = vpop.f32.mrf.mxu0
    %v6473 = vadd.f32 %v6369, %v6472
    %6474 = vdwg.mxu0
    %6475 = vmatprep.subr.mxu0 0.0
    %6476 = vmatpush1.xpose.msra.mxu0 0.0
    %6477 = vmatprep.subr.mxu0 0.0
    %6478 = vmatpush1.xpose.msra.mxu0 0.0
    %6479 = vmatprep.subr.mxu0 0.0
    %6480 = vmatpush1.xpose.msra.mxu0 0.0
    %6481 = vmatprep.subr.mxu0 0.0
    %6482 = vmatpush1.xpose.msra.mxu0 0.0
    %6483 = vmatprep.subr.mxu0 0.0
    %6484 = vmatpush1.xpose.msra.mxu0 0.0
    %6485 = vmatprep.subr.mxu0 0.0
    %6486 = vmatpush1.xpose.msra.mxu0 0.0
    %6487 = vmatprep.subr.mxu0 0.0
    %6488 = vmatpush1.xpose.msra.mxu0 0.0
    %6489 = vmatprep.subr.mxu0 0.0
    %6490 = vmatpush1.xpose.msra.mxu0 0.0
    %6491 = vmatprep.subr.mxu0 0.0
    %6492 = vmatpush1.xpose.msra.mxu0 0.0
    %6493 = vmatprep.subr.mxu0 0.0
    %6494 = vmatpush1.xpose.msra.mxu0 0.0
    %6495 = vmatprep.subr.mxu0 0.0
    %v6496 = vand.u32 %v5618, 4294901760
    %6497 = vmatpush1.xpose.msra.mxu0 %v6496
    %6498 = vmatprep.subr.mxu0 0.0
    %v6499 = vand.u32 %v5615, 4294901760
    %6500 = vmatpush1.xpose.msra.mxu0 %v6499
    %6501 = vmatprep.subr.mxu0 0.0
    %v6502 = vand.u32 %v5612, 4294901760
    %6503 = vmatpush1.xpose.msra.mxu0 %v6502
    %6504 = vmatprep.subr.mxu0 0.0
    %v6505 = vand.u32 %v5609, 4294901760
    %6506 = vmatpush1.xpose.msra.mxu0 %v6505
    %6507 = vmatprep.subr.mxu0 0.0
    %v6508 = vand.u32 %v5606, 4294901760
    %6509 = vmatpush1.xpose.msra.mxu0 %v6508
    %6510 = vmatprep.subr.mxu0 0.0
    %v6511 = vand.u32 %v5603, 4294901760
    %6512 = vmatpush1.xpose.msra.mxu0 %v6511
    %6513 = vmatprep.subr.mxu0 0.0
    %6514 = vmatpush2.xpose.msra.mxu0 0.0
    %6515 = vmatprep.subr.mxu0 0.0
    %6516 = vmatpush2.xpose.msra.mxu0 0.0
    %6517 = vmatprep.subr.mxu0 0.0
    %6518 = vmatpush2.xpose.msra.mxu0 0.0
    %6519 = vmatprep.subr.mxu0 0.0
    %6520 = vmatpush2.xpose.msra.mxu0 0.0
    %6521 = vmatprep.subr.mxu0 0.0
    %6522 = vmatpush2.xpose.msra.mxu0 0.0
    %6523 = vmatprep.subr.mxu0 0.0
    %6524 = vmatpush2.xpose.msra.mxu0 0.0
    %6525 = vmatprep.subr.mxu0 0.0
    %6526 = vmatpush2.xpose.msra.mxu0 0.0
    %6527 = vmatprep.subr.mxu0 0.0
    %6528 = vmatpush2.xpose.msra.mxu0 0.0
    %6529 = vmatprep.subr.mxu0 0.0
    %6530 = vmatpush2.xpose.msra.mxu0 0.0
    %6531 = vmatprep.subr.mxu0 0.0
    %6532 = vmatpush2.xpose.msra.mxu0 0.0
    %6533 = vmatprep.subr.mxu0 0.0
    %6534 = vmatpush2.xpose.msra.mxu0 0.0
    %6535 = vmatprep.subr.mxu0 0.0
    %6536 = vmatpush2.xpose.msra.mxu0 0.0
    %6537 = vmatprep.subr.mxu0 0.0
    %6538 = vmatpush2.xpose.msra.mxu0 0.0
    %6539 = vmatprep.subr.mxu0 0.0
    %6540 = vmatpush2.xpose.msra.mxu0 0.0
    %6541 = vmatprep.subr.mxu0 0.0
    %6542 = vmatpush2.xpose.msra.mxu0 0.0
    %6543 = vmatprep.subr.mxu0 0.0
    %6544 = vmatpush2.xpose.msra.mxu0 0.0
    %6545 = vmatprep.mubr.f32.mxu0 0.0
    %v6546 = vand.u32 %v5504, 4294901760
    %v6547 = vsub.f32 %v5504, %v6546
    %v6548 = vand.u32 %v6547, 4294901760
    %v6549 = vsub.f32 %v6547, %v6548
    %v6550 = vand.u32 %v6549, 4294901760
    %6551 = vmatmul.mubr.f32.gmra.mxu0 %v6550
    %v6552 = vpop.f32.mrf.mxu0
    %v6553 = vadd.f32 0.0, %v6552
    %v6554 = vpop.f32.mrf.mxu0
    %6555 = vdwg.mxu0
    %6556 = vmatprep.subr.mxu0 0.0
    %6557 = vmatpush1.xpose.msra.mxu0 0.0
    %6558 = vmatprep.subr.mxu0 0.0
    %6559 = vmatpush1.xpose.msra.mxu0 0.0
    %6560 = vmatprep.subr.mxu0 0.0
    %6561 = vmatpush1.xpose.msra.mxu0 0.0
    %6562 = vmatprep.subr.mxu0 0.0
    %6563 = vmatpush1.xpose.msra.mxu0 0.0
    %6564 = vmatprep.subr.mxu0 0.0
    %6565 = vmatpush1.xpose.msra.mxu0 0.0
    %6566 = vmatprep.subr.mxu0 0.0
    %6567 = vmatpush1.xpose.msra.mxu0 0.0
    %6568 = vmatprep.subr.mxu0 0.0
    %6569 = vmatpush1.xpose.msra.mxu0 0.0
    %6570 = vmatprep.subr.mxu0 0.0
    %6571 = vmatpush1.xpose.msra.mxu0 0.0
    %6572 = vmatprep.subr.mxu0 0.0
    %6573 = vmatpush1.xpose.msra.mxu0 0.0
    %6574 = vmatprep.subr.mxu0 0.0
    %6575 = vmatpush1.xpose.msra.mxu0 0.0
    %6576 = vmatprep.subr.mxu0 0.0
    %v6577 = vand.u32 %v5618, 4294901760
    %v6578 = vsub.f32 %v5618, %v6577
    %v6579 = vand.u32 %v6578, 4294901760
    %v6580 = vsub.f32 %v6578, %v6579
    %v6581 = vand.u32 %v6580, 4294901760
    %6582 = vmatpush1.xpose.msra.mxu0 %v6581
    %6583 = vmatprep.subr.mxu0 0.0
    %v6584 = vand.u32 %v5615, 4294901760
    %v6585 = vsub.f32 %v5615, %v6584
    %v6586 = vand.u32 %v6585, 4294901760
    %v6587 = vsub.f32 %v6585, %v6586
    %v6588 = vand.u32 %v6587, 4294901760
    %6589 = vmatpush1.xpose.msra.mxu0 %v6588
    %6590 = vmatprep.subr.mxu0 0.0
    %v6591 = vand.u32 %v5612, 4294901760
    %v6592 = vsub.f32 %v5612, %v6591
    %v6593 = vand.u32 %v6592, 4294901760
    %v6594 = vsub.f32 %v6592, %v6593
    %v6595 = vand.u32 %v6594, 4294901760
    %6596 = vmatpush1.xpose.msra.mxu0 %v6595
    %6597 = vmatprep.subr.mxu0 0.0
    %v6598 = vand.u32 %v5609, 4294901760
    %v6599 = vsub.f32 %v5609, %v6598
    %v6600 = vand.u32 %v6599, 4294901760
    %v6601 = vsub.f32 %v6599, %v6600
    %v6602 = vand.u32 %v6601, 4294901760
    %6603 = vmatpush1.xpose.msra.mxu0 %v6602
    %6604 = vmatprep.subr.mxu0 0.0
    %v6605 = vand.u32 %v5606, 4294901760
    %v6606 = vsub.f32 %v5606, %v6605
    %v6607 = vand.u32 %v6606, 4294901760
    %v6608 = vsub.f32 %v6606, %v6607
    %v6609 = vand.u32 %v6608, 4294901760
    %6610 = vmatpush1.xpose.msra.mxu0 %v6609
    %6611 = vmatprep.subr.mxu0 0.0
    %v6612 = vand.u32 %v5603, 4294901760
    %v6613 = vsub.f32 %v5603, %v6612
    %v6614 = vand.u32 %v6613, 4294901760
    %v6615 = vsub.f32 %v6613, %v6614
    %v6616 = vand.u32 %v6615, 4294901760
    %6617 = vmatpush1.xpose.msra.mxu0 %v6616
    %6618 = vmatprep.subr.mxu0 0.0
    %6619 = vmatpush2.xpose.msra.mxu0 0.0
    %6620 = vmatprep.subr.mxu0 0.0
    %6621 = vmatpush2.xpose.msra.mxu0 0.0
    %6622 = vmatprep.subr.mxu0 0.0
    %6623 = vmatpush2.xpose.msra.mxu0 0.0
    %6624 = vmatprep.subr.mxu0 0.0
    %6625 = vmatpush2.xpose.msra.mxu0 0.0
    %6626 = vmatprep.subr.mxu0 0.0
    %6627 = vmatpush2.xpose.msra.mxu0 0.0
    %6628 = vmatprep.subr.mxu0 0.0
    %6629 = vmatpush2.xpose.msra.mxu0 0.0
    %6630 = vmatprep.subr.mxu0 0.0
    %6631 = vmatpush2.xpose.msra.mxu0 0.0
    %6632 = vmatprep.subr.mxu0 0.0
    %6633 = vmatpush2.xpose.msra.mxu0 0.0
    %6634 = vmatprep.subr.mxu0 0.0
    %6635 = vmatpush2.xpose.msra.mxu0 0.0
    %6636 = vmatprep.subr.mxu0 0.0
    %6637 = vmatpush2.xpose.msra.mxu0 0.0
    %6638 = vmatprep.subr.mxu0 0.0
    %6639 = vmatpush2.xpose.msra.mxu0 0.0
    %6640 = vmatprep.subr.mxu0 0.0
    %6641 = vmatpush2.xpose.msra.mxu0 0.0
    %6642 = vmatprep.subr.mxu0 0.0
    %6643 = vmatpush2.xpose.msra.mxu0 0.0
    %6644 = vmatprep.subr.mxu0 0.0
    %6645 = vmatpush2.xpose.msra.mxu0 0.0
    %6646 = vmatprep.subr.mxu0 0.0
    %6647 = vmatpush2.xpose.msra.mxu0 0.0
    %6648 = vmatprep.subr.mxu0 0.0
    %6649 = vmatpush2.xpose.msra.mxu0 0.0
    %6650 = vmatprep.mubr.f32.mxu0 0.0
    %v6651 = vand.u32 %v5504, 4294901760
    %6652 = vmatmul.mubr.f32.gmra.mxu0 %v6651
    %v6653 = vpop.f32.mrf.mxu0
    %v6654 = vadd.f32 %v6553, %v6653
    %v6655 = vpop.f32.mrf.mxu0
    %6656 = vdwg.mxu0
    %6657 = vmatprep.subr.mxu0 0.0
    %6658 = vmatpush1.xpose.msra.mxu0 0.0
    %6659 = vmatprep.subr.mxu0 0.0
    %6660 = vmatpush1.xpose.msra.mxu0 0.0
    %6661 = vmatprep.subr.mxu0 0.0
    %6662 = vmatpush1.xpose.msra.mxu0 0.0
    %6663 = vmatprep.subr.mxu0 0.0
    %6664 = vmatpush1.xpose.msra.mxu0 0.0
    %6665 = vmatprep.subr.mxu0 0.0
    %6666 = vmatpush1.xpose.msra.mxu0 0.0
    %6667 = vmatprep.subr.mxu0 0.0
    %6668 = vmatpush1.xpose.msra.mxu0 0.0
    %6669 = vmatprep.subr.mxu0 0.0
    %6670 = vmatpush1.xpose.msra.mxu0 0.0
    %6671 = vmatprep.subr.mxu0 0.0
    %6672 = vmatpush1.xpose.msra.mxu0 0.0
    %6673 = vmatprep.subr.mxu0 0.0
    %6674 = vmatpush1.xpose.msra.mxu0 0.0
    %6675 = vmatprep.subr.mxu0 0.0
    %6676 = vmatpush1.xpose.msra.mxu0 0.0
    %6677 = vmatprep.subr.mxu0 0.0
    %v6678 = vand.u32 %v5618, 4294901760
    %v6679 = vsub.f32 %v5618, %v6678
    %6680 = vmatpush1.xpose.msra.mxu0 %v6679
    %6681 = vmatprep.subr.mxu0 0.0
    %v6682 = vand.u32 %v5615, 4294901760
    %v6683 = vsub.f32 %v5615, %v6682
    %6684 = vmatpush1.xpose.msra.mxu0 %v6683
    %6685 = vmatprep.subr.mxu0 0.0
    %v6686 = vand.u32 %v5612, 4294901760
    %v6687 = vsub.f32 %v5612, %v6686
    %6688 = vmatpush1.xpose.msra.mxu0 %v6687
    %6689 = vmatprep.subr.mxu0 0.0
    %v6690 = vand.u32 %v5609, 4294901760
    %v6691 = vsub.f32 %v5609, %v6690
    %6692 = vmatpush1.xpose.msra.mxu0 %v6691
    %6693 = vmatprep.subr.mxu0 0.0
    %v6694 = vand.u32 %v5606, 4294901760
    %v6695 = vsub.f32 %v5606, %v6694
    %6696 = vmatpush1.xpose.msra.mxu0 %v6695
    %6697 = vmatprep.subr.mxu0 0.0
    %v6698 = vand.u32 %v5603, 4294901760
    %v6699 = vsub.f32 %v5603, %v6698
    %6700 = vmatpush1.xpose.msra.mxu0 %v6699
    %6701 = vmatprep.subr.mxu0 0.0
    %6702 = vmatpush2.xpose.msra.mxu0 0.0
    %6703 = vmatprep.subr.mxu0 0.0
    %6704 = vmatpush2.xpose.msra.mxu0 0.0
    %6705 = vmatprep.subr.mxu0 0.0
    %6706 = vmatpush2.xpose.msra.mxu0 0.0
    %6707 = vmatprep.subr.mxu0 0.0
    %6708 = vmatpush2.xpose.msra.mxu0 0.0
    %6709 = vmatprep.subr.mxu0 0.0
    %6710 = vmatpush2.xpose.msra.mxu0 0.0
    %6711 = vmatprep.subr.mxu0 0.0
    %6712 = vmatpush2.xpose.msra.mxu0 0.0
    %6713 = vmatprep.subr.mxu0 0.0
    %6714 = vmatpush2.xpose.msra.mxu0 0.0
    %6715 = vmatprep.subr.mxu0 0.0
    %6716 = vmatpush2.xpose.msra.mxu0 0.0
    %6717 = vmatprep.subr.mxu0 0.0
    %6718 = vmatpush2.xpose.msra.mxu0 0.0
    %6719 = vmatprep.subr.mxu0 0.0
    %6720 = vmatpush2.xpose.msra.mxu0 0.0
    %6721 = vmatprep.subr.mxu0 0.0
    %6722 = vmatpush2.xpose.msra.mxu0 0.0
    %6723 = vmatprep.subr.mxu0 0.0
    %6724 = vmatpush2.xpose.msra.mxu0 0.0
    %6725 = vmatprep.subr.mxu0 0.0
    %6726 = vmatpush2.xpose.msra.mxu0 0.0
    %6727 = vmatprep.subr.mxu0 0.0
    %6728 = vmatpush2.xpose.msra.mxu0 0.0
    %6729 = vmatprep.subr.mxu0 0.0
    %6730 = vmatpush2.xpose.msra.mxu0 0.0
    %6731 = vmatprep.subr.mxu0 0.0
    %6732 = vmatpush2.xpose.msra.mxu0 0.0
    %6733 = vmatprep.mubr.f32.mxu0 0.0
    %v6734 = vand.u32 %v5504, 4294901760
    %v6735 = vsub.f32 %v5504, %v6734
    %6736 = vmatmul.mubr.f32.gmra.mxu0 %v6735
    %v6737 = vpop.f32.mrf.mxu0
    %v6738 = vadd.f32 %v6654, %v6737
    %v6739 = vpop.f32.mrf.mxu0
    %6740 = vdwg.mxu0
    %6741 = vmatprep.subr.mxu0 0.0
    %6742 = vmatpush1.xpose.msra.mxu0 0.0
    %6743 = vmatprep.subr.mxu0 0.0
    %6744 = vmatpush1.xpose.msra.mxu0 0.0
    %6745 = vmatprep.subr.mxu0 0.0
    %6746 = vmatpush1.xpose.msra.mxu0 0.0
    %6747 = vmatprep.subr.mxu0 0.0
    %6748 = vmatpush1.xpose.msra.mxu0 0.0
    %6749 = vmatprep.subr.mxu0 0.0
    %6750 = vmatpush1.xpose.msra.mxu0 0.0
    %6751 = vmatprep.subr.mxu0 0.0
    %6752 = vmatpush1.xpose.msra.mxu0 0.0
    %6753 = vmatprep.subr.mxu0 0.0
    %6754 = vmatpush1.xpose.msra.mxu0 0.0
    %6755 = vmatprep.subr.mxu0 0.0
    %6756 = vmatpush1.xpose.msra.mxu0 0.0
    %6757 = vmatprep.subr.mxu0 0.0
    %6758 = vmatpush1.xpose.msra.mxu0 0.0
    %6759 = vmatprep.subr.mxu0 0.0
    %6760 = vmatpush1.xpose.msra.mxu0 0.0
    %6761 = vmatprep.subr.mxu0 0.0
    %v6762 = vand.u32 %v5618, 4294901760
    %6763 = vmatpush1.xpose.msra.mxu0 %v6762
    %6764 = vmatprep.subr.mxu0 0.0
    %v6765 = vand.u32 %v5615, 4294901760
    %6766 = vmatpush1.xpose.msra.mxu0 %v6765
    %6767 = vmatprep.subr.mxu0 0.0
    %v6768 = vand.u32 %v5612, 4294901760
    %6769 = vmatpush1.xpose.msra.mxu0 %v6768
    %6770 = vmatprep.subr.mxu0 0.0
    %v6771 = vand.u32 %v5609, 4294901760
    %6772 = vmatpush1.xpose.msra.mxu0 %v6771
    %6773 = vmatprep.subr.mxu0 0.0
    %v6774 = vand.u32 %v5606, 4294901760
    %6775 = vmatpush1.xpose.msra.mxu0 %v6774
    %6776 = vmatprep.subr.mxu0 0.0
    %v6777 = vand.u32 %v5603, 4294901760
    %6778 = vmatpush1.xpose.msra.mxu0 %v6777
    %6779 = vmatprep.subr.mxu0 0.0
    %6780 = vmatpush2.xpose.msra.mxu0 0.0
    %6781 = vmatprep.subr.mxu0 0.0
    %6782 = vmatpush2.xpose.msra.mxu0 0.0
    %6783 = vmatprep.subr.mxu0 0.0
    %6784 = vmatpush2.xpose.msra.mxu0 0.0
    %6785 = vmatprep.subr.mxu0 0.0
    %6786 = vmatpush2.xpose.msra.mxu0 0.0
    %6787 = vmatprep.subr.mxu0 0.0
    %6788 = vmatpush2.xpose.msra.mxu0 0.0
    %6789 = vmatprep.subr.mxu0 0.0
    %6790 = vmatpush2.xpose.msra.mxu0 0.0
    %6791 = vmatprep.subr.mxu0 0.0
    %6792 = vmatpush2.xpose.msra.mxu0 0.0
    %6793 = vmatprep.subr.mxu0 0.0
    %6794 = vmatpush2.xpose.msra.mxu0 0.0
    %6795 = vmatprep.subr.mxu0 0.0
    %6796 = vmatpush2.xpose.msra.mxu0 0.0
    %6797 = vmatprep.subr.mxu0 0.0
    %6798 = vmatpush2.xpose.msra.mxu0 0.0
    %6799 = vmatprep.subr.mxu0 0.0
    %6800 = vmatpush2.xpose.msra.mxu0 0.0
    %6801 = vmatprep.subr.mxu0 0.0
    %6802 = vmatpush2.xpose.msra.mxu0 0.0
    %6803 = vmatprep.subr.mxu0 0.0
    %6804 = vmatpush2.xpose.msra.mxu0 0.0
    %6805 = vmatprep.subr.mxu0 0.0
    %6806 = vmatpush2.xpose.msra.mxu0 0.0
    %6807 = vmatprep.subr.mxu0 0.0
    %6808 = vmatpush2.xpose.msra.mxu0 0.0
    %6809 = vmatprep.subr.mxu0 0.0
    %6810 = vmatpush2.xpose.msra.mxu0 0.0
    %6811 = vmatprep.mubr.f32.mxu0 0.0
    %v6812 = vand.u32 %v5504, 4294901760
    %v6813 = vsub.f32 %v5504, %v6812
    %v6814 = vand.u32 %v6813, 4294901760
    %6815 = vmatmul.mubr.f32.gmra.mxu0 %v6814
    %v6816 = vpop.f32.mrf.mxu0
    %v6817 = vadd.f32 %v6738, %v6816
    %v6818 = vpop.f32.mrf.mxu0
    %6819 = vdwg.mxu0
    %6820 = vmatprep.subr.mxu0 0.0
    %6821 = vmatpush1.xpose.msra.mxu0 0.0
    %6822 = vmatprep.subr.mxu0 0.0
    %6823 = vmatpush1.xpose.msra.mxu0 0.0
    %6824 = vmatprep.subr.mxu0 0.0
    %6825 = vmatpush1.xpose.msra.mxu0 0.0
    %6826 = vmatprep.subr.mxu0 0.0
    %6827 = vmatpush1.xpose.msra.mxu0 0.0
    %6828 = vmatprep.subr.mxu0 0.0
    %6829 = vmatpush1.xpose.msra.mxu0 0.0
    %6830 = vmatprep.subr.mxu0 0.0
    %6831 = vmatpush1.xpose.msra.mxu0 0.0
    %6832 = vmatprep.subr.mxu0 0.0
    %6833 = vmatpush1.xpose.msra.mxu0 0.0
    %6834 = vmatprep.subr.mxu0 0.0
    %6835 = vmatpush1.xpose.msra.mxu0 0.0
    %6836 = vmatprep.subr.mxu0 0.0
    %6837 = vmatpush1.xpose.msra.mxu0 0.0
    %6838 = vmatprep.subr.mxu0 0.0
    %6839 = vmatpush1.xpose.msra.mxu0 0.0
    %6840 = vmatprep.subr.mxu0 0.0
    %v6841 = vand.u32 %v5618, 4294901760
    %v6842 = vsub.f32 %v5618, %v6841
    %v6843 = vand.u32 %v6842, 4294901760
    %6844 = vmatpush1.xpose.msra.mxu0 %v6843
    %6845 = vmatprep.subr.mxu0 0.0
    %v6846 = vand.u32 %v5615, 4294901760
    %v6847 = vsub.f32 %v5615, %v6846
    %v6848 = vand.u32 %v6847, 4294901760
    %6849 = vmatpush1.xpose.msra.mxu0 %v6848
    %6850 = vmatprep.subr.mxu0 0.0
    %v6851 = vand.u32 %v5612, 4294901760
    %v6852 = vsub.f32 %v5612, %v6851
    %v6853 = vand.u32 %v6852, 4294901760
    %6854 = vmatpush1.xpose.msra.mxu0 %v6853
    %6855 = vmatprep.subr.mxu0 0.0
    %v6856 = vand.u32 %v5609, 4294901760
    %v6857 = vsub.f32 %v5609, %v6856
    %v6858 = vand.u32 %v6857, 4294901760
    %6859 = vmatpush1.xpose.msra.mxu0 %v6858
    %6860 = vmatprep.subr.mxu0 0.0
    %v6861 = vand.u32 %v5606, 4294901760
    %v6862 = vsub.f32 %v5606, %v6861
    %v6863 = vand.u32 %v6862, 4294901760
    %6864 = vmatpush1.xpose.msra.mxu0 %v6863
    %6865 = vmatprep.subr.mxu0 0.0
    %v6866 = vand.u32 %v5603, 4294901760
    %v6867 = vsub.f32 %v5603, %v6866
    %v6868 = vand.u32 %v6867, 4294901760
    %6869 = vmatpush1.xpose.msra.mxu0 %v6868
    %6870 = vmatprep.subr.mxu0 0.0
    %6871 = vmatpush2.xpose.msra.mxu0 0.0
    %6872 = vmatprep.subr.mxu0 0.0
    %6873 = vmatpush2.xpose.msra.mxu0 0.0
    %6874 = vmatprep.subr.mxu0 0.0
    %6875 = vmatpush2.xpose.msra.mxu0 0.0
    %6876 = vmatprep.subr.mxu0 0.0
    %6877 = vmatpush2.xpose.msra.mxu0 0.0
    %6878 = vmatprep.subr.mxu0 0.0
    %6879 = vmatpush2.xpose.msra.mxu0 0.0
    %6880 = vmatprep.subr.mxu0 0.0
    %6881 = vmatpush2.xpose.msra.mxu0 0.0
    %6882 = vmatprep.subr.mxu0 0.0
    %6883 = vmatpush2.xpose.msra.mxu0 0.0
    %6884 = vmatprep.subr.mxu0 0.0
    %6885 = vmatpush2.xpose.msra.mxu0 0.0
    %6886 = vmatprep.subr.mxu0 0.0
    %6887 = vmatpush2.xpose.msra.mxu0 0.0
    %6888 = vmatprep.subr.mxu0 0.0
    %6889 = vmatpush2.xpose.msra.mxu0 0.0
    %6890 = vmatprep.subr.mxu0 0.0
    %6891 = vmatpush2.xpose.msra.mxu0 0.0
    %6892 = vmatprep.subr.mxu0 0.0
    %6893 = vmatpush2.xpose.msra.mxu0 0.0
    %6894 = vmatprep.subr.mxu0 0.0
    %6895 = vmatpush2.xpose.msra.mxu0 0.0
    %6896 = vmatprep.subr.mxu0 0.0
    %6897 = vmatpush2.xpose.msra.mxu0 0.0
    %6898 = vmatprep.subr.mxu0 0.0
    %6899 = vmatpush2.xpose.msra.mxu0 0.0
    %6900 = vmatprep.subr.mxu0 0.0
    %6901 = vmatpush2.xpose.msra.mxu0 0.0
    %6902 = vmatprep.mubr.f32.mxu0 0.0
    %v6903 = vand.u32 %v5504, 4294901760
    %6904 = vmatmul.mubr.f32.gmra.mxu0 %v6903
    %v6905 = vpop.f32.mrf.mxu0
    %v6906 = vadd.f32 %v6817, %v6905
    %v6907 = vpop.f32.mrf.mxu0
    %6908 = vdwg.mxu0
    %6909 = vmatprep.subr.mxu0 0.0
    %6910 = vmatpush1.xpose.msra.mxu0 0.0
    %6911 = vmatprep.subr.mxu0 0.0
    %6912 = vmatpush1.xpose.msra.mxu0 0.0
    %6913 = vmatprep.subr.mxu0 0.0
    %6914 = vmatpush1.xpose.msra.mxu0 0.0
    %6915 = vmatprep.subr.mxu0 0.0
    %6916 = vmatpush1.xpose.msra.mxu0 0.0
    %6917 = vmatprep.subr.mxu0 0.0
    %6918 = vmatpush1.xpose.msra.mxu0 0.0
    %6919 = vmatprep.subr.mxu0 0.0
    %6920 = vmatpush1.xpose.msra.mxu0 0.0
    %6921 = vmatprep.subr.mxu0 0.0
    %6922 = vmatpush1.xpose.msra.mxu0 0.0
    %6923 = vmatprep.subr.mxu0 0.0
    %6924 = vmatpush1.xpose.msra.mxu0 0.0
    %6925 = vmatprep.subr.mxu0 0.0
    %6926 = vmatpush1.xpose.msra.mxu0 0.0
    %6927 = vmatprep.subr.mxu0 0.0
    %6928 = vmatpush1.xpose.msra.mxu0 0.0
    %6929 = vmatprep.subr.mxu0 0.0
    %v6930 = vand.u32 %v5618, 4294901760
    %6931 = vmatpush1.xpose.msra.mxu0 %v6930
    %6932 = vmatprep.subr.mxu0 0.0
    %v6933 = vand.u32 %v5615, 4294901760
    %6934 = vmatpush1.xpose.msra.mxu0 %v6933
    %6935 = vmatprep.subr.mxu0 0.0
    %v6936 = vand.u32 %v5612, 4294901760
    %6937 = vmatpush1.xpose.msra.mxu0 %v6936
    %6938 = vmatprep.subr.mxu0 0.0
    %v6939 = vand.u32 %v5609, 4294901760
    %6940 = vmatpush1.xpose.msra.mxu0 %v6939
    %6941 = vmatprep.subr.mxu0 0.0
    %v6942 = vand.u32 %v5606, 4294901760
    %6943 = vmatpush1.xpose.msra.mxu0 %v6942
    %6944 = vmatprep.subr.mxu0 0.0
    %v6945 = vand.u32 %v5603, 4294901760
    %6946 = vmatpush1.xpose.msra.mxu0 %v6945
    %6947 = vmatprep.subr.mxu0 0.0
    %6948 = vmatpush2.xpose.msra.mxu0 0.0
    %6949 = vmatprep.subr.mxu0 0.0
    %6950 = vmatpush2.xpose.msra.mxu0 0.0
    %6951 = vmatprep.subr.mxu0 0.0
    %6952 = vmatpush2.xpose.msra.mxu0 0.0
    %6953 = vmatprep.subr.mxu0 0.0
    %6954 = vmatpush2.xpose.msra.mxu0 0.0
    %6955 = vmatprep.subr.mxu0 0.0
    %6956 = vmatpush2.xpose.msra.mxu0 0.0
    %6957 = vmatprep.subr.mxu0 0.0
    %6958 = vmatpush2.xpose.msra.mxu0 0.0
    %6959 = vmatprep.subr.mxu0 0.0
    %6960 = vmatpush2.xpose.msra.mxu0 0.0
    %6961 = vmatprep.subr.mxu0 0.0
    %6962 = vmatpush2.xpose.msra.mxu0 0.0
    %6963 = vmatprep.subr.mxu0 0.0
    %6964 = vmatpush2.xpose.msra.mxu0 0.0
    %6965 = vmatprep.subr.mxu0 0.0
    %6966 = vmatpush2.xpose.msra.mxu0 0.0
    %6967 = vmatprep.subr.mxu0 0.0
    %6968 = vmatpush2.xpose.msra.mxu0 0.0
    %6969 = vmatprep.subr.mxu0 0.0
    %6970 = vmatpush2.xpose.msra.mxu0 0.0
    %6971 = vmatprep.subr.mxu0 0.0
    %6972 = vmatpush2.xpose.msra.mxu0 0.0
    %6973 = vmatprep.subr.mxu0 0.0
    %6974 = vmatpush2.xpose.msra.mxu0 0.0
    %6975 = vmatprep.subr.mxu0 0.0
    %6976 = vmatpush2.xpose.msra.mxu0 0.0
    %6977 = vmatprep.subr.mxu0 0.0
    %6978 = vmatpush2.xpose.msra.mxu0 0.0
    %6979 = vmatprep.mubr.f32.mxu0 0.0
    %v6980 = vand.u32 %v5504, 4294901760
    %6981 = vmatmul.mubr.f32.gmra.mxu0 %v6980
    %v6982 = vpop.f32.mrf.mxu0
    %v6983 = vadd.f32 %v6906, %v6982
    %v6984 = vpop.f32.mrf.mxu0
    %6985 = vdwg.mxu0
    %6986 = vst [vmem:[#allocation2] sm:$0xff] %v6471
    %6987 = vst [vmem:[#allocation2 + $0x8] sm:$0xff] %v6473
    %vm6988 = vcmask 392192
    %6989 = vst.msk [vmem:[#allocation2 + $0x10] sm:$0xff] %vm6988, %v6983
    // Predicated region
    $region34: #{tpu_custom_call.1} parent=1 // pred_check
      _
    $region35: #{tpu_custom_call.1} parent=1 // pred_check_branch
      %6991 = sbr.rel (0) target = $region37
    $region36: #{tpu_custom_call.1} parent=1 // pred_region
      %s6993 = ssub.s32 384, 384
      %6994 = vsyncadd [#allocation3], %s6993
      %s6996 = sshll.u32 [#allocation2], 4
      %s6997 = int_to_ptr.vmem [resolvable:$true] %s6996
      %6999 = dma.vmem_to_hbm [thread:$0]  %s6997, 384, %s8, [#allocation3]
    $region37: #{tpu_custom_call.1} parent=1 // pred_fallthru
      _
    // Predicated region
    $region38: #{tpu_custom_call.1} parent=1 // pred_check
      _
    $region39: #{tpu_custom_call.1} parent=1 // pred_check_branch
      %7001 = sbr.rel (0) target = $region41
    $region40: #{tpu_custom_call.1} parent=1 // pred_region
      %7002 = dma.done [#allocation3], 384
    $region41: #{tpu_custom_call.1} parent=1 // pred_fallthru
      _
    %7003 = vsyncpa [#allocation3], 1

</llo_original>
